<compile_context>
chip_gen: v7x
topology: tpu7x:2x2x1
jax: 0.10.0
libtpu: 0.0.40
codegen_flags: <defaults>
</compile_context>

<pallas_src>
import math

import jax
import jax.numpy as jnp
from jax.experimental import pallas as pl
from jax.experimental.pallas import tpu as pltpu

K = 3  # kernel_size (== stride for nn.MaxPool2d(kernel_size=3))


def _ceil_out(size: int) -> int:
    """Output extent for MaxPool2d(kernel_size=3, stride=3, ceil_mode=True)."""
    o = math.ceil((size - K) / K) + 1
    if (o - 1) * K >= size:  # last window must start inside the input
        o -= 1
    return o


def _maxpool_kernel(x_ref, o_ref):
    # x_ref: (B, H, W) batch of N*C slices; o_ref: (B, oH, oW)
    B, H, W = x_ref.shape
    _, oH, oW = o_ref.shape
    fill = float(jnp.finfo(jnp.float32).min)  # dtype-safe identity (not -inf)

    # Stride-3 de-interleave along the lane (W) axis as 0/1 selection matmuls:
    # sel_k[w, j] = 1.0  iff  w == K*j + k.  Built from iotas and hoisted out
    # of the row loop so the broadcasts materialize once per grid step.
    row = jax.lax.broadcasted_iota(jnp.int32, (W, oW), 0)
    col = jax.lax.broadcasted_iota(jnp.int32, (W, oW), 1)
    sels = [jnp.where(row == K * col + k, 1.0, 0.0).astype(jnp.float32)
            for k in range(K)]
    if W % K != 0:  # ragged last column window (ceil_mode along W)
        j_idx = jax.lax.broadcasted_iota(jnp.int32, (B, oW), 1)

    for i in range(oH):  # static unroll over output rows
        hi = min(K * i + K, H)  # ceil_mode: last row window may be 1-2 rows
        rows = x_ref[:, K * i:hi, :].astype(jnp.float32)  # (B, <=K, W)
        m = jnp.max(rows, axis=1)                         # (B, W) row-pooled
        out = None
        for k in range(K):
            # g[:, j] == m[:, K*j + k] (exact one-hot gather on the MXU)
            g = jnp.dot(m, sels[k],
                        precision=jax.lax.Precision.HIGHEST,
                        preferred_element_type=jnp.float32)  # (B, oW)
            if K * (oW - 1) + k >= W:  # tap k of the last column is OOB
                g = jnp.where(K * j_idx + k < W, g, fill)
            out = g if out is None else jnp.maximum(out, g)
        o_ref[:, i, :] = out.astype(o_ref.dtype)


def maxpool2d_ceil(x: jax.Array) -> jax.Array:
    """MaxPool2d(kernel_size=3, ceil_mode=True) on an NCHW tensor."""
    # TODO(synk): integer dtypes would need an exact (non-MXU) column gather.
    N, C, H, W = x.shape
    oH, oW = _ceil_out(H), _ceil_out(W)
    NC = N * C
    x3 = x.reshape(NC, H, W)  # free reshape: no data movement

    # Batch N*C slices per grid step so double-buffered input blocks are ~MiB
    # sized; keep >= 2 grid steps so both v7x TensorCores get work.
    itemsize = x.dtype.itemsize
    target = 2 * 1024 * 1024
    B = max(1, min(NC, target // max(1, H * W * itemsize)))
    if B >= 8:
        B = (B // 8) * 8  # sublane-friendly batch
    if NC >= 2:
        B = min(B, -(-NC // 2))  # ensure at least 2 grid steps
    grid = (pl.cdiv(NC, B),)

    cost = pl.CostEstimate(
        flops=int(NC * oH * oW * (9 + 2 * K * W)),
        transcendentals=0,
        bytes_accessed=int(x.size * itemsize + NC * oH * oW * itemsize),
    )

    out = pl.pallas_call(
        _maxpool_kernel,
        out_shape=jax.ShapeDtypeStruct((NC, oH, oW), x.dtype),
        grid=grid,
        in_specs=[pl.BlockSpec((B, H, W), lambda n: (n, 0, 0))],
        out_specs=pl.BlockSpec((B, oH, oW), lambda n: (n, 0, 0)),
        compiler_params=pltpu.CompilerParams(
            dimension_semantics=("parallel",),
            vmem_limit_bytes=48 * 1024 * 1024,
        ),
        cost_estimate=cost,
    )(x3)

    return out.reshape(N, C, oH, oW)


def _reference_maxpool(x: jax.Array) -> jax.Array:
    """Pure-JAX reference (lax.reduce_window) reproducing ceil_mode=True."""
    N, C, H, W = x.shape
    oH, oW = _ceil_out(H), _ceil_out(W)
    pad_h, pad_w = oH * K - H, oW * K - W
    return jax.lax.reduce_window(
        x, -jnp.inf, jax.lax.max,
        window_dimensions=(1, 1, K, K),
        window_strides=(1, 1, K, K),
        padding=((0, 0), (0, 0), (0, pad_h), (0, pad_w)),
    )


if __name__ == "__main__":
    key = jax.random.PRNGKey(0)
    x = jax.random.normal(key, (2, 4, 16, 16), dtype=jnp.float32)

    y = jax.block_until_ready(maxpool2d_ceil(x))

    y_ref = _reference_maxpool(x)
    assert y.shape == (2, 4, 6, 6), y.shape
    assert jnp.allclose(y, y_ref, rtol=1e-5, atol=1e-5), "Pallas maxpool mismatch"

    print("KERNEL_OK")
</pallas_src>

<mosaic_0001>
module attributes {stable_mosaic.version = 11 : i64} {
  func.func @_maxpool_kernel(%arg0: i32, %arg1: memref<4x16x16xf32, #tpu.memory_space<vmem>>, %arg2: memref<4x6x6xf32, #tpu.memory_space<vmem>>) attributes {dimension_semantics = [#tpu.dimension_semantics<parallel>], iteration_bounds = array<i64: 2>, scalar_prefetch = 0 : i64, scratch_operands = 0 : i64, tpu.core_type = #tpu.core_type<tc>, window_params = [{transform_indices = @transform_0, window_bounds = array<i64: 4, 16, 16>}, {transform_indices = @transform_1, window_bounds = array<i64: 4, 6, 6>}]} {
    %0 = tpu.iota {dimensions = array<i32: 0>} : vector<16x6xi32>
    %1 = tpu.iota {dimensions = array<i32: 1>} : vector<16x6xi32>
    %c3_i32 = arith.constant 3 : i32
    %2 = vector.broadcast %c3_i32 : i32 to vector<16x6xi32>
    %3 = arith.muli %2, %1 : vector<16x6xi32>
    %c0_i32 = arith.constant 0 : i32
    %4 = vector.broadcast %c0_i32 : i32 to vector<16x6xi32>
    %5 = arith.addi %3, %4 : vector<16x6xi32>
    %6 = arith.cmpi eq, %0, %5 : vector<16x6xi32>
    %cst = arith.constant 1.000000e+00 : f32
    %cst_0 = arith.constant 0.000000e+00 : f32
    %7 = vector.broadcast %cst : f32 to vector<16x6xf32>
    %8 = vector.broadcast %cst_0 : f32 to vector<16x6xf32>
    %9 = arith.select %6, %7, %8 : vector<16x6xi1>, vector<16x6xf32>
    %c3_i32_1 = arith.constant 3 : i32
    %10 = vector.broadcast %c3_i32_1 : i32 to vector<16x6xi32>
    %11 = arith.muli %10, %1 : vector<16x6xi32>
    %c1_i32 = arith.constant 1 : i32
    %12 = vector.broadcast %c1_i32 : i32 to vector<16x6xi32>
    %13 = arith.addi %11, %12 : vector<16x6xi32>
    %14 = arith.cmpi eq, %0, %13 : vector<16x6xi32>
    %cst_2 = arith.constant 1.000000e+00 : f32
    %cst_3 = arith.constant 0.000000e+00 : f32
    %15 = vector.broadcast %cst_2 : f32 to vector<16x6xf32>
    %16 = vector.broadcast %cst_3 : f32 to vector<16x6xf32>
    %17 = arith.select %14, %15, %16 : vector<16x6xi1>, vector<16x6xf32>
    %c3_i32_4 = arith.constant 3 : i32
    %18 = vector.broadcast %c3_i32_4 : i32 to vector<16x6xi32>
    %19 = arith.muli %18, %1 : vector<16x6xi32>
    %c2_i32 = arith.constant 2 : i32
    %20 = vector.broadcast %c2_i32 : i32 to vector<16x6xi32>
    %21 = arith.addi %19, %20 : vector<16x6xi32>
    %22 = arith.cmpi eq, %0, %21 : vector<16x6xi32>
    %cst_5 = arith.constant 1.000000e+00 : f32
    %cst_6 = arith.constant 0.000000e+00 : f32
    %23 = vector.broadcast %cst_5 : f32 to vector<16x6xf32>
    %24 = vector.broadcast %cst_6 : f32 to vector<16x6xf32>
    %25 = arith.select %22, %23, %24 : vector<16x6xi1>, vector<16x6xf32>
    %26 = tpu.iota {dimensions = array<i32: 1>} : vector<4x6xi32>
    %c0 = arith.constant 0 : index
    %c0_7 = arith.constant 0 : index
    %c0_8 = arith.constant 0 : index
    %27 = vector.load %arg1[%c0, %c0_7, %c0_8] : memref<4x16x16xf32, #tpu.memory_space<vmem>>, vector<4x3x16xf32>
    %cst_9 = arith.constant dense<0xFF800000> : vector<4x16xf32>
    %28 = vector.multi_reduction <maximumf>, %27, %cst_9 [1] : vector<4x3x16xf32> to vector<4x16xf32>
    %cst_10 = arith.constant dense<0.000000e+00> : vector<4x6xf32>
    %29 = tpu.matmul %28, %9, %cst_10 {dimension_numbers = #tpu.dot_dimension_numbers<[1], [0], [0], [1], [0, 0, 1, 1], [], []>, precision = #tpu.contract_precision<fp32>} : vector<4x16xf32>, vector<16x6xf32>, vector<4x6xf32> -> vector<4x6xf32>
    %cst_11 = arith.constant dense<0.000000e+00> : vector<4x6xf32>
    %30 = tpu.matmul %28, %17, %cst_11 {dimension_numbers = #tpu.dot_dimension_numbers<[1], [0], [0], [1], [0, 0, 1, 1], [], []>, precision = #tpu.contract_precision<fp32>} : vector<4x16xf32>, vector<16x6xf32>, vector<4x6xf32> -> vector<4x6xf32>
    %c3_i32_12 = arith.constant 3 : i32
    %31 = vector.broadcast %c3_i32_12 : i32 to vector<4x6xi32>
    %32 = arith.muli %31, %26 : vector<4x6xi32>
    %c1_i32_13 = arith.constant 1 : i32
    %33 = vector.broadcast %c1_i32_13 : i32 to vector<4x6xi32>
    %34 = arith.addi %32, %33 : vector<4x6xi32>
    %c16_i32 = arith.constant 16 : i32
    %35 = vector.broadcast %c16_i32 : i32 to vector<4x6xi32>
    %36 = arith.cmpi slt, %34, %35 : vector<4x6xi32>
    %cst_14 = arith.constant -3.40282347E+38 : f32
    %37 = vector.broadcast %cst_14 : f32 to vector<4x6xf32>
    %38 = arith.select %36, %30, %37 : vector<4x6xi1>, vector<4x6xf32>
    %39 = arith.maximumf %29, %38 : vector<4x6xf32>
    %cst_15 = arith.constant dense<0.000000e+00> : vector<4x6xf32>
    %40 = tpu.matmul %28, %25, %cst_15 {dimension_numbers = #tpu.dot_dimension_numbers<[1], [0], [0], [1], [0, 0, 1, 1], [], []>, precision = #tpu.contract_precision<fp32>} : vector<4x16xf32>, vector<16x6xf32>, vector<4x6xf32> -> vector<4x6xf32>
    %c3_i32_16 = arith.constant 3 : i32
    %41 = vector.broadcast %c3_i32_16 : i32 to vector<4x6xi32>
    %42 = arith.muli %41, %26 : vector<4x6xi32>
    %c2_i32_17 = arith.constant 2 : i32
    %43 = vector.broadcast %c2_i32_17 : i32 to vector<4x6xi32>
    %44 = arith.addi %42, %43 : vector<4x6xi32>
    %c16_i32_18 = arith.constant 16 : i32
    %45 = vector.broadcast %c16_i32_18 : i32 to vector<4x6xi32>
    %46 = arith.cmpi slt, %44, %45 : vector<4x6xi32>
    %cst_19 = arith.constant -3.40282347E+38 : f32
    %47 = vector.broadcast %cst_19 : f32 to vector<4x6xf32>
    %48 = arith.select %46, %40, %47 : vector<4x6xi1>, vector<4x6xf32>
    %49 = arith.maximumf %39, %48 : vector<4x6xf32>
    %c0_20 = arith.constant 0 : index
    %c0_21 = arith.constant 0 : index
    %c0_22 = arith.constant 0 : index
    %50 = vector.load %arg2[%c0_20, %c0_21, %c0_22] : memref<4x6x6xf32, #tpu.memory_space<vmem>>, vector<4x1x6xf32>
    %51 = vector.shape_cast %50 : vector<4x1x6xf32> to vector<4x6xf32>
    %52 = vector.shape_cast %49 : vector<4x6xf32> to vector<4x1x6xf32>
    tpu.vector_store %arg2[%c0_20, %c0_21, %c0_22], %52 {strides = array<i32>} : memref<4x6x6xf32, #tpu.memory_space<vmem>>, vector<4x1x6xf32>,
    %c0_23 = arith.constant 0 : index
    %c3 = arith.constant 3 : index
    %c0_24 = arith.constant 0 : index
    %53 = vector.load %arg1[%c0_23, %c3, %c0_24] : memref<4x16x16xf32, #tpu.memory_space<vmem>>, vector<4x3x16xf32>
    %cst_25 = arith.constant dense<0xFF800000> : vector<4x16xf32>
    %54 = vector.multi_reduction <maximumf>, %53, %cst_25 [1] : vector<4x3x16xf32> to vector<4x16xf32>
    %cst_26 = arith.constant dense<0.000000e+00> : vector<4x6xf32>
    %55 = tpu.matmul %54, %9, %cst_26 {dimension_numbers = #tpu.dot_dimension_numbers<[1], [0], [0], [1], [0, 0, 1, 1], [], []>, precision = #tpu.contract_precision<fp32>} : vector<4x16xf32>, vector<16x6xf32>, vector<4x6xf32> -> vector<4x6xf32>
    %cst_27 = arith.constant dense<0.000000e+00> : vector<4x6xf32>
    %56 = tpu.matmul %54, %17, %cst_27 {dimension_numbers = #tpu.dot_dimension_numbers<[1], [0], [0], [1], [0, 0, 1, 1], [], []>, precision = #tpu.contract_precision<fp32>} : vector<4x16xf32>, vector<16x6xf32>, vector<4x6xf32> -> vector<4x6xf32>
    %c3_i32_28 = arith.constant 3 : i32
    %57 = vector.broadcast %c3_i32_28 : i32 to vector<4x6xi32>
    %58 = arith.muli %57, %26 : vector<4x6xi32>
    %c1_i32_29 = arith.constant 1 : i32
    %59 = vector.broadcast %c1_i32_29 : i32 to vector<4x6xi32>
    %60 = arith.addi %58, %59 : vector<4x6xi32>
    %c16_i32_30 = arith.constant 16 : i32
    %61 = vector.broadcast %c16_i32_30 : i32 to vector<4x6xi32>
    %62 = arith.cmpi slt, %60, %61 : vector<4x6xi32>
    %cst_31 = arith.constant -3.40282347E+38 : f32
    %63 = vector.broadcast %cst_31 : f32 to vector<4x6xf32>
    %64 = arith.select %62, %56, %63 : vector<4x6xi1>, vector<4x6xf32>
    %65 = arith.maximumf %55, %64 : vector<4x6xf32>
    %cst_32 = arith.constant dense<0.000000e+00> : vector<4x6xf32>
    %66 = tpu.matmul %54, %25, %cst_32 {dimension_numbers = #tpu.dot_dimension_numbers<[1], [0], [0], [1], [0, 0, 1, 1], [], []>, precision = #tpu.contract_precision<fp32>} : vector<4x16xf32>, vector<16x6xf32>, vector<4x6xf32> -> vector<4x6xf32>
    %c3_i32_33 = arith.constant 3 : i32
    %67 = vector.broadcast %c3_i32_33 : i32 to vector<4x6xi32>
    %68 = arith.muli %67, %26 : vector<4x6xi32>
    %c2_i32_34 = arith.constant 2 : i32
    %69 = vector.broadcast %c2_i32_34 : i32 to vector<4x6xi32>
    %70 = arith.addi %68, %69 : vector<4x6xi32>
    %c16_i32_35 = arith.constant 16 : i32
    %71 = vector.broadcast %c16_i32_35 : i32 to vector<4x6xi32>
    %72 = arith.cmpi slt, %70, %71 : vector<4x6xi32>
    %cst_36 = arith.constant -3.40282347E+38 : f32
    %73 = vector.broadcast %cst_36 : f32 to vector<4x6xf32>
    %74 = arith.select %72, %66, %73 : vector<4x6xi1>, vector<4x6xf32>
    %75 = arith.maximumf %65, %74 : vector<4x6xf32>
    %c0_37 = arith.constant 0 : index
    %c1 = arith.constant 1 : index
    %c0_38 = arith.constant 0 : index
    %76 = vector.load %arg2[%c0_37, %c1, %c0_38] : memref<4x6x6xf32, #tpu.memory_space<vmem>>, vector<4x1x6xf32>
    %77 = vector.shape_cast %76 : vector<4x1x6xf32> to vector<4x6xf32>
    %78 = vector.shape_cast %75 : vector<4x6xf32> to vector<4x1x6xf32>
    tpu.vector_store %arg2[%c0_37, %c1, %c0_38], %78 {strides = array<i32>} : memref<4x6x6xf32, #tpu.memory_space<vmem>>, vector<4x1x6xf32>,
    %c0_39 = arith.constant 0 : index
    %c6 = arith.constant 6 : index
    %c0_40 = arith.constant 0 : index
    %79 = vector.load %arg1[%c0_39, %c6, %c0_40] : memref<4x16x16xf32, #tpu.memory_space<vmem>>, vector<4x3x16xf32>
    %cst_41 = arith.constant dense<0xFF800000> : vector<4x16xf32>
    %80 = vector.multi_reduction <maximumf>, %79, %cst_41 [1] : vector<4x3x16xf32> to vector<4x16xf32>
    %cst_42 = arith.constant dense<0.000000e+00> : vector<4x6xf32>
    %81 = tpu.matmul %80, %9, %cst_42 {dimension_numbers = #tpu.dot_dimension_numbers<[1], [0], [0], [1], [0, 0, 1, 1], [], []>, precision = #tpu.contract_precision<fp32>} : vector<4x16xf32>, vector<16x6xf32>, vector<4x6xf32> -> vector<4x6xf32>
    %cst_43 = arith.constant dense<0.000000e+00> : vector<4x6xf32>
    %82 = tpu.matmul %80, %17, %cst_43 {dimension_numbers = #tpu.dot_dimension_numbers<[1], [0], [0], [1], [0, 0, 1, 1], [], []>, precision = #tpu.contract_precision<fp32>} : vector<4x16xf32>, vector<16x6xf32>, vector<4x6xf32> -> vector<4x6xf32>
    %c3_i32_44 = arith.constant 3 : i32
    %83 = vector.broadcast %c3_i32_44 : i32 to vector<4x6xi32>
    %84 = arith.muli %83, %26 : vector<4x6xi32>
    %c1_i32_45 = arith.constant 1 : i32
    %85 = vector.broadcast %c1_i32_45 : i32 to vector<4x6xi32>
    %86 = arith.addi %84, %85 : vector<4x6xi32>
    %c16_i32_46 = arith.constant 16 : i32
    %87 = vector.broadcast %c16_i32_46 : i32 to vector<4x6xi32>
    %88 = arith.cmpi slt, %86, %87 : vector<4x6xi32>
    %cst_47 = arith.constant -3.40282347E+38 : f32
    %89 = vector.broadcast %cst_47 : f32 to vector<4x6xf32>
    %90 = arith.select %88, %82, %89 : vector<4x6xi1>, vector<4x6xf32>
    %91 = arith.maximumf %81, %90 : vector<4x6xf32>
    %cst_48 = arith.constant dense<0.000000e+00> : vector<4x6xf32>
    %92 = tpu.matmul %80, %25, %cst_48 {dimension_numbers = #tpu.dot_dimension_numbers<[1], [0], [0], [1], [0, 0, 1, 1], [], []>, precision = #tpu.contract_precision<fp32>} : vector<4x16xf32>, vector<16x6xf32>, vector<4x6xf32> -> vector<4x6xf32>
    %c3_i32_49 = arith.constant 3 : i32
    %93 = vector.broadcast %c3_i32_49 : i32 to vector<4x6xi32>
    %94 = arith.muli %93, %26 : vector<4x6xi32>
    %c2_i32_50 = arith.constant 2 : i32
    %95 = vector.broadcast %c2_i32_50 : i32 to vector<4x6xi32>
    %96 = arith.addi %94, %95 : vector<4x6xi32>
    %c16_i32_51 = arith.constant 16 : i32
    %97 = vector.broadcast %c16_i32_51 : i32 to vector<4x6xi32>
    %98 = arith.cmpi slt, %96, %97 : vector<4x6xi32>
    %cst_52 = arith.constant -3.40282347E+38 : f32
    %99 = vector.broadcast %cst_52 : f32 to vector<4x6xf32>
    %100 = arith.select %98, %92, %99 : vector<4x6xi1>, vector<4x6xf32>
    %101 = arith.maximumf %91, %100 : vector<4x6xf32>
    %c0_53 = arith.constant 0 : index
    %c2 = arith.constant 2 : index
    %c0_54 = arith.constant 0 : index
    %102 = vector.load %arg2[%c0_53, %c2, %c0_54] : memref<4x6x6xf32, #tpu.memory_space<vmem>>, vector<4x1x6xf32>
    %103 = vector.shape_cast %102 : vector<4x1x6xf32> to vector<4x6xf32>
    %104 = vector.shape_cast %101 : vector<4x6xf32> to vector<4x1x6xf32>
    tpu.vector_store %arg2[%c0_53, %c2, %c0_54], %104 {strides = array<i32>} : memref<4x6x6xf32, #tpu.memory_space<vmem>>, vector<4x1x6xf32>,
    %c0_55 = arith.constant 0 : index
    %c9 = arith.constant 9 : index
    %c0_56 = arith.constant 0 : index
    %105 = vector.load %arg1[%c0_55, %c9, %c0_56] : memref<4x16x16xf32, #tpu.memory_space<vmem>>, vector<4x3x16xf32>
    %cst_57 = arith.constant dense<0xFF800000> : vector<4x16xf32>
    %106 = vector.multi_reduction <maximumf>, %105, %cst_57 [1] : vector<4x3x16xf32> to vector<4x16xf32>
    %cst_58 = arith.constant dense<0.000000e+00> : vector<4x6xf32>
    %107 = tpu.matmul %106, %9, %cst_58 {dimension_numbers = #tpu.dot_dimension_numbers<[1], [0], [0], [1], [0, 0, 1, 1], [], []>, precision = #tpu.contract_precision<fp32>} : vector<4x16xf32>, vector<16x6xf32>, vector<4x6xf32> -> vector<4x6xf32>
    %cst_59 = arith.constant dense<0.000000e+00> : vector<4x6xf32>
    %108 = tpu.matmul %106, %17, %cst_59 {dimension_numbers = #tpu.dot_dimension_numbers<[1], [0], [0], [1], [0, 0, 1, 1], [], []>, precision = #tpu.contract_precision<fp32>} : vector<4x16xf32>, vector<16x6xf32>, vector<4x6xf32> -> vector<4x6xf32>
    %c3_i32_60 = arith.constant 3 : i32
    %109 = vector.broadcast %c3_i32_60 : i32 to vector<4x6xi32>
    %110 = arith.muli %109, %26 : vector<4x6xi32>
    %c1_i32_61 = arith.constant 1 : i32
    %111 = vector.broadcast %c1_i32_61 : i32 to vector<4x6xi32>
    %112 = arith.addi %110, %111 : vector<4x6xi32>
    %c16_i32_62 = arith.constant 16 : i32
    %113 = vector.broadcast %c16_i32_62 : i32 to vector<4x6xi32>
    %114 = arith.cmpi slt, %112, %113 : vector<4x6xi32>
    %cst_63 = arith.constant -3.40282347E+38 : f32
    %115 = vector.broadcast %cst_63 : f32 to vector<4x6xf32>
    %116 = arith.select %114, %108, %115 : vector<4x6xi1>, vector<4x6xf32>
    %117 = arith.maximumf %107, %116 : vector<4x6xf32>
    %cst_64 = arith.constant dense<0.000000e+00> : vector<4x6xf32>
    %118 = tpu.matmul %106, %25, %cst_64 {dimension_numbers = #tpu.dot_dimension_numbers<[1], [0], [0], [1], [0, 0, 1, 1], [], []>, precision = #tpu.contract_precision<fp32>} : vector<4x16xf32>, vector<16x6xf32>, vector<4x6xf32> -> vector<4x6xf32>
    %c3_i32_65 = arith.constant 3 : i32
    %119 = vector.broadcast %c3_i32_65 : i32 to vector<4x6xi32>
    %120 = arith.muli %119, %26 : vector<4x6xi32>
    %c2_i32_66 = arith.constant 2 : i32
    %121 = vector.broadcast %c2_i32_66 : i32 to vector<4x6xi32>
    %122 = arith.addi %120, %121 : vector<4x6xi32>
    %c16_i32_67 = arith.constant 16 : i32
    %123 = vector.broadcast %c16_i32_67 : i32 to vector<4x6xi32>
    %124 = arith.cmpi slt, %122, %123 : vector<4x6xi32>
    %cst_68 = arith.constant -3.40282347E+38 : f32
    %125 = vector.broadcast %cst_68 : f32 to vector<4x6xf32>
    %126 = arith.select %124, %118, %125 : vector<4x6xi1>, vector<4x6xf32>
    %127 = arith.maximumf %117, %126 : vector<4x6xf32>
    %c0_69 = arith.constant 0 : index
    %c3_70 = arith.constant 3 : index
    %c0_71 = arith.constant 0 : index
    %128 = vector.load %arg2[%c0_69, %c3_70, %c0_71] : memref<4x6x6xf32, #tpu.memory_space<vmem>>, vector<4x1x6xf32>
    %129 = vector.shape_cast %128 : vector<4x1x6xf32> to vector<4x6xf32>
    %130 = vector.shape_cast %127 : vector<4x6xf32> to vector<4x1x6xf32>
    tpu.vector_store %arg2[%c0_69, %c3_70, %c0_71], %130 {strides = array<i32>} : memref<4x6x6xf32, #tpu.memory_space<vmem>>, vector<4x1x6xf32>,
    %c0_72 = arith.constant 0 : index
    %c12 = arith.constant 12 : index
    %c0_73 = arith.constant 0 : index
    %131 = vector.load %arg1[%c0_72, %c12, %c0_73] : memref<4x16x16xf32, #tpu.memory_space<vmem>>, vector<4x3x16xf32>
    %cst_74 = arith.constant dense<0xFF800000> : vector<4x16xf32>
    %132 = vector.multi_reduction <maximumf>, %131, %cst_74 [1] : vector<4x3x16xf32> to vector<4x16xf32>
    %cst_75 = arith.constant dense<0.000000e+00> : vector<4x6xf32>
    %133 = tpu.matmul %132, %9, %cst_75 {dimension_numbers = #tpu.dot_dimension_numbers<[1], [0], [0], [1], [0, 0, 1, 1], [], []>, precision = #tpu.contract_precision<fp32>} : vector<4x16xf32>, vector<16x6xf32>, vector<4x6xf32> -> vector<4x6xf32>
    %cst_76 = arith.constant dense<0.000000e+00> : vector<4x6xf32>
    %134 = tpu.matmul %132, %17, %cst_76 {dimension_numbers = #tpu.dot_dimension_numbers<[1], [0], [0], [1], [0, 0, 1, 1], [], []>, precision = #tpu.contract_precision<fp32>} : vector<4x16xf32>, vector<16x6xf32>, vector<4x6xf32> -> vector<4x6xf32>
    %c3_i32_77 = arith.constant 3 : i32
    %135 = vector.broadcast %c3_i32_77 : i32 to vector<4x6xi32>
    %136 = arith.muli %135, %26 : vector<4x6xi32>
    %c1_i32_78 = arith.constant 1 : i32
    %137 = vector.broadcast %c1_i32_78 : i32 to vector<4x6xi32>
    %138 = arith.addi %136, %137 : vector<4x6xi32>
    %c16_i32_79 = arith.constant 16 : i32
    %139 = vector.broadcast %c16_i32_79 : i32 to vector<4x6xi32>
    %140 = arith.cmpi slt, %138, %139 : vector<4x6xi32>
    %cst_80 = arith.constant -3.40282347E+38 : f32
    %141 = vector.broadcast %cst_80 : f32 to vector<4x6xf32>
    %142 = arith.select %140, %134, %141 : vector<4x6xi1>, vector<4x6xf32>
    %143 = arith.maximumf %133, %142 : vector<4x6xf32>
    %cst_81 = arith.constant dense<0.000000e+00> : vector<4x6xf32>
    %144 = tpu.matmul %132, %25, %cst_81 {dimension_numbers = #tpu.dot_dimension_numbers<[1], [0], [0], [1], [0, 0, 1, 1], [], []>, precision = #tpu.contract_precision<fp32>} : vector<4x16xf32>, vector<16x6xf32>, vector<4x6xf32> -> vector<4x6xf32>
    %c3_i32_82 = arith.constant 3 : i32
    %145 = vector.broadcast %c3_i32_82 : i32 to vector<4x6xi32>
    %146 = arith.muli %145, %26 : vector<4x6xi32>
    %c2_i32_83 = arith.constant 2 : i32
    %147 = vector.broadcast %c2_i32_83 : i32 to vector<4x6xi32>
    %148 = arith.addi %146, %147 : vector<4x6xi32>
    %c16_i32_84 = arith.constant 16 : i32
    %149 = vector.broadcast %c16_i32_84 : i32 to vector<4x6xi32>
    %150 = arith.cmpi slt, %148, %149 : vector<4x6xi32>
    %cst_85 = arith.constant -3.40282347E+38 : f32
    %151 = vector.broadcast %cst_85 : f32 to vector<4x6xf32>
    %152 = arith.select %150, %144, %151 : vector<4x6xi1>, vector<4x6xf32>
    %153 = arith.maximumf %143, %152 : vector<4x6xf32>
    %c0_86 = arith.constant 0 : index
    %c4 = arith.constant 4 : index
    %c0_87 = arith.constant 0 : index
    %154 = vector.load %arg2[%c0_86, %c4, %c0_87] : memref<4x6x6xf32, #tpu.memory_space<vmem>>, vector<4x1x6xf32>
    %155 = vector.shape_cast %154 : vector<4x1x6xf32> to vector<4x6xf32>
    %156 = vector.shape_cast %153 : vector<4x6xf32> to vector<4x1x6xf32>
    tpu.vector_store %arg2[%c0_86, %c4, %c0_87], %156 {strides = array<i32>} : memref<4x6x6xf32, #tpu.memory_space<vmem>>, vector<4x1x6xf32>,
    %c0_88 = arith.constant 0 : index
    %c15 = arith.constant 15 : index
    %c0_89 = arith.constant 0 : index
    %157 = vector.load %arg1[%c0_88, %c15, %c0_89] : memref<4x16x16xf32, #tpu.memory_space<vmem>>, vector<4x1x16xf32>
    %cst_90 = arith.constant dense<0xFF800000> : vector<4x16xf32>
    %158 = vector.multi_reduction <maximumf>, %157, %cst_90 [1] : vector<4x1x16xf32> to vector<4x16xf32>
    %cst_91 = arith.constant dense<0.000000e+00> : vector<4x6xf32>
    %159 = tpu.matmul %158, %9, %cst_91 {dimension_numbers = #tpu.dot_dimension_numbers<[1], [0], [0], [1], [0, 0, 1, 1], [], []>, precision = #tpu.contract_precision<fp32>} : vector<4x16xf32>, vector<16x6xf32>, vector<4x6xf32> -> vector<4x6xf32>
    %cst_92 = arith.constant dense<0.000000e+00> : vector<4x6xf32>
    %160 = tpu.matmul %158, %17, %cst_92 {dimension_numbers = #tpu.dot_dimension_numbers<[1], [0], [0], [1], [0, 0, 1, 1], [], []>, precision = #tpu.contract_precision<fp32>} : vector<4x16xf32>, vector<16x6xf32>, vector<4x6xf32> -> vector<4x6xf32>
    %c3_i32_93 = arith.constant 3 : i32
    %161 = vector.broadcast %c3_i32_93 : i32 to vector<4x6xi32>
    %162 = arith.muli %161, %26 : vector<4x6xi32>
    %c1_i32_94 = arith.constant 1 : i32
    %163 = vector.broadcast %c1_i32_94 : i32 to vector<4x6xi32>
    %164 = arith.addi %162, %163 : vector<4x6xi32>
    %c16_i32_95 = arith.constant 16 : i32
    %165 = vector.broadcast %c16_i32_95 : i32 to vector<4x6xi32>
    %166 = arith.cmpi slt, %164, %165 : vector<4x6xi32>
    %cst_96 = arith.constant -3.40282347E+38 : f32
    %167 = vector.broadcast %cst_96 : f32 to vector<4x6xf32>
    %168 = arith.select %166, %160, %167 : vector<4x6xi1>, vector<4x6xf32>
    %169 = arith.maximumf %159, %168 : vector<4x6xf32>
    %cst_97 = arith.constant dense<0.000000e+00> : vector<4x6xf32>
    %170 = tpu.matmul %158, %25, %cst_97 {dimension_numbers = #tpu.dot_dimension_numbers<[1], [0], [0], [1], [0, 0, 1, 1], [], []>, precision = #tpu.contract_precision<fp32>} : vector<4x16xf32>, vector<16x6xf32>, vector<4x6xf32> -> vector<4x6xf32>
    %c3_i32_98 = arith.constant 3 : i32
    %171 = vector.broadcast %c3_i32_98 : i32 to vector<4x6xi32>
    %172 = arith.muli %171, %26 : vector<4x6xi32>
    %c2_i32_99 = arith.constant 2 : i32
    %173 = vector.broadcast %c2_i32_99 : i32 to vector<4x6xi32>
    %174 = arith.addi %172, %173 : vector<4x6xi32>
    %c16_i32_100 = arith.constant 16 : i32
    %175 = vector.broadcast %c16_i32_100 : i32 to vector<4x6xi32>
    %176 = arith.cmpi slt, %174, %175 : vector<4x6xi32>
    %cst_101 = arith.constant -3.40282347E+38 : f32
    %177 = vector.broadcast %cst_101 : f32 to vector<4x6xf32>
    %178 = arith.select %176, %170, %177 : vector<4x6xi1>, vector<4x6xf32>
    %179 = arith.maximumf %169, %178 : vector<4x6xf32>
    %c0_102 = arith.constant 0 : index
    %c5 = arith.constant 5 : index
    %c0_103 = arith.constant 0 : index
    %180 = vector.load %arg2[%c0_102, %c5, %c0_103] : memref<4x6x6xf32, #tpu.memory_space<vmem>>, vector<4x1x6xf32>
    %181 = vector.shape_cast %180 : vector<4x1x6xf32> to vector<4x6xf32>
    %182 = vector.shape_cast %179 : vector<4x6xf32> to vector<4x1x6xf32>
    tpu.vector_store %arg2[%c0_102, %c5, %c0_103], %182 {strides = array<i32>} : memref<4x6x6xf32, #tpu.memory_space<vmem>>, vector<4x1x6xf32>,
    return
  }
  func.func @transform_0(%arg0: i32) -> (i32, i32, i32) {
    %c0_i32 = arith.constant 0 : i32
    %c0_i32_0 = arith.constant 0 : i32
    %c0_i32_1 = arith.constant 0 : i32
    return %arg0, %c0_i32, %c0_i32_0 : i32, i32, i32
  }
  func.func @transform_1(%arg0: i32) -> (i32, i32, i32) {
    %c0_i32 = arith.constant 0 : i32
    %c0_i32_0 = arith.constant 0 : i32
    %c0_i32_1 = arith.constant 0 : i32
    return %arg0, %c0_i32, %c0_i32_0 : i32, i32, i32
  }
}

</mosaic_0001>

<llo_original>
// kernel: tpu_custom_call.1
$region0: #{tpu_custom_call.1}
  #allocation0 [shape = 'u32[]', space=smem, size = 0x4, offset = 0x4, fixed_abs, tag = 'smem constant byte address 0x4 - core index']
  #allocation1 [shape = 'u32[144,128]{1,0:T(1,128)}', space=vmem, size = 0x12000, scoped, tag = 'internal scratch']
  %s0 = inlined_call_operand.hbm [shape: f32[8,16,16], index: 0, kind: input, shape index: {}]
  %s1 = inlined_call_operand.vmem [shape: f32[8,6,6], index: 1, kind: output, shape index: {}]
  %s2 = sld [smem:[#allocation0]]
  $region41: #{tpu_custom_call.1} parent=0
    _
  %s4 = ssub.s32 1, %s2
  %s5 = scalar_select 0, %s4, %s2
  $region1: #{tpu_custom_call.1} parent=0
    #allocation2 [shape = 'u8[65536]{0}', space=vmem, size = 0x10000, scoped, tag = 'input window, operand 0']
    #allocation3 [shape = 's32[2]{0}', space=sflag, size = 0x8, scoped, tag = 'scoped memory for tpu_custom_call.1']
    %6 = vsyncpa [#allocation3], 0
    %s7 = scalar_lea.sflag [#allocation3], 1
    %8 = vsyncpa %s7, 0
    loop: start=0, step=1, limit=4
    $region2: #{tpu_custom_call.1} parent=1 // loop_pre_header
      _
    $region3: #{tpu_custom_call.1} parent=1 // loop_header
      %s10 = sphi 0, %s14
      %p11 = scmp.ge.s32.totalorder %s10, 4
      %s20 = sphi 0, %s22
      %s23 = sphi 0, %s20
      %s24 = sphi 0, %s23
      %s40 = sphi 0, %s24
      %s46 = sphi 0, %s48
      %s49 = sphi 0, %s46
      %s50 = sphi 0, %s49
      %s66 = sphi 0, %s50
    $region4: #{tpu_custom_call.1} parent=1 // loop_header_branch
      %13 = sbr.rel (%p11) target = $region8
    $region5: #{tpu_custom_call.1} parent=1 // loop_body
      %s15 = ssub.s32 %s10, 1
      %s16 = ssub.s32 %s10, 2
      %s17 = sadd.s32 %s10, 1
      %s18 = ssub.s32 %s10, %s17
      %p19 = scmp.eq.s32.totalorder %s18, 0
      %s21 = sadd.s32 %s20, 1
      %s22 = scalar_select %p19, %s20, %s21
      %p25 = pneg %p19
      %p26 = scmp.eq.s32.totalorder %s10, 1
      %p27 = por %p25, %p26
      %p28 = scmp.ne.s32.totalorder %s20, %s23
      %p29 = scmp.eq.s32.totalorder %s10, 0
      %p30 = por %p28, %p29
      %p31 = scmp.ne.s32.totalorder %s20, %s23
      %p32 = scmp.eq.s32.totalorder %s15, 1
      %p33 = por %p31, %p32
      %p34 = scmp.ne.s32.totalorder %s23, %s24
      %p35 = scmp.eq.s32.totalorder %s15, 0
      %p36 = por %p34, %p35
      %p37 = scmp.ne.s32.totalorder %s23, %s24
      %p38 = scmp.eq.s32.totalorder %s16, 1
      %p39 = por %p37, %p38
      %p41 = scmp.ne.s32.totalorder %s24, %s40
      %p42 = scmp.eq.s32.totalorder %s16, 0
      %p43 = por %p41, %p42
      %s44 = ssub.s32 %s10, %s17
      %p45 = scmp.eq.s32.totalorder %s44, 0
      %s47 = sadd.s32 %s46, 1
      %s48 = scalar_select %p45, %s46, %s47
      %p51 = pneg %p45
      %p52 = scmp.eq.s32.totalorder %s10, 1
      %p53 = por %p51, %p52
      %p54 = scmp.ne.s32.totalorder %s46, %s49
      %p55 = scmp.eq.s32.totalorder %s10, 0
      %p56 = por %p54, %p55
      %p57 = scmp.ne.s32.totalorder %s46, %s49
      %p58 = scmp.eq.s32.totalorder %s15, 1
      %p59 = por %p57, %p58
      %p60 = scmp.ne.s32.totalorder %s49, %s50
      %p61 = scmp.eq.s32.totalorder %s15, 0
      %p62 = por %p60, %p61
      %p63 = scmp.ne.s32.totalorder %s49, %s50
      %p64 = scmp.eq.s32.totalorder %s16, 1
      %p65 = por %p63, %p64
      %p67 = scmp.ne.s32.totalorder %s50, %s66
      %p68 = scmp.eq.s32.totalorder %s16, 0
      %p69 = por %p67, %p68
      %p70 = scmp.le.s32.totalorder 1, %s10
      %p71 = scmp.lt.s32.totalorder %s10, 3
      %p72 = pnand %p70, %p71
      %p73 = pneg %p72
      // Predicated region
      $region9: #{tpu_custom_call.1} parent=5 // pred_check
        _
      $region10: #{tpu_custom_call.1} parent=5 // pred_check_branch
        %75 = sbr.rel (%p72) target = $region12
      $region11: #{tpu_custom_call.1} parent=5 // pred_region
        %s76 = ssub.s32 %s10, 1
      $region12: #{tpu_custom_call.1} parent=5 // pred_fallthru
        _
      %p77 = scmp.lt.s32.totalorder %s10, 2
      // Predicated region
      $region13: #{tpu_custom_call.1} parent=5 // pred_check
        %p78 = pneg %p77
      $region14: #{tpu_custom_call.1} parent=5 // pred_check_branch
        %80 = sbr.rel (%p78) target = $region16
      $region15: #{tpu_custom_call.1} parent=5 // pred_region
        // Predicated region
        $region17: #{tpu_custom_call.1} parent=15 // pred_check
          %p81 = pneg %p30
        $region18: #{tpu_custom_call.1} parent=15 // pred_check_branch
          %83 = sbr.rel (%p81) target = $region20
        $region19: #{tpu_custom_call.1} parent=15 // pred_region
          %s84 = sand.u32 %s20, 1
          %s85 = scalar_lea.sflag [#allocation3], %s84
          %s86 = sand.u32 %s20, 1
          %s87 = smul.addr %s86, 64
          %s88 = scalar_lea.vmem [#allocation2], %s87
          %s89 = smul.u32 4, %s10
          %s91 = ssub.s32 1024, 1024
          %92 = vsyncadd %s85, %s91
          %s93 = smul.addr %s89, 2
          %s94 = smul.addr %s93, 128
          %s95 = scalar_lea.hbm %s0, %s94
          %s96 = sshll.u32 %s88, 4
          %s97 = int_to_ptr.vmem [resolvable:$true] %s96
          %102 = dma.hbm_to_vmem [thread:$0]  %s95, 1024, %s97, %s85, 128, 128, 8
        $region20: #{tpu_custom_call.1} parent=15 // pred_fallthru
          _
      $region16: #{tpu_custom_call.1} parent=5 // pred_fallthru
        _
      %p103 = scmp.le.s32.totalorder 1, %s10
      %p104 = scmp.lt.s32.totalorder %s10, 3
      %p105 = pnand %p103, %p104
      %p106 = pneg %p105
      // Predicated region
      $region21: #{tpu_custom_call.1} parent=5 // pred_check
        _
      $region22: #{tpu_custom_call.1} parent=5 // pred_check_branch
        %108 = sbr.rel (%p105) target = $region24
      $region23: #{tpu_custom_call.1} parent=5 // pred_region
        %s109 = ssub.s32 %s10, 1
        %s110 = sand.u32 %s23, 1
        %s111 = scalar_lea.sflag [#allocation3], %s110
        %s112 = sand.u32 %s23, 1
        %s113 = smul.addr %s112, 64
        %s114 = scalar_lea.vmem [#allocation2], %s113
        // Predicated region
        $region25: #{tpu_custom_call.1} parent=23 // pred_check
          %p115 = pneg %p36
        $region26: #{tpu_custom_call.1} parent=23 // pred_check_branch
          %117 = sbr.rel (%p115) target = $region28
        $region27: #{tpu_custom_call.1} parent=23 // pred_region
          %118 = dma.done %s111, 1024
        $region28: #{tpu_custom_call.1} parent=23 // pred_fallthru
          _
        %s119 = sand.u32 %s23, 1
        %s120 = scalar_lea.sflag [#allocation3], %s119
        %s121 = sand.u32 %s23, 1
        %s122 = smul.addr %s121, 64
        %s123 = scalar_lea.vmem [#allocation2], %s122
        %p124 = pneg %p36
        %p125 = pneg %p33
        %p126 = pneg %p62
        %p127 = pneg %p59
        %s128 = smul.u32 4, %s15
        %p129 = scmp.lt.s32.totalorder %s128, 7
        %s130 = scalar_select %p129, %s128, 7
        %s131 = smul.addr %s130, 8
        %s132 = scalar_lea.vmem %s1, %s131
        %s133 = smul.u32 4, %s15
        %s134 = smul.u32 4, %s15
        %p135 = scmp.lt.s32.totalorder %s134, 7
        %s136 = scalar_select %p135, %s134, 7
        %s137 = smul.addr %s136, 8
        %s138 = scalar_lea.vmem %s1, %s137
        %s139 = smul.u32 4, %s15
        %v140 = vlaneseq
        %v141 = vshrl.u32 %v140, 7
        %v142 = vadd.s32 %v141, 8
        %v143 = vlaneseq
        %v144 = vand.u32 %v143, 127
        %v145 = vmul.u32 %v144, 3
        %vm146 = vcmp.eq.s32.totalorder %v141, %v145
        %vm147 = vcmp.eq.s32.totalorder %v142, %v145
        %v148 = vsel %vm146, 1.0, 0.0
        %v149 = vsel %vm147, 1.0, 0.0
        %v150 = vadd.s32 %v145, 1
        %vm151 = vcmp.eq.s32.totalorder %v141, %v150
        %vm152 = vcmp.eq.s32.totalorder %v142, %v150
        %v153 = vsel %vm151, 1.0, 0.0
        %v154 = vsel %vm152, 1.0, 0.0
        %v155 = vadd.s32 %v145, 2
        %vm156 = vcmp.eq.s32.totalorder %v141, %v155
        %vm157 = vcmp.eq.s32.totalorder %v142, %v155
        %v158 = vsel %vm156, 1.0, 0.0
        %v159 = vsel %vm157, 1.0, 0.0
        %v160 = vld [vmem:[%s114] sm:$0x7]
        %v161 = vld [vmem:[%s114 + $0x10] sm:$0x7]
        %v162 = vld [vmem:[%s114 + $0x20] sm:$0x7]
        %v163 = vld [vmem:[%s114 + $0x30] sm:$0x7]
        %vm164 = vcmask 124928
        %v165 = vsel %vm164, %v160, -inf
        %v166 = vrot.slane %v165, 4
        %v167 = vmax.f32 %v165, %v166
        %v168 = vrot.slane %v167, 2
        %v169 = vmax.f32 %v167, %v168
        %v170 = vrot.slane %v169, 1
        %v171 = vmax.f32 %v169, %v170
        %v172 = vsel %vm164, %v161, -inf
        %v173 = vrot.slane %v172, 4
        %v174 = vmax.f32 %v172, %v173
        %v175 = vrot.slane %v174, 2
        %v176 = vmax.f32 %v174, %v175
        %v177 = vrot.slane %v176, 1
        %v178 = vmax.f32 %v176, %v177
        %v179 = vsel %vm164, %v162, -inf
        %v180 = vrot.slane %v179, 4
        %v181 = vmax.f32 %v179, %v180
        %v182 = vrot.slane %v181, 2
        %v183 = vmax.f32 %v181, %v182
        %v184 = vrot.slane %v183, 1
        %v185 = vmax.f32 %v183, %v184
        %v186 = vsel %vm164, %v163, -inf
        %v187 = vrot.slane %v186, 4
        %v188 = vmax.f32 %v186, %v187
        %v189 = vrot.slane %v188, 2
        %v190 = vmax.f32 %v188, %v189
        %v191 = vrot.slane %v190, 1
        %v192 = vmax.f32 %v190, %v191
        %vm197 = vcmask 1041409
        %v198 = vsel %vm197, %v178, %v171
        %vm199 = vcmask 1042434
        %v200 = vsel %vm199, %v185, %v198
        %vm201 = vcmask 1043459
        %v202 = vsel %vm201, %v192, %v200
        %vm203 = vcmask 130048
        %v204 = vsel %vm203, %v202, 0
        %206 = vmatprep.subr.mxu0 0.0
        %207 = vmatpush1.msra.mxu0 %v148
        %208 = vmatprep.subr.mxu0 0.0
        %209 = vmatpush1.msra.mxu0 %v149
        %210 = vmatprep.subr.mxu0 0.0
        %211 = vmatpush1.msra.mxu0 0.0
        %212 = vmatprep.subr.mxu0 0.0
        %213 = vmatpush1.msra.mxu0 0.0
        %214 = vmatprep.subr.mxu0 0.0
        %215 = vmatpush1.msra.mxu0 0.0
        %216 = vmatprep.subr.mxu0 0.0
        %217 = vmatpush1.msra.mxu0 0.0
        %218 = vmatprep.subr.mxu0 0.0
        %219 = vmatpush1.msra.mxu0 0.0
        %220 = vmatprep.subr.mxu0 0.0
        %221 = vmatpush1.msra.mxu0 0.0
        %222 = vmatprep.subr.mxu0 0.0
        %223 = vmatpush1.msra.mxu0 0.0
        %224 = vmatprep.subr.mxu0 0.0
        %225 = vmatpush1.msra.mxu0 0.0
        %226 = vmatprep.subr.mxu0 0.0
        %227 = vmatpush1.msra.mxu0 0.0
        %228 = vmatprep.subr.mxu0 0.0
        %229 = vmatpush1.msra.mxu0 0.0
        %230 = vmatprep.subr.mxu0 0.0
        %231 = vmatpush1.msra.mxu0 0.0
        %232 = vmatprep.subr.mxu0 0.0
        %233 = vmatpush1.msra.mxu0 0.0
        %234 = vmatprep.subr.mxu0 0.0
        %235 = vmatpush1.msra.mxu0 0.0
        %236 = vmatprep.subr.mxu0 0.0
        %237 = vmatpush1.msra.mxu0 0.0
        %238 = vmatprep.subr.mxu0 0.0
        %239 = vmatpush1.msra.mxu0 0.0
        %240 = vmatprep.subr.mxu0 0.0
        %241 = vmatpush1.msra.mxu0 0.0
        %242 = vmatprep.subr.mxu0 0.0
        %243 = vmatpush1.msra.mxu0 0.0
        %244 = vmatprep.subr.mxu0 0.0
        %245 = vmatpush1.msra.mxu0 0.0
        %246 = vmatprep.subr.mxu0 0.0
        %247 = vmatpush1.msra.mxu0 0.0
        %248 = vmatprep.subr.mxu0 0.0
        %249 = vmatpush1.msra.mxu0 0.0
        %250 = vmatprep.subr.mxu0 0.0
        %251 = vmatpush1.msra.mxu0 0.0
        %252 = vmatprep.subr.mxu0 0.0
        %253 = vmatpush1.msra.mxu0 0.0
        %254 = vmatprep.subr.mxu0 0.0
        %255 = vmatpush1.msra.mxu0 0.0
        %256 = vmatprep.subr.mxu0 0.0
        %257 = vmatpush1.msra.mxu0 0.0
        %258 = vmatprep.subr.mxu0 0.0
        %259 = vmatpush1.msra.mxu0 0.0
        %260 = vmatprep.subr.mxu0 0.0
        %261 = vmatpush1.msra.mxu0 0.0
        %262 = vmatprep.subr.mxu0 0.0
        %263 = vmatpush1.msra.mxu0 0.0
        %264 = vmatprep.subr.mxu0 0.0
        %265 = vmatpush1.msra.mxu0 0.0
        %266 = vmatprep.subr.mxu0 0.0
        %267 = vmatpush1.msra.mxu0 0.0
        %268 = vmatprep.subr.mxu0 0.0
        %269 = vmatpush1.msra.mxu0 0.0
        %270 = vmatprep.mubr.f32.mxu0 0.0
        %v271 = vand.u32 %v204, 4294901760
        %v272 = vsub.f32 %v204, %v271
        %v273 = vand.u32 %v272, 4294901760
        %v274 = vsub.f32 %v272, %v273
        %v275 = vand.u32 %v274, 4294901760
        %276 = vmatmul.mubr.f32.gmra.mrb[0].mxu0 %v275
        %v277 = vpop.f32.mrb[0].mxu0
        %v278 = vadd.f32 0.0, %v277
        %v279 = vpop.f32.mrb[0].mxu0
        %280 = vdwg.mxu0
        %281 = vmatprep.subr.mxu0 0.0
        %v282 = vsub.f32 %v148, %v148
        %v283 = vand.u32 %v282, 4294901760
        %v284 = vsub.f32 %v282, %v283
        %v285 = vand.u32 %v284, 4294901760
        %286 = vmatpush1.msra.mxu0 %v285
        %287 = vmatprep.subr.mxu0 0.0
        %v288 = vsub.f32 %v149, %v149
        %v289 = vand.u32 %v288, 4294901760
        %v290 = vsub.f32 %v288, %v289
        %v291 = vand.u32 %v290, 4294901760
        %292 = vmatpush1.msra.mxu0 %v291
        %293 = vmatprep.subr.mxu0 0.0
        %294 = vmatpush1.msra.mxu0 0.0
        %295 = vmatprep.subr.mxu0 0.0
        %296 = vmatpush1.msra.mxu0 0.0
        %297 = vmatprep.subr.mxu0 0.0
        %298 = vmatpush1.msra.mxu0 0.0
        %299 = vmatprep.subr.mxu0 0.0
        %300 = vmatpush1.msra.mxu0 0.0
        %301 = vmatprep.subr.mxu0 0.0
        %302 = vmatpush1.msra.mxu0 0.0
        %303 = vmatprep.subr.mxu0 0.0
        %304 = vmatpush1.msra.mxu0 0.0
        %305 = vmatprep.subr.mxu0 0.0
        %306 = vmatpush1.msra.mxu0 0.0
        %307 = vmatprep.subr.mxu0 0.0
        %308 = vmatpush1.msra.mxu0 0.0
        %309 = vmatprep.subr.mxu0 0.0
        %310 = vmatpush1.msra.mxu0 0.0
        %311 = vmatprep.subr.mxu0 0.0
        %312 = vmatpush1.msra.mxu0 0.0
        %313 = vmatprep.subr.mxu0 0.0
        %314 = vmatpush1.msra.mxu0 0.0
        %315 = vmatprep.subr.mxu0 0.0
        %316 = vmatpush1.msra.mxu0 0.0
        %317 = vmatprep.subr.mxu0 0.0
        %318 = vmatpush1.msra.mxu0 0.0
        %319 = vmatprep.subr.mxu0 0.0
        %320 = vmatpush1.msra.mxu0 0.0
        %321 = vmatprep.subr.mxu0 0.0
        %322 = vmatpush1.msra.mxu0 0.0
        %323 = vmatprep.subr.mxu0 0.0
        %324 = vmatpush1.msra.mxu0 0.0
        %325 = vmatprep.subr.mxu0 0.0
        %326 = vmatpush1.msra.mxu0 0.0
        %327 = vmatprep.subr.mxu0 0.0
        %328 = vmatpush1.msra.mxu0 0.0
        %329 = vmatprep.subr.mxu0 0.0
        %330 = vmatpush1.msra.mxu0 0.0
        %331 = vmatprep.subr.mxu0 0.0
        %332 = vmatpush1.msra.mxu0 0.0
        %333 = vmatprep.subr.mxu0 0.0
        %334 = vmatpush1.msra.mxu0 0.0
        %335 = vmatprep.subr.mxu0 0.0
        %336 = vmatpush1.msra.mxu0 0.0
        %337 = vmatprep.subr.mxu0 0.0
        %338 = vmatpush1.msra.mxu0 0.0
        %339 = vmatprep.subr.mxu0 0.0
        %340 = vmatpush1.msra.mxu0 0.0
        %341 = vmatprep.subr.mxu0 0.0
        %342 = vmatpush1.msra.mxu0 0.0
        %343 = vmatprep.subr.mxu0 0.0
        %344 = vmatpush1.msra.mxu0 0.0
        %345 = vmatprep.subr.mxu0 0.0
        %346 = vmatpush1.msra.mxu0 0.0
        %347 = vmatprep.subr.mxu0 0.0
        %348 = vmatpush1.msra.mxu0 0.0
        %349 = vmatprep.subr.mxu0 0.0
        %350 = vmatpush1.msra.mxu0 0.0
        %351 = vmatprep.subr.mxu0 0.0
        %352 = vmatpush1.msra.mxu0 0.0
        %353 = vmatprep.mubr.f32.mxu0 0.0
        %v354 = vand.u32 %v204, 4294901760
        %355 = vmatmul.mubr.f32.gmra.mrb[0].mxu0 %v354
        %v356 = vpop.f32.mrb[0].mxu0
        %v357 = vadd.f32 %v278, %v356
        %v358 = vpop.f32.mrb[0].mxu0
        %359 = vdwg.mxu0
        %360 = vmatprep.subr.mxu0 0.0
        %v361 = vsub.f32 %v148, %v148
        %362 = vmatpush1.msra.mxu0 %v361
        %363 = vmatprep.subr.mxu0 0.0
        %v364 = vsub.f32 %v149, %v149
        %365 = vmatpush1.msra.mxu0 %v364
        %366 = vmatprep.subr.mxu0 0.0
        %367 = vmatpush1.msra.mxu0 0.0
        %368 = vmatprep.subr.mxu0 0.0
        %369 = vmatpush1.msra.mxu0 0.0
        %370 = vmatprep.subr.mxu0 0.0
        %371 = vmatpush1.msra.mxu0 0.0
        %372 = vmatprep.subr.mxu0 0.0
        %373 = vmatpush1.msra.mxu0 0.0
        %374 = vmatprep.subr.mxu0 0.0
        %375 = vmatpush1.msra.mxu0 0.0
        %376 = vmatprep.subr.mxu0 0.0
        %377 = vmatpush1.msra.mxu0 0.0
        %378 = vmatprep.subr.mxu0 0.0
        %379 = vmatpush1.msra.mxu0 0.0
        %380 = vmatprep.subr.mxu0 0.0
        %381 = vmatpush1.msra.mxu0 0.0
        %382 = vmatprep.subr.mxu0 0.0
        %383 = vmatpush1.msra.mxu0 0.0
        %384 = vmatprep.subr.mxu0 0.0
        %385 = vmatpush1.msra.mxu0 0.0
        %386 = vmatprep.subr.mxu0 0.0
        %387 = vmatpush1.msra.mxu0 0.0
        %388 = vmatprep.subr.mxu0 0.0
        %389 = vmatpush1.msra.mxu0 0.0
        %390 = vmatprep.subr.mxu0 0.0
        %391 = vmatpush1.msra.mxu0 0.0
        %392 = vmatprep.subr.mxu0 0.0
        %393 = vmatpush1.msra.mxu0 0.0
        %394 = vmatprep.subr.mxu0 0.0
        %395 = vmatpush1.msra.mxu0 0.0
        %396 = vmatprep.subr.mxu0 0.0
        %397 = vmatpush1.msra.mxu0 0.0
        %398 = vmatprep.subr.mxu0 0.0
        %399 = vmatpush1.msra.mxu0 0.0
        %400 = vmatprep.subr.mxu0 0.0
        %401 = vmatpush1.msra.mxu0 0.0
        %402 = vmatprep.subr.mxu0 0.0
        %403 = vmatpush1.msra.mxu0 0.0
        %404 = vmatprep.subr.mxu0 0.0
        %405 = vmatpush1.msra.mxu0 0.0
        %406 = vmatprep.subr.mxu0 0.0
        %407 = vmatpush1.msra.mxu0 0.0
        %408 = vmatprep.subr.mxu0 0.0
        %409 = vmatpush1.msra.mxu0 0.0
        %410 = vmatprep.subr.mxu0 0.0
        %411 = vmatpush1.msra.mxu0 0.0
        %412 = vmatprep.subr.mxu0 0.0
        %413 = vmatpush1.msra.mxu0 0.0
        %414 = vmatprep.subr.mxu0 0.0
        %415 = vmatpush1.msra.mxu0 0.0
        %416 = vmatprep.subr.mxu0 0.0
        %417 = vmatpush1.msra.mxu0 0.0
        %418 = vmatprep.subr.mxu0 0.0
        %419 = vmatpush1.msra.mxu0 0.0
        %420 = vmatprep.subr.mxu0 0.0
        %421 = vmatpush1.msra.mxu0 0.0
        %422 = vmatprep.subr.mxu0 0.0
        %423 = vmatpush1.msra.mxu0 0.0
        %424 = vmatprep.subr.mxu0 0.0
        %425 = vmatpush1.msra.mxu0 0.0
        %426 = vmatprep.mubr.f32.mxu0 0.0
        %v427 = vand.u32 %v204, 4294901760
        %v428 = vsub.f32 %v204, %v427
        %429 = vmatmul.mubr.f32.gmra.mrb[0].mxu0 %v428
        %v430 = vpop.f32.mrb[0].mxu0
        %v431 = vadd.f32 %v357, %v430
        %v432 = vpop.f32.mrb[0].mxu0
        %433 = vdwg.mxu0
        %434 = vmatprep.subr.mxu0 0.0
        %435 = vmatpush1.msra.mxu0 %v148
        %436 = vmatprep.subr.mxu0 0.0
        %437 = vmatpush1.msra.mxu0 %v149
        %438 = vmatprep.subr.mxu0 0.0
        %439 = vmatpush1.msra.mxu0 0.0
        %440 = vmatprep.subr.mxu0 0.0
        %441 = vmatpush1.msra.mxu0 0.0
        %442 = vmatprep.subr.mxu0 0.0
        %443 = vmatpush1.msra.mxu0 0.0
        %444 = vmatprep.subr.mxu0 0.0
        %445 = vmatpush1.msra.mxu0 0.0
        %446 = vmatprep.subr.mxu0 0.0
        %447 = vmatpush1.msra.mxu0 0.0
        %448 = vmatprep.subr.mxu0 0.0
        %449 = vmatpush1.msra.mxu0 0.0
        %450 = vmatprep.subr.mxu0 0.0
        %451 = vmatpush1.msra.mxu0 0.0
        %452 = vmatprep.subr.mxu0 0.0
        %453 = vmatpush1.msra.mxu0 0.0
        %454 = vmatprep.subr.mxu0 0.0
        %455 = vmatpush1.msra.mxu0 0.0
        %456 = vmatprep.subr.mxu0 0.0
        %457 = vmatpush1.msra.mxu0 0.0
        %458 = vmatprep.subr.mxu0 0.0
        %459 = vmatpush1.msra.mxu0 0.0
        %460 = vmatprep.subr.mxu0 0.0
        %461 = vmatpush1.msra.mxu0 0.0
        %462 = vmatprep.subr.mxu0 0.0
        %463 = vmatpush1.msra.mxu0 0.0
        %464 = vmatprep.subr.mxu0 0.0
        %465 = vmatpush1.msra.mxu0 0.0
        %466 = vmatprep.subr.mxu0 0.0
        %467 = vmatpush1.msra.mxu0 0.0
        %468 = vmatprep.subr.mxu0 0.0
        %469 = vmatpush1.msra.mxu0 0.0
        %470 = vmatprep.subr.mxu0 0.0
        %471 = vmatpush1.msra.mxu0 0.0
        %472 = vmatprep.subr.mxu0 0.0
        %473 = vmatpush1.msra.mxu0 0.0
        %474 = vmatprep.subr.mxu0 0.0
        %475 = vmatpush1.msra.mxu0 0.0
        %476 = vmatprep.subr.mxu0 0.0
        %477 = vmatpush1.msra.mxu0 0.0
        %478 = vmatprep.subr.mxu0 0.0
        %479 = vmatpush1.msra.mxu0 0.0
        %480 = vmatprep.subr.mxu0 0.0
        %481 = vmatpush1.msra.mxu0 0.0
        %482 = vmatprep.subr.mxu0 0.0
        %483 = vmatpush1.msra.mxu0 0.0
        %484 = vmatprep.subr.mxu0 0.0
        %485 = vmatpush1.msra.mxu0 0.0
        %486 = vmatprep.subr.mxu0 0.0
        %487 = vmatpush1.msra.mxu0 0.0
        %488 = vmatprep.subr.mxu0 0.0
        %489 = vmatpush1.msra.mxu0 0.0
        %490 = vmatprep.subr.mxu0 0.0
        %491 = vmatpush1.msra.mxu0 0.0
        %492 = vmatprep.subr.mxu0 0.0
        %493 = vmatpush1.msra.mxu0 0.0
        %494 = vmatprep.subr.mxu0 0.0
        %495 = vmatpush1.msra.mxu0 0.0
        %496 = vmatprep.subr.mxu0 0.0
        %497 = vmatpush1.msra.mxu0 0.0
        %498 = vmatprep.mubr.f32.mxu0 0.0
        %v499 = vand.u32 %v204, 4294901760
        %v500 = vsub.f32 %v204, %v499
        %v501 = vand.u32 %v500, 4294901760
        %502 = vmatmul.mubr.f32.gmra.mrb[0].mxu0 %v501
        %v503 = vpop.f32.mrb[0].mxu0
        %v504 = vadd.f32 %v431, %v503
        %v505 = vpop.f32.mrb[0].mxu0
        %506 = vdwg.mxu0
        %507 = vmatprep.subr.mxu0 0.0
        %v508 = vsub.f32 %v148, %v148
        %v509 = vand.u32 %v508, 4294901760
        %510 = vmatpush1.msra.mxu0 %v509
        %511 = vmatprep.subr.mxu0 0.0
        %v512 = vsub.f32 %v149, %v149
        %v513 = vand.u32 %v512, 4294901760
        %514 = vmatpush1.msra.mxu0 %v513
        %515 = vmatprep.subr.mxu0 0.0
        %516 = vmatpush1.msra.mxu0 0.0
        %517 = vmatprep.subr.mxu0 0.0
        %518 = vmatpush1.msra.mxu0 0.0
        %519 = vmatprep.subr.mxu0 0.0
        %520 = vmatpush1.msra.mxu0 0.0
        %521 = vmatprep.subr.mxu0 0.0
        %522 = vmatpush1.msra.mxu0 0.0
        %523 = vmatprep.subr.mxu0 0.0
        %524 = vmatpush1.msra.mxu0 0.0
        %525 = vmatprep.subr.mxu0 0.0
        %526 = vmatpush1.msra.mxu0 0.0
        %527 = vmatprep.subr.mxu0 0.0
        %528 = vmatpush1.msra.mxu0 0.0
        %529 = vmatprep.subr.mxu0 0.0
        %530 = vmatpush1.msra.mxu0 0.0
        %531 = vmatprep.subr.mxu0 0.0
        %532 = vmatpush1.msra.mxu0 0.0
        %533 = vmatprep.subr.mxu0 0.0
        %534 = vmatpush1.msra.mxu0 0.0
        %535 = vmatprep.subr.mxu0 0.0
        %536 = vmatpush1.msra.mxu0 0.0
        %537 = vmatprep.subr.mxu0 0.0
        %538 = vmatpush1.msra.mxu0 0.0
        %539 = vmatprep.subr.mxu0 0.0
        %540 = vmatpush1.msra.mxu0 0.0
        %541 = vmatprep.subr.mxu0 0.0
        %542 = vmatpush1.msra.mxu0 0.0
        %543 = vmatprep.subr.mxu0 0.0
        %544 = vmatpush1.msra.mxu0 0.0
        %545 = vmatprep.subr.mxu0 0.0
        %546 = vmatpush1.msra.mxu0 0.0
        %547 = vmatprep.subr.mxu0 0.0
        %548 = vmatpush1.msra.mxu0 0.0
        %549 = vmatprep.subr.mxu0 0.0
        %550 = vmatpush1.msra.mxu0 0.0
        %551 = vmatprep.subr.mxu0 0.0
        %552 = vmatpush1.msra.mxu0 0.0
        %553 = vmatprep.subr.mxu0 0.0
        %554 = vmatpush1.msra.mxu0 0.0
        %555 = vmatprep.subr.mxu0 0.0
        %556 = vmatpush1.msra.mxu0 0.0
        %557 = vmatprep.subr.mxu0 0.0
        %558 = vmatpush1.msra.mxu0 0.0
        %559 = vmatprep.subr.mxu0 0.0
        %560 = vmatpush1.msra.mxu0 0.0
        %561 = vmatprep.subr.mxu0 0.0
        %562 = vmatpush1.msra.mxu0 0.0
        %563 = vmatprep.subr.mxu0 0.0
        %564 = vmatpush1.msra.mxu0 0.0
        %565 = vmatprep.subr.mxu0 0.0
        %566 = vmatpush1.msra.mxu0 0.0
        %567 = vmatprep.subr.mxu0 0.0
        %568 = vmatpush1.msra.mxu0 0.0
        %569 = vmatprep.subr.mxu0 0.0
        %570 = vmatpush1.msra.mxu0 0.0
        %571 = vmatprep.subr.mxu0 0.0
        %572 = vmatpush1.msra.mxu0 0.0
        %573 = vmatprep.subr.mxu0 0.0
        %574 = vmatpush1.msra.mxu0 0.0
        %575 = vmatprep.mubr.f32.mxu0 0.0
        %v576 = vand.u32 %v204, 4294901760
        %577 = vmatmul.mubr.f32.gmra.mrb[0].mxu0 %v576
        %v578 = vpop.f32.mrb[0].mxu0
        %v579 = vadd.f32 %v504, %v578
        %v580 = vpop.f32.mrb[0].mxu0
        %581 = vdwg.mxu0
        %582 = vmatprep.subr.mxu0 0.0
        %583 = vmatpush1.msra.mxu0 %v148
        %584 = vmatprep.subr.mxu0 0.0
        %585 = vmatpush1.msra.mxu0 %v149
        %586 = vmatprep.subr.mxu0 0.0
        %587 = vmatpush1.msra.mxu0 0.0
        %588 = vmatprep.subr.mxu0 0.0
        %589 = vmatpush1.msra.mxu0 0.0
        %590 = vmatprep.subr.mxu0 0.0
        %591 = vmatpush1.msra.mxu0 0.0
        %592 = vmatprep.subr.mxu0 0.0
        %593 = vmatpush1.msra.mxu0 0.0
        %594 = vmatprep.subr.mxu0 0.0
        %595 = vmatpush1.msra.mxu0 0.0
        %596 = vmatprep.subr.mxu0 0.0
        %597 = vmatpush1.msra.mxu0 0.0
        %598 = vmatprep.subr.mxu0 0.0
        %599 = vmatpush1.msra.mxu0 0.0
        %600 = vmatprep.subr.mxu0 0.0
        %601 = vmatpush1.msra.mxu0 0.0
        %602 = vmatprep.subr.mxu0 0.0
        %603 = vmatpush1.msra.mxu0 0.0
        %604 = vmatprep.subr.mxu0 0.0
        %605 = vmatpush1.msra.mxu0 0.0
        %606 = vmatprep.subr.mxu0 0.0
        %607 = vmatpush1.msra.mxu0 0.0
        %608 = vmatprep.subr.mxu0 0.0
        %609 = vmatpush1.msra.mxu0 0.0
        %610 = vmatprep.subr.mxu0 0.0
        %611 = vmatpush1.msra.mxu0 0.0
        %612 = vmatprep.subr.mxu0 0.0
        %613 = vmatpush1.msra.mxu0 0.0
        %614 = vmatprep.subr.mxu0 0.0
        %615 = vmatpush1.msra.mxu0 0.0
        %616 = vmatprep.subr.mxu0 0.0
        %617 = vmatpush1.msra.mxu0 0.0
        %618 = vmatprep.subr.mxu0 0.0
        %619 = vmatpush1.msra.mxu0 0.0
        %620 = vmatprep.subr.mxu0 0.0
        %621 = vmatpush1.msra.mxu0 0.0
        %622 = vmatprep.subr.mxu0 0.0
        %623 = vmatpush1.msra.mxu0 0.0
        %624 = vmatprep.subr.mxu0 0.0
        %625 = vmatpush1.msra.mxu0 0.0
        %626 = vmatprep.subr.mxu0 0.0
        %627 = vmatpush1.msra.mxu0 0.0
        %628 = vmatprep.subr.mxu0 0.0
        %629 = vmatpush1.msra.mxu0 0.0
        %630 = vmatprep.subr.mxu0 0.0
        %631 = vmatpush1.msra.mxu0 0.0
        %632 = vmatprep.subr.mxu0 0.0
        %633 = vmatpush1.msra.mxu0 0.0
        %634 = vmatprep.subr.mxu0 0.0
        %635 = vmatpush1.msra.mxu0 0.0
        %636 = vmatprep.subr.mxu0 0.0
        %637 = vmatpush1.msra.mxu0 0.0
        %638 = vmatprep.subr.mxu0 0.0
        %639 = vmatpush1.msra.mxu0 0.0
        %640 = vmatprep.subr.mxu0 0.0
        %641 = vmatpush1.msra.mxu0 0.0
        %642 = vmatprep.subr.mxu0 0.0
        %643 = vmatpush1.msra.mxu0 0.0
        %644 = vmatprep.subr.mxu0 0.0
        %645 = vmatpush1.msra.mxu0 0.0
        %646 = vmatprep.mubr.f32.mxu0 0.0
        %v647 = vand.u32 %v204, 4294901760
        %648 = vmatmul.mubr.f32.gmra.mrb[0].mxu0 %v647
        %v649 = vpop.f32.mrb[0].mxu0
        %v650 = vadd.f32 %v579, %v649
        %v651 = vpop.f32.mrb[0].mxu0
        %652 = vdwg.mxu0
        %653 = vmatprep.subr.mxu0 0.0
        %654 = vmatpush1.msra.mxu0 %v153
        %655 = vmatprep.subr.mxu0 0.0
        %656 = vmatpush1.msra.mxu0 %v154
        %657 = vmatprep.subr.mxu0 0.0
        %658 = vmatpush1.msra.mxu0 0.0
        %659 = vmatprep.subr.mxu0 0.0
        %660 = vmatpush1.msra.mxu0 0.0
        %661 = vmatprep.subr.mxu0 0.0
        %662 = vmatpush1.msra.mxu0 0.0
        %663 = vmatprep.subr.mxu0 0.0
        %664 = vmatpush1.msra.mxu0 0.0
        %665 = vmatprep.subr.mxu0 0.0
        %666 = vmatpush1.msra.mxu0 0.0
        %667 = vmatprep.subr.mxu0 0.0
        %668 = vmatpush1.msra.mxu0 0.0
        %669 = vmatprep.subr.mxu0 0.0
        %670 = vmatpush1.msra.mxu0 0.0
        %671 = vmatprep.subr.mxu0 0.0
        %672 = vmatpush1.msra.mxu0 0.0
        %673 = vmatprep.subr.mxu0 0.0
        %674 = vmatpush1.msra.mxu0 0.0
        %675 = vmatprep.subr.mxu0 0.0
        %676 = vmatpush1.msra.mxu0 0.0
        %677 = vmatprep.subr.mxu0 0.0
        %678 = vmatpush1.msra.mxu0 0.0
        %679 = vmatprep.subr.mxu0 0.0
        %680 = vmatpush1.msra.mxu0 0.0
        %681 = vmatprep.subr.mxu0 0.0
        %682 = vmatpush1.msra.mxu0 0.0
        %683 = vmatprep.subr.mxu0 0.0
        %684 = vmatpush1.msra.mxu0 0.0
        %685 = vmatprep.subr.mxu0 0.0
        %686 = vmatpush1.msra.mxu0 0.0
        %687 = vmatprep.subr.mxu0 0.0
        %688 = vmatpush1.msra.mxu0 0.0
        %689 = vmatprep.subr.mxu0 0.0
        %690 = vmatpush1.msra.mxu0 0.0
        %691 = vmatprep.subr.mxu0 0.0
        %692 = vmatpush1.msra.mxu0 0.0
        %693 = vmatprep.subr.mxu0 0.0
        %694 = vmatpush1.msra.mxu0 0.0
        %695 = vmatprep.subr.mxu0 0.0
        %696 = vmatpush1.msra.mxu0 0.0
        %697 = vmatprep.subr.mxu0 0.0
        %698 = vmatpush1.msra.mxu0 0.0
        %699 = vmatprep.subr.mxu0 0.0
        %700 = vmatpush1.msra.mxu0 0.0
        %701 = vmatprep.subr.mxu0 0.0
        %702 = vmatpush1.msra.mxu0 0.0
        %703 = vmatprep.subr.mxu0 0.0
        %704 = vmatpush1.msra.mxu0 0.0
        %705 = vmatprep.subr.mxu0 0.0
        %706 = vmatpush1.msra.mxu0 0.0
        %707 = vmatprep.subr.mxu0 0.0
        %708 = vmatpush1.msra.mxu0 0.0
        %709 = vmatprep.subr.mxu0 0.0
        %710 = vmatpush1.msra.mxu0 0.0
        %711 = vmatprep.subr.mxu0 0.0
        %712 = vmatpush1.msra.mxu0 0.0
        %713 = vmatprep.subr.mxu0 0.0
        %714 = vmatpush1.msra.mxu0 0.0
        %715 = vmatprep.subr.mxu0 0.0
        %716 = vmatpush1.msra.mxu0 0.0
        %717 = vmatprep.mubr.f32.mxu0 0.0
        %v718 = vand.u32 %v204, 4294901760
        %v719 = vsub.f32 %v204, %v718
        %v720 = vand.u32 %v719, 4294901760
        %v721 = vsub.f32 %v719, %v720
        %v722 = vand.u32 %v721, 4294901760
        %723 = vmatmul.mubr.f32.gmra.mrb[0].mxu0 %v722
        %v724 = vpop.f32.mrb[0].mxu0
        %v725 = vadd.f32 0.0, %v724
        %v726 = vpop.f32.mrb[0].mxu0
        %727 = vdwg.mxu0
        %728 = vmatprep.subr.mxu0 0.0
        %v729 = vsub.f32 %v153, %v153
        %v730 = vand.u32 %v729, 4294901760
        %v731 = vsub.f32 %v729, %v730
        %v732 = vand.u32 %v731, 4294901760
        %733 = vmatpush1.msra.mxu0 %v732
        %734 = vmatprep.subr.mxu0 0.0
        %v735 = vsub.f32 %v154, %v154
        %v736 = vand.u32 %v735, 4294901760
        %v737 = vsub.f32 %v735, %v736
        %v738 = vand.u32 %v737, 4294901760
        %739 = vmatpush1.msra.mxu0 %v738
        %740 = vmatprep.subr.mxu0 0.0
        %741 = vmatpush1.msra.mxu0 0.0
        %742 = vmatprep.subr.mxu0 0.0
        %743 = vmatpush1.msra.mxu0 0.0
        %744 = vmatprep.subr.mxu0 0.0
        %745 = vmatpush1.msra.mxu0 0.0
        %746 = vmatprep.subr.mxu0 0.0
        %747 = vmatpush1.msra.mxu0 0.0
        %748 = vmatprep.subr.mxu0 0.0
        %749 = vmatpush1.msra.mxu0 0.0
        %750 = vmatprep.subr.mxu0 0.0
        %751 = vmatpush1.msra.mxu0 0.0
        %752 = vmatprep.subr.mxu0 0.0
        %753 = vmatpush1.msra.mxu0 0.0
        %754 = vmatprep.subr.mxu0 0.0
        %755 = vmatpush1.msra.mxu0 0.0
        %756 = vmatprep.subr.mxu0 0.0
        %757 = vmatpush1.msra.mxu0 0.0
        %758 = vmatprep.subr.mxu0 0.0
        %759 = vmatpush1.msra.mxu0 0.0
        %760 = vmatprep.subr.mxu0 0.0
        %761 = vmatpush1.msra.mxu0 0.0
        %762 = vmatprep.subr.mxu0 0.0
        %763 = vmatpush1.msra.mxu0 0.0
        %764 = vmatprep.subr.mxu0 0.0
        %765 = vmatpush1.msra.mxu0 0.0
        %766 = vmatprep.subr.mxu0 0.0
        %767 = vmatpush1.msra.mxu0 0.0
        %768 = vmatprep.subr.mxu0 0.0
        %769 = vmatpush1.msra.mxu0 0.0
        %770 = vmatprep.subr.mxu0 0.0
        %771 = vmatpush1.msra.mxu0 0.0
        %772 = vmatprep.subr.mxu0 0.0
        %773 = vmatpush1.msra.mxu0 0.0
        %774 = vmatprep.subr.mxu0 0.0
        %775 = vmatpush1.msra.mxu0 0.0
        %776 = vmatprep.subr.mxu0 0.0
        %777 = vmatpush1.msra.mxu0 0.0
        %778 = vmatprep.subr.mxu0 0.0
        %779 = vmatpush1.msra.mxu0 0.0
        %780 = vmatprep.subr.mxu0 0.0
        %781 = vmatpush1.msra.mxu0 0.0
        %782 = vmatprep.subr.mxu0 0.0
        %783 = vmatpush1.msra.mxu0 0.0
        %784 = vmatprep.subr.mxu0 0.0
        %785 = vmatpush1.msra.mxu0 0.0
        %786 = vmatprep.subr.mxu0 0.0
        %787 = vmatpush1.msra.mxu0 0.0
        %788 = vmatprep.subr.mxu0 0.0
        %789 = vmatpush1.msra.mxu0 0.0
        %790 = vmatprep.subr.mxu0 0.0
        %791 = vmatpush1.msra.mxu0 0.0
        %792 = vmatprep.subr.mxu0 0.0
        %793 = vmatpush1.msra.mxu0 0.0
        %794 = vmatprep.subr.mxu0 0.0
        %795 = vmatpush1.msra.mxu0 0.0
        %796 = vmatprep.subr.mxu0 0.0
        %797 = vmatpush1.msra.mxu0 0.0
        %798 = vmatprep.subr.mxu0 0.0
        %799 = vmatpush1.msra.mxu0 0.0
        %800 = vmatprep.mubr.f32.mxu0 0.0
        %v801 = vand.u32 %v204, 4294901760
        %802 = vmatmul.mubr.f32.gmra.mrb[0].mxu0 %v801
        %v803 = vpop.f32.mrb[0].mxu0
        %v804 = vadd.f32 %v725, %v803
        %v805 = vpop.f32.mrb[0].mxu0
        %806 = vdwg.mxu0
        %807 = vmatprep.subr.mxu0 0.0
        %v808 = vsub.f32 %v153, %v153
        %809 = vmatpush1.msra.mxu0 %v808
        %810 = vmatprep.subr.mxu0 0.0
        %v811 = vsub.f32 %v154, %v154
        %812 = vmatpush1.msra.mxu0 %v811
        %813 = vmatprep.subr.mxu0 0.0
        %814 = vmatpush1.msra.mxu0 0.0
        %815 = vmatprep.subr.mxu0 0.0
        %816 = vmatpush1.msra.mxu0 0.0
        %817 = vmatprep.subr.mxu0 0.0
        %818 = vmatpush1.msra.mxu0 0.0
        %819 = vmatprep.subr.mxu0 0.0
        %820 = vmatpush1.msra.mxu0 0.0
        %821 = vmatprep.subr.mxu0 0.0
        %822 = vmatpush1.msra.mxu0 0.0
        %823 = vmatprep.subr.mxu0 0.0
        %824 = vmatpush1.msra.mxu0 0.0
        %825 = vmatprep.subr.mxu0 0.0
        %826 = vmatpush1.msra.mxu0 0.0
        %827 = vmatprep.subr.mxu0 0.0
        %828 = vmatpush1.msra.mxu0 0.0
        %829 = vmatprep.subr.mxu0 0.0
        %830 = vmatpush1.msra.mxu0 0.0
        %831 = vmatprep.subr.mxu0 0.0
        %832 = vmatpush1.msra.mxu0 0.0
        %833 = vmatprep.subr.mxu0 0.0
        %834 = vmatpush1.msra.mxu0 0.0
        %835 = vmatprep.subr.mxu0 0.0
        %836 = vmatpush1.msra.mxu0 0.0
        %837 = vmatprep.subr.mxu0 0.0
        %838 = vmatpush1.msra.mxu0 0.0
        %839 = vmatprep.subr.mxu0 0.0
        %840 = vmatpush1.msra.mxu0 0.0
        %841 = vmatprep.subr.mxu0 0.0
        %842 = vmatpush1.msra.mxu0 0.0
        %843 = vmatprep.subr.mxu0 0.0
        %844 = vmatpush1.msra.mxu0 0.0
        %845 = vmatprep.subr.mxu0 0.0
        %846 = vmatpush1.msra.mxu0 0.0
        %847 = vmatprep.subr.mxu0 0.0
        %848 = vmatpush1.msra.mxu0 0.0
        %849 = vmatprep.subr.mxu0 0.0
        %850 = vmatpush1.msra.mxu0 0.0
        %851 = vmatprep.subr.mxu0 0.0
        %852 = vmatpush1.msra.mxu0 0.0
        %853 = vmatprep.subr.mxu0 0.0
        %854 = vmatpush1.msra.mxu0 0.0
        %855 = vmatprep.subr.mxu0 0.0
        %856 = vmatpush1.msra.mxu0 0.0
        %857 = vmatprep.subr.mxu0 0.0
        %858 = vmatpush1.msra.mxu0 0.0
        %859 = vmatprep.subr.mxu0 0.0
        %860 = vmatpush1.msra.mxu0 0.0
        %861 = vmatprep.subr.mxu0 0.0
        %862 = vmatpush1.msra.mxu0 0.0
        %863 = vmatprep.subr.mxu0 0.0
        %864 = vmatpush1.msra.mxu0 0.0
        %865 = vmatprep.subr.mxu0 0.0
        %866 = vmatpush1.msra.mxu0 0.0
        %867 = vmatprep.subr.mxu0 0.0
        %868 = vmatpush1.msra.mxu0 0.0
        %869 = vmatprep.subr.mxu0 0.0
        %870 = vmatpush1.msra.mxu0 0.0
        %871 = vmatprep.subr.mxu0 0.0
        %872 = vmatpush1.msra.mxu0 0.0
        %873 = vmatprep.mubr.f32.mxu0 0.0
        %v874 = vand.u32 %v204, 4294901760
        %v875 = vsub.f32 %v204, %v874
        %876 = vmatmul.mubr.f32.gmra.mrb[0].mxu0 %v875
        %v877 = vpop.f32.mrb[0].mxu0
        %v878 = vadd.f32 %v804, %v877
        %v879 = vpop.f32.mrb[0].mxu0
        %880 = vdwg.mxu0
        %881 = vmatprep.subr.mxu0 0.0
        %882 = vmatpush1.msra.mxu0 %v153
        %883 = vmatprep.subr.mxu0 0.0
        %884 = vmatpush1.msra.mxu0 %v154
        %885 = vmatprep.subr.mxu0 0.0
        %886 = vmatpush1.msra.mxu0 0.0
        %887 = vmatprep.subr.mxu0 0.0
        %888 = vmatpush1.msra.mxu0 0.0
        %889 = vmatprep.subr.mxu0 0.0
        %890 = vmatpush1.msra.mxu0 0.0
        %891 = vmatprep.subr.mxu0 0.0
        %892 = vmatpush1.msra.mxu0 0.0
        %893 = vmatprep.subr.mxu0 0.0
        %894 = vmatpush1.msra.mxu0 0.0
        %895 = vmatprep.subr.mxu0 0.0
        %896 = vmatpush1.msra.mxu0 0.0
        %897 = vmatprep.subr.mxu0 0.0
        %898 = vmatpush1.msra.mxu0 0.0
        %899 = vmatprep.subr.mxu0 0.0
        %900 = vmatpush1.msra.mxu0 0.0
        %901 = vmatprep.subr.mxu0 0.0
        %902 = vmatpush1.msra.mxu0 0.0
        %903 = vmatprep.subr.mxu0 0.0
        %904 = vmatpush1.msra.mxu0 0.0
        %905 = vmatprep.subr.mxu0 0.0
        %906 = vmatpush1.msra.mxu0 0.0
        %907 = vmatprep.subr.mxu0 0.0
        %908 = vmatpush1.msra.mxu0 0.0
        %909 = vmatprep.subr.mxu0 0.0
        %910 = vmatpush1.msra.mxu0 0.0
        %911 = vmatprep.subr.mxu0 0.0
        %912 = vmatpush1.msra.mxu0 0.0
        %913 = vmatprep.subr.mxu0 0.0
        %914 = vmatpush1.msra.mxu0 0.0
        %915 = vmatprep.subr.mxu0 0.0
        %916 = vmatpush1.msra.mxu0 0.0
        %917 = vmatprep.subr.mxu0 0.0
        %918 = vmatpush1.msra.mxu0 0.0
        %919 = vmatprep.subr.mxu0 0.0
        %920 = vmatpush1.msra.mxu0 0.0
        %921 = vmatprep.subr.mxu0 0.0
        %922 = vmatpush1.msra.mxu0 0.0
        %923 = vmatprep.subr.mxu0 0.0
        %924 = vmatpush1.msra.mxu0 0.0
        %925 = vmatprep.subr.mxu0 0.0
        %926 = vmatpush1.msra.mxu0 0.0
        %927 = vmatprep.subr.mxu0 0.0
        %928 = vmatpush1.msra.mxu0 0.0
        %929 = vmatprep.subr.mxu0 0.0
        %930 = vmatpush1.msra.mxu0 0.0
        %931 = vmatprep.subr.mxu0 0.0
        %932 = vmatpush1.msra.mxu0 0.0
        %933 = vmatprep.subr.mxu0 0.0
        %934 = vmatpush1.msra.mxu0 0.0
        %935 = vmatprep.subr.mxu0 0.0
        %936 = vmatpush1.msra.mxu0 0.0
        %937 = vmatprep.subr.mxu0 0.0
        %938 = vmatpush1.msra.mxu0 0.0
        %939 = vmatprep.subr.mxu0 0.0
        %940 = vmatpush1.msra.mxu0 0.0
        %941 = vmatprep.subr.mxu0 0.0
        %942 = vmatpush1.msra.mxu0 0.0
        %943 = vmatprep.subr.mxu0 0.0
        %944 = vmatpush1.msra.mxu0 0.0
        %945 = vmatprep.mubr.f32.mxu0 0.0
        %v946 = vand.u32 %v204, 4294901760
        %v947 = vsub.f32 %v204, %v946
        %v948 = vand.u32 %v947, 4294901760
        %949 = vmatmul.mubr.f32.gmra.mrb[0].mxu0 %v948
        %v950 = vpop.f32.mrb[0].mxu0
        %v951 = vadd.f32 %v878, %v950
        %v952 = vpop.f32.mrb[0].mxu0
        %953 = vdwg.mxu0
        %954 = vmatprep.subr.mxu0 0.0
        %v955 = vsub.f32 %v153, %v153
        %v956 = vand.u32 %v955, 4294901760
        %957 = vmatpush1.msra.mxu0 %v956
        %958 = vmatprep.subr.mxu0 0.0
        %v959 = vsub.f32 %v154, %v154
        %v960 = vand.u32 %v959, 4294901760
        %961 = vmatpush1.msra.mxu0 %v960
        %962 = vmatprep.subr.mxu0 0.0
        %963 = vmatpush1.msra.mxu0 0.0
        %964 = vmatprep.subr.mxu0 0.0
        %965 = vmatpush1.msra.mxu0 0.0
        %966 = vmatprep.subr.mxu0 0.0
        %967 = vmatpush1.msra.mxu0 0.0
        %968 = vmatprep.subr.mxu0 0.0
        %969 = vmatpush1.msra.mxu0 0.0
        %970 = vmatprep.subr.mxu0 0.0
        %971 = vmatpush1.msra.mxu0 0.0
        %972 = vmatprep.subr.mxu0 0.0
        %973 = vmatpush1.msra.mxu0 0.0
        %974 = vmatprep.subr.mxu0 0.0
        %975 = vmatpush1.msra.mxu0 0.0
        %976 = vmatprep.subr.mxu0 0.0
        %977 = vmatpush1.msra.mxu0 0.0
        %978 = vmatprep.subr.mxu0 0.0
        %979 = vmatpush1.msra.mxu0 0.0
        %980 = vmatprep.subr.mxu0 0.0
        %981 = vmatpush1.msra.mxu0 0.0
        %982 = vmatprep.subr.mxu0 0.0
        %983 = vmatpush1.msra.mxu0 0.0
        %984 = vmatprep.subr.mxu0 0.0
        %985 = vmatpush1.msra.mxu0 0.0
        %986 = vmatprep.subr.mxu0 0.0
        %987 = vmatpush1.msra.mxu0 0.0
        %988 = vmatprep.subr.mxu0 0.0
        %989 = vmatpush1.msra.mxu0 0.0
        %990 = vmatprep.subr.mxu0 0.0
        %991 = vmatpush1.msra.mxu0 0.0
        %992 = vmatprep.subr.mxu0 0.0
        %993 = vmatpush1.msra.mxu0 0.0
        %994 = vmatprep.subr.mxu0 0.0
        %995 = vmatpush1.msra.mxu0 0.0
        %996 = vmatprep.subr.mxu0 0.0
        %997 = vmatpush1.msra.mxu0 0.0
        %998 = vmatprep.subr.mxu0 0.0
        %999 = vmatpush1.msra.mxu0 0.0
        %1000 = vmatprep.subr.mxu0 0.0
        %1001 = vmatpush1.msra.mxu0 0.0
        %1002 = vmatprep.subr.mxu0 0.0
        %1003 = vmatpush1.msra.mxu0 0.0
        %1004 = vmatprep.subr.mxu0 0.0
        %1005 = vmatpush1.msra.mxu0 0.0
        %1006 = vmatprep.subr.mxu0 0.0
        %1007 = vmatpush1.msra.mxu0 0.0
        %1008 = vmatprep.subr.mxu0 0.0
        %1009 = vmatpush1.msra.mxu0 0.0
        %1010 = vmatprep.subr.mxu0 0.0
        %1011 = vmatpush1.msra.mxu0 0.0
        %1012 = vmatprep.subr.mxu0 0.0
        %1013 = vmatpush1.msra.mxu0 0.0
        %1014 = vmatprep.subr.mxu0 0.0
        %1015 = vmatpush1.msra.mxu0 0.0
        %1016 = vmatprep.subr.mxu0 0.0
        %1017 = vmatpush1.msra.mxu0 0.0
        %1018 = vmatprep.subr.mxu0 0.0
        %1019 = vmatpush1.msra.mxu0 0.0
        %1020 = vmatprep.subr.mxu0 0.0
        %1021 = vmatpush1.msra.mxu0 0.0
        %1022 = vmatprep.mubr.f32.mxu0 0.0
        %v1023 = vand.u32 %v204, 4294901760
        %1024 = vmatmul.mubr.f32.gmra.mrb[0].mxu0 %v1023
        %v1025 = vpop.f32.mrb[0].mxu0
        %v1026 = vadd.f32 %v951, %v1025
        %v1027 = vpop.f32.mrb[0].mxu0
        %1028 = vdwg.mxu0
        %1029 = vmatprep.subr.mxu0 0.0
        %1030 = vmatpush1.msra.mxu0 %v153
        %1031 = vmatprep.subr.mxu0 0.0
        %1032 = vmatpush1.msra.mxu0 %v154
        %1033 = vmatprep.subr.mxu0 0.0
        %1034 = vmatpush1.msra.mxu0 0.0
        %1035 = vmatprep.subr.mxu0 0.0
        %1036 = vmatpush1.msra.mxu0 0.0
        %1037 = vmatprep.subr.mxu0 0.0
        %1038 = vmatpush1.msra.mxu0 0.0
        %1039 = vmatprep.subr.mxu0 0.0
        %1040 = vmatpush1.msra.mxu0 0.0
        %1041 = vmatprep.subr.mxu0 0.0
        %1042 = vmatpush1.msra.mxu0 0.0
        %1043 = vmatprep.subr.mxu0 0.0
        %1044 = vmatpush1.msra.mxu0 0.0
        %1045 = vmatprep.subr.mxu0 0.0
        %1046 = vmatpush1.msra.mxu0 0.0
        %1047 = vmatprep.subr.mxu0 0.0
        %1048 = vmatpush1.msra.mxu0 0.0
        %1049 = vmatprep.subr.mxu0 0.0
        %1050 = vmatpush1.msra.mxu0 0.0
        %1051 = vmatprep.subr.mxu0 0.0
        %1052 = vmatpush1.msra.mxu0 0.0
        %1053 = vmatprep.subr.mxu0 0.0
        %1054 = vmatpush1.msra.mxu0 0.0
        %1055 = vmatprep.subr.mxu0 0.0
        %1056 = vmatpush1.msra.mxu0 0.0
        %1057 = vmatprep.subr.mxu0 0.0
        %1058 = vmatpush1.msra.mxu0 0.0
        %1059 = vmatprep.subr.mxu0 0.0
        %1060 = vmatpush1.msra.mxu0 0.0
        %1061 = vmatprep.subr.mxu0 0.0
        %1062 = vmatpush1.msra.mxu0 0.0
        %1063 = vmatprep.subr.mxu0 0.0
        %1064 = vmatpush1.msra.mxu0 0.0
        %1065 = vmatprep.subr.mxu0 0.0
        %1066 = vmatpush1.msra.mxu0 0.0
        %1067 = vmatprep.subr.mxu0 0.0
        %1068 = vmatpush1.msra.mxu0 0.0
        %1069 = vmatprep.subr.mxu0 0.0
        %1070 = vmatpush1.msra.mxu0 0.0
        %1071 = vmatprep.subr.mxu0 0.0
        %1072 = vmatpush1.msra.mxu0 0.0
        %1073 = vmatprep.subr.mxu0 0.0
        %1074 = vmatpush1.msra.mxu0 0.0
        %1075 = vmatprep.subr.mxu0 0.0
        %1076 = vmatpush1.msra.mxu0 0.0
        %1077 = vmatprep.subr.mxu0 0.0
        %1078 = vmatpush1.msra.mxu0 0.0
        %1079 = vmatprep.subr.mxu0 0.0
        %1080 = vmatpush1.msra.mxu0 0.0
        %1081 = vmatprep.subr.mxu0 0.0
        %1082 = vmatpush1.msra.mxu0 0.0
        %1083 = vmatprep.subr.mxu0 0.0
        %1084 = vmatpush1.msra.mxu0 0.0
        %1085 = vmatprep.subr.mxu0 0.0
        %1086 = vmatpush1.msra.mxu0 0.0
        %1087 = vmatprep.subr.mxu0 0.0
        %1088 = vmatpush1.msra.mxu0 0.0
        %1089 = vmatprep.subr.mxu0 0.0
        %1090 = vmatpush1.msra.mxu0 0.0
        %1091 = vmatprep.subr.mxu0 0.0
        %1092 = vmatpush1.msra.mxu0 0.0
        %1093 = vmatprep.mubr.f32.mxu0 0.0
        %v1094 = vand.u32 %v204, 4294901760
        %1095 = vmatmul.mubr.f32.gmra.mrb[0].mxu0 %v1094
        %v1096 = vpop.f32.mrb[0].mxu0
        %v1097 = vadd.f32 %v1026, %v1096
        %v1098 = vpop.f32.mrb[0].mxu0
        %1099 = vdwg.mxu0
        %vm1100 = vcmp.lt.s32.totalorder %v150, 16
        %v1101 = vsel %vm1100, %v1097, -3.4028235e+38
        %v1102 = vmax.f32 %v650, %v1101
        %1103 = vmatprep.subr.mxu0 0.0
        %1104 = vmatpush1.msra.mxu0 %v158
        %1105 = vmatprep.subr.mxu0 0.0
        %1106 = vmatpush1.msra.mxu0 %v159
        %1107 = vmatprep.subr.mxu0 0.0
        %1108 = vmatpush1.msra.mxu0 0.0
        %1109 = vmatprep.subr.mxu0 0.0
        %1110 = vmatpush1.msra.mxu0 0.0
        %1111 = vmatprep.subr.mxu0 0.0
        %1112 = vmatpush1.msra.mxu0 0.0
        %1113 = vmatprep.subr.mxu0 0.0
        %1114 = vmatpush1.msra.mxu0 0.0
        %1115 = vmatprep.subr.mxu0 0.0
        %1116 = vmatpush1.msra.mxu0 0.0
        %1117 = vmatprep.subr.mxu0 0.0
        %1118 = vmatpush1.msra.mxu0 0.0
        %1119 = vmatprep.subr.mxu0 0.0
        %1120 = vmatpush1.msra.mxu0 0.0
        %1121 = vmatprep.subr.mxu0 0.0
        %1122 = vmatpush1.msra.mxu0 0.0
        %1123 = vmatprep.subr.mxu0 0.0
        %1124 = vmatpush1.msra.mxu0 0.0
        %1125 = vmatprep.subr.mxu0 0.0
        %1126 = vmatpush1.msra.mxu0 0.0
        %1127 = vmatprep.subr.mxu0 0.0
        %1128 = vmatpush1.msra.mxu0 0.0
        %1129 = vmatprep.subr.mxu0 0.0
        %1130 = vmatpush1.msra.mxu0 0.0
        %1131 = vmatprep.subr.mxu0 0.0
        %1132 = vmatpush1.msra.mxu0 0.0
        %1133 = vmatprep.subr.mxu0 0.0
        %1134 = vmatpush1.msra.mxu0 0.0
        %1135 = vmatprep.subr.mxu0 0.0
        %1136 = vmatpush1.msra.mxu0 0.0
        %1137 = vmatprep.subr.mxu0 0.0
        %1138 = vmatpush1.msra.mxu0 0.0
        %1139 = vmatprep.subr.mxu0 0.0
        %1140 = vmatpush1.msra.mxu0 0.0
        %1141 = vmatprep.subr.mxu0 0.0
        %1142 = vmatpush1.msra.mxu0 0.0
        %1143 = vmatprep.subr.mxu0 0.0
        %1144 = vmatpush1.msra.mxu0 0.0
        %1145 = vmatprep.subr.mxu0 0.0
        %1146 = vmatpush1.msra.mxu0 0.0
        %1147 = vmatprep.subr.mxu0 0.0
        %1148 = vmatpush1.msra.mxu0 0.0
        %1149 = vmatprep.subr.mxu0 0.0
        %1150 = vmatpush1.msra.mxu0 0.0
        %1151 = vmatprep.subr.mxu0 0.0
        %1152 = vmatpush1.msra.mxu0 0.0
        %1153 = vmatprep.subr.mxu0 0.0
        %1154 = vmatpush1.msra.mxu0 0.0
        %1155 = vmatprep.subr.mxu0 0.0
        %1156 = vmatpush1.msra.mxu0 0.0
        %1157 = vmatprep.subr.mxu0 0.0
        %1158 = vmatpush1.msra.mxu0 0.0
        %1159 = vmatprep.subr.mxu0 0.0
        %1160 = vmatpush1.msra.mxu0 0.0
        %1161 = vmatprep.subr.mxu0 0.0
        %1162 = vmatpush1.msra.mxu0 0.0
        %1163 = vmatprep.subr.mxu0 0.0
        %1164 = vmatpush1.msra.mxu0 0.0
        %1165 = vmatprep.subr.mxu0 0.0
        %1166 = vmatpush1.msra.mxu0 0.0
        %1167 = vmatprep.mubr.f32.mxu0 0.0
        %v1168 = vand.u32 %v204, 4294901760
        %v1169 = vsub.f32 %v204, %v1168
        %v1170 = vand.u32 %v1169, 4294901760
        %v1171 = vsub.f32 %v1169, %v1170
        %v1172 = vand.u32 %v1171, 4294901760
        %1173 = vmatmul.mubr.f32.gmra.mrb[0].mxu0 %v1172
        %v1174 = vpop.f32.mrb[0].mxu0
        %v1175 = vadd.f32 0.0, %v1174
        %v1176 = vpop.f32.mrb[0].mxu0
        %1177 = vdwg.mxu0
        %1178 = vmatprep.subr.mxu0 0.0
        %v1179 = vsub.f32 %v158, %v158
        %v1180 = vand.u32 %v1179, 4294901760
        %v1181 = vsub.f32 %v1179, %v1180
        %v1182 = vand.u32 %v1181, 4294901760
        %1183 = vmatpush1.msra.mxu0 %v1182
        %1184 = vmatprep.subr.mxu0 0.0
        %v1185 = vsub.f32 %v159, %v159
        %v1186 = vand.u32 %v1185, 4294901760
        %v1187 = vsub.f32 %v1185, %v1186
        %v1188 = vand.u32 %v1187, 4294901760
        %1189 = vmatpush1.msra.mxu0 %v1188
        %1190 = vmatprep.subr.mxu0 0.0
        %1191 = vmatpush1.msra.mxu0 0.0
        %1192 = vmatprep.subr.mxu0 0.0
        %1193 = vmatpush1.msra.mxu0 0.0
        %1194 = vmatprep.subr.mxu0 0.0
        %1195 = vmatpush1.msra.mxu0 0.0
        %1196 = vmatprep.subr.mxu0 0.0
        %1197 = vmatpush1.msra.mxu0 0.0
        %1198 = vmatprep.subr.mxu0 0.0
        %1199 = vmatpush1.msra.mxu0 0.0
        %1200 = vmatprep.subr.mxu0 0.0
        %1201 = vmatpush1.msra.mxu0 0.0
        %1202 = vmatprep.subr.mxu0 0.0
        %1203 = vmatpush1.msra.mxu0 0.0
        %1204 = vmatprep.subr.mxu0 0.0
        %1205 = vmatpush1.msra.mxu0 0.0
        %1206 = vmatprep.subr.mxu0 0.0
        %1207 = vmatpush1.msra.mxu0 0.0
        %1208 = vmatprep.subr.mxu0 0.0
        %1209 = vmatpush1.msra.mxu0 0.0
        %1210 = vmatprep.subr.mxu0 0.0
        %1211 = vmatpush1.msra.mxu0 0.0
        %1212 = vmatprep.subr.mxu0 0.0
        %1213 = vmatpush1.msra.mxu0 0.0
        %1214 = vmatprep.subr.mxu0 0.0
        %1215 = vmatpush1.msra.mxu0 0.0
        %1216 = vmatprep.subr.mxu0 0.0
        %1217 = vmatpush1.msra.mxu0 0.0
        %1218 = vmatprep.subr.mxu0 0.0
        %1219 = vmatpush1.msra.mxu0 0.0
        %1220 = vmatprep.subr.mxu0 0.0
        %1221 = vmatpush1.msra.mxu0 0.0
        %1222 = vmatprep.subr.mxu0 0.0
        %1223 = vmatpush1.msra.mxu0 0.0
        %1224 = vmatprep.subr.mxu0 0.0
        %1225 = vmatpush1.msra.mxu0 0.0
        %1226 = vmatprep.subr.mxu0 0.0
        %1227 = vmatpush1.msra.mxu0 0.0
        %1228 = vmatprep.subr.mxu0 0.0
        %1229 = vmatpush1.msra.mxu0 0.0
        %1230 = vmatprep.subr.mxu0 0.0
        %1231 = vmatpush1.msra.mxu0 0.0
        %1232 = vmatprep.subr.mxu0 0.0
        %1233 = vmatpush1.msra.mxu0 0.0
        %1234 = vmatprep.subr.mxu0 0.0
        %1235 = vmatpush1.msra.mxu0 0.0
        %1236 = vmatprep.subr.mxu0 0.0
        %1237 = vmatpush1.msra.mxu0 0.0
        %1238 = vmatprep.subr.mxu0 0.0
        %1239 = vmatpush1.msra.mxu0 0.0
        %1240 = vmatprep.subr.mxu0 0.0
        %1241 = vmatpush1.msra.mxu0 0.0
        %1242 = vmatprep.subr.mxu0 0.0
        %1243 = vmatpush1.msra.mxu0 0.0
        %1244 = vmatprep.subr.mxu0 0.0
        %1245 = vmatpush1.msra.mxu0 0.0
        %1246 = vmatprep.subr.mxu0 0.0
        %1247 = vmatpush1.msra.mxu0 0.0
        %1248 = vmatprep.subr.mxu0 0.0
        %1249 = vmatpush1.msra.mxu0 0.0
        %1250 = vmatprep.mubr.f32.mxu0 0.0
        %v1251 = vand.u32 %v204, 4294901760
        %1252 = vmatmul.mubr.f32.gmra.mrb[0].mxu0 %v1251
        %v1253 = vpop.f32.mrb[0].mxu0
        %v1254 = vadd.f32 %v1175, %v1253
        %v1255 = vpop.f32.mrb[0].mxu0
        %1256 = vdwg.mxu0
        %1257 = vmatprep.subr.mxu0 0.0
        %v1258 = vsub.f32 %v158, %v158
        %1259 = vmatpush1.msra.mxu0 %v1258
        %1260 = vmatprep.subr.mxu0 0.0
        %v1261 = vsub.f32 %v159, %v159
        %1262 = vmatpush1.msra.mxu0 %v1261
        %1263 = vmatprep.subr.mxu0 0.0
        %1264 = vmatpush1.msra.mxu0 0.0
        %1265 = vmatprep.subr.mxu0 0.0
        %1266 = vmatpush1.msra.mxu0 0.0
        %1267 = vmatprep.subr.mxu0 0.0
        %1268 = vmatpush1.msra.mxu0 0.0
        %1269 = vmatprep.subr.mxu0 0.0
        %1270 = vmatpush1.msra.mxu0 0.0
        %1271 = vmatprep.subr.mxu0 0.0
        %1272 = vmatpush1.msra.mxu0 0.0
        %1273 = vmatprep.subr.mxu0 0.0
        %1274 = vmatpush1.msra.mxu0 0.0
        %1275 = vmatprep.subr.mxu0 0.0
        %1276 = vmatpush1.msra.mxu0 0.0
        %1277 = vmatprep.subr.mxu0 0.0
        %1278 = vmatpush1.msra.mxu0 0.0
        %1279 = vmatprep.subr.mxu0 0.0
        %1280 = vmatpush1.msra.mxu0 0.0
        %1281 = vmatprep.subr.mxu0 0.0
        %1282 = vmatpush1.msra.mxu0 0.0
        %1283 = vmatprep.subr.mxu0 0.0
        %1284 = vmatpush1.msra.mxu0 0.0
        %1285 = vmatprep.subr.mxu0 0.0
        %1286 = vmatpush1.msra.mxu0 0.0
        %1287 = vmatprep.subr.mxu0 0.0
        %1288 = vmatpush1.msra.mxu0 0.0
        %1289 = vmatprep.subr.mxu0 0.0
        %1290 = vmatpush1.msra.mxu0 0.0
        %1291 = vmatprep.subr.mxu0 0.0
        %1292 = vmatpush1.msra.mxu0 0.0
        %1293 = vmatprep.subr.mxu0 0.0
        %1294 = vmatpush1.msra.mxu0 0.0
        %1295 = vmatprep.subr.mxu0 0.0
        %1296 = vmatpush1.msra.mxu0 0.0
        %1297 = vmatprep.subr.mxu0 0.0
        %1298 = vmatpush1.msra.mxu0 0.0
        %1299 = vmatprep.subr.mxu0 0.0
        %1300 = vmatpush1.msra.mxu0 0.0
        %1301 = vmatprep.subr.mxu0 0.0
        %1302 = vmatpush1.msra.mxu0 0.0
        %1303 = vmatprep.subr.mxu0 0.0
        %1304 = vmatpush1.msra.mxu0 0.0
        %1305 = vmatprep.subr.mxu0 0.0
        %1306 = vmatpush1.msra.mxu0 0.0
        %1307 = vmatprep.subr.mxu0 0.0
        %1308 = vmatpush1.msra.mxu0 0.0
        %1309 = vmatprep.subr.mxu0 0.0
        %1310 = vmatpush1.msra.mxu0 0.0
        %1311 = vmatprep.subr.mxu0 0.0
        %1312 = vmatpush1.msra.mxu0 0.0
        %1313 = vmatprep.subr.mxu0 0.0
        %1314 = vmatpush1.msra.mxu0 0.0
        %1315 = vmatprep.subr.mxu0 0.0
        %1316 = vmatpush1.msra.mxu0 0.0
        %1317 = vmatprep.subr.mxu0 0.0
        %1318 = vmatpush1.msra.mxu0 0.0
        %1319 = vmatprep.subr.mxu0 0.0
        %1320 = vmatpush1.msra.mxu0 0.0
        %1321 = vmatprep.subr.mxu0 0.0
        %1322 = vmatpush1.msra.mxu0 0.0
        %1323 = vmatprep.mubr.f32.mxu0 0.0
        %v1324 = vand.u32 %v204, 4294901760
        %v1325 = vsub.f32 %v204, %v1324
        %1326 = vmatmul.mubr.f32.gmra.mrb[0].mxu0 %v1325
        %v1327 = vpop.f32.mrb[0].mxu0
        %v1328 = vadd.f32 %v1254, %v1327
        %v1329 = vpop.f32.mrb[0].mxu0
        %1330 = vdwg.mxu0
        %1331 = vmatprep.subr.mxu0 0.0
        %1332 = vmatpush1.msra.mxu0 %v158
        %1333 = vmatprep.subr.mxu0 0.0
        %1334 = vmatpush1.msra.mxu0 %v159
        %1335 = vmatprep.subr.mxu0 0.0
        %1336 = vmatpush1.msra.mxu0 0.0
        %1337 = vmatprep.subr.mxu0 0.0
        %1338 = vmatpush1.msra.mxu0 0.0
        %1339 = vmatprep.subr.mxu0 0.0
        %1340 = vmatpush1.msra.mxu0 0.0
        %1341 = vmatprep.subr.mxu0 0.0
        %1342 = vmatpush1.msra.mxu0 0.0
        %1343 = vmatprep.subr.mxu0 0.0
        %1344 = vmatpush1.msra.mxu0 0.0
        %1345 = vmatprep.subr.mxu0 0.0
        %1346 = vmatpush1.msra.mxu0 0.0
        %1347 = vmatprep.subr.mxu0 0.0
        %1348 = vmatpush1.msra.mxu0 0.0
        %1349 = vmatprep.subr.mxu0 0.0
        %1350 = vmatpush1.msra.mxu0 0.0
        %1351 = vmatprep.subr.mxu0 0.0
        %1352 = vmatpush1.msra.mxu0 0.0
        %1353 = vmatprep.subr.mxu0 0.0
        %1354 = vmatpush1.msra.mxu0 0.0
        %1355 = vmatprep.subr.mxu0 0.0
        %1356 = vmatpush1.msra.mxu0 0.0
        %1357 = vmatprep.subr.mxu0 0.0
        %1358 = vmatpush1.msra.mxu0 0.0
        %1359 = vmatprep.subr.mxu0 0.0
        %1360 = vmatpush1.msra.mxu0 0.0
        %1361 = vmatprep.subr.mxu0 0.0
        %1362 = vmatpush1.msra.mxu0 0.0
        %1363 = vmatprep.subr.mxu0 0.0
        %1364 = vmatpush1.msra.mxu0 0.0
        %1365 = vmatprep.subr.mxu0 0.0
        %1366 = vmatpush1.msra.mxu0 0.0
        %1367 = vmatprep.subr.mxu0 0.0
        %1368 = vmatpush1.msra.mxu0 0.0
        %1369 = vmatprep.subr.mxu0 0.0
        %1370 = vmatpush1.msra.mxu0 0.0
        %1371 = vmatprep.subr.mxu0 0.0
        %1372 = vmatpush1.msra.mxu0 0.0
        %1373 = vmatprep.subr.mxu0 0.0
        %1374 = vmatpush1.msra.mxu0 0.0
        %1375 = vmatprep.subr.mxu0 0.0
        %1376 = vmatpush1.msra.mxu0 0.0
        %1377 = vmatprep.subr.mxu0 0.0
        %1378 = vmatpush1.msra.mxu0 0.0
        %1379 = vmatprep.subr.mxu0 0.0
        %1380 = vmatpush1.msra.mxu0 0.0
        %1381 = vmatprep.subr.mxu0 0.0
        %1382 = vmatpush1.msra.mxu0 0.0
        %1383 = vmatprep.subr.mxu0 0.0
        %1384 = vmatpush1.msra.mxu0 0.0
        %1385 = vmatprep.subr.mxu0 0.0
        %1386 = vmatpush1.msra.mxu0 0.0
        %1387 = vmatprep.subr.mxu0 0.0
        %1388 = vmatpush1.msra.mxu0 0.0
        %1389 = vmatprep.subr.mxu0 0.0
        %1390 = vmatpush1.msra.mxu0 0.0
        %1391 = vmatprep.subr.mxu0 0.0
        %1392 = vmatpush1.msra.mxu0 0.0
        %1393 = vmatprep.subr.mxu0 0.0
        %1394 = vmatpush1.msra.mxu0 0.0
        %1395 = vmatprep.mubr.f32.mxu0 0.0
        %v1396 = vand.u32 %v204, 4294901760
        %v1397 = vsub.f32 %v204, %v1396
        %v1398 = vand.u32 %v1397, 4294901760
        %1399 = vmatmul.mubr.f32.gmra.mrb[0].mxu0 %v1398
        %v1400 = vpop.f32.mrb[0].mxu0
        %v1401 = vadd.f32 %v1328, %v1400
        %v1402 = vpop.f32.mrb[0].mxu0
        %1403 = vdwg.mxu0
        %1404 = vmatprep.subr.mxu0 0.0
        %v1405 = vsub.f32 %v158, %v158
        %v1406 = vand.u32 %v1405, 4294901760
        %1407 = vmatpush1.msra.mxu0 %v1406
        %1408 = vmatprep.subr.mxu0 0.0
        %v1409 = vsub.f32 %v159, %v159
        %v1410 = vand.u32 %v1409, 4294901760
        %1411 = vmatpush1.msra.mxu0 %v1410
        %1412 = vmatprep.subr.mxu0 0.0
        %1413 = vmatpush1.msra.mxu0 0.0
        %1414 = vmatprep.subr.mxu0 0.0
        %1415 = vmatpush1.msra.mxu0 0.0
        %1416 = vmatprep.subr.mxu0 0.0
        %1417 = vmatpush1.msra.mxu0 0.0
        %1418 = vmatprep.subr.mxu0 0.0
        %1419 = vmatpush1.msra.mxu0 0.0
        %1420 = vmatprep.subr.mxu0 0.0
        %1421 = vmatpush1.msra.mxu0 0.0
        %1422 = vmatprep.subr.mxu0 0.0
        %1423 = vmatpush1.msra.mxu0 0.0
        %1424 = vmatprep.subr.mxu0 0.0
        %1425 = vmatpush1.msra.mxu0 0.0
        %1426 = vmatprep.subr.mxu0 0.0
        %1427 = vmatpush1.msra.mxu0 0.0
        %1428 = vmatprep.subr.mxu0 0.0
        %1429 = vmatpush1.msra.mxu0 0.0
        %1430 = vmatprep.subr.mxu0 0.0
        %1431 = vmatpush1.msra.mxu0 0.0
        %1432 = vmatprep.subr.mxu0 0.0
        %1433 = vmatpush1.msra.mxu0 0.0
        %1434 = vmatprep.subr.mxu0 0.0
        %1435 = vmatpush1.msra.mxu0 0.0
        %1436 = vmatprep.subr.mxu0 0.0
        %1437 = vmatpush1.msra.mxu0 0.0
        %1438 = vmatprep.subr.mxu0 0.0
        %1439 = vmatpush1.msra.mxu0 0.0
        %1440 = vmatprep.subr.mxu0 0.0
        %1441 = vmatpush1.msra.mxu0 0.0
        %1442 = vmatprep.subr.mxu0 0.0
        %1443 = vmatpush1.msra.mxu0 0.0
        %1444 = vmatprep.subr.mxu0 0.0
        %1445 = vmatpush1.msra.mxu0 0.0
        %1446 = vmatprep.subr.mxu0 0.0
        %1447 = vmatpush1.msra.mxu0 0.0
        %1448 = vmatprep.subr.mxu0 0.0
        %1449 = vmatpush1.msra.mxu0 0.0
        %1450 = vmatprep.subr.mxu0 0.0
        %1451 = vmatpush1.msra.mxu0 0.0
        %1452 = vmatprep.subr.mxu0 0.0
        %1453 = vmatpush1.msra.mxu0 0.0
        %1454 = vmatprep.subr.mxu0 0.0
        %1455 = vmatpush1.msra.mxu0 0.0
        %1456 = vmatprep.subr.mxu0 0.0
        %1457 = vmatpush1.msra.mxu0 0.0
        %1458 = vmatprep.subr.mxu0 0.0
        %1459 = vmatpush1.msra.mxu0 0.0
        %1460 = vmatprep.subr.mxu0 0.0
        %1461 = vmatpush1.msra.mxu0 0.0
        %1462 = vmatprep.subr.mxu0 0.0
        %1463 = vmatpush1.msra.mxu0 0.0
        %1464 = vmatprep.subr.mxu0 0.0
        %1465 = vmatpush1.msra.mxu0 0.0
        %1466 = vmatprep.subr.mxu0 0.0
        %1467 = vmatpush1.msra.mxu0 0.0
        %1468 = vmatprep.subr.mxu0 0.0
        %1469 = vmatpush1.msra.mxu0 0.0
        %1470 = vmatprep.subr.mxu0 0.0
        %1471 = vmatpush1.msra.mxu0 0.0
        %1472 = vmatprep.mubr.f32.mxu0 0.0
        %v1473 = vand.u32 %v204, 4294901760
        %1474 = vmatmul.mubr.f32.gmra.mrb[0].mxu0 %v1473
        %v1475 = vpop.f32.mrb[0].mxu0
        %v1476 = vadd.f32 %v1401, %v1475
        %v1477 = vpop.f32.mrb[0].mxu0
        %1478 = vdwg.mxu0
        %1479 = vmatprep.subr.mxu0 0.0
        %1480 = vmatpush1.msra.mxu0 %v158
        %1481 = vmatprep.subr.mxu0 0.0
        %1482 = vmatpush1.msra.mxu0 %v159
        %1483 = vmatprep.subr.mxu0 0.0
        %1484 = vmatpush1.msra.mxu0 0.0
        %1485 = vmatprep.subr.mxu0 0.0
        %1486 = vmatpush1.msra.mxu0 0.0
        %1487 = vmatprep.subr.mxu0 0.0
        %1488 = vmatpush1.msra.mxu0 0.0
        %1489 = vmatprep.subr.mxu0 0.0
        %1490 = vmatpush1.msra.mxu0 0.0
        %1491 = vmatprep.subr.mxu0 0.0
        %1492 = vmatpush1.msra.mxu0 0.0
        %1493 = vmatprep.subr.mxu0 0.0
        %1494 = vmatpush1.msra.mxu0 0.0
        %1495 = vmatprep.subr.mxu0 0.0
        %1496 = vmatpush1.msra.mxu0 0.0
        %1497 = vmatprep.subr.mxu0 0.0
        %1498 = vmatpush1.msra.mxu0 0.0
        %1499 = vmatprep.subr.mxu0 0.0
        %1500 = vmatpush1.msra.mxu0 0.0
        %1501 = vmatprep.subr.mxu0 0.0
        %1502 = vmatpush1.msra.mxu0 0.0
        %1503 = vmatprep.subr.mxu0 0.0
        %1504 = vmatpush1.msra.mxu0 0.0
        %1505 = vmatprep.subr.mxu0 0.0
        %1506 = vmatpush1.msra.mxu0 0.0
        %1507 = vmatprep.subr.mxu0 0.0
        %1508 = vmatpush1.msra.mxu0 0.0
        %1509 = vmatprep.subr.mxu0 0.0
        %1510 = vmatpush1.msra.mxu0 0.0
        %1511 = vmatprep.subr.mxu0 0.0
        %1512 = vmatpush1.msra.mxu0 0.0
        %1513 = vmatprep.subr.mxu0 0.0
        %1514 = vmatpush1.msra.mxu0 0.0
        %1515 = vmatprep.subr.mxu0 0.0
        %1516 = vmatpush1.msra.mxu0 0.0
        %1517 = vmatprep.subr.mxu0 0.0
        %1518 = vmatpush1.msra.mxu0 0.0
        %1519 = vmatprep.subr.mxu0 0.0
        %1520 = vmatpush1.msra.mxu0 0.0
        %1521 = vmatprep.subr.mxu0 0.0
        %1522 = vmatpush1.msra.mxu0 0.0
        %1523 = vmatprep.subr.mxu0 0.0
        %1524 = vmatpush1.msra.mxu0 0.0
        %1525 = vmatprep.subr.mxu0 0.0
        %1526 = vmatpush1.msra.mxu0 0.0
        %1527 = vmatprep.subr.mxu0 0.0
        %1528 = vmatpush1.msra.mxu0 0.0
        %1529 = vmatprep.subr.mxu0 0.0
        %1530 = vmatpush1.msra.mxu0 0.0
        %1531 = vmatprep.subr.mxu0 0.0
        %1532 = vmatpush1.msra.mxu0 0.0
        %1533 = vmatprep.subr.mxu0 0.0
        %1534 = vmatpush1.msra.mxu0 0.0
        %1535 = vmatprep.subr.mxu0 0.0
        %1536 = vmatpush1.msra.mxu0 0.0
        %1537 = vmatprep.subr.mxu0 0.0
        %1538 = vmatpush1.msra.mxu0 0.0
        %1539 = vmatprep.subr.mxu0 0.0
        %1540 = vmatpush1.msra.mxu0 0.0
        %1541 = vmatprep.subr.mxu0 0.0
        %1542 = vmatpush1.msra.mxu0 0.0
        %1543 = vmatprep.mubr.f32.mxu0 0.0
        %v1544 = vand.u32 %v204, 4294901760
        %1545 = vmatmul.mubr.f32.gmra.mrb[0].mxu0 %v1544
        %v1546 = vpop.f32.mrb[0].mxu0
        %v1547 = vadd.f32 %v1476, %v1546
        %v1548 = vpop.f32.mrb[0].mxu0
        %1549 = vdwg.mxu0
        %vm1550 = vcmp.lt.s32.totalorder %v155, 16
        %v1551 = vsel %vm1550, %v1547, -3.4028235e+38
        %v1552 = vmax.f32 %v1102, %v1551
        %v1555 = vunpack.c.l.s4 1966171168
        %v1556 = vunpack.c.0.s8 %v1555
        %v1557 = vlaneseq
        %v1558 = vshrl.u32 %v1557, 7
        %v1559 = vsub.s32 %v1556, %v1558
        %v1560 = vrot.slane %v1552, %v1559
        %v1561 = vcombine.high %v1560, %v1560
        %v1563 = vunpack.c.l.s4 1966171168
        %v1564 = vunpack.c.0.s8 %v1563
        %v1565 = vlaneseq
        %v1566 = vshrl.u32 %v1565, 7
        %v1567 = vsub.s32 %v1564, %v1566
        %v1568 = vrot.slane %v1560, %v1567
        %v1570 = vunpack.c.l.s4 1966171168
        %v1571 = vunpack.c.0.s8 %v1570
        %v1572 = vlaneseq
        %v1573 = vshrl.u32 %v1572, 7
        %v1574 = vsub.s32 %v1571, %v1573
        %v1575 = vrot.slane %v1561, %v1574
        %v1576 = vcombine.high %v1568, %v1568
        %v1577 = vcombine.high %v1575, %v1575
        %vm1582 = vcmask 40960
        %1583 = vst.msk [vmem:[%s138] sm:$0x1] %vm1582, %v1568
        %1584 = vst.msk [vmem:[%s138 + $0x8] sm:$0x1] %vm1582, %v1575
        %1585 = vst.msk [vmem:[%s138 + $0x10] sm:$0x1] %vm1582, %v1576
        %1586 = vst.msk [vmem:[%s138 + $0x18] sm:$0x1] %vm1582, %v1577
        %v1587 = vld [vmem:[%s114 + $0x3] sm:$0x7]
        %v1588 = vld [vmem:[%s114 + $0x13] sm:$0x7]
        %v1589 = vld [vmem:[%s114 + $0x23] sm:$0x7]
        %v1590 = vld [vmem:[%s114 + $0x33] sm:$0x7]
        %v1591 = vsel %vm164, %v1587, -inf
        %v1592 = vrot.slane %v1591, 4
        %v1593 = vmax.f32 %v1591, %v1592
        %v1594 = vrot.slane %v1593, 2
        %v1595 = vmax.f32 %v1593, %v1594
        %v1596 = vrot.slane %v1595, 1
        %v1597 = vmax.f32 %v1595, %v1596
        %v1598 = vsel %vm164, %v1588, -inf
        %v1599 = vrot.slane %v1598, 4
        %v1600 = vmax.f32 %v1598, %v1599
        %v1601 = vrot.slane %v1600, 2
        %v1602 = vmax.f32 %v1600, %v1601
        %v1603 = vrot.slane %v1602, 1
        %v1604 = vmax.f32 %v1602, %v1603
        %v1605 = vsel %vm164, %v1589, -inf
        %v1606 = vrot.slane %v1605, 4
        %v1607 = vmax.f32 %v1605, %v1606
        %v1608 = vrot.slane %v1607, 2
        %v1609 = vmax.f32 %v1607, %v1608
        %v1610 = vrot.slane %v1609, 1
        %v1611 = vmax.f32 %v1609, %v1610
        %v1612 = vsel %vm164, %v1590, -inf
        %v1613 = vrot.slane %v1612, 4
        %v1614 = vmax.f32 %v1612, %v1613
        %v1615 = vrot.slane %v1614, 2
        %v1616 = vmax.f32 %v1614, %v1615
        %v1617 = vrot.slane %v1616, 1
        %v1618 = vmax.f32 %v1616, %v1617
        %v1623 = vsel %vm197, %v1604, %v1597
        %v1624 = vsel %vm199, %v1611, %v1623
        %v1625 = vsel %vm201, %v1618, %v1624
        %v1626 = vsel %vm203, %v1625, 0
        %1628 = vmatprep.subr.mxu0 0.0
        %1629 = vmatpush1.msra.mxu0 %v148
        %1630 = vmatprep.subr.mxu0 0.0
        %1631 = vmatpush1.msra.mxu0 %v149
        %1632 = vmatprep.subr.mxu0 0.0
        %1633 = vmatpush1.msra.mxu0 0.0
        %1634 = vmatprep.subr.mxu0 0.0
        %1635 = vmatpush1.msra.mxu0 0.0
        %1636 = vmatprep.subr.mxu0 0.0
        %1637 = vmatpush1.msra.mxu0 0.0
        %1638 = vmatprep.subr.mxu0 0.0
        %1639 = vmatpush1.msra.mxu0 0.0
        %1640 = vmatprep.subr.mxu0 0.0
        %1641 = vmatpush1.msra.mxu0 0.0
        %1642 = vmatprep.subr.mxu0 0.0
        %1643 = vmatpush1.msra.mxu0 0.0
        %1644 = vmatprep.subr.mxu0 0.0
        %1645 = vmatpush1.msra.mxu0 0.0
        %1646 = vmatprep.subr.mxu0 0.0
        %1647 = vmatpush1.msra.mxu0 0.0
        %1648 = vmatprep.subr.mxu0 0.0
        %1649 = vmatpush1.msra.mxu0 0.0
        %1650 = vmatprep.subr.mxu0 0.0
        %1651 = vmatpush1.msra.mxu0 0.0
        %1652 = vmatprep.subr.mxu0 0.0
        %1653 = vmatpush1.msra.mxu0 0.0
        %1654 = vmatprep.subr.mxu0 0.0
        %1655 = vmatpush1.msra.mxu0 0.0
        %1656 = vmatprep.subr.mxu0 0.0
        %1657 = vmatpush1.msra.mxu0 0.0
        %1658 = vmatprep.subr.mxu0 0.0
        %1659 = vmatpush1.msra.mxu0 0.0
        %1660 = vmatprep.subr.mxu0 0.0
        %1661 = vmatpush1.msra.mxu0 0.0
        %1662 = vmatprep.subr.mxu0 0.0
        %1663 = vmatpush1.msra.mxu0 0.0
        %1664 = vmatprep.subr.mxu0 0.0
        %1665 = vmatpush1.msra.mxu0 0.0
        %1666 = vmatprep.subr.mxu0 0.0
        %1667 = vmatpush1.msra.mxu0 0.0
        %1668 = vmatprep.subr.mxu0 0.0
        %1669 = vmatpush1.msra.mxu0 0.0
        %1670 = vmatprep.subr.mxu0 0.0
        %1671 = vmatpush1.msra.mxu0 0.0
        %1672 = vmatprep.subr.mxu0 0.0
        %1673 = vmatpush1.msra.mxu0 0.0
        %1674 = vmatprep.subr.mxu0 0.0
        %1675 = vmatpush1.msra.mxu0 0.0
        %1676 = vmatprep.subr.mxu0 0.0
        %1677 = vmatpush1.msra.mxu0 0.0
        %1678 = vmatprep.subr.mxu0 0.0
        %1679 = vmatpush1.msra.mxu0 0.0
        %1680 = vmatprep.subr.mxu0 0.0
        %1681 = vmatpush1.msra.mxu0 0.0
        %1682 = vmatprep.subr.mxu0 0.0
        %1683 = vmatpush1.msra.mxu0 0.0
        %1684 = vmatprep.subr.mxu0 0.0
        %1685 = vmatpush1.msra.mxu0 0.0
        %1686 = vmatprep.subr.mxu0 0.0
        %1687 = vmatpush1.msra.mxu0 0.0
        %1688 = vmatprep.subr.mxu0 0.0
        %1689 = vmatpush1.msra.mxu0 0.0
        %1690 = vmatprep.subr.mxu0 0.0
        %1691 = vmatpush1.msra.mxu0 0.0
        %1692 = vmatprep.mubr.f32.mxu0 0.0
        %v1693 = vand.u32 %v1626, 4294901760
        %v1694 = vsub.f32 %v1626, %v1693
        %v1695 = vand.u32 %v1694, 4294901760
        %v1696 = vsub.f32 %v1694, %v1695
        %v1697 = vand.u32 %v1696, 4294901760
        %1698 = vmatmul.mubr.f32.gmra.mrb[0].mxu0 %v1697
        %v1699 = vpop.f32.mrb[0].mxu0
        %v1700 = vadd.f32 0.0, %v1699
        %v1701 = vpop.f32.mrb[0].mxu0
        %1702 = vdwg.mxu0
        %1703 = vmatprep.subr.mxu0 0.0
        %v1704 = vsub.f32 %v148, %v148
        %v1705 = vand.u32 %v1704, 4294901760
        %v1706 = vsub.f32 %v1704, %v1705
        %v1707 = vand.u32 %v1706, 4294901760
        %1708 = vmatpush1.msra.mxu0 %v1707
        %1709 = vmatprep.subr.mxu0 0.0
        %v1710 = vsub.f32 %v149, %v149
        %v1711 = vand.u32 %v1710, 4294901760
        %v1712 = vsub.f32 %v1710, %v1711
        %v1713 = vand.u32 %v1712, 4294901760
        %1714 = vmatpush1.msra.mxu0 %v1713
        %1715 = vmatprep.subr.mxu0 0.0
        %1716 = vmatpush1.msra.mxu0 0.0
        %1717 = vmatprep.subr.mxu0 0.0
        %1718 = vmatpush1.msra.mxu0 0.0
        %1719 = vmatprep.subr.mxu0 0.0
        %1720 = vmatpush1.msra.mxu0 0.0
        %1721 = vmatprep.subr.mxu0 0.0
        %1722 = vmatpush1.msra.mxu0 0.0
        %1723 = vmatprep.subr.mxu0 0.0
        %1724 = vmatpush1.msra.mxu0 0.0
        %1725 = vmatprep.subr.mxu0 0.0
        %1726 = vmatpush1.msra.mxu0 0.0
        %1727 = vmatprep.subr.mxu0 0.0
        %1728 = vmatpush1.msra.mxu0 0.0
        %1729 = vmatprep.subr.mxu0 0.0
        %1730 = vmatpush1.msra.mxu0 0.0
        %1731 = vmatprep.subr.mxu0 0.0
        %1732 = vmatpush1.msra.mxu0 0.0
        %1733 = vmatprep.subr.mxu0 0.0
        %1734 = vmatpush1.msra.mxu0 0.0
        %1735 = vmatprep.subr.mxu0 0.0
        %1736 = vmatpush1.msra.mxu0 0.0
        %1737 = vmatprep.subr.mxu0 0.0
        %1738 = vmatpush1.msra.mxu0 0.0
        %1739 = vmatprep.subr.mxu0 0.0
        %1740 = vmatpush1.msra.mxu0 0.0
        %1741 = vmatprep.subr.mxu0 0.0
        %1742 = vmatpush1.msra.mxu0 0.0
        %1743 = vmatprep.subr.mxu0 0.0
        %1744 = vmatpush1.msra.mxu0 0.0
        %1745 = vmatprep.subr.mxu0 0.0
        %1746 = vmatpush1.msra.mxu0 0.0
        %1747 = vmatprep.subr.mxu0 0.0
        %1748 = vmatpush1.msra.mxu0 0.0
        %1749 = vmatprep.subr.mxu0 0.0
        %1750 = vmatpush1.msra.mxu0 0.0
        %1751 = vmatprep.subr.mxu0 0.0
        %1752 = vmatpush1.msra.mxu0 0.0
        %1753 = vmatprep.subr.mxu0 0.0
        %1754 = vmatpush1.msra.mxu0 0.0
        %1755 = vmatprep.subr.mxu0 0.0
        %1756 = vmatpush1.msra.mxu0 0.0
        %1757 = vmatprep.subr.mxu0 0.0
        %1758 = vmatpush1.msra.mxu0 0.0
        %1759 = vmatprep.subr.mxu0 0.0
        %1760 = vmatpush1.msra.mxu0 0.0
        %1761 = vmatprep.subr.mxu0 0.0
        %1762 = vmatpush1.msra.mxu0 0.0
        %1763 = vmatprep.subr.mxu0 0.0
        %1764 = vmatpush1.msra.mxu0 0.0
        %1765 = vmatprep.subr.mxu0 0.0
        %1766 = vmatpush1.msra.mxu0 0.0
        %1767 = vmatprep.subr.mxu0 0.0
        %1768 = vmatpush1.msra.mxu0 0.0
        %1769 = vmatprep.subr.mxu0 0.0
        %1770 = vmatpush1.msra.mxu0 0.0
        %1771 = vmatprep.subr.mxu0 0.0
        %1772 = vmatpush1.msra.mxu0 0.0
        %1773 = vmatprep.subr.mxu0 0.0
        %1774 = vmatpush1.msra.mxu0 0.0
        %1775 = vmatprep.mubr.f32.mxu0 0.0
        %v1776 = vand.u32 %v1626, 4294901760
        %1777 = vmatmul.mubr.f32.gmra.mrb[0].mxu0 %v1776
        %v1778 = vpop.f32.mrb[0].mxu0
        %v1779 = vadd.f32 %v1700, %v1778
        %v1780 = vpop.f32.mrb[0].mxu0
        %1781 = vdwg.mxu0
        %1782 = vmatprep.subr.mxu0 0.0
        %v1783 = vsub.f32 %v148, %v148
        %1784 = vmatpush1.msra.mxu0 %v1783
        %1785 = vmatprep.subr.mxu0 0.0
        %v1786 = vsub.f32 %v149, %v149
        %1787 = vmatpush1.msra.mxu0 %v1786
        %1788 = vmatprep.subr.mxu0 0.0
        %1789 = vmatpush1.msra.mxu0 0.0
        %1790 = vmatprep.subr.mxu0 0.0
        %1791 = vmatpush1.msra.mxu0 0.0
        %1792 = vmatprep.subr.mxu0 0.0
        %1793 = vmatpush1.msra.mxu0 0.0
        %1794 = vmatprep.subr.mxu0 0.0
        %1795 = vmatpush1.msra.mxu0 0.0
        %1796 = vmatprep.subr.mxu0 0.0
        %1797 = vmatpush1.msra.mxu0 0.0
        %1798 = vmatprep.subr.mxu0 0.0
        %1799 = vmatpush1.msra.mxu0 0.0
        %1800 = vmatprep.subr.mxu0 0.0
        %1801 = vmatpush1.msra.mxu0 0.0
        %1802 = vmatprep.subr.mxu0 0.0
        %1803 = vmatpush1.msra.mxu0 0.0
        %1804 = vmatprep.subr.mxu0 0.0
        %1805 = vmatpush1.msra.mxu0 0.0
        %1806 = vmatprep.subr.mxu0 0.0
        %1807 = vmatpush1.msra.mxu0 0.0
        %1808 = vmatprep.subr.mxu0 0.0
        %1809 = vmatpush1.msra.mxu0 0.0
        %1810 = vmatprep.subr.mxu0 0.0
        %1811 = vmatpush1.msra.mxu0 0.0
        %1812 = vmatprep.subr.mxu0 0.0
        %1813 = vmatpush1.msra.mxu0 0.0
        %1814 = vmatprep.subr.mxu0 0.0
        %1815 = vmatpush1.msra.mxu0 0.0
        %1816 = vmatprep.subr.mxu0 0.0
        %1817 = vmatpush1.msra.mxu0 0.0
        %1818 = vmatprep.subr.mxu0 0.0
        %1819 = vmatpush1.msra.mxu0 0.0
        %1820 = vmatprep.subr.mxu0 0.0
        %1821 = vmatpush1.msra.mxu0 0.0
        %1822 = vmatprep.subr.mxu0 0.0
        %1823 = vmatpush1.msra.mxu0 0.0
        %1824 = vmatprep.subr.mxu0 0.0
        %1825 = vmatpush1.msra.mxu0 0.0
        %1826 = vmatprep.subr.mxu0 0.0
        %1827 = vmatpush1.msra.mxu0 0.0
        %1828 = vmatprep.subr.mxu0 0.0
        %1829 = vmatpush1.msra.mxu0 0.0
        %1830 = vmatprep.subr.mxu0 0.0
        %1831 = vmatpush1.msra.mxu0 0.0
        %1832 = vmatprep.subr.mxu0 0.0
        %1833 = vmatpush1.msra.mxu0 0.0
        %1834 = vmatprep.subr.mxu0 0.0
        %1835 = vmatpush1.msra.mxu0 0.0
        %1836 = vmatprep.subr.mxu0 0.0
        %1837 = vmatpush1.msra.mxu0 0.0
        %1838 = vmatprep.subr.mxu0 0.0
        %1839 = vmatpush1.msra.mxu0 0.0
        %1840 = vmatprep.subr.mxu0 0.0
        %1841 = vmatpush1.msra.mxu0 0.0
        %1842 = vmatprep.subr.mxu0 0.0
        %1843 = vmatpush1.msra.mxu0 0.0
        %1844 = vmatprep.subr.mxu0 0.0
        %1845 = vmatpush1.msra.mxu0 0.0
        %1846 = vmatprep.subr.mxu0 0.0
        %1847 = vmatpush1.msra.mxu0 0.0
        %1848 = vmatprep.mubr.f32.mxu0 0.0
        %v1849 = vand.u32 %v1626, 4294901760
        %v1850 = vsub.f32 %v1626, %v1849
        %1851 = vmatmul.mubr.f32.gmra.mrb[0].mxu0 %v1850
        %v1852 = vpop.f32.mrb[0].mxu0
        %v1853 = vadd.f32 %v1779, %v1852
        %v1854 = vpop.f32.mrb[0].mxu0
        %1855 = vdwg.mxu0
        %1856 = vmatprep.subr.mxu0 0.0
        %1857 = vmatpush1.msra.mxu0 %v148
        %1858 = vmatprep.subr.mxu0 0.0
        %1859 = vmatpush1.msra.mxu0 %v149
        %1860 = vmatprep.subr.mxu0 0.0
        %1861 = vmatpush1.msra.mxu0 0.0
        %1862 = vmatprep.subr.mxu0 0.0
        %1863 = vmatpush1.msra.mxu0 0.0
        %1864 = vmatprep.subr.mxu0 0.0
        %1865 = vmatpush1.msra.mxu0 0.0
        %1866 = vmatprep.subr.mxu0 0.0
        %1867 = vmatpush1.msra.mxu0 0.0
        %1868 = vmatprep.subr.mxu0 0.0
        %1869 = vmatpush1.msra.mxu0 0.0
        %1870 = vmatprep.subr.mxu0 0.0
        %1871 = vmatpush1.msra.mxu0 0.0
        %1872 = vmatprep.subr.mxu0 0.0
        %1873 = vmatpush1.msra.mxu0 0.0
        %1874 = vmatprep.subr.mxu0 0.0
        %1875 = vmatpush1.msra.mxu0 0.0
        %1876 = vmatprep.subr.mxu0 0.0
        %1877 = vmatpush1.msra.mxu0 0.0
        %1878 = vmatprep.subr.mxu0 0.0
        %1879 = vmatpush1.msra.mxu0 0.0
        %1880 = vmatprep.subr.mxu0 0.0
        %1881 = vmatpush1.msra.mxu0 0.0
        %1882 = vmatprep.subr.mxu0 0.0
        %1883 = vmatpush1.msra.mxu0 0.0
        %1884 = vmatprep.subr.mxu0 0.0
        %1885 = vmatpush1.msra.mxu0 0.0
        %1886 = vmatprep.subr.mxu0 0.0
        %1887 = vmatpush1.msra.mxu0 0.0
        %1888 = vmatprep.subr.mxu0 0.0
        %1889 = vmatpush1.msra.mxu0 0.0
        %1890 = vmatprep.subr.mxu0 0.0
        %1891 = vmatpush1.msra.mxu0 0.0
        %1892 = vmatprep.subr.mxu0 0.0
        %1893 = vmatpush1.msra.mxu0 0.0
        %1894 = vmatprep.subr.mxu0 0.0
        %1895 = vmatpush1.msra.mxu0 0.0
        %1896 = vmatprep.subr.mxu0 0.0
        %1897 = vmatpush1.msra.mxu0 0.0
        %1898 = vmatprep.subr.mxu0 0.0
        %1899 = vmatpush1.msra.mxu0 0.0
        %1900 = vmatprep.subr.mxu0 0.0
        %1901 = vmatpush1.msra.mxu0 0.0
        %1902 = vmatprep.subr.mxu0 0.0
        %1903 = vmatpush1.msra.mxu0 0.0
        %1904 = vmatprep.subr.mxu0 0.0
        %1905 = vmatpush1.msra.mxu0 0.0
        %1906 = vmatprep.subr.mxu0 0.0
        %1907 = vmatpush1.msra.mxu0 0.0
        %1908 = vmatprep.subr.mxu0 0.0
        %1909 = vmatpush1.msra.mxu0 0.0
        %1910 = vmatprep.subr.mxu0 0.0
        %1911 = vmatpush1.msra.mxu0 0.0
        %1912 = vmatprep.subr.mxu0 0.0
        %1913 = vmatpush1.msra.mxu0 0.0
        %1914 = vmatprep.subr.mxu0 0.0
        %1915 = vmatpush1.msra.mxu0 0.0
        %1916 = vmatprep.subr.mxu0 0.0
        %1917 = vmatpush1.msra.mxu0 0.0
        %1918 = vmatprep.subr.mxu0 0.0
        %1919 = vmatpush1.msra.mxu0 0.0
        %1920 = vmatprep.mubr.f32.mxu0 0.0
        %v1921 = vand.u32 %v1626, 4294901760
        %v1922 = vsub.f32 %v1626, %v1921
        %v1923 = vand.u32 %v1922, 4294901760
        %1924 = vmatmul.mubr.f32.gmra.mrb[0].mxu0 %v1923
        %v1925 = vpop.f32.mrb[0].mxu0
        %v1926 = vadd.f32 %v1853, %v1925
        %v1927 = vpop.f32.mrb[0].mxu0
        %1928 = vdwg.mxu0
        %1929 = vmatprep.subr.mxu0 0.0
        %v1930 = vsub.f32 %v148, %v148
        %v1931 = vand.u32 %v1930, 4294901760
        %1932 = vmatpush1.msra.mxu0 %v1931
        %1933 = vmatprep.subr.mxu0 0.0
        %v1934 = vsub.f32 %v149, %v149
        %v1935 = vand.u32 %v1934, 4294901760
        %1936 = vmatpush1.msra.mxu0 %v1935
        %1937 = vmatprep.subr.mxu0 0.0
        %1938 = vmatpush1.msra.mxu0 0.0
        %1939 = vmatprep.subr.mxu0 0.0
        %1940 = vmatpush1.msra.mxu0 0.0
        %1941 = vmatprep.subr.mxu0 0.0
        %1942 = vmatpush1.msra.mxu0 0.0
        %1943 = vmatprep.subr.mxu0 0.0
        %1944 = vmatpush1.msra.mxu0 0.0
        %1945 = vmatprep.subr.mxu0 0.0
        %1946 = vmatpush1.msra.mxu0 0.0
        %1947 = vmatprep.subr.mxu0 0.0
        %1948 = vmatpush1.msra.mxu0 0.0
        %1949 = vmatprep.subr.mxu0 0.0
        %1950 = vmatpush1.msra.mxu0 0.0
        %1951 = vmatprep.subr.mxu0 0.0
        %1952 = vmatpush1.msra.mxu0 0.0
        %1953 = vmatprep.subr.mxu0 0.0
        %1954 = vmatpush1.msra.mxu0 0.0
        %1955 = vmatprep.subr.mxu0 0.0
        %1956 = vmatpush1.msra.mxu0 0.0
        %1957 = vmatprep.subr.mxu0 0.0
        %1958 = vmatpush1.msra.mxu0 0.0
        %1959 = vmatprep.subr.mxu0 0.0
        %1960 = vmatpush1.msra.mxu0 0.0
        %1961 = vmatprep.subr.mxu0 0.0
        %1962 = vmatpush1.msra.mxu0 0.0
        %1963 = vmatprep.subr.mxu0 0.0
        %1964 = vmatpush1.msra.mxu0 0.0
        %1965 = vmatprep.subr.mxu0 0.0
        %1966 = vmatpush1.msra.mxu0 0.0
        %1967 = vmatprep.subr.mxu0 0.0
        %1968 = vmatpush1.msra.mxu0 0.0
        %1969 = vmatprep.subr.mxu0 0.0
        %1970 = vmatpush1.msra.mxu0 0.0
        %1971 = vmatprep.subr.mxu0 0.0
        %1972 = vmatpush1.msra.mxu0 0.0
        %1973 = vmatprep.subr.mxu0 0.0
        %1974 = vmatpush1.msra.mxu0 0.0
        %1975 = vmatprep.subr.mxu0 0.0
        %1976 = vmatpush1.msra.mxu0 0.0
        %1977 = vmatprep.subr.mxu0 0.0
        %1978 = vmatpush1.msra.mxu0 0.0
        %1979 = vmatprep.subr.mxu0 0.0
        %1980 = vmatpush1.msra.mxu0 0.0
        %1981 = vmatprep.subr.mxu0 0.0
        %1982 = vmatpush1.msra.mxu0 0.0
        %1983 = vmatprep.subr.mxu0 0.0
        %1984 = vmatpush1.msra.mxu0 0.0
        %1985 = vmatprep.subr.mxu0 0.0
        %1986 = vmatpush1.msra.mxu0 0.0
        %1987 = vmatprep.subr.mxu0 0.0
        %1988 = vmatpush1.msra.mxu0 0.0
        %1989 = vmatprep.subr.mxu0 0.0
        %1990 = vmatpush1.msra.mxu0 0.0
        %1991 = vmatprep.subr.mxu0 0.0
        %1992 = vmatpush1.msra.mxu0 0.0
        %1993 = vmatprep.subr.mxu0 0.0
        %1994 = vmatpush1.msra.mxu0 0.0
        %1995 = vmatprep.subr.mxu0 0.0
        %1996 = vmatpush1.msra.mxu0 0.0
        %1997 = vmatprep.mubr.f32.mxu0 0.0
        %v1998 = vand.u32 %v1626, 4294901760
        %1999 = vmatmul.mubr.f32.gmra.mrb[0].mxu0 %v1998
        %v2000 = vpop.f32.mrb[0].mxu0
        %v2001 = vadd.f32 %v1926, %v2000
        %v2002 = vpop.f32.mrb[0].mxu0
        %2003 = vdwg.mxu0
        %2004 = vmatprep.subr.mxu0 0.0
        %2005 = vmatpush1.msra.mxu0 %v148
        %2006 = vmatprep.subr.mxu0 0.0
        %2007 = vmatpush1.msra.mxu0 %v149
        %2008 = vmatprep.subr.mxu0 0.0
        %2009 = vmatpush1.msra.mxu0 0.0
        %2010 = vmatprep.subr.mxu0 0.0
        %2011 = vmatpush1.msra.mxu0 0.0
        %2012 = vmatprep.subr.mxu0 0.0
        %2013 = vmatpush1.msra.mxu0 0.0
        %2014 = vmatprep.subr.mxu0 0.0
        %2015 = vmatpush1.msra.mxu0 0.0
        %2016 = vmatprep.subr.mxu0 0.0
        %2017 = vmatpush1.msra.mxu0 0.0
        %2018 = vmatprep.subr.mxu0 0.0
        %2019 = vmatpush1.msra.mxu0 0.0
        %2020 = vmatprep.subr.mxu0 0.0
        %2021 = vmatpush1.msra.mxu0 0.0
        %2022 = vmatprep.subr.mxu0 0.0
        %2023 = vmatpush1.msra.mxu0 0.0
        %2024 = vmatprep.subr.mxu0 0.0
        %2025 = vmatpush1.msra.mxu0 0.0
        %2026 = vmatprep.subr.mxu0 0.0
        %2027 = vmatpush1.msra.mxu0 0.0
        %2028 = vmatprep.subr.mxu0 0.0
        %2029 = vmatpush1.msra.mxu0 0.0
        %2030 = vmatprep.subr.mxu0 0.0
        %2031 = vmatpush1.msra.mxu0 0.0
        %2032 = vmatprep.subr.mxu0 0.0
        %2033 = vmatpush1.msra.mxu0 0.0
        %2034 = vmatprep.subr.mxu0 0.0
        %2035 = vmatpush1.msra.mxu0 0.0
        %2036 = vmatprep.subr.mxu0 0.0
        %2037 = vmatpush1.msra.mxu0 0.0
        %2038 = vmatprep.subr.mxu0 0.0
        %2039 = vmatpush1.msra.mxu0 0.0
        %2040 = vmatprep.subr.mxu0 0.0
        %2041 = vmatpush1.msra.mxu0 0.0
        %2042 = vmatprep.subr.mxu0 0.0
        %2043 = vmatpush1.msra.mxu0 0.0
        %2044 = vmatprep.subr.mxu0 0.0
        %2045 = vmatpush1.msra.mxu0 0.0
        %2046 = vmatprep.subr.mxu0 0.0
        %2047 = vmatpush1.msra.mxu0 0.0
        %2048 = vmatprep.subr.mxu0 0.0
        %2049 = vmatpush1.msra.mxu0 0.0
        %2050 = vmatprep.subr.mxu0 0.0
        %2051 = vmatpush1.msra.mxu0 0.0
        %2052 = vmatprep.subr.mxu0 0.0
        %2053 = vmatpush1.msra.mxu0 0.0
        %2054 = vmatprep.subr.mxu0 0.0
        %2055 = vmatpush1.msra.mxu0 0.0
        %2056 = vmatprep.subr.mxu0 0.0
        %2057 = vmatpush1.msra.mxu0 0.0
        %2058 = vmatprep.subr.mxu0 0.0
        %2059 = vmatpush1.msra.mxu0 0.0
        %2060 = vmatprep.subr.mxu0 0.0
        %2061 = vmatpush1.msra.mxu0 0.0
        %2062 = vmatprep.subr.mxu0 0.0
        %2063 = vmatpush1.msra.mxu0 0.0
        %2064 = vmatprep.subr.mxu0 0.0
        %2065 = vmatpush1.msra.mxu0 0.0
        %2066 = vmatprep.subr.mxu0 0.0
        %2067 = vmatpush1.msra.mxu0 0.0
        %2068 = vmatprep.mubr.f32.mxu0 0.0
        %v2069 = vand.u32 %v1626, 4294901760
        %2070 = vmatmul.mubr.f32.gmra.mrb[0].mxu0 %v2069
        %v2071 = vpop.f32.mrb[0].mxu0
        %v2072 = vadd.f32 %v2001, %v2071
        %v2073 = vpop.f32.mrb[0].mxu0
        %2074 = vdwg.mxu0
        %2075 = vmatprep.subr.mxu0 0.0
        %2076 = vmatpush1.msra.mxu0 %v153
        %2077 = vmatprep.subr.mxu0 0.0
        %2078 = vmatpush1.msra.mxu0 %v154
        %2079 = vmatprep.subr.mxu0 0.0
        %2080 = vmatpush1.msra.mxu0 0.0
        %2081 = vmatprep.subr.mxu0 0.0
        %2082 = vmatpush1.msra.mxu0 0.0
        %2083 = vmatprep.subr.mxu0 0.0
        %2084 = vmatpush1.msra.mxu0 0.0
        %2085 = vmatprep.subr.mxu0 0.0
        %2086 = vmatpush1.msra.mxu0 0.0
        %2087 = vmatprep.subr.mxu0 0.0
        %2088 = vmatpush1.msra.mxu0 0.0
        %2089 = vmatprep.subr.mxu0 0.0
        %2090 = vmatpush1.msra.mxu0 0.0
        %2091 = vmatprep.subr.mxu0 0.0
        %2092 = vmatpush1.msra.mxu0 0.0
        %2093 = vmatprep.subr.mxu0 0.0
        %2094 = vmatpush1.msra.mxu0 0.0
        %2095 = vmatprep.subr.mxu0 0.0
        %2096 = vmatpush1.msra.mxu0 0.0
        %2097 = vmatprep.subr.mxu0 0.0
        %2098 = vmatpush1.msra.mxu0 0.0
        %2099 = vmatprep.subr.mxu0 0.0
        %2100 = vmatpush1.msra.mxu0 0.0
        %2101 = vmatprep.subr.mxu0 0.0
        %2102 = vmatpush1.msra.mxu0 0.0
        %2103 = vmatprep.subr.mxu0 0.0
        %2104 = vmatpush1.msra.mxu0 0.0
        %2105 = vmatprep.subr.mxu0 0.0
        %2106 = vmatpush1.msra.mxu0 0.0
        %2107 = vmatprep.subr.mxu0 0.0
        %2108 = vmatpush1.msra.mxu0 0.0
        %2109 = vmatprep.subr.mxu0 0.0
        %2110 = vmatpush1.msra.mxu0 0.0
        %2111 = vmatprep.subr.mxu0 0.0
        %2112 = vmatpush1.msra.mxu0 0.0
        %2113 = vmatprep.subr.mxu0 0.0
        %2114 = vmatpush1.msra.mxu0 0.0
        %2115 = vmatprep.subr.mxu0 0.0
        %2116 = vmatpush1.msra.mxu0 0.0
        %2117 = vmatprep.subr.mxu0 0.0
        %2118 = vmatpush1.msra.mxu0 0.0
        %2119 = vmatprep.subr.mxu0 0.0
        %2120 = vmatpush1.msra.mxu0 0.0
        %2121 = vmatprep.subr.mxu0 0.0
        %2122 = vmatpush1.msra.mxu0 0.0
        %2123 = vmatprep.subr.mxu0 0.0
        %2124 = vmatpush1.msra.mxu0 0.0
        %2125 = vmatprep.subr.mxu0 0.0
        %2126 = vmatpush1.msra.mxu0 0.0
        %2127 = vmatprep.subr.mxu0 0.0
        %2128 = vmatpush1.msra.mxu0 0.0
        %2129 = vmatprep.subr.mxu0 0.0
        %2130 = vmatpush1.msra.mxu0 0.0
        %2131 = vmatprep.subr.mxu0 0.0
        %2132 = vmatpush1.msra.mxu0 0.0
        %2133 = vmatprep.subr.mxu0 0.0
        %2134 = vmatpush1.msra.mxu0 0.0
        %2135 = vmatprep.subr.mxu0 0.0
        %2136 = vmatpush1.msra.mxu0 0.0
        %2137 = vmatprep.subr.mxu0 0.0
        %2138 = vmatpush1.msra.mxu0 0.0
        %2139 = vmatprep.mubr.f32.mxu0 0.0
        %v2140 = vand.u32 %v1626, 4294901760
        %v2141 = vsub.f32 %v1626, %v2140
        %v2142 = vand.u32 %v2141, 4294901760
        %v2143 = vsub.f32 %v2141, %v2142
        %v2144 = vand.u32 %v2143, 4294901760
        %2145 = vmatmul.mubr.f32.gmra.mrb[0].mxu0 %v2144
        %v2146 = vpop.f32.mrb[0].mxu0
        %v2147 = vadd.f32 0.0, %v2146
        %v2148 = vpop.f32.mrb[0].mxu0
        %2149 = vdwg.mxu0
        %2150 = vmatprep.subr.mxu0 0.0
        %v2151 = vsub.f32 %v153, %v153
        %v2152 = vand.u32 %v2151, 4294901760
        %v2153 = vsub.f32 %v2151, %v2152
        %v2154 = vand.u32 %v2153, 4294901760
        %2155 = vmatpush1.msra.mxu0 %v2154
        %2156 = vmatprep.subr.mxu0 0.0
        %v2157 = vsub.f32 %v154, %v154
        %v2158 = vand.u32 %v2157, 4294901760
        %v2159 = vsub.f32 %v2157, %v2158
        %v2160 = vand.u32 %v2159, 4294901760
        %2161 = vmatpush1.msra.mxu0 %v2160
        %2162 = vmatprep.subr.mxu0 0.0
        %2163 = vmatpush1.msra.mxu0 0.0
        %2164 = vmatprep.subr.mxu0 0.0
        %2165 = vmatpush1.msra.mxu0 0.0
        %2166 = vmatprep.subr.mxu0 0.0
        %2167 = vmatpush1.msra.mxu0 0.0
        %2168 = vmatprep.subr.mxu0 0.0
        %2169 = vmatpush1.msra.mxu0 0.0
        %2170 = vmatprep.subr.mxu0 0.0
        %2171 = vmatpush1.msra.mxu0 0.0
        %2172 = vmatprep.subr.mxu0 0.0
        %2173 = vmatpush1.msra.mxu0 0.0
        %2174 = vmatprep.subr.mxu0 0.0
        %2175 = vmatpush1.msra.mxu0 0.0
        %2176 = vmatprep.subr.mxu0 0.0
        %2177 = vmatpush1.msra.mxu0 0.0
        %2178 = vmatprep.subr.mxu0 0.0
        %2179 = vmatpush1.msra.mxu0 0.0
        %2180 = vmatprep.subr.mxu0 0.0
        %2181 = vmatpush1.msra.mxu0 0.0
        %2182 = vmatprep.subr.mxu0 0.0
        %2183 = vmatpush1.msra.mxu0 0.0
        %2184 = vmatprep.subr.mxu0 0.0
        %2185 = vmatpush1.msra.mxu0 0.0
        %2186 = vmatprep.subr.mxu0 0.0
        %2187 = vmatpush1.msra.mxu0 0.0
        %2188 = vmatprep.subr.mxu0 0.0
        %2189 = vmatpush1.msra.mxu0 0.0
        %2190 = vmatprep.subr.mxu0 0.0
        %2191 = vmatpush1.msra.mxu0 0.0
        %2192 = vmatprep.subr.mxu0 0.0
        %2193 = vmatpush1.msra.mxu0 0.0
        %2194 = vmatprep.subr.mxu0 0.0
        %2195 = vmatpush1.msra.mxu0 0.0
        %2196 = vmatprep.subr.mxu0 0.0
        %2197 = vmatpush1.msra.mxu0 0.0
        %2198 = vmatprep.subr.mxu0 0.0
        %2199 = vmatpush1.msra.mxu0 0.0
        %2200 = vmatprep.subr.mxu0 0.0
        %2201 = vmatpush1.msra.mxu0 0.0
        %2202 = vmatprep.subr.mxu0 0.0
        %2203 = vmatpush1.msra.mxu0 0.0
        %2204 = vmatprep.subr.mxu0 0.0
        %2205 = vmatpush1.msra.mxu0 0.0
        %2206 = vmatprep.subr.mxu0 0.0
        %2207 = vmatpush1.msra.mxu0 0.0
        %2208 = vmatprep.subr.mxu0 0.0
        %2209 = vmatpush1.msra.mxu0 0.0
        %2210 = vmatprep.subr.mxu0 0.0
        %2211 = vmatpush1.msra.mxu0 0.0
        %2212 = vmatprep.subr.mxu0 0.0
        %2213 = vmatpush1.msra.mxu0 0.0
        %2214 = vmatprep.subr.mxu0 0.0
        %2215 = vmatpush1.msra.mxu0 0.0
        %2216 = vmatprep.subr.mxu0 0.0
        %2217 = vmatpush1.msra.mxu0 0.0
        %2218 = vmatprep.subr.mxu0 0.0
        %2219 = vmatpush1.msra.mxu0 0.0
        %2220 = vmatprep.subr.mxu0 0.0
        %2221 = vmatpush1.msra.mxu0 0.0
        %2222 = vmatprep.mubr.f32.mxu0 0.0
        %v2223 = vand.u32 %v1626, 4294901760
        %2224 = vmatmul.mubr.f32.gmra.mrb[0].mxu0 %v2223
        %v2225 = vpop.f32.mrb[0].mxu0
        %v2226 = vadd.f32 %v2147, %v2225
        %v2227 = vpop.f32.mrb[0].mxu0
        %2228 = vdwg.mxu0
        %2229 = vmatprep.subr.mxu0 0.0
        %v2230 = vsub.f32 %v153, %v153
        %2231 = vmatpush1.msra.mxu0 %v2230
        %2232 = vmatprep.subr.mxu0 0.0
        %v2233 = vsub.f32 %v154, %v154
        %2234 = vmatpush1.msra.mxu0 %v2233
        %2235 = vmatprep.subr.mxu0 0.0
        %2236 = vmatpush1.msra.mxu0 0.0
        %2237 = vmatprep.subr.mxu0 0.0
        %2238 = vmatpush1.msra.mxu0 0.0
        %2239 = vmatprep.subr.mxu0 0.0
        %2240 = vmatpush1.msra.mxu0 0.0
        %2241 = vmatprep.subr.mxu0 0.0
        %2242 = vmatpush1.msra.mxu0 0.0
        %2243 = vmatprep.subr.mxu0 0.0
        %2244 = vmatpush1.msra.mxu0 0.0
        %2245 = vmatprep.subr.mxu0 0.0
        %2246 = vmatpush1.msra.mxu0 0.0
        %2247 = vmatprep.subr.mxu0 0.0
        %2248 = vmatpush1.msra.mxu0 0.0
        %2249 = vmatprep.subr.mxu0 0.0
        %2250 = vmatpush1.msra.mxu0 0.0
        %2251 = vmatprep.subr.mxu0 0.0
        %2252 = vmatpush1.msra.mxu0 0.0
        %2253 = vmatprep.subr.mxu0 0.0
        %2254 = vmatpush1.msra.mxu0 0.0
        %2255 = vmatprep.subr.mxu0 0.0
        %2256 = vmatpush1.msra.mxu0 0.0
        %2257 = vmatprep.subr.mxu0 0.0
        %2258 = vmatpush1.msra.mxu0 0.0
        %2259 = vmatprep.subr.mxu0 0.0
        %2260 = vmatpush1.msra.mxu0 0.0
        %2261 = vmatprep.subr.mxu0 0.0
        %2262 = vmatpush1.msra.mxu0 0.0
        %2263 = vmatprep.subr.mxu0 0.0
        %2264 = vmatpush1.msra.mxu0 0.0
        %2265 = vmatprep.subr.mxu0 0.0
        %2266 = vmatpush1.msra.mxu0 0.0
        %2267 = vmatprep.subr.mxu0 0.0
        %2268 = vmatpush1.msra.mxu0 0.0
        %2269 = vmatprep.subr.mxu0 0.0
        %2270 = vmatpush1.msra.mxu0 0.0
        %2271 = vmatprep.subr.mxu0 0.0
        %2272 = vmatpush1.msra.mxu0 0.0
        %2273 = vmatprep.subr.mxu0 0.0
        %2274 = vmatpush1.msra.mxu0 0.0
        %2275 = vmatprep.subr.mxu0 0.0
        %2276 = vmatpush1.msra.mxu0 0.0
        %2277 = vmatprep.subr.mxu0 0.0
        %2278 = vmatpush1.msra.mxu0 0.0
        %2279 = vmatprep.subr.mxu0 0.0
        %2280 = vmatpush1.msra.mxu0 0.0
        %2281 = vmatprep.subr.mxu0 0.0
        %2282 = vmatpush1.msra.mxu0 0.0
        %2283 = vmatprep.subr.mxu0 0.0
        %2284 = vmatpush1.msra.mxu0 0.0
        %2285 = vmatprep.subr.mxu0 0.0
        %2286 = vmatpush1.msra.mxu0 0.0
        %2287 = vmatprep.subr.mxu0 0.0
        %2288 = vmatpush1.msra.mxu0 0.0
        %2289 = vmatprep.subr.mxu0 0.0
        %2290 = vmatpush1.msra.mxu0 0.0
        %2291 = vmatprep.subr.mxu0 0.0
        %2292 = vmatpush1.msra.mxu0 0.0
        %2293 = vmatprep.subr.mxu0 0.0
        %2294 = vmatpush1.msra.mxu0 0.0
        %2295 = vmatprep.mubr.f32.mxu0 0.0
        %v2296 = vand.u32 %v1626, 4294901760
        %v2297 = vsub.f32 %v1626, %v2296
        %2298 = vmatmul.mubr.f32.gmra.mrb[0].mxu0 %v2297
        %v2299 = vpop.f32.mrb[0].mxu0
        %v2300 = vadd.f32 %v2226, %v2299
        %v2301 = vpop.f32.mrb[0].mxu0
        %2302 = vdwg.mxu0
        %2303 = vmatprep.subr.mxu0 0.0
        %2304 = vmatpush1.msra.mxu0 %v153
        %2305 = vmatprep.subr.mxu0 0.0
        %2306 = vmatpush1.msra.mxu0 %v154
        %2307 = vmatprep.subr.mxu0 0.0
        %2308 = vmatpush1.msra.mxu0 0.0
        %2309 = vmatprep.subr.mxu0 0.0
        %2310 = vmatpush1.msra.mxu0 0.0
        %2311 = vmatprep.subr.mxu0 0.0
        %2312 = vmatpush1.msra.mxu0 0.0
        %2313 = vmatprep.subr.mxu0 0.0
        %2314 = vmatpush1.msra.mxu0 0.0
        %2315 = vmatprep.subr.mxu0 0.0
        %2316 = vmatpush1.msra.mxu0 0.0
        %2317 = vmatprep.subr.mxu0 0.0
        %2318 = vmatpush1.msra.mxu0 0.0
        %2319 = vmatprep.subr.mxu0 0.0
        %2320 = vmatpush1.msra.mxu0 0.0
        %2321 = vmatprep.subr.mxu0 0.0
        %2322 = vmatpush1.msra.mxu0 0.0
        %2323 = vmatprep.subr.mxu0 0.0
        %2324 = vmatpush1.msra.mxu0 0.0
        %2325 = vmatprep.subr.mxu0 0.0
        %2326 = vmatpush1.msra.mxu0 0.0
        %2327 = vmatprep.subr.mxu0 0.0
        %2328 = vmatpush1.msra.mxu0 0.0
        %2329 = vmatprep.subr.mxu0 0.0
        %2330 = vmatpush1.msra.mxu0 0.0
        %2331 = vmatprep.subr.mxu0 0.0
        %2332 = vmatpush1.msra.mxu0 0.0
        %2333 = vmatprep.subr.mxu0 0.0
        %2334 = vmatpush1.msra.mxu0 0.0
        %2335 = vmatprep.subr.mxu0 0.0
        %2336 = vmatpush1.msra.mxu0 0.0
        %2337 = vmatprep.subr.mxu0 0.0
        %2338 = vmatpush1.msra.mxu0 0.0
        %2339 = vmatprep.subr.mxu0 0.0
        %2340 = vmatpush1.msra.mxu0 0.0
        %2341 = vmatprep.subr.mxu0 0.0
        %2342 = vmatpush1.msra.mxu0 0.0
        %2343 = vmatprep.subr.mxu0 0.0
        %2344 = vmatpush1.msra.mxu0 0.0
        %2345 = vmatprep.subr.mxu0 0.0
        %2346 = vmatpush1.msra.mxu0 0.0
        %2347 = vmatprep.subr.mxu0 0.0
        %2348 = vmatpush1.msra.mxu0 0.0
        %2349 = vmatprep.subr.mxu0 0.0
        %2350 = vmatpush1.msra.mxu0 0.0
        %2351 = vmatprep.subr.mxu0 0.0
        %2352 = vmatpush1.msra.mxu0 0.0
        %2353 = vmatprep.subr.mxu0 0.0
        %2354 = vmatpush1.msra.mxu0 0.0
        %2355 = vmatprep.subr.mxu0 0.0
        %2356 = vmatpush1.msra.mxu0 0.0
        %2357 = vmatprep.subr.mxu0 0.0
        %2358 = vmatpush1.msra.mxu0 0.0
        %2359 = vmatprep.subr.mxu0 0.0
        %2360 = vmatpush1.msra.mxu0 0.0
        %2361 = vmatprep.subr.mxu0 0.0
        %2362 = vmatpush1.msra.mxu0 0.0
        %2363 = vmatprep.subr.mxu0 0.0
        %2364 = vmatpush1.msra.mxu0 0.0
        %2365 = vmatprep.subr.mxu0 0.0
        %2366 = vmatpush1.msra.mxu0 0.0
        %2367 = vmatprep.mubr.f32.mxu0 0.0
        %v2368 = vand.u32 %v1626, 4294901760
        %v2369 = vsub.f32 %v1626, %v2368
        %v2370 = vand.u32 %v2369, 4294901760
        %2371 = vmatmul.mubr.f32.gmra.mrb[0].mxu0 %v2370
        %v2372 = vpop.f32.mrb[0].mxu0
        %v2373 = vadd.f32 %v2300, %v2372
        %v2374 = vpop.f32.mrb[0].mxu0
        %2375 = vdwg.mxu0
        %2376 = vmatprep.subr.mxu0 0.0
        %v2377 = vsub.f32 %v153, %v153
        %v2378 = vand.u32 %v2377, 4294901760
        %2379 = vmatpush1.msra.mxu0 %v2378
        %2380 = vmatprep.subr.mxu0 0.0
        %v2381 = vsub.f32 %v154, %v154
        %v2382 = vand.u32 %v2381, 4294901760
        %2383 = vmatpush1.msra.mxu0 %v2382
        %2384 = vmatprep.subr.mxu0 0.0
        %2385 = vmatpush1.msra.mxu0 0.0
        %2386 = vmatprep.subr.mxu0 0.0
        %2387 = vmatpush1.msra.mxu0 0.0
        %2388 = vmatprep.subr.mxu0 0.0
        %2389 = vmatpush1.msra.mxu0 0.0
        %2390 = vmatprep.subr.mxu0 0.0
        %2391 = vmatpush1.msra.mxu0 0.0
        %2392 = vmatprep.subr.mxu0 0.0
        %2393 = vmatpush1.msra.mxu0 0.0
        %2394 = vmatprep.subr.mxu0 0.0
        %2395 = vmatpush1.msra.mxu0 0.0
        %2396 = vmatprep.subr.mxu0 0.0
        %2397 = vmatpush1.msra.mxu0 0.0
        %2398 = vmatprep.subr.mxu0 0.0
        %2399 = vmatpush1.msra.mxu0 0.0
        %2400 = vmatprep.subr.mxu0 0.0
        %2401 = vmatpush1.msra.mxu0 0.0
        %2402 = vmatprep.subr.mxu0 0.0
        %2403 = vmatpush1.msra.mxu0 0.0
        %2404 = vmatprep.subr.mxu0 0.0
        %2405 = vmatpush1.msra.mxu0 0.0
        %2406 = vmatprep.subr.mxu0 0.0
        %2407 = vmatpush1.msra.mxu0 0.0
        %2408 = vmatprep.subr.mxu0 0.0
        %2409 = vmatpush1.msra.mxu0 0.0
        %2410 = vmatprep.subr.mxu0 0.0
        %2411 = vmatpush1.msra.mxu0 0.0
        %2412 = vmatprep.subr.mxu0 0.0
        %2413 = vmatpush1.msra.mxu0 0.0
        %2414 = vmatprep.subr.mxu0 0.0
        %2415 = vmatpush1.msra.mxu0 0.0
        %2416 = vmatprep.subr.mxu0 0.0
        %2417 = vmatpush1.msra.mxu0 0.0
        %2418 = vmatprep.subr.mxu0 0.0
        %2419 = vmatpush1.msra.mxu0 0.0
        %2420 = vmatprep.subr.mxu0 0.0
        %2421 = vmatpush1.msra.mxu0 0.0
        %2422 = vmatprep.subr.mxu0 0.0
        %2423 = vmatpush1.msra.mxu0 0.0
        %2424 = vmatprep.subr.mxu0 0.0
        %2425 = vmatpush1.msra.mxu0 0.0
        %2426 = vmatprep.subr.mxu0 0.0
        %2427 = vmatpush1.msra.mxu0 0.0
        %2428 = vmatprep.subr.mxu0 0.0
        %2429 = vmatpush1.msra.mxu0 0.0
        %2430 = vmatprep.subr.mxu0 0.0
        %2431 = vmatpush1.msra.mxu0 0.0
        %2432 = vmatprep.subr.mxu0 0.0
        %2433 = vmatpush1.msra.mxu0 0.0
        %2434 = vmatprep.subr.mxu0 0.0
        %2435 = vmatpush1.msra.mxu0 0.0
        %2436 = vmatprep.subr.mxu0 0.0
        %2437 = vmatpush1.msra.mxu0 0.0
        %2438 = vmatprep.subr.mxu0 0.0
        %2439 = vmatpush1.msra.mxu0 0.0
        %2440 = vmatprep.subr.mxu0 0.0
        %2441 = vmatpush1.msra.mxu0 0.0
        %2442 = vmatprep.subr.mxu0 0.0
        %2443 = vmatpush1.msra.mxu0 0.0
        %2444 = vmatprep.mubr.f32.mxu0 0.0
        %v2445 = vand.u32 %v1626, 4294901760
        %2446 = vmatmul.mubr.f32.gmra.mrb[0].mxu0 %v2445
        %v2447 = vpop.f32.mrb[0].mxu0
        %v2448 = vadd.f32 %v2373, %v2447
        %v2449 = vpop.f32.mrb[0].mxu0
        %2450 = vdwg.mxu0
        %2451 = vmatprep.subr.mxu0 0.0
        %2452 = vmatpush1.msra.mxu0 %v153
        %2453 = vmatprep.subr.mxu0 0.0
        %2454 = vmatpush1.msra.mxu0 %v154
        %2455 = vmatprep.subr.mxu0 0.0
        %2456 = vmatpush1.msra.mxu0 0.0
        %2457 = vmatprep.subr.mxu0 0.0
        %2458 = vmatpush1.msra.mxu0 0.0
        %2459 = vmatprep.subr.mxu0 0.0
        %2460 = vmatpush1.msra.mxu0 0.0
        %2461 = vmatprep.subr.mxu0 0.0
        %2462 = vmatpush1.msra.mxu0 0.0
        %2463 = vmatprep.subr.mxu0 0.0
        %2464 = vmatpush1.msra.mxu0 0.0
        %2465 = vmatprep.subr.mxu0 0.0
        %2466 = vmatpush1.msra.mxu0 0.0
        %2467 = vmatprep.subr.mxu0 0.0
        %2468 = vmatpush1.msra.mxu0 0.0
        %2469 = vmatprep.subr.mxu0 0.0
        %2470 = vmatpush1.msra.mxu0 0.0
        %2471 = vmatprep.subr.mxu0 0.0
        %2472 = vmatpush1.msra.mxu0 0.0
        %2473 = vmatprep.subr.mxu0 0.0
        %2474 = vmatpush1.msra.mxu0 0.0
        %2475 = vmatprep.subr.mxu0 0.0
        %2476 = vmatpush1.msra.mxu0 0.0
        %2477 = vmatprep.subr.mxu0 0.0
        %2478 = vmatpush1.msra.mxu0 0.0
        %2479 = vmatprep.subr.mxu0 0.0
        %2480 = vmatpush1.msra.mxu0 0.0
        %2481 = vmatprep.subr.mxu0 0.0
        %2482 = vmatpush1.msra.mxu0 0.0
        %2483 = vmatprep.subr.mxu0 0.0
        %2484 = vmatpush1.msra.mxu0 0.0
        %2485 = vmatprep.subr.mxu0 0.0
        %2486 = vmatpush1.msra.mxu0 0.0
        %2487 = vmatprep.subr.mxu0 0.0
        %2488 = vmatpush1.msra.mxu0 0.0
        %2489 = vmatprep.subr.mxu0 0.0
        %2490 = vmatpush1.msra.mxu0 0.0
        %2491 = vmatprep.subr.mxu0 0.0
        %2492 = vmatpush1.msra.mxu0 0.0
        %2493 = vmatprep.subr.mxu0 0.0
        %2494 = vmatpush1.msra.mxu0 0.0
        %2495 = vmatprep.subr.mxu0 0.0
        %2496 = vmatpush1.msra.mxu0 0.0
        %2497 = vmatprep.subr.mxu0 0.0
        %2498 = vmatpush1.msra.mxu0 0.0
        %2499 = vmatprep.subr.mxu0 0.0
        %2500 = vmatpush1.msra.mxu0 0.0
        %2501 = vmatprep.subr.mxu0 0.0
        %2502 = vmatpush1.msra.mxu0 0.0
        %2503 = vmatprep.subr.mxu0 0.0
        %2504 = vmatpush1.msra.mxu0 0.0
        %2505 = vmatprep.subr.mxu0 0.0
        %2506 = vmatpush1.msra.mxu0 0.0
        %2507 = vmatprep.subr.mxu0 0.0
        %2508 = vmatpush1.msra.mxu0 0.0
        %2509 = vmatprep.subr.mxu0 0.0
        %2510 = vmatpush1.msra.mxu0 0.0
        %2511 = vmatprep.subr.mxu0 0.0
        %2512 = vmatpush1.msra.mxu0 0.0
        %2513 = vmatprep.subr.mxu0 0.0
        %2514 = vmatpush1.msra.mxu0 0.0
        %2515 = vmatprep.mubr.f32.mxu0 0.0
        %v2516 = vand.u32 %v1626, 4294901760
        %2517 = vmatmul.mubr.f32.gmra.mrb[0].mxu0 %v2516
        %v2518 = vpop.f32.mrb[0].mxu0
        %v2519 = vadd.f32 %v2448, %v2518
        %v2520 = vpop.f32.mrb[0].mxu0
        %2521 = vdwg.mxu0
        %v2522 = vsel %vm1100, %v2519, -3.4028235e+38
        %v2523 = vmax.f32 %v2072, %v2522
        %2524 = vmatprep.subr.mxu0 0.0
        %2525 = vmatpush1.msra.mxu0 %v158
        %2526 = vmatprep.subr.mxu0 0.0
        %2527 = vmatpush1.msra.mxu0 %v159
        %2528 = vmatprep.subr.mxu0 0.0
        %2529 = vmatpush1.msra.mxu0 0.0
        %2530 = vmatprep.subr.mxu0 0.0
        %2531 = vmatpush1.msra.mxu0 0.0
        %2532 = vmatprep.subr.mxu0 0.0
        %2533 = vmatpush1.msra.mxu0 0.0
        %2534 = vmatprep.subr.mxu0 0.0
        %2535 = vmatpush1.msra.mxu0 0.0
        %2536 = vmatprep.subr.mxu0 0.0
        %2537 = vmatpush1.msra.mxu0 0.0
        %2538 = vmatprep.subr.mxu0 0.0
        %2539 = vmatpush1.msra.mxu0 0.0
        %2540 = vmatprep.subr.mxu0 0.0
        %2541 = vmatpush1.msra.mxu0 0.0
        %2542 = vmatprep.subr.mxu0 0.0
        %2543 = vmatpush1.msra.mxu0 0.0
        %2544 = vmatprep.subr.mxu0 0.0
        %2545 = vmatpush1.msra.mxu0 0.0
        %2546 = vmatprep.subr.mxu0 0.0
        %2547 = vmatpush1.msra.mxu0 0.0
        %2548 = vmatprep.subr.mxu0 0.0
        %2549 = vmatpush1.msra.mxu0 0.0
        %2550 = vmatprep.subr.mxu0 0.0
        %2551 = vmatpush1.msra.mxu0 0.0
        %2552 = vmatprep.subr.mxu0 0.0
        %2553 = vmatpush1.msra.mxu0 0.0
        %2554 = vmatprep.subr.mxu0 0.0
        %2555 = vmatpush1.msra.mxu0 0.0
        %2556 = vmatprep.subr.mxu0 0.0
        %2557 = vmatpush1.msra.mxu0 0.0
        %2558 = vmatprep.subr.mxu0 0.0
        %2559 = vmatpush1.msra.mxu0 0.0
        %2560 = vmatprep.subr.mxu0 0.0
        %2561 = vmatpush1.msra.mxu0 0.0
        %2562 = vmatprep.subr.mxu0 0.0
        %2563 = vmatpush1.msra.mxu0 0.0
        %2564 = vmatprep.subr.mxu0 0.0
        %2565 = vmatpush1.msra.mxu0 0.0
        %2566 = vmatprep.subr.mxu0 0.0
        %2567 = vmatpush1.msra.mxu0 0.0
        %2568 = vmatprep.subr.mxu0 0.0
        %2569 = vmatpush1.msra.mxu0 0.0
        %2570 = vmatprep.subr.mxu0 0.0
        %2571 = vmatpush1.msra.mxu0 0.0
        %2572 = vmatprep.subr.mxu0 0.0
        %2573 = vmatpush1.msra.mxu0 0.0
        %2574 = vmatprep.subr.mxu0 0.0
        %2575 = vmatpush1.msra.mxu0 0.0
        %2576 = vmatprep.subr.mxu0 0.0
        %2577 = vmatpush1.msra.mxu0 0.0
        %2578 = vmatprep.subr.mxu0 0.0
        %2579 = vmatpush1.msra.mxu0 0.0
        %2580 = vmatprep.subr.mxu0 0.0
        %2581 = vmatpush1.msra.mxu0 0.0
        %2582 = vmatprep.subr.mxu0 0.0
        %2583 = vmatpush1.msra.mxu0 0.0
        %2584 = vmatprep.subr.mxu0 0.0
        %2585 = vmatpush1.msra.mxu0 0.0
        %2586 = vmatprep.subr.mxu0 0.0
        %2587 = vmatpush1.msra.mxu0 0.0
        %2588 = vmatprep.mubr.f32.mxu0 0.0
        %v2589 = vand.u32 %v1626, 4294901760
        %v2590 = vsub.f32 %v1626, %v2589
        %v2591 = vand.u32 %v2590, 4294901760
        %v2592 = vsub.f32 %v2590, %v2591
        %v2593 = vand.u32 %v2592, 4294901760
        %2594 = vmatmul.mubr.f32.gmra.mrb[0].mxu0 %v2593
        %v2595 = vpop.f32.mrb[0].mxu0
        %v2596 = vadd.f32 0.0, %v2595
        %v2597 = vpop.f32.mrb[0].mxu0
        %2598 = vdwg.mxu0
        %2599 = vmatprep.subr.mxu0 0.0
        %v2600 = vsub.f32 %v158, %v158
        %v2601 = vand.u32 %v2600, 4294901760
        %v2602 = vsub.f32 %v2600, %v2601
        %v2603 = vand.u32 %v2602, 4294901760
        %2604 = vmatpush1.msra.mxu0 %v2603
        %2605 = vmatprep.subr.mxu0 0.0
        %v2606 = vsub.f32 %v159, %v159
        %v2607 = vand.u32 %v2606, 4294901760
        %v2608 = vsub.f32 %v2606, %v2607
        %v2609 = vand.u32 %v2608, 4294901760
        %2610 = vmatpush1.msra.mxu0 %v2609
        %2611 = vmatprep.subr.mxu0 0.0
        %2612 = vmatpush1.msra.mxu0 0.0
        %2613 = vmatprep.subr.mxu0 0.0
        %2614 = vmatpush1.msra.mxu0 0.0
        %2615 = vmatprep.subr.mxu0 0.0
        %2616 = vmatpush1.msra.mxu0 0.0
        %2617 = vmatprep.subr.mxu0 0.0
        %2618 = vmatpush1.msra.mxu0 0.0
        %2619 = vmatprep.subr.mxu0 0.0
        %2620 = vmatpush1.msra.mxu0 0.0
        %2621 = vmatprep.subr.mxu0 0.0
        %2622 = vmatpush1.msra.mxu0 0.0
        %2623 = vmatprep.subr.mxu0 0.0
        %2624 = vmatpush1.msra.mxu0 0.0
        %2625 = vmatprep.subr.mxu0 0.0
        %2626 = vmatpush1.msra.mxu0 0.0
        %2627 = vmatprep.subr.mxu0 0.0
        %2628 = vmatpush1.msra.mxu0 0.0
        %2629 = vmatprep.subr.mxu0 0.0
        %2630 = vmatpush1.msra.mxu0 0.0
        %2631 = vmatprep.subr.mxu0 0.0
        %2632 = vmatpush1.msra.mxu0 0.0
        %2633 = vmatprep.subr.mxu0 0.0
        %2634 = vmatpush1.msra.mxu0 0.0
        %2635 = vmatprep.subr.mxu0 0.0
        %2636 = vmatpush1.msra.mxu0 0.0
        %2637 = vmatprep.subr.mxu0 0.0
        %2638 = vmatpush1.msra.mxu0 0.0
        %2639 = vmatprep.subr.mxu0 0.0
        %2640 = vmatpush1.msra.mxu0 0.0
        %2641 = vmatprep.subr.mxu0 0.0
        %2642 = vmatpush1.msra.mxu0 0.0
        %2643 = vmatprep.subr.mxu0 0.0
        %2644 = vmatpush1.msra.mxu0 0.0
        %2645 = vmatprep.subr.mxu0 0.0
        %2646 = vmatpush1.msra.mxu0 0.0
        %2647 = vmatprep.subr.mxu0 0.0
        %2648 = vmatpush1.msra.mxu0 0.0
        %2649 = vmatprep.subr.mxu0 0.0
        %2650 = vmatpush1.msra.mxu0 0.0
        %2651 = vmatprep.subr.mxu0 0.0
        %2652 = vmatpush1.msra.mxu0 0.0
        %2653 = vmatprep.subr.mxu0 0.0
        %2654 = vmatpush1.msra.mxu0 0.0
        %2655 = vmatprep.subr.mxu0 0.0
        %2656 = vmatpush1.msra.mxu0 0.0
        %2657 = vmatprep.subr.mxu0 0.0
        %2658 = vmatpush1.msra.mxu0 0.0
        %2659 = vmatprep.subr.mxu0 0.0
        %2660 = vmatpush1.msra.mxu0 0.0
        %2661 = vmatprep.subr.mxu0 0.0
        %2662 = vmatpush1.msra.mxu0 0.0
        %2663 = vmatprep.subr.mxu0 0.0
        %2664 = vmatpush1.msra.mxu0 0.0
        %2665 = vmatprep.subr.mxu0 0.0
        %2666 = vmatpush1.msra.mxu0 0.0
        %2667 = vmatprep.subr.mxu0 0.0
        %2668 = vmatpush1.msra.mxu0 0.0
        %2669 = vmatprep.subr.mxu0 0.0
        %2670 = vmatpush1.msra.mxu0 0.0
        %2671 = vmatprep.mubr.f32.mxu0 0.0
        %v2672 = vand.u32 %v1626, 4294901760
        %2673 = vmatmul.mubr.f32.gmra.mrb[0].mxu0 %v2672
        %v2674 = vpop.f32.mrb[0].mxu0
        %v2675 = vadd.f32 %v2596, %v2674
        %v2676 = vpop.f32.mrb[0].mxu0
        %2677 = vdwg.mxu0
        %2678 = vmatprep.subr.mxu0 0.0
        %v2679 = vsub.f32 %v158, %v158
        %2680 = vmatpush1.msra.mxu0 %v2679
        %2681 = vmatprep.subr.mxu0 0.0
        %v2682 = vsub.f32 %v159, %v159
        %2683 = vmatpush1.msra.mxu0 %v2682
        %2684 = vmatprep.subr.mxu0 0.0
        %2685 = vmatpush1.msra.mxu0 0.0
        %2686 = vmatprep.subr.mxu0 0.0
        %2687 = vmatpush1.msra.mxu0 0.0
        %2688 = vmatprep.subr.mxu0 0.0
        %2689 = vmatpush1.msra.mxu0 0.0
        %2690 = vmatprep.subr.mxu0 0.0
        %2691 = vmatpush1.msra.mxu0 0.0
        %2692 = vmatprep.subr.mxu0 0.0
        %2693 = vmatpush1.msra.mxu0 0.0
        %2694 = vmatprep.subr.mxu0 0.0
        %2695 = vmatpush1.msra.mxu0 0.0
        %2696 = vmatprep.subr.mxu0 0.0
        %2697 = vmatpush1.msra.mxu0 0.0
        %2698 = vmatprep.subr.mxu0 0.0
        %2699 = vmatpush1.msra.mxu0 0.0
        %2700 = vmatprep.subr.mxu0 0.0
        %2701 = vmatpush1.msra.mxu0 0.0
        %2702 = vmatprep.subr.mxu0 0.0
        %2703 = vmatpush1.msra.mxu0 0.0
        %2704 = vmatprep.subr.mxu0 0.0
        %2705 = vmatpush1.msra.mxu0 0.0
        %2706 = vmatprep.subr.mxu0 0.0
        %2707 = vmatpush1.msra.mxu0 0.0
        %2708 = vmatprep.subr.mxu0 0.0
        %2709 = vmatpush1.msra.mxu0 0.0
        %2710 = vmatprep.subr.mxu0 0.0
        %2711 = vmatpush1.msra.mxu0 0.0
        %2712 = vmatprep.subr.mxu0 0.0
        %2713 = vmatpush1.msra.mxu0 0.0
        %2714 = vmatprep.subr.mxu0 0.0
        %2715 = vmatpush1.msra.mxu0 0.0
        %2716 = vmatprep.subr.mxu0 0.0
        %2717 = vmatpush1.msra.mxu0 0.0
        %2718 = vmatprep.subr.mxu0 0.0
        %2719 = vmatpush1.msra.mxu0 0.0
        %2720 = vmatprep.subr.mxu0 0.0
        %2721 = vmatpush1.msra.mxu0 0.0
        %2722 = vmatprep.subr.mxu0 0.0
        %2723 = vmatpush1.msra.mxu0 0.0
        %2724 = vmatprep.subr.mxu0 0.0
        %2725 = vmatpush1.msra.mxu0 0.0
        %2726 = vmatprep.subr.mxu0 0.0
        %2727 = vmatpush1.msra.mxu0 0.0
        %2728 = vmatprep.subr.mxu0 0.0
        %2729 = vmatpush1.msra.mxu0 0.0
        %2730 = vmatprep.subr.mxu0 0.0
        %2731 = vmatpush1.msra.mxu0 0.0
        %2732 = vmatprep.subr.mxu0 0.0
        %2733 = vmatpush1.msra.mxu0 0.0
        %2734 = vmatprep.subr.mxu0 0.0
        %2735 = vmatpush1.msra.mxu0 0.0
        %2736 = vmatprep.subr.mxu0 0.0
        %2737 = vmatpush1.msra.mxu0 0.0
        %2738 = vmatprep.subr.mxu0 0.0
        %2739 = vmatpush1.msra.mxu0 0.0
        %2740 = vmatprep.subr.mxu0 0.0
        %2741 = vmatpush1.msra.mxu0 0.0
        %2742 = vmatprep.subr.mxu0 0.0
        %2743 = vmatpush1.msra.mxu0 0.0
        %2744 = vmatprep.mubr.f32.mxu0 0.0
        %v2745 = vand.u32 %v1626, 4294901760
        %v2746 = vsub.f32 %v1626, %v2745
        %2747 = vmatmul.mubr.f32.gmra.mrb[0].mxu0 %v2746
        %v2748 = vpop.f32.mrb[0].mxu0
        %v2749 = vadd.f32 %v2675, %v2748
        %v2750 = vpop.f32.mrb[0].mxu0
        %2751 = vdwg.mxu0
        %2752 = vmatprep.subr.mxu0 0.0
        %2753 = vmatpush1.msra.mxu0 %v158
        %2754 = vmatprep.subr.mxu0 0.0
        %2755 = vmatpush1.msra.mxu0 %v159
        %2756 = vmatprep.subr.mxu0 0.0
        %2757 = vmatpush1.msra.mxu0 0.0
        %2758 = vmatprep.subr.mxu0 0.0
        %2759 = vmatpush1.msra.mxu0 0.0
        %2760 = vmatprep.subr.mxu0 0.0
        %2761 = vmatpush1.msra.mxu0 0.0
        %2762 = vmatprep.subr.mxu0 0.0
        %2763 = vmatpush1.msra.mxu0 0.0
        %2764 = vmatprep.subr.mxu0 0.0
        %2765 = vmatpush1.msra.mxu0 0.0
        %2766 = vmatprep.subr.mxu0 0.0
        %2767 = vmatpush1.msra.mxu0 0.0
        %2768 = vmatprep.subr.mxu0 0.0
        %2769 = vmatpush1.msra.mxu0 0.0
        %2770 = vmatprep.subr.mxu0 0.0
        %2771 = vmatpush1.msra.mxu0 0.0
        %2772 = vmatprep.subr.mxu0 0.0
        %2773 = vmatpush1.msra.mxu0 0.0
        %2774 = vmatprep.subr.mxu0 0.0
        %2775 = vmatpush1.msra.mxu0 0.0
        %2776 = vmatprep.subr.mxu0 0.0
        %2777 = vmatpush1.msra.mxu0 0.0
        %2778 = vmatprep.subr.mxu0 0.0
        %2779 = vmatpush1.msra.mxu0 0.0
        %2780 = vmatprep.subr.mxu0 0.0
        %2781 = vmatpush1.msra.mxu0 0.0
        %2782 = vmatprep.subr.mxu0 0.0
        %2783 = vmatpush1.msra.mxu0 0.0
        %2784 = vmatprep.subr.mxu0 0.0
        %2785 = vmatpush1.msra.mxu0 0.0
        %2786 = vmatprep.subr.mxu0 0.0
        %2787 = vmatpush1.msra.mxu0 0.0
        %2788 = vmatprep.subr.mxu0 0.0
        %2789 = vmatpush1.msra.mxu0 0.0
        %2790 = vmatprep.subr.mxu0 0.0
        %2791 = vmatpush1.msra.mxu0 0.0
        %2792 = vmatprep.subr.mxu0 0.0
        %2793 = vmatpush1.msra.mxu0 0.0
        %2794 = vmatprep.subr.mxu0 0.0
        %2795 = vmatpush1.msra.mxu0 0.0
        %2796 = vmatprep.subr.mxu0 0.0
        %2797 = vmatpush1.msra.mxu0 0.0
        %2798 = vmatprep.subr.mxu0 0.0
        %2799 = vmatpush1.msra.mxu0 0.0
        %2800 = vmatprep.subr.mxu0 0.0
        %2801 = vmatpush1.msra.mxu0 0.0
        %2802 = vmatprep.subr.mxu0 0.0
        %2803 = vmatpush1.msra.mxu0 0.0
        %2804 = vmatprep.subr.mxu0 0.0
        %2805 = vmatpush1.msra.mxu0 0.0
        %2806 = vmatprep.subr.mxu0 0.0
        %2807 = vmatpush1.msra.mxu0 0.0
        %2808 = vmatprep.subr.mxu0 0.0
        %2809 = vmatpush1.msra.mxu0 0.0
        %2810 = vmatprep.subr.mxu0 0.0
        %2811 = vmatpush1.msra.mxu0 0.0
        %2812 = vmatprep.subr.mxu0 0.0
        %2813 = vmatpush1.msra.mxu0 0.0
        %2814 = vmatprep.subr.mxu0 0.0
        %2815 = vmatpush1.msra.mxu0 0.0
        %2816 = vmatprep.mubr.f32.mxu0 0.0
        %v2817 = vand.u32 %v1626, 4294901760
        %v2818 = vsub.f32 %v1626, %v2817
        %v2819 = vand.u32 %v2818, 4294901760
        %2820 = vmatmul.mubr.f32.gmra.mrb[0].mxu0 %v2819
        %v2821 = vpop.f32.mrb[0].mxu0
        %v2822 = vadd.f32 %v2749, %v2821
        %v2823 = vpop.f32.mrb[0].mxu0
        %2824 = vdwg.mxu0
        %2825 = vmatprep.subr.mxu0 0.0
        %v2826 = vsub.f32 %v158, %v158
        %v2827 = vand.u32 %v2826, 4294901760
        %2828 = vmatpush1.msra.mxu0 %v2827
        %2829 = vmatprep.subr.mxu0 0.0
        %v2830 = vsub.f32 %v159, %v159
        %v2831 = vand.u32 %v2830, 4294901760
        %2832 = vmatpush1.msra.mxu0 %v2831
        %2833 = vmatprep.subr.mxu0 0.0
        %2834 = vmatpush1.msra.mxu0 0.0
        %2835 = vmatprep.subr.mxu0 0.0
        %2836 = vmatpush1.msra.mxu0 0.0
        %2837 = vmatprep.subr.mxu0 0.0
        %2838 = vmatpush1.msra.mxu0 0.0
        %2839 = vmatprep.subr.mxu0 0.0
        %2840 = vmatpush1.msra.mxu0 0.0
        %2841 = vmatprep.subr.mxu0 0.0
        %2842 = vmatpush1.msra.mxu0 0.0
        %2843 = vmatprep.subr.mxu0 0.0
        %2844 = vmatpush1.msra.mxu0 0.0
        %2845 = vmatprep.subr.mxu0 0.0
        %2846 = vmatpush1.msra.mxu0 0.0
        %2847 = vmatprep.subr.mxu0 0.0
        %2848 = vmatpush1.msra.mxu0 0.0
        %2849 = vmatprep.subr.mxu0 0.0
        %2850 = vmatpush1.msra.mxu0 0.0
        %2851 = vmatprep.subr.mxu0 0.0
        %2852 = vmatpush1.msra.mxu0 0.0
        %2853 = vmatprep.subr.mxu0 0.0
        %2854 = vmatpush1.msra.mxu0 0.0
        %2855 = vmatprep.subr.mxu0 0.0
        %2856 = vmatpush1.msra.mxu0 0.0
        %2857 = vmatprep.subr.mxu0 0.0
        %2858 = vmatpush1.msra.mxu0 0.0
        %2859 = vmatprep.subr.mxu0 0.0
        %2860 = vmatpush1.msra.mxu0 0.0
        %2861 = vmatprep.subr.mxu0 0.0
        %2862 = vmatpush1.msra.mxu0 0.0
        %2863 = vmatprep.subr.mxu0 0.0
        %2864 = vmatpush1.msra.mxu0 0.0
        %2865 = vmatprep.subr.mxu0 0.0
        %2866 = vmatpush1.msra.mxu0 0.0
        %2867 = vmatprep.subr.mxu0 0.0
        %2868 = vmatpush1.msra.mxu0 0.0
        %2869 = vmatprep.subr.mxu0 0.0
        %2870 = vmatpush1.msra.mxu0 0.0
        %2871 = vmatprep.subr.mxu0 0.0
        %2872 = vmatpush1.msra.mxu0 0.0
        %2873 = vmatprep.subr.mxu0 0.0
        %2874 = vmatpush1.msra.mxu0 0.0
        %2875 = vmatprep.subr.mxu0 0.0
        %2876 = vmatpush1.msra.mxu0 0.0
        %2877 = vmatprep.subr.mxu0 0.0
        %2878 = vmatpush1.msra.mxu0 0.0
        %2879 = vmatprep.subr.mxu0 0.0
        %2880 = vmatpush1.msra.mxu0 0.0
        %2881 = vmatprep.subr.mxu0 0.0
        %2882 = vmatpush1.msra.mxu0 0.0
        %2883 = vmatprep.subr.mxu0 0.0
        %2884 = vmatpush1.msra.mxu0 0.0
        %2885 = vmatprep.subr.mxu0 0.0
        %2886 = vmatpush1.msra.mxu0 0.0
        %2887 = vmatprep.subr.mxu0 0.0
        %2888 = vmatpush1.msra.mxu0 0.0
        %2889 = vmatprep.subr.mxu0 0.0
        %2890 = vmatpush1.msra.mxu0 0.0
        %2891 = vmatprep.subr.mxu0 0.0
        %2892 = vmatpush1.msra.mxu0 0.0
        %2893 = vmatprep.mubr.f32.mxu0 0.0
        %v2894 = vand.u32 %v1626, 4294901760
        %2895 = vmatmul.mubr.f32.gmra.mrb[0].mxu0 %v2894
        %v2896 = vpop.f32.mrb[0].mxu0
        %v2897 = vadd.f32 %v2822, %v2896
        %v2898 = vpop.f32.mrb[0].mxu0
        %2899 = vdwg.mxu0
        %2900 = vmatprep.subr.mxu0 0.0
        %2901 = vmatpush1.msra.mxu0 %v158
        %2902 = vmatprep.subr.mxu0 0.0
        %2903 = vmatpush1.msra.mxu0 %v159
        %2904 = vmatprep.subr.mxu0 0.0
        %2905 = vmatpush1.msra.mxu0 0.0
        %2906 = vmatprep.subr.mxu0 0.0
        %2907 = vmatpush1.msra.mxu0 0.0
        %2908 = vmatprep.subr.mxu0 0.0
        %2909 = vmatpush1.msra.mxu0 0.0
        %2910 = vmatprep.subr.mxu0 0.0
        %2911 = vmatpush1.msra.mxu0 0.0
        %2912 = vmatprep.subr.mxu0 0.0
        %2913 = vmatpush1.msra.mxu0 0.0
        %2914 = vmatprep.subr.mxu0 0.0
        %2915 = vmatpush1.msra.mxu0 0.0
        %2916 = vmatprep.subr.mxu0 0.0
        %2917 = vmatpush1.msra.mxu0 0.0
        %2918 = vmatprep.subr.mxu0 0.0
        %2919 = vmatpush1.msra.mxu0 0.0
        %2920 = vmatprep.subr.mxu0 0.0
        %2921 = vmatpush1.msra.mxu0 0.0
        %2922 = vmatprep.subr.mxu0 0.0
        %2923 = vmatpush1.msra.mxu0 0.0
        %2924 = vmatprep.subr.mxu0 0.0
        %2925 = vmatpush1.msra.mxu0 0.0
        %2926 = vmatprep.subr.mxu0 0.0
        %2927 = vmatpush1.msra.mxu0 0.0
        %2928 = vmatprep.subr.mxu0 0.0
        %2929 = vmatpush1.msra.mxu0 0.0
        %2930 = vmatprep.subr.mxu0 0.0
        %2931 = vmatpush1.msra.mxu0 0.0
        %2932 = vmatprep.subr.mxu0 0.0
        %2933 = vmatpush1.msra.mxu0 0.0
        %2934 = vmatprep.subr.mxu0 0.0
        %2935 = vmatpush1.msra.mxu0 0.0
        %2936 = vmatprep.subr.mxu0 0.0
        %2937 = vmatpush1.msra.mxu0 0.0
        %2938 = vmatprep.subr.mxu0 0.0
        %2939 = vmatpush1.msra.mxu0 0.0
        %2940 = vmatprep.subr.mxu0 0.0
        %2941 = vmatpush1.msra.mxu0 0.0
        %2942 = vmatprep.subr.mxu0 0.0
        %2943 = vmatpush1.msra.mxu0 0.0
        %2944 = vmatprep.subr.mxu0 0.0
        %2945 = vmatpush1.msra.mxu0 0.0
        %2946 = vmatprep.subr.mxu0 0.0
        %2947 = vmatpush1.msra.mxu0 0.0
        %2948 = vmatprep.subr.mxu0 0.0
        %2949 = vmatpush1.msra.mxu0 0.0
        %2950 = vmatprep.subr.mxu0 0.0
        %2951 = vmatpush1.msra.mxu0 0.0
        %2952 = vmatprep.subr.mxu0 0.0
        %2953 = vmatpush1.msra.mxu0 0.0
        %2954 = vmatprep.subr.mxu0 0.0
        %2955 = vmatpush1.msra.mxu0 0.0
        %2956 = vmatprep.subr.mxu0 0.0
        %2957 = vmatpush1.msra.mxu0 0.0
        %2958 = vmatprep.subr.mxu0 0.0
        %2959 = vmatpush1.msra.mxu0 0.0
        %2960 = vmatprep.subr.mxu0 0.0
        %2961 = vmatpush1.msra.mxu0 0.0
        %2962 = vmatprep.subr.mxu0 0.0
        %2963 = vmatpush1.msra.mxu0 0.0
        %2964 = vmatprep.mubr.f32.mxu0 0.0
        %v2965 = vand.u32 %v1626, 4294901760
        %2966 = vmatmul.mubr.f32.gmra.mrb[0].mxu0 %v2965
        %v2967 = vpop.f32.mrb[0].mxu0
        %v2968 = vadd.f32 %v2897, %v2967
        %v2969 = vpop.f32.mrb[0].mxu0
        %2970 = vdwg.mxu0
        %v2971 = vsel %vm1550, %v2968, -3.4028235e+38
        %v2972 = vmax.f32 %v2523, %v2971
        %v2975 = vunpack.c.l.s4 1966171168
        %v2976 = vunpack.c.0.s8 %v2975
        %v2977 = vlaneseq
        %v2978 = vshrl.u32 %v2977, 7
        %v2979 = vsub.s32 %v2976, %v2978
        %v2980 = vrot.slane %v2972, %v2979
        %v2981 = vcombine.high %v2980, %v2980
        %v2983 = vunpack.c.l.s4 1966171168
        %v2984 = vunpack.c.0.s8 %v2983
        %v2985 = vlaneseq
        %v2986 = vshrl.u32 %v2985, 7
        %v2987 = vsub.s32 %v2984, %v2986
        %v2988 = vrot.slane %v2980, %v2987
        %v2990 = vunpack.c.l.s4 1966171168
        %v2991 = vunpack.c.0.s8 %v2990
        %v2992 = vlaneseq
        %v2993 = vshrl.u32 %v2992, 7
        %v2994 = vsub.s32 %v2991, %v2993
        %v2995 = vrot.slane %v2981, %v2994
        %v2996 = vcombine.high %v2988, %v2988
        %v2997 = vcombine.high %v2995, %v2995
        %3002 = vst.msk [vmem:[%s138 + $0x1] sm:$0x1] %vm1582, %v2988
        %3003 = vst.msk [vmem:[%s138 + $0x9] sm:$0x1] %vm1582, %v2995
        %3004 = vst.msk [vmem:[%s138 + $0x11] sm:$0x1] %vm1582, %v2996
        %3005 = vst.msk [vmem:[%s138 + $0x19] sm:$0x1] %vm1582, %v2997
        %v3006 = vld [vmem:[%s114 + $0x6] sm:$0x7]
        %v3007 = vld [vmem:[%s114 + $0x16] sm:$0x7]
        %v3008 = vld [vmem:[%s114 + $0x26] sm:$0x7]
        %v3009 = vld [vmem:[%s114 + $0x36] sm:$0x7]
        %v3010 = vsel %vm164, %v3006, -inf
        %v3011 = vrot.slane %v3010, 4
        %v3012 = vmax.f32 %v3010, %v3011
        %v3013 = vrot.slane %v3012, 2
        %v3014 = vmax.f32 %v3012, %v3013
        %v3015 = vrot.slane %v3014, 1
        %v3016 = vmax.f32 %v3014, %v3015
        %v3017 = vsel %vm164, %v3007, -inf
        %v3018 = vrot.slane %v3017, 4
        %v3019 = vmax.f32 %v3017, %v3018
        %v3020 = vrot.slane %v3019, 2
        %v3021 = vmax.f32 %v3019, %v3020
        %v3022 = vrot.slane %v3021, 1
        %v3023 = vmax.f32 %v3021, %v3022
        %v3024 = vsel %vm164, %v3008, -inf
        %v3025 = vrot.slane %v3024, 4
        %v3026 = vmax.f32 %v3024, %v3025
        %v3027 = vrot.slane %v3026, 2
        %v3028 = vmax.f32 %v3026, %v3027
        %v3029 = vrot.slane %v3028, 1
        %v3030 = vmax.f32 %v3028, %v3029
        %v3031 = vsel %vm164, %v3009, -inf
        %v3032 = vrot.slane %v3031, 4
        %v3033 = vmax.f32 %v3031, %v3032
        %v3034 = vrot.slane %v3033, 2
        %v3035 = vmax.f32 %v3033, %v3034
        %v3036 = vrot.slane %v3035, 1
        %v3037 = vmax.f32 %v3035, %v3036
        %v3042 = vsel %vm197, %v3023, %v3016
        %v3043 = vsel %vm199, %v3030, %v3042
        %v3044 = vsel %vm201, %v3037, %v3043
        %v3045 = vsel %vm203, %v3044, 0
        %3047 = vmatprep.subr.mxu0 0.0
        %3048 = vmatpush1.msra.mxu0 %v148
        %3049 = vmatprep.subr.mxu0 0.0
        %3050 = vmatpush1.msra.mxu0 %v149
        %3051 = vmatprep.subr.mxu0 0.0
        %3052 = vmatpush1.msra.mxu0 0.0
        %3053 = vmatprep.subr.mxu0 0.0
        %3054 = vmatpush1.msra.mxu0 0.0
        %3055 = vmatprep.subr.mxu0 0.0
        %3056 = vmatpush1.msra.mxu0 0.0
        %3057 = vmatprep.subr.mxu0 0.0
        %3058 = vmatpush1.msra.mxu0 0.0
        %3059 = vmatprep.subr.mxu0 0.0
        %3060 = vmatpush1.msra.mxu0 0.0
        %3061 = vmatprep.subr.mxu0 0.0
        %3062 = vmatpush1.msra.mxu0 0.0
        %3063 = vmatprep.subr.mxu0 0.0
        %3064 = vmatpush1.msra.mxu0 0.0
        %3065 = vmatprep.subr.mxu0 0.0
        %3066 = vmatpush1.msra.mxu0 0.0
        %3067 = vmatprep.subr.mxu0 0.0
        %3068 = vmatpush1.msra.mxu0 0.0
        %3069 = vmatprep.subr.mxu0 0.0
        %3070 = vmatpush1.msra.mxu0 0.0
        %3071 = vmatprep.subr.mxu0 0.0
        %3072 = vmatpush1.msra.mxu0 0.0
        %3073 = vmatprep.subr.mxu0 0.0
        %3074 = vmatpush1.msra.mxu0 0.0
        %3075 = vmatprep.subr.mxu0 0.0
        %3076 = vmatpush1.msra.mxu0 0.0
        %3077 = vmatprep.subr.mxu0 0.0
        %3078 = vmatpush1.msra.mxu0 0.0
        %3079 = vmatprep.subr.mxu0 0.0
        %3080 = vmatpush1.msra.mxu0 0.0
        %3081 = vmatprep.subr.mxu0 0.0
        %3082 = vmatpush1.msra.mxu0 0.0
        %3083 = vmatprep.subr.mxu0 0.0
        %3084 = vmatpush1.msra.mxu0 0.0
        %3085 = vmatprep.subr.mxu0 0.0
        %3086 = vmatpush1.msra.mxu0 0.0
        %3087 = vmatprep.subr.mxu0 0.0
        %3088 = vmatpush1.msra.mxu0 0.0
        %3089 = vmatprep.subr.mxu0 0.0
        %3090 = vmatpush1.msra.mxu0 0.0
        %3091 = vmatprep.subr.mxu0 0.0
        %3092 = vmatpush1.msra.mxu0 0.0
        %3093 = vmatprep.subr.mxu0 0.0
        %3094 = vmatpush1.msra.mxu0 0.0
        %3095 = vmatprep.subr.mxu0 0.0
        %3096 = vmatpush1.msra.mxu0 0.0
        %3097 = vmatprep.subr.mxu0 0.0
        %3098 = vmatpush1.msra.mxu0 0.0
        %3099 = vmatprep.subr.mxu0 0.0
        %3100 = vmatpush1.msra.mxu0 0.0
        %3101 = vmatprep.subr.mxu0 0.0
        %3102 = vmatpush1.msra.mxu0 0.0
        %3103 = vmatprep.subr.mxu0 0.0
        %3104 = vmatpush1.msra.mxu0 0.0
        %3105 = vmatprep.subr.mxu0 0.0
        %3106 = vmatpush1.msra.mxu0 0.0
        %3107 = vmatprep.subr.mxu0 0.0
        %3108 = vmatpush1.msra.mxu0 0.0
        %3109 = vmatprep.subr.mxu0 0.0
        %3110 = vmatpush1.msra.mxu0 0.0
        %3111 = vmatprep.mubr.f32.mxu0 0.0
        %v3112 = vand.u32 %v3045, 4294901760
        %v3113 = vsub.f32 %v3045, %v3112
        %v3114 = vand.u32 %v3113, 4294901760
        %v3115 = vsub.f32 %v3113, %v3114
        %v3116 = vand.u32 %v3115, 4294901760
        %3117 = vmatmul.mubr.f32.gmra.mrb[0].mxu0 %v3116
        %v3118 = vpop.f32.mrb[0].mxu0
        %v3119 = vadd.f32 0.0, %v3118
        %v3120 = vpop.f32.mrb[0].mxu0
        %3121 = vdwg.mxu0
        %3122 = vmatprep.subr.mxu0 0.0
        %v3123 = vsub.f32 %v148, %v148
        %v3124 = vand.u32 %v3123, 4294901760
        %v3125 = vsub.f32 %v3123, %v3124
        %v3126 = vand.u32 %v3125, 4294901760
        %3127 = vmatpush1.msra.mxu0 %v3126
        %3128 = vmatprep.subr.mxu0 0.0
        %v3129 = vsub.f32 %v149, %v149
        %v3130 = vand.u32 %v3129, 4294901760
        %v3131 = vsub.f32 %v3129, %v3130
        %v3132 = vand.u32 %v3131, 4294901760
        %3133 = vmatpush1.msra.mxu0 %v3132
        %3134 = vmatprep.subr.mxu0 0.0
        %3135 = vmatpush1.msra.mxu0 0.0
        %3136 = vmatprep.subr.mxu0 0.0
        %3137 = vmatpush1.msra.mxu0 0.0
        %3138 = vmatprep.subr.mxu0 0.0
        %3139 = vmatpush1.msra.mxu0 0.0
        %3140 = vmatprep.subr.mxu0 0.0
        %3141 = vmatpush1.msra.mxu0 0.0
        %3142 = vmatprep.subr.mxu0 0.0
        %3143 = vmatpush1.msra.mxu0 0.0
        %3144 = vmatprep.subr.mxu0 0.0
        %3145 = vmatpush1.msra.mxu0 0.0
        %3146 = vmatprep.subr.mxu0 0.0
        %3147 = vmatpush1.msra.mxu0 0.0
        %3148 = vmatprep.subr.mxu0 0.0
        %3149 = vmatpush1.msra.mxu0 0.0
        %3150 = vmatprep.subr.mxu0 0.0
        %3151 = vmatpush1.msra.mxu0 0.0
        %3152 = vmatprep.subr.mxu0 0.0
        %3153 = vmatpush1.msra.mxu0 0.0
        %3154 = vmatprep.subr.mxu0 0.0
        %3155 = vmatpush1.msra.mxu0 0.0
        %3156 = vmatprep.subr.mxu0 0.0
        %3157 = vmatpush1.msra.mxu0 0.0
        %3158 = vmatprep.subr.mxu0 0.0
        %3159 = vmatpush1.msra.mxu0 0.0
        %3160 = vmatprep.subr.mxu0 0.0
        %3161 = vmatpush1.msra.mxu0 0.0
        %3162 = vmatprep.subr.mxu0 0.0
        %3163 = vmatpush1.msra.mxu0 0.0
        %3164 = vmatprep.subr.mxu0 0.0
        %3165 = vmatpush1.msra.mxu0 0.0
        %3166 = vmatprep.subr.mxu0 0.0
        %3167 = vmatpush1.msra.mxu0 0.0
        %3168 = vmatprep.subr.mxu0 0.0
        %3169 = vmatpush1.msra.mxu0 0.0
        %3170 = vmatprep.subr.mxu0 0.0
        %3171 = vmatpush1.msra.mxu0 0.0
        %3172 = vmatprep.subr.mxu0 0.0
        %3173 = vmatpush1.msra.mxu0 0.0
        %3174 = vmatprep.subr.mxu0 0.0
        %3175 = vmatpush1.msra.mxu0 0.0
        %3176 = vmatprep.subr.mxu0 0.0
        %3177 = vmatpush1.msra.mxu0 0.0
        %3178 = vmatprep.subr.mxu0 0.0
        %3179 = vmatpush1.msra.mxu0 0.0
        %3180 = vmatprep.subr.mxu0 0.0
        %3181 = vmatpush1.msra.mxu0 0.0
        %3182 = vmatprep.subr.mxu0 0.0
        %3183 = vmatpush1.msra.mxu0 0.0
        %3184 = vmatprep.subr.mxu0 0.0
        %3185 = vmatpush1.msra.mxu0 0.0
        %3186 = vmatprep.subr.mxu0 0.0
        %3187 = vmatpush1.msra.mxu0 0.0
        %3188 = vmatprep.subr.mxu0 0.0
        %3189 = vmatpush1.msra.mxu0 0.0
        %3190 = vmatprep.subr.mxu0 0.0
        %3191 = vmatpush1.msra.mxu0 0.0
        %3192 = vmatprep.subr.mxu0 0.0
        %3193 = vmatpush1.msra.mxu0 0.0
        %3194 = vmatprep.mubr.f32.mxu0 0.0
        %v3195 = vand.u32 %v3045, 4294901760
        %3196 = vmatmul.mubr.f32.gmra.mrb[0].mxu0 %v3195
        %v3197 = vpop.f32.mrb[0].mxu0
        %v3198 = vadd.f32 %v3119, %v3197
        %v3199 = vpop.f32.mrb[0].mxu0
        %3200 = vdwg.mxu0
        %3201 = vmatprep.subr.mxu0 0.0
        %v3202 = vsub.f32 %v148, %v148
        %3203 = vmatpush1.msra.mxu0 %v3202
        %3204 = vmatprep.subr.mxu0 0.0
        %v3205 = vsub.f32 %v149, %v149
        %3206 = vmatpush1.msra.mxu0 %v3205
        %3207 = vmatprep.subr.mxu0 0.0
        %3208 = vmatpush1.msra.mxu0 0.0
        %3209 = vmatprep.subr.mxu0 0.0
        %3210 = vmatpush1.msra.mxu0 0.0
        %3211 = vmatprep.subr.mxu0 0.0
        %3212 = vmatpush1.msra.mxu0 0.0
        %3213 = vmatprep.subr.mxu0 0.0
        %3214 = vmatpush1.msra.mxu0 0.0
        %3215 = vmatprep.subr.mxu0 0.0
        %3216 = vmatpush1.msra.mxu0 0.0
        %3217 = vmatprep.subr.mxu0 0.0
        %3218 = vmatpush1.msra.mxu0 0.0
        %3219 = vmatprep.subr.mxu0 0.0
        %3220 = vmatpush1.msra.mxu0 0.0
        %3221 = vmatprep.subr.mxu0 0.0
        %3222 = vmatpush1.msra.mxu0 0.0
        %3223 = vmatprep.subr.mxu0 0.0
        %3224 = vmatpush1.msra.mxu0 0.0
        %3225 = vmatprep.subr.mxu0 0.0
        %3226 = vmatpush1.msra.mxu0 0.0
        %3227 = vmatprep.subr.mxu0 0.0
        %3228 = vmatpush1.msra.mxu0 0.0
        %3229 = vmatprep.subr.mxu0 0.0
        %3230 = vmatpush1.msra.mxu0 0.0
        %3231 = vmatprep.subr.mxu0 0.0
        %3232 = vmatpush1.msra.mxu0 0.0
        %3233 = vmatprep.subr.mxu0 0.0
        %3234 = vmatpush1.msra.mxu0 0.0
        %3235 = vmatprep.subr.mxu0 0.0
        %3236 = vmatpush1.msra.mxu0 0.0
        %3237 = vmatprep.subr.mxu0 0.0
        %3238 = vmatpush1.msra.mxu0 0.0
        %3239 = vmatprep.subr.mxu0 0.0
        %3240 = vmatpush1.msra.mxu0 0.0
        %3241 = vmatprep.subr.mxu0 0.0
        %3242 = vmatpush1.msra.mxu0 0.0
        %3243 = vmatprep.subr.mxu0 0.0
        %3244 = vmatpush1.msra.mxu0 0.0
        %3245 = vmatprep.subr.mxu0 0.0
        %3246 = vmatpush1.msra.mxu0 0.0
        %3247 = vmatprep.subr.mxu0 0.0
        %3248 = vmatpush1.msra.mxu0 0.0
        %3249 = vmatprep.subr.mxu0 0.0
        %3250 = vmatpush1.msra.mxu0 0.0
        %3251 = vmatprep.subr.mxu0 0.0
        %3252 = vmatpush1.msra.mxu0 0.0
        %3253 = vmatprep.subr.mxu0 0.0
        %3254 = vmatpush1.msra.mxu0 0.0
        %3255 = vmatprep.subr.mxu0 0.0
        %3256 = vmatpush1.msra.mxu0 0.0
        %3257 = vmatprep.subr.mxu0 0.0
        %3258 = vmatpush1.msra.mxu0 0.0
        %3259 = vmatprep.subr.mxu0 0.0
        %3260 = vmatpush1.msra.mxu0 0.0
        %3261 = vmatprep.subr.mxu0 0.0
        %3262 = vmatpush1.msra.mxu0 0.0
        %3263 = vmatprep.subr.mxu0 0.0
        %3264 = vmatpush1.msra.mxu0 0.0
        %3265 = vmatprep.subr.mxu0 0.0
        %3266 = vmatpush1.msra.mxu0 0.0
        %3267 = vmatprep.mubr.f32.mxu0 0.0
        %v3268 = vand.u32 %v3045, 4294901760
        %v3269 = vsub.f32 %v3045, %v3268
        %3270 = vmatmul.mubr.f32.gmra.mrb[0].mxu0 %v3269
        %v3271 = vpop.f32.mrb[0].mxu0
        %v3272 = vadd.f32 %v3198, %v3271
        %v3273 = vpop.f32.mrb[0].mxu0
        %3274 = vdwg.mxu0
        %3275 = vmatprep.subr.mxu0 0.0
        %3276 = vmatpush1.msra.mxu0 %v148
        %3277 = vmatprep.subr.mxu0 0.0
        %3278 = vmatpush1.msra.mxu0 %v149
        %3279 = vmatprep.subr.mxu0 0.0
        %3280 = vmatpush1.msra.mxu0 0.0
        %3281 = vmatprep.subr.mxu0 0.0
        %3282 = vmatpush1.msra.mxu0 0.0
        %3283 = vmatprep.subr.mxu0 0.0
        %3284 = vmatpush1.msra.mxu0 0.0
        %3285 = vmatprep.subr.mxu0 0.0
        %3286 = vmatpush1.msra.mxu0 0.0
        %3287 = vmatprep.subr.mxu0 0.0
        %3288 = vmatpush1.msra.mxu0 0.0
        %3289 = vmatprep.subr.mxu0 0.0
        %3290 = vmatpush1.msra.mxu0 0.0
        %3291 = vmatprep.subr.mxu0 0.0
        %3292 = vmatpush1.msra.mxu0 0.0
        %3293 = vmatprep.subr.mxu0 0.0
        %3294 = vmatpush1.msra.mxu0 0.0
        %3295 = vmatprep.subr.mxu0 0.0
        %3296 = vmatpush1.msra.mxu0 0.0
        %3297 = vmatprep.subr.mxu0 0.0
        %3298 = vmatpush1.msra.mxu0 0.0
        %3299 = vmatprep.subr.mxu0 0.0
        %3300 = vmatpush1.msra.mxu0 0.0
        %3301 = vmatprep.subr.mxu0 0.0
        %3302 = vmatpush1.msra.mxu0 0.0
        %3303 = vmatprep.subr.mxu0 0.0
        %3304 = vmatpush1.msra.mxu0 0.0
        %3305 = vmatprep.subr.mxu0 0.0
        %3306 = vmatpush1.msra.mxu0 0.0
        %3307 = vmatprep.subr.mxu0 0.0
        %3308 = vmatpush1.msra.mxu0 0.0
        %3309 = vmatprep.subr.mxu0 0.0
        %3310 = vmatpush1.msra.mxu0 0.0
        %3311 = vmatprep.subr.mxu0 0.0
        %3312 = vmatpush1.msra.mxu0 0.0
        %3313 = vmatprep.subr.mxu0 0.0
        %3314 = vmatpush1.msra.mxu0 0.0
        %3315 = vmatprep.subr.mxu0 0.0
        %3316 = vmatpush1.msra.mxu0 0.0
        %3317 = vmatprep.subr.mxu0 0.0
        %3318 = vmatpush1.msra.mxu0 0.0
        %3319 = vmatprep.subr.mxu0 0.0
        %3320 = vmatpush1.msra.mxu0 0.0
        %3321 = vmatprep.subr.mxu0 0.0
        %3322 = vmatpush1.msra.mxu0 0.0
        %3323 = vmatprep.subr.mxu0 0.0
        %3324 = vmatpush1.msra.mxu0 0.0
        %3325 = vmatprep.subr.mxu0 0.0
        %3326 = vmatpush1.msra.mxu0 0.0
        %3327 = vmatprep.subr.mxu0 0.0
        %3328 = vmatpush1.msra.mxu0 0.0
        %3329 = vmatprep.subr.mxu0 0.0
        %3330 = vmatpush1.msra.mxu0 0.0
        %3331 = vmatprep.subr.mxu0 0.0
        %3332 = vmatpush1.msra.mxu0 0.0
        %3333 = vmatprep.subr.mxu0 0.0
        %3334 = vmatpush1.msra.mxu0 0.0
        %3335 = vmatprep.subr.mxu0 0.0
        %3336 = vmatpush1.msra.mxu0 0.0
        %3337 = vmatprep.subr.mxu0 0.0
        %3338 = vmatpush1.msra.mxu0 0.0
        %3339 = vmatprep.mubr.f32.mxu0 0.0
        %v3340 = vand.u32 %v3045, 4294901760
        %v3341 = vsub.f32 %v3045, %v3340
        %v3342 = vand.u32 %v3341, 4294901760
        %3343 = vmatmul.mubr.f32.gmra.mrb[0].mxu0 %v3342
        %v3344 = vpop.f32.mrb[0].mxu0
        %v3345 = vadd.f32 %v3272, %v3344
        %v3346 = vpop.f32.mrb[0].mxu0
        %3347 = vdwg.mxu0
        %3348 = vmatprep.subr.mxu0 0.0
        %v3349 = vsub.f32 %v148, %v148
        %v3350 = vand.u32 %v3349, 4294901760
        %3351 = vmatpush1.msra.mxu0 %v3350
        %3352 = vmatprep.subr.mxu0 0.0
        %v3353 = vsub.f32 %v149, %v149
        %v3354 = vand.u32 %v3353, 4294901760
        %3355 = vmatpush1.msra.mxu0 %v3354
        %3356 = vmatprep.subr.mxu0 0.0
        %3357 = vmatpush1.msra.mxu0 0.0
        %3358 = vmatprep.subr.mxu0 0.0
        %3359 = vmatpush1.msra.mxu0 0.0
        %3360 = vmatprep.subr.mxu0 0.0
        %3361 = vmatpush1.msra.mxu0 0.0
        %3362 = vmatprep.subr.mxu0 0.0
        %3363 = vmatpush1.msra.mxu0 0.0
        %3364 = vmatprep.subr.mxu0 0.0
        %3365 = vmatpush1.msra.mxu0 0.0
        %3366 = vmatprep.subr.mxu0 0.0
        %3367 = vmatpush1.msra.mxu0 0.0
        %3368 = vmatprep.subr.mxu0 0.0
        %3369 = vmatpush1.msra.mxu0 0.0
        %3370 = vmatprep.subr.mxu0 0.0
        %3371 = vmatpush1.msra.mxu0 0.0
        %3372 = vmatprep.subr.mxu0 0.0
        %3373 = vmatpush1.msra.mxu0 0.0
        %3374 = vmatprep.subr.mxu0 0.0
        %3375 = vmatpush1.msra.mxu0 0.0
        %3376 = vmatprep.subr.mxu0 0.0
        %3377 = vmatpush1.msra.mxu0 0.0
        %3378 = vmatprep.subr.mxu0 0.0
        %3379 = vmatpush1.msra.mxu0 0.0
        %3380 = vmatprep.subr.mxu0 0.0
        %3381 = vmatpush1.msra.mxu0 0.0
        %3382 = vmatprep.subr.mxu0 0.0
        %3383 = vmatpush1.msra.mxu0 0.0
        %3384 = vmatprep.subr.mxu0 0.0
        %3385 = vmatpush1.msra.mxu0 0.0
        %3386 = vmatprep.subr.mxu0 0.0
        %3387 = vmatpush1.msra.mxu0 0.0
        %3388 = vmatprep.subr.mxu0 0.0
        %3389 = vmatpush1.msra.mxu0 0.0
        %3390 = vmatprep.subr.mxu0 0.0
        %3391 = vmatpush1.msra.mxu0 0.0
        %3392 = vmatprep.subr.mxu0 0.0
        %3393 = vmatpush1.msra.mxu0 0.0
        %3394 = vmatprep.subr.mxu0 0.0
        %3395 = vmatpush1.msra.mxu0 0.0
        %3396 = vmatprep.subr.mxu0 0.0
        %3397 = vmatpush1.msra.mxu0 0.0
        %3398 = vmatprep.subr.mxu0 0.0
        %3399 = vmatpush1.msra.mxu0 0.0
        %3400 = vmatprep.subr.mxu0 0.0
        %3401 = vmatpush1.msra.mxu0 0.0
        %3402 = vmatprep.subr.mxu0 0.0
        %3403 = vmatpush1.msra.mxu0 0.0
        %3404 = vmatprep.subr.mxu0 0.0
        %3405 = vmatpush1.msra.mxu0 0.0
        %3406 = vmatprep.subr.mxu0 0.0
        %3407 = vmatpush1.msra.mxu0 0.0
        %3408 = vmatprep.subr.mxu0 0.0
        %3409 = vmatpush1.msra.mxu0 0.0
        %3410 = vmatprep.subr.mxu0 0.0
        %3411 = vmatpush1.msra.mxu0 0.0
        %3412 = vmatprep.subr.mxu0 0.0
        %3413 = vmatpush1.msra.mxu0 0.0
        %3414 = vmatprep.subr.mxu0 0.0
        %3415 = vmatpush1.msra.mxu0 0.0
        %3416 = vmatprep.mubr.f32.mxu0 0.0
        %v3417 = vand.u32 %v3045, 4294901760
        %3418 = vmatmul.mubr.f32.gmra.mrb[0].mxu0 %v3417
        %v3419 = vpop.f32.mrb[0].mxu0
        %v3420 = vadd.f32 %v3345, %v3419
        %v3421 = vpop.f32.mrb[0].mxu0
        %3422 = vdwg.mxu0
        %3423 = vmatprep.subr.mxu0 0.0
        %3424 = vmatpush1.msra.mxu0 %v148
        %3425 = vmatprep.subr.mxu0 0.0
        %3426 = vmatpush1.msra.mxu0 %v149
        %3427 = vmatprep.subr.mxu0 0.0
        %3428 = vmatpush1.msra.mxu0 0.0
        %3429 = vmatprep.subr.mxu0 0.0
        %3430 = vmatpush1.msra.mxu0 0.0
        %3431 = vmatprep.subr.mxu0 0.0
        %3432 = vmatpush1.msra.mxu0 0.0
        %3433 = vmatprep.subr.mxu0 0.0
        %3434 = vmatpush1.msra.mxu0 0.0
        %3435 = vmatprep.subr.mxu0 0.0
        %3436 = vmatpush1.msra.mxu0 0.0
        %3437 = vmatprep.subr.mxu0 0.0
        %3438 = vmatpush1.msra.mxu0 0.0
        %3439 = vmatprep.subr.mxu0 0.0
        %3440 = vmatpush1.msra.mxu0 0.0
        %3441 = vmatprep.subr.mxu0 0.0
        %3442 = vmatpush1.msra.mxu0 0.0
        %3443 = vmatprep.subr.mxu0 0.0
        %3444 = vmatpush1.msra.mxu0 0.0
        %3445 = vmatprep.subr.mxu0 0.0
        %3446 = vmatpush1.msra.mxu0 0.0
        %3447 = vmatprep.subr.mxu0 0.0
        %3448 = vmatpush1.msra.mxu0 0.0
        %3449 = vmatprep.subr.mxu0 0.0
        %3450 = vmatpush1.msra.mxu0 0.0
        %3451 = vmatprep.subr.mxu0 0.0
        %3452 = vmatpush1.msra.mxu0 0.0
        %3453 = vmatprep.subr.mxu0 0.0
        %3454 = vmatpush1.msra.mxu0 0.0
        %3455 = vmatprep.subr.mxu0 0.0
        %3456 = vmatpush1.msra.mxu0 0.0
        %3457 = vmatprep.subr.mxu0 0.0
        %3458 = vmatpush1.msra.mxu0 0.0
        %3459 = vmatprep.subr.mxu0 0.0
        %3460 = vmatpush1.msra.mxu0 0.0
        %3461 = vmatprep.subr.mxu0 0.0
        %3462 = vmatpush1.msra.mxu0 0.0
        %3463 = vmatprep.subr.mxu0 0.0
        %3464 = vmatpush1.msra.mxu0 0.0
        %3465 = vmatprep.subr.mxu0 0.0
        %3466 = vmatpush1.msra.mxu0 0.0
        %3467 = vmatprep.subr.mxu0 0.0
        %3468 = vmatpush1.msra.mxu0 0.0
        %3469 = vmatprep.subr.mxu0 0.0
        %3470 = vmatpush1.msra.mxu0 0.0
        %3471 = vmatprep.subr.mxu0 0.0
        %3472 = vmatpush1.msra.mxu0 0.0
        %3473 = vmatprep.subr.mxu0 0.0
        %3474 = vmatpush1.msra.mxu0 0.0
        %3475 = vmatprep.subr.mxu0 0.0
        %3476 = vmatpush1.msra.mxu0 0.0
        %3477 = vmatprep.subr.mxu0 0.0
        %3478 = vmatpush1.msra.mxu0 0.0
        %3479 = vmatprep.subr.mxu0 0.0
        %3480 = vmatpush1.msra.mxu0 0.0
        %3481 = vmatprep.subr.mxu0 0.0
        %3482 = vmatpush1.msra.mxu0 0.0
        %3483 = vmatprep.subr.mxu0 0.0
        %3484 = vmatpush1.msra.mxu0 0.0
        %3485 = vmatprep.subr.mxu0 0.0
        %3486 = vmatpush1.msra.mxu0 0.0
        %3487 = vmatprep.mubr.f32.mxu0 0.0
        %v3488 = vand.u32 %v3045, 4294901760
        %3489 = vmatmul.mubr.f32.gmra.mrb[0].mxu0 %v3488
        %v3490 = vpop.f32.mrb[0].mxu0
        %v3491 = vadd.f32 %v3420, %v3490
        %v3492 = vpop.f32.mrb[0].mxu0
        %3493 = vdwg.mxu0
        %3494 = vmatprep.subr.mxu0 0.0
        %3495 = vmatpush1.msra.mxu0 %v153
        %3496 = vmatprep.subr.mxu0 0.0
        %3497 = vmatpush1.msra.mxu0 %v154
        %3498 = vmatprep.subr.mxu0 0.0
        %3499 = vmatpush1.msra.mxu0 0.0
        %3500 = vmatprep.subr.mxu0 0.0
        %3501 = vmatpush1.msra.mxu0 0.0
        %3502 = vmatprep.subr.mxu0 0.0
        %3503 = vmatpush1.msra.mxu0 0.0
        %3504 = vmatprep.subr.mxu0 0.0
        %3505 = vmatpush1.msra.mxu0 0.0
        %3506 = vmatprep.subr.mxu0 0.0
        %3507 = vmatpush1.msra.mxu0 0.0
        %3508 = vmatprep.subr.mxu0 0.0
        %3509 = vmatpush1.msra.mxu0 0.0
        %3510 = vmatprep.subr.mxu0 0.0
        %3511 = vmatpush1.msra.mxu0 0.0
        %3512 = vmatprep.subr.mxu0 0.0
        %3513 = vmatpush1.msra.mxu0 0.0
        %3514 = vmatprep.subr.mxu0 0.0
        %3515 = vmatpush1.msra.mxu0 0.0
        %3516 = vmatprep.subr.mxu0 0.0
        %3517 = vmatpush1.msra.mxu0 0.0
        %3518 = vmatprep.subr.mxu0 0.0
        %3519 = vmatpush1.msra.mxu0 0.0
        %3520 = vmatprep.subr.mxu0 0.0
        %3521 = vmatpush1.msra.mxu0 0.0
        %3522 = vmatprep.subr.mxu0 0.0
        %3523 = vmatpush1.msra.mxu0 0.0
        %3524 = vmatprep.subr.mxu0 0.0
        %3525 = vmatpush1.msra.mxu0 0.0
        %3526 = vmatprep.subr.mxu0 0.0
        %3527 = vmatpush1.msra.mxu0 0.0
        %3528 = vmatprep.subr.mxu0 0.0
        %3529 = vmatpush1.msra.mxu0 0.0
        %3530 = vmatprep.subr.mxu0 0.0
        %3531 = vmatpush1.msra.mxu0 0.0
        %3532 = vmatprep.subr.mxu0 0.0
        %3533 = vmatpush1.msra.mxu0 0.0
        %3534 = vmatprep.subr.mxu0 0.0
        %3535 = vmatpush1.msra.mxu0 0.0
        %3536 = vmatprep.subr.mxu0 0.0
        %3537 = vmatpush1.msra.mxu0 0.0
        %3538 = vmatprep.subr.mxu0 0.0
        %3539 = vmatpush1.msra.mxu0 0.0
        %3540 = vmatprep.subr.mxu0 0.0
        %3541 = vmatpush1.msra.mxu0 0.0
        %3542 = vmatprep.subr.mxu0 0.0
        %3543 = vmatpush1.msra.mxu0 0.0
        %3544 = vmatprep.subr.mxu0 0.0
        %3545 = vmatpush1.msra.mxu0 0.0
        %3546 = vmatprep.subr.mxu0 0.0
        %3547 = vmatpush1.msra.mxu0 0.0
        %3548 = vmatprep.subr.mxu0 0.0
        %3549 = vmatpush1.msra.mxu0 0.0
        %3550 = vmatprep.subr.mxu0 0.0
        %3551 = vmatpush1.msra.mxu0 0.0
        %3552 = vmatprep.subr.mxu0 0.0
        %3553 = vmatpush1.msra.mxu0 0.0
        %3554 = vmatprep.subr.mxu0 0.0
        %3555 = vmatpush1.msra.mxu0 0.0
        %3556 = vmatprep.subr.mxu0 0.0
        %3557 = vmatpush1.msra.mxu0 0.0
        %3558 = vmatprep.mubr.f32.mxu0 0.0
        %v3559 = vand.u32 %v3045, 4294901760
        %v3560 = vsub.f32 %v3045, %v3559
        %v3561 = vand.u32 %v3560, 4294901760
        %v3562 = vsub.f32 %v3560, %v3561
        %v3563 = vand.u32 %v3562, 4294901760
        %3564 = vmatmul.mubr.f32.gmra.mrb[0].mxu0 %v3563
        %v3565 = vpop.f32.mrb[0].mxu0
        %v3566 = vadd.f32 0.0, %v3565
        %v3567 = vpop.f32.mrb[0].mxu0
        %3568 = vdwg.mxu0
        %3569 = vmatprep.subr.mxu0 0.0
        %v3570 = vsub.f32 %v153, %v153
        %v3571 = vand.u32 %v3570, 4294901760
        %v3572 = vsub.f32 %v3570, %v3571
        %v3573 = vand.u32 %v3572, 4294901760
        %3574 = vmatpush1.msra.mxu0 %v3573
        %3575 = vmatprep.subr.mxu0 0.0
        %v3576 = vsub.f32 %v154, %v154
        %v3577 = vand.u32 %v3576, 4294901760
        %v3578 = vsub.f32 %v3576, %v3577
        %v3579 = vand.u32 %v3578, 4294901760
        %3580 = vmatpush1.msra.mxu0 %v3579
        %3581 = vmatprep.subr.mxu0 0.0
        %3582 = vmatpush1.msra.mxu0 0.0
        %3583 = vmatprep.subr.mxu0 0.0
        %3584 = vmatpush1.msra.mxu0 0.0
        %3585 = vmatprep.subr.mxu0 0.0
        %3586 = vmatpush1.msra.mxu0 0.0
        %3587 = vmatprep.subr.mxu0 0.0
        %3588 = vmatpush1.msra.mxu0 0.0
        %3589 = vmatprep.subr.mxu0 0.0
        %3590 = vmatpush1.msra.mxu0 0.0
        %3591 = vmatprep.subr.mxu0 0.0
        %3592 = vmatpush1.msra.mxu0 0.0
        %3593 = vmatprep.subr.mxu0 0.0
        %3594 = vmatpush1.msra.mxu0 0.0
        %3595 = vmatprep.subr.mxu0 0.0
        %3596 = vmatpush1.msra.mxu0 0.0
        %3597 = vmatprep.subr.mxu0 0.0
        %3598 = vmatpush1.msra.mxu0 0.0
        %3599 = vmatprep.subr.mxu0 0.0
        %3600 = vmatpush1.msra.mxu0 0.0
        %3601 = vmatprep.subr.mxu0 0.0
        %3602 = vmatpush1.msra.mxu0 0.0
        %3603 = vmatprep.subr.mxu0 0.0
        %3604 = vmatpush1.msra.mxu0 0.0
        %3605 = vmatprep.subr.mxu0 0.0
        %3606 = vmatpush1.msra.mxu0 0.0
        %3607 = vmatprep.subr.mxu0 0.0
        %3608 = vmatpush1.msra.mxu0 0.0
        %3609 = vmatprep.subr.mxu0 0.0
        %3610 = vmatpush1.msra.mxu0 0.0
        %3611 = vmatprep.subr.mxu0 0.0
        %3612 = vmatpush1.msra.mxu0 0.0
        %3613 = vmatprep.subr.mxu0 0.0
        %3614 = vmatpush1.msra.mxu0 0.0
        %3615 = vmatprep.subr.mxu0 0.0
        %3616 = vmatpush1.msra.mxu0 0.0
        %3617 = vmatprep.subr.mxu0 0.0
        %3618 = vmatpush1.msra.mxu0 0.0
        %3619 = vmatprep.subr.mxu0 0.0
        %3620 = vmatpush1.msra.mxu0 0.0
        %3621 = vmatprep.subr.mxu0 0.0
        %3622 = vmatpush1.msra.mxu0 0.0
        %3623 = vmatprep.subr.mxu0 0.0
        %3624 = vmatpush1.msra.mxu0 0.0
        %3625 = vmatprep.subr.mxu0 0.0
        %3626 = vmatpush1.msra.mxu0 0.0
        %3627 = vmatprep.subr.mxu0 0.0
        %3628 = vmatpush1.msra.mxu0 0.0
        %3629 = vmatprep.subr.mxu0 0.0
        %3630 = vmatpush1.msra.mxu0 0.0
        %3631 = vmatprep.subr.mxu0 0.0
        %3632 = vmatpush1.msra.mxu0 0.0
        %3633 = vmatprep.subr.mxu0 0.0
        %3634 = vmatpush1.msra.mxu0 0.0
        %3635 = vmatprep.subr.mxu0 0.0
        %3636 = vmatpush1.msra.mxu0 0.0
        %3637 = vmatprep.subr.mxu0 0.0
        %3638 = vmatpush1.msra.mxu0 0.0
        %3639 = vmatprep.subr.mxu0 0.0
        %3640 = vmatpush1.msra.mxu0 0.0
        %3641 = vmatprep.mubr.f32.mxu0 0.0
        %v3642 = vand.u32 %v3045, 4294901760
        %3643 = vmatmul.mubr.f32.gmra.mrb[0].mxu0 %v3642
        %v3644 = vpop.f32.mrb[0].mxu0
        %v3645 = vadd.f32 %v3566, %v3644
        %v3646 = vpop.f32.mrb[0].mxu0
        %3647 = vdwg.mxu0
        %3648 = vmatprep.subr.mxu0 0.0
        %v3649 = vsub.f32 %v153, %v153
        %3650 = vmatpush1.msra.mxu0 %v3649
        %3651 = vmatprep.subr.mxu0 0.0
        %v3652 = vsub.f32 %v154, %v154
        %3653 = vmatpush1.msra.mxu0 %v3652
        %3654 = vmatprep.subr.mxu0 0.0
        %3655 = vmatpush1.msra.mxu0 0.0
        %3656 = vmatprep.subr.mxu0 0.0
        %3657 = vmatpush1.msra.mxu0 0.0
        %3658 = vmatprep.subr.mxu0 0.0
        %3659 = vmatpush1.msra.mxu0 0.0
        %3660 = vmatprep.subr.mxu0 0.0
        %3661 = vmatpush1.msra.mxu0 0.0
        %3662 = vmatprep.subr.mxu0 0.0
        %3663 = vmatpush1.msra.mxu0 0.0
        %3664 = vmatprep.subr.mxu0 0.0
        %3665 = vmatpush1.msra.mxu0 0.0
        %3666 = vmatprep.subr.mxu0 0.0
        %3667 = vmatpush1.msra.mxu0 0.0
        %3668 = vmatprep.subr.mxu0 0.0
        %3669 = vmatpush1.msra.mxu0 0.0
        %3670 = vmatprep.subr.mxu0 0.0
        %3671 = vmatpush1.msra.mxu0 0.0
        %3672 = vmatprep.subr.mxu0 0.0
        %3673 = vmatpush1.msra.mxu0 0.0
        %3674 = vmatprep.subr.mxu0 0.0
        %3675 = vmatpush1.msra.mxu0 0.0
        %3676 = vmatprep.subr.mxu0 0.0
        %3677 = vmatpush1.msra.mxu0 0.0
        %3678 = vmatprep.subr.mxu0 0.0
        %3679 = vmatpush1.msra.mxu0 0.0
        %3680 = vmatprep.subr.mxu0 0.0
        %3681 = vmatpush1.msra.mxu0 0.0
        %3682 = vmatprep.subr.mxu0 0.0
        %3683 = vmatpush1.msra.mxu0 0.0
        %3684 = vmatprep.subr.mxu0 0.0
        %3685 = vmatpush1.msra.mxu0 0.0
        %3686 = vmatprep.subr.mxu0 0.0
        %3687 = vmatpush1.msra.mxu0 0.0
        %3688 = vmatprep.subr.mxu0 0.0
        %3689 = vmatpush1.msra.mxu0 0.0
        %3690 = vmatprep.subr.mxu0 0.0
        %3691 = vmatpush1.msra.mxu0 0.0
        %3692 = vmatprep.subr.mxu0 0.0
        %3693 = vmatpush1.msra.mxu0 0.0
        %3694 = vmatprep.subr.mxu0 0.0
        %3695 = vmatpush1.msra.mxu0 0.0
        %3696 = vmatprep.subr.mxu0 0.0
        %3697 = vmatpush1.msra.mxu0 0.0
        %3698 = vmatprep.subr.mxu0 0.0
        %3699 = vmatpush1.msra.mxu0 0.0
        %3700 = vmatprep.subr.mxu0 0.0
        %3701 = vmatpush1.msra.mxu0 0.0
        %3702 = vmatprep.subr.mxu0 0.0
        %3703 = vmatpush1.msra.mxu0 0.0
        %3704 = vmatprep.subr.mxu0 0.0
        %3705 = vmatpush1.msra.mxu0 0.0
        %3706 = vmatprep.subr.mxu0 0.0
        %3707 = vmatpush1.msra.mxu0 0.0
        %3708 = vmatprep.subr.mxu0 0.0
        %3709 = vmatpush1.msra.mxu0 0.0
        %3710 = vmatprep.subr.mxu0 0.0
        %3711 = vmatpush1.msra.mxu0 0.0
        %3712 = vmatprep.subr.mxu0 0.0
        %3713 = vmatpush1.msra.mxu0 0.0
        %3714 = vmatprep.mubr.f32.mxu0 0.0
        %v3715 = vand.u32 %v3045, 4294901760
        %v3716 = vsub.f32 %v3045, %v3715
        %3717 = vmatmul.mubr.f32.gmra.mrb[0].mxu0 %v3716
        %v3718 = vpop.f32.mrb[0].mxu0
        %v3719 = vadd.f32 %v3645, %v3718
        %v3720 = vpop.f32.mrb[0].mxu0
        %3721 = vdwg.mxu0
        %3722 = vmatprep.subr.mxu0 0.0
        %3723 = vmatpush1.msra.mxu0 %v153
        %3724 = vmatprep.subr.mxu0 0.0
        %3725 = vmatpush1.msra.mxu0 %v154
        %3726 = vmatprep.subr.mxu0 0.0
        %3727 = vmatpush1.msra.mxu0 0.0
        %3728 = vmatprep.subr.mxu0 0.0
        %3729 = vmatpush1.msra.mxu0 0.0
        %3730 = vmatprep.subr.mxu0 0.0
        %3731 = vmatpush1.msra.mxu0 0.0
        %3732 = vmatprep.subr.mxu0 0.0
        %3733 = vmatpush1.msra.mxu0 0.0
        %3734 = vmatprep.subr.mxu0 0.0
        %3735 = vmatpush1.msra.mxu0 0.0
        %3736 = vmatprep.subr.mxu0 0.0
        %3737 = vmatpush1.msra.mxu0 0.0
        %3738 = vmatprep.subr.mxu0 0.0
        %3739 = vmatpush1.msra.mxu0 0.0
        %3740 = vmatprep.subr.mxu0 0.0
        %3741 = vmatpush1.msra.mxu0 0.0
        %3742 = vmatprep.subr.mxu0 0.0
        %3743 = vmatpush1.msra.mxu0 0.0
        %3744 = vmatprep.subr.mxu0 0.0
        %3745 = vmatpush1.msra.mxu0 0.0
        %3746 = vmatprep.subr.mxu0 0.0
        %3747 = vmatpush1.msra.mxu0 0.0
        %3748 = vmatprep.subr.mxu0 0.0
        %3749 = vmatpush1.msra.mxu0 0.0
        %3750 = vmatprep.subr.mxu0 0.0
        %3751 = vmatpush1.msra.mxu0 0.0
        %3752 = vmatprep.subr.mxu0 0.0
        %3753 = vmatpush1.msra.mxu0 0.0
        %3754 = vmatprep.subr.mxu0 0.0
        %3755 = vmatpush1.msra.mxu0 0.0
        %3756 = vmatprep.subr.mxu0 0.0
        %3757 = vmatpush1.msra.mxu0 0.0
        %3758 = vmatprep.subr.mxu0 0.0
        %3759 = vmatpush1.msra.mxu0 0.0
        %3760 = vmatprep.subr.mxu0 0.0
        %3761 = vmatpush1.msra.mxu0 0.0
        %3762 = vmatprep.subr.mxu0 0.0
        %3763 = vmatpush1.msra.mxu0 0.0
        %3764 = vmatprep.subr.mxu0 0.0
        %3765 = vmatpush1.msra.mxu0 0.0
        %3766 = vmatprep.subr.mxu0 0.0
        %3767 = vmatpush1.msra.mxu0 0.0
        %3768 = vmatprep.subr.mxu0 0.0
        %3769 = vmatpush1.msra.mxu0 0.0
        %3770 = vmatprep.subr.mxu0 0.0
        %3771 = vmatpush1.msra.mxu0 0.0
        %3772 = vmatprep.subr.mxu0 0.0
        %3773 = vmatpush1.msra.mxu0 0.0
        %3774 = vmatprep.subr.mxu0 0.0
        %3775 = vmatpush1.msra.mxu0 0.0
        %3776 = vmatprep.subr.mxu0 0.0
        %3777 = vmatpush1.msra.mxu0 0.0
        %3778 = vmatprep.subr.mxu0 0.0
        %3779 = vmatpush1.msra.mxu0 0.0
        %3780 = vmatprep.subr.mxu0 0.0
        %3781 = vmatpush1.msra.mxu0 0.0
        %3782 = vmatprep.subr.mxu0 0.0
        %3783 = vmatpush1.msra.mxu0 0.0
        %3784 = vmatprep.subr.mxu0 0.0
        %3785 = vmatpush1.msra.mxu0 0.0
        %3786 = vmatprep.mubr.f32.mxu0 0.0
        %v3787 = vand.u32 %v3045, 4294901760
        %v3788 = vsub.f32 %v3045, %v3787
        %v3789 = vand.u32 %v3788, 4294901760
        %3790 = vmatmul.mubr.f32.gmra.mrb[0].mxu0 %v3789
        %v3791 = vpop.f32.mrb[0].mxu0
        %v3792 = vadd.f32 %v3719, %v3791
        %v3793 = vpop.f32.mrb[0].mxu0
        %3794 = vdwg.mxu0
        %3795 = vmatprep.subr.mxu0 0.0
        %v3796 = vsub.f32 %v153, %v153
        %v3797 = vand.u32 %v3796, 4294901760
        %3798 = vmatpush1.msra.mxu0 %v3797
        %3799 = vmatprep.subr.mxu0 0.0
        %v3800 = vsub.f32 %v154, %v154
        %v3801 = vand.u32 %v3800, 4294901760
        %3802 = vmatpush1.msra.mxu0 %v3801
        %3803 = vmatprep.subr.mxu0 0.0
        %3804 = vmatpush1.msra.mxu0 0.0
        %3805 = vmatprep.subr.mxu0 0.0
        %3806 = vmatpush1.msra.mxu0 0.0
        %3807 = vmatprep.subr.mxu0 0.0
        %3808 = vmatpush1.msra.mxu0 0.0
        %3809 = vmatprep.subr.mxu0 0.0
        %3810 = vmatpush1.msra.mxu0 0.0
        %3811 = vmatprep.subr.mxu0 0.0
        %3812 = vmatpush1.msra.mxu0 0.0
        %3813 = vmatprep.subr.mxu0 0.0
        %3814 = vmatpush1.msra.mxu0 0.0
        %3815 = vmatprep.subr.mxu0 0.0
        %3816 = vmatpush1.msra.mxu0 0.0
        %3817 = vmatprep.subr.mxu0 0.0
        %3818 = vmatpush1.msra.mxu0 0.0
        %3819 = vmatprep.subr.mxu0 0.0
        %3820 = vmatpush1.msra.mxu0 0.0
        %3821 = vmatprep.subr.mxu0 0.0
        %3822 = vmatpush1.msra.mxu0 0.0
        %3823 = vmatprep.subr.mxu0 0.0
        %3824 = vmatpush1.msra.mxu0 0.0
        %3825 = vmatprep.subr.mxu0 0.0
        %3826 = vmatpush1.msra.mxu0 0.0
        %3827 = vmatprep.subr.mxu0 0.0
        %3828 = vmatpush1.msra.mxu0 0.0
        %3829 = vmatprep.subr.mxu0 0.0
        %3830 = vmatpush1.msra.mxu0 0.0
        %3831 = vmatprep.subr.mxu0 0.0
        %3832 = vmatpush1.msra.mxu0 0.0
        %3833 = vmatprep.subr.mxu0 0.0
        %3834 = vmatpush1.msra.mxu0 0.0
        %3835 = vmatprep.subr.mxu0 0.0
        %3836 = vmatpush1.msra.mxu0 0.0
        %3837 = vmatprep.subr.mxu0 0.0
        %3838 = vmatpush1.msra.mxu0 0.0
        %3839 = vmatprep.subr.mxu0 0.0
        %3840 = vmatpush1.msra.mxu0 0.0
        %3841 = vmatprep.subr.mxu0 0.0
        %3842 = vmatpush1.msra.mxu0 0.0
        %3843 = vmatprep.subr.mxu0 0.0
        %3844 = vmatpush1.msra.mxu0 0.0
        %3845 = vmatprep.subr.mxu0 0.0
        %3846 = vmatpush1.msra.mxu0 0.0
        %3847 = vmatprep.subr.mxu0 0.0
        %3848 = vmatpush1.msra.mxu0 0.0
        %3849 = vmatprep.subr.mxu0 0.0
        %3850 = vmatpush1.msra.mxu0 0.0
        %3851 = vmatprep.subr.mxu0 0.0
        %3852 = vmatpush1.msra.mxu0 0.0
        %3853 = vmatprep.subr.mxu0 0.0
        %3854 = vmatpush1.msra.mxu0 0.0
        %3855 = vmatprep.subr.mxu0 0.0
        %3856 = vmatpush1.msra.mxu0 0.0
        %3857 = vmatprep.subr.mxu0 0.0
        %3858 = vmatpush1.msra.mxu0 0.0
        %3859 = vmatprep.subr.mxu0 0.0
        %3860 = vmatpush1.msra.mxu0 0.0
        %3861 = vmatprep.subr.mxu0 0.0
        %3862 = vmatpush1.msra.mxu0 0.0
        %3863 = vmatprep.mubr.f32.mxu0 0.0
        %v3864 = vand.u32 %v3045, 4294901760
        %3865 = vmatmul.mubr.f32.gmra.mrb[0].mxu0 %v3864
        %v3866 = vpop.f32.mrb[0].mxu0
        %v3867 = vadd.f32 %v3792, %v3866
        %v3868 = vpop.f32.mrb[0].mxu0
        %3869 = vdwg.mxu0
        %3870 = vmatprep.subr.mxu0 0.0
        %3871 = vmatpush1.msra.mxu0 %v153
        %3872 = vmatprep.subr.mxu0 0.0
        %3873 = vmatpush1.msra.mxu0 %v154
        %3874 = vmatprep.subr.mxu0 0.0
        %3875 = vmatpush1.msra.mxu0 0.0
        %3876 = vmatprep.subr.mxu0 0.0
        %3877 = vmatpush1.msra.mxu0 0.0
        %3878 = vmatprep.subr.mxu0 0.0
        %3879 = vmatpush1.msra.mxu0 0.0
        %3880 = vmatprep.subr.mxu0 0.0
        %3881 = vmatpush1.msra.mxu0 0.0
        %3882 = vmatprep.subr.mxu0 0.0
        %3883 = vmatpush1.msra.mxu0 0.0
        %3884 = vmatprep.subr.mxu0 0.0
        %3885 = vmatpush1.msra.mxu0 0.0
        %3886 = vmatprep.subr.mxu0 0.0
        %3887 = vmatpush1.msra.mxu0 0.0
        %3888 = vmatprep.subr.mxu0 0.0
        %3889 = vmatpush1.msra.mxu0 0.0
        %3890 = vmatprep.subr.mxu0 0.0
        %3891 = vmatpush1.msra.mxu0 0.0
        %3892 = vmatprep.subr.mxu0 0.0
        %3893 = vmatpush1.msra.mxu0 0.0
        %3894 = vmatprep.subr.mxu0 0.0
        %3895 = vmatpush1.msra.mxu0 0.0
        %3896 = vmatprep.subr.mxu0 0.0
        %3897 = vmatpush1.msra.mxu0 0.0
        %3898 = vmatprep.subr.mxu0 0.0
        %3899 = vmatpush1.msra.mxu0 0.0
        %3900 = vmatprep.subr.mxu0 0.0
        %3901 = vmatpush1.msra.mxu0 0.0
        %3902 = vmatprep.subr.mxu0 0.0
        %3903 = vmatpush1.msra.mxu0 0.0
        %3904 = vmatprep.subr.mxu0 0.0
        %3905 = vmatpush1.msra.mxu0 0.0
        %3906 = vmatprep.subr.mxu0 0.0
        %3907 = vmatpush1.msra.mxu0 0.0
        %3908 = vmatprep.subr.mxu0 0.0
        %3909 = vmatpush1.msra.mxu0 0.0
        %3910 = vmatprep.subr.mxu0 0.0
        %3911 = vmatpush1.msra.mxu0 0.0
        %3912 = vmatprep.subr.mxu0 0.0
        %3913 = vmatpush1.msra.mxu0 0.0
        %3914 = vmatprep.subr.mxu0 0.0
        %3915 = vmatpush1.msra.mxu0 0.0
        %3916 = vmatprep.subr.mxu0 0.0
        %3917 = vmatpush1.msra.mxu0 0.0
        %3918 = vmatprep.subr.mxu0 0.0
        %3919 = vmatpush1.msra.mxu0 0.0
        %3920 = vmatprep.subr.mxu0 0.0
        %3921 = vmatpush1.msra.mxu0 0.0
        %3922 = vmatprep.subr.mxu0 0.0
        %3923 = vmatpush1.msra.mxu0 0.0
        %3924 = vmatprep.subr.mxu0 0.0
        %3925 = vmatpush1.msra.mxu0 0.0
        %3926 = vmatprep.subr.mxu0 0.0
        %3927 = vmatpush1.msra.mxu0 0.0
        %3928 = vmatprep.subr.mxu0 0.0
        %3929 = vmatpush1.msra.mxu0 0.0
        %3930 = vmatprep.subr.mxu0 0.0
        %3931 = vmatpush1.msra.mxu0 0.0
        %3932 = vmatprep.subr.mxu0 0.0
        %3933 = vmatpush1.msra.mxu0 0.0
        %3934 = vmatprep.mubr.f32.mxu0 0.0
        %v3935 = vand.u32 %v3045, 4294901760
        %3936 = vmatmul.mubr.f32.gmra.mrb[0].mxu0 %v3935
        %v3937 = vpop.f32.mrb[0].mxu0
        %v3938 = vadd.f32 %v3867, %v3937
        %v3939 = vpop.f32.mrb[0].mxu0
        %3940 = vdwg.mxu0
        %v3941 = vsel %vm1100, %v3938, -3.4028235e+38
        %v3942 = vmax.f32 %v3491, %v3941
        %3943 = vmatprep.subr.mxu0 0.0
        %3944 = vmatpush1.msra.mxu0 %v158
        %3945 = vmatprep.subr.mxu0 0.0
        %3946 = vmatpush1.msra.mxu0 %v159
        %3947 = vmatprep.subr.mxu0 0.0
        %3948 = vmatpush1.msra.mxu0 0.0
        %3949 = vmatprep.subr.mxu0 0.0
        %3950 = vmatpush1.msra.mxu0 0.0
        %3951 = vmatprep.subr.mxu0 0.0
        %3952 = vmatpush1.msra.mxu0 0.0
        %3953 = vmatprep.subr.mxu0 0.0
        %3954 = vmatpush1.msra.mxu0 0.0
        %3955 = vmatprep.subr.mxu0 0.0
        %3956 = vmatpush1.msra.mxu0 0.0
        %3957 = vmatprep.subr.mxu0 0.0
        %3958 = vmatpush1.msra.mxu0 0.0
        %3959 = vmatprep.subr.mxu0 0.0
        %3960 = vmatpush1.msra.mxu0 0.0
        %3961 = vmatprep.subr.mxu0 0.0
        %3962 = vmatpush1.msra.mxu0 0.0
        %3963 = vmatprep.subr.mxu0 0.0
        %3964 = vmatpush1.msra.mxu0 0.0
        %3965 = vmatprep.subr.mxu0 0.0
        %3966 = vmatpush1.msra.mxu0 0.0
        %3967 = vmatprep.subr.mxu0 0.0
        %3968 = vmatpush1.msra.mxu0 0.0
        %3969 = vmatprep.subr.mxu0 0.0
        %3970 = vmatpush1.msra.mxu0 0.0
        %3971 = vmatprep.subr.mxu0 0.0
        %3972 = vmatpush1.msra.mxu0 0.0
        %3973 = vmatprep.subr.mxu0 0.0
        %3974 = vmatpush1.msra.mxu0 0.0
        %3975 = vmatprep.subr.mxu0 0.0
        %3976 = vmatpush1.msra.mxu0 0.0
        %3977 = vmatprep.subr.mxu0 0.0
        %3978 = vmatpush1.msra.mxu0 0.0
        %3979 = vmatprep.subr.mxu0 0.0
        %3980 = vmatpush1.msra.mxu0 0.0
        %3981 = vmatprep.subr.mxu0 0.0
        %3982 = vmatpush1.msra.mxu0 0.0
        %3983 = vmatprep.subr.mxu0 0.0
        %3984 = vmatpush1.msra.mxu0 0.0
        %3985 = vmatprep.subr.mxu0 0.0
        %3986 = vmatpush1.msra.mxu0 0.0
        %3987 = vmatprep.subr.mxu0 0.0
        %3988 = vmatpush1.msra.mxu0 0.0
        %3989 = vmatprep.subr.mxu0 0.0
        %3990 = vmatpush1.msra.mxu0 0.0
        %3991 = vmatprep.subr.mxu0 0.0
        %3992 = vmatpush1.msra.mxu0 0.0
        %3993 = vmatprep.subr.mxu0 0.0
        %3994 = vmatpush1.msra.mxu0 0.0
        %3995 = vmatprep.subr.mxu0 0.0
        %3996 = vmatpush1.msra.mxu0 0.0
        %3997 = vmatprep.subr.mxu0 0.0
        %3998 = vmatpush1.msra.mxu0 0.0
        %3999 = vmatprep.subr.mxu0 0.0
        %4000 = vmatpush1.msra.mxu0 0.0
        %4001 = vmatprep.subr.mxu0 0.0
        %4002 = vmatpush1.msra.mxu0 0.0
        %4003 = vmatprep.subr.mxu0 0.0
        %4004 = vmatpush1.msra.mxu0 0.0
        %4005 = vmatprep.subr.mxu0 0.0
        %4006 = vmatpush1.msra.mxu0 0.0
        %4007 = vmatprep.mubr.f32.mxu0 0.0
        %v4008 = vand.u32 %v3045, 4294901760
        %v4009 = vsub.f32 %v3045, %v4008
        %v4010 = vand.u32 %v4009, 4294901760
        %v4011 = vsub.f32 %v4009, %v4010
        %v4012 = vand.u32 %v4011, 4294901760
        %4013 = vmatmul.mubr.f32.gmra.mrb[0].mxu0 %v4012
        %v4014 = vpop.f32.mrb[0].mxu0
        %v4015 = vadd.f32 0.0, %v4014
        %v4016 = vpop.f32.mrb[0].mxu0
        %4017 = vdwg.mxu0
        %4018 = vmatprep.subr.mxu0 0.0
        %v4019 = vsub.f32 %v158, %v158
        %v4020 = vand.u32 %v4019, 4294901760
        %v4021 = vsub.f32 %v4019, %v4020
        %v4022 = vand.u32 %v4021, 4294901760
        %4023 = vmatpush1.msra.mxu0 %v4022
        %4024 = vmatprep.subr.mxu0 0.0
        %v4025 = vsub.f32 %v159, %v159
        %v4026 = vand.u32 %v4025, 4294901760
        %v4027 = vsub.f32 %v4025, %v4026
        %v4028 = vand.u32 %v4027, 4294901760
        %4029 = vmatpush1.msra.mxu0 %v4028
        %4030 = vmatprep.subr.mxu0 0.0
        %4031 = vmatpush1.msra.mxu0 0.0
        %4032 = vmatprep.subr.mxu0 0.0
        %4033 = vmatpush1.msra.mxu0 0.0
        %4034 = vmatprep.subr.mxu0 0.0
        %4035 = vmatpush1.msra.mxu0 0.0
        %4036 = vmatprep.subr.mxu0 0.0
        %4037 = vmatpush1.msra.mxu0 0.0
        %4038 = vmatprep.subr.mxu0 0.0
        %4039 = vmatpush1.msra.mxu0 0.0
        %4040 = vmatprep.subr.mxu0 0.0
        %4041 = vmatpush1.msra.mxu0 0.0
        %4042 = vmatprep.subr.mxu0 0.0
        %4043 = vmatpush1.msra.mxu0 0.0
        %4044 = vmatprep.subr.mxu0 0.0
        %4045 = vmatpush1.msra.mxu0 0.0
        %4046 = vmatprep.subr.mxu0 0.0
        %4047 = vmatpush1.msra.mxu0 0.0
        %4048 = vmatprep.subr.mxu0 0.0
        %4049 = vmatpush1.msra.mxu0 0.0
        %4050 = vmatprep.subr.mxu0 0.0
        %4051 = vmatpush1.msra.mxu0 0.0
        %4052 = vmatprep.subr.mxu0 0.0
        %4053 = vmatpush1.msra.mxu0 0.0
        %4054 = vmatprep.subr.mxu0 0.0
        %4055 = vmatpush1.msra.mxu0 0.0
        %4056 = vmatprep.subr.mxu0 0.0
        %4057 = vmatpush1.msra.mxu0 0.0
        %4058 = vmatprep.subr.mxu0 0.0
        %4059 = vmatpush1.msra.mxu0 0.0
        %4060 = vmatprep.subr.mxu0 0.0
        %4061 = vmatpush1.msra.mxu0 0.0
        %4062 = vmatprep.subr.mxu0 0.0
        %4063 = vmatpush1.msra.mxu0 0.0
        %4064 = vmatprep.subr.mxu0 0.0
        %4065 = vmatpush1.msra.mxu0 0.0
        %4066 = vmatprep.subr.mxu0 0.0
        %4067 = vmatpush1.msra.mxu0 0.0
        %4068 = vmatprep.subr.mxu0 0.0
        %4069 = vmatpush1.msra.mxu0 0.0
        %4070 = vmatprep.subr.mxu0 0.0
        %4071 = vmatpush1.msra.mxu0 0.0
        %4072 = vmatprep.subr.mxu0 0.0
        %4073 = vmatpush1.msra.mxu0 0.0
        %4074 = vmatprep.subr.mxu0 0.0
        %4075 = vmatpush1.msra.mxu0 0.0
        %4076 = vmatprep.subr.mxu0 0.0
        %4077 = vmatpush1.msra.mxu0 0.0
        %4078 = vmatprep.subr.mxu0 0.0
        %4079 = vmatpush1.msra.mxu0 0.0
        %4080 = vmatprep.subr.mxu0 0.0
        %4081 = vmatpush1.msra.mxu0 0.0
        %4082 = vmatprep.subr.mxu0 0.0
        %4083 = vmatpush1.msra.mxu0 0.0
        %4084 = vmatprep.subr.mxu0 0.0
        %4085 = vmatpush1.msra.mxu0 0.0
        %4086 = vmatprep.subr.mxu0 0.0
        %4087 = vmatpush1.msra.mxu0 0.0
        %4088 = vmatprep.subr.mxu0 0.0
        %4089 = vmatpush1.msra.mxu0 0.0
        %4090 = vmatprep.mubr.f32.mxu0 0.0
        %v4091 = vand.u32 %v3045, 4294901760
        %4092 = vmatmul.mubr.f32.gmra.mrb[0].mxu0 %v4091
        %v4093 = vpop.f32.mrb[0].mxu0
        %v4094 = vadd.f32 %v4015, %v4093
        %v4095 = vpop.f32.mrb[0].mxu0
        %4096 = vdwg.mxu0
        %4097 = vmatprep.subr.mxu0 0.0
        %v4098 = vsub.f32 %v158, %v158
        %4099 = vmatpush1.msra.mxu0 %v4098
        %4100 = vmatprep.subr.mxu0 0.0
        %v4101 = vsub.f32 %v159, %v159
        %4102 = vmatpush1.msra.mxu0 %v4101
        %4103 = vmatprep.subr.mxu0 0.0
        %4104 = vmatpush1.msra.mxu0 0.0
        %4105 = vmatprep.subr.mxu0 0.0
        %4106 = vmatpush1.msra.mxu0 0.0
        %4107 = vmatprep.subr.mxu0 0.0
        %4108 = vmatpush1.msra.mxu0 0.0
        %4109 = vmatprep.subr.mxu0 0.0
        %4110 = vmatpush1.msra.mxu0 0.0
        %4111 = vmatprep.subr.mxu0 0.0
        %4112 = vmatpush1.msra.mxu0 0.0
        %4113 = vmatprep.subr.mxu0 0.0
        %4114 = vmatpush1.msra.mxu0 0.0
        %4115 = vmatprep.subr.mxu0 0.0
        %4116 = vmatpush1.msra.mxu0 0.0
        %4117 = vmatprep.subr.mxu0 0.0
        %4118 = vmatpush1.msra.mxu0 0.0
        %4119 = vmatprep.subr.mxu0 0.0
        %4120 = vmatpush1.msra.mxu0 0.0
        %4121 = vmatprep.subr.mxu0 0.0
        %4122 = vmatpush1.msra.mxu0 0.0
        %4123 = vmatprep.subr.mxu0 0.0
        %4124 = vmatpush1.msra.mxu0 0.0
        %4125 = vmatprep.subr.mxu0 0.0
        %4126 = vmatpush1.msra.mxu0 0.0
        %4127 = vmatprep.subr.mxu0 0.0
        %4128 = vmatpush1.msra.mxu0 0.0
        %4129 = vmatprep.subr.mxu0 0.0
        %4130 = vmatpush1.msra.mxu0 0.0
        %4131 = vmatprep.subr.mxu0 0.0
        %4132 = vmatpush1.msra.mxu0 0.0
        %4133 = vmatprep.subr.mxu0 0.0
        %4134 = vmatpush1.msra.mxu0 0.0
        %4135 = vmatprep.subr.mxu0 0.0
        %4136 = vmatpush1.msra.mxu0 0.0
        %4137 = vmatprep.subr.mxu0 0.0
        %4138 = vmatpush1.msra.mxu0 0.0
        %4139 = vmatprep.subr.mxu0 0.0
        %4140 = vmatpush1.msra.mxu0 0.0
        %4141 = vmatprep.subr.mxu0 0.0
        %4142 = vmatpush1.msra.mxu0 0.0
        %4143 = vmatprep.subr.mxu0 0.0
        %4144 = vmatpush1.msra.mxu0 0.0
        %4145 = vmatprep.subr.mxu0 0.0
        %4146 = vmatpush1.msra.mxu0 0.0
        %4147 = vmatprep.subr.mxu0 0.0
        %4148 = vmatpush1.msra.mxu0 0.0
        %4149 = vmatprep.subr.mxu0 0.0
        %4150 = vmatpush1.msra.mxu0 0.0
        %4151 = vmatprep.subr.mxu0 0.0
        %4152 = vmatpush1.msra.mxu0 0.0
        %4153 = vmatprep.subr.mxu0 0.0
        %4154 = vmatpush1.msra.mxu0 0.0
        %4155 = vmatprep.subr.mxu0 0.0
        %4156 = vmatpush1.msra.mxu0 0.0
        %4157 = vmatprep.subr.mxu0 0.0
        %4158 = vmatpush1.msra.mxu0 0.0
        %4159 = vmatprep.subr.mxu0 0.0
        %4160 = vmatpush1.msra.mxu0 0.0
        %4161 = vmatprep.subr.mxu0 0.0
        %4162 = vmatpush1.msra.mxu0 0.0
        %4163 = vmatprep.mubr.f32.mxu0 0.0
        %v4164 = vand.u32 %v3045, 4294901760
        %v4165 = vsub.f32 %v3045, %v4164
        %4166 = vmatmul.mubr.f32.gmra.mrb[0].mxu0 %v4165
        %v4167 = vpop.f32.mrb[0].mxu0
        %v4168 = vadd.f32 %v4094, %v4167
        %v4169 = vpop.f32.mrb[0].mxu0
        %4170 = vdwg.mxu0
        %4171 = vmatprep.subr.mxu0 0.0
        %4172 = vmatpush1.msra.mxu0 %v158
        %4173 = vmatprep.subr.mxu0 0.0
        %4174 = vmatpush1.msra.mxu0 %v159
        %4175 = vmatprep.subr.mxu0 0.0
        %4176 = vmatpush1.msra.mxu0 0.0
        %4177 = vmatprep.subr.mxu0 0.0
        %4178 = vmatpush1.msra.mxu0 0.0
        %4179 = vmatprep.subr.mxu0 0.0
        %4180 = vmatpush1.msra.mxu0 0.0
        %4181 = vmatprep.subr.mxu0 0.0
        %4182 = vmatpush1.msra.mxu0 0.0
        %4183 = vmatprep.subr.mxu0 0.0
        %4184 = vmatpush1.msra.mxu0 0.0
        %4185 = vmatprep.subr.mxu0 0.0
        %4186 = vmatpush1.msra.mxu0 0.0
        %4187 = vmatprep.subr.mxu0 0.0
        %4188 = vmatpush1.msra.mxu0 0.0
        %4189 = vmatprep.subr.mxu0 0.0
        %4190 = vmatpush1.msra.mxu0 0.0
        %4191 = vmatprep.subr.mxu0 0.0
        %4192 = vmatpush1.msra.mxu0 0.0
        %4193 = vmatprep.subr.mxu0 0.0
        %4194 = vmatpush1.msra.mxu0 0.0
        %4195 = vmatprep.subr.mxu0 0.0
        %4196 = vmatpush1.msra.mxu0 0.0
        %4197 = vmatprep.subr.mxu0 0.0
        %4198 = vmatpush1.msra.mxu0 0.0
        %4199 = vmatprep.subr.mxu0 0.0
        %4200 = vmatpush1.msra.mxu0 0.0
        %4201 = vmatprep.subr.mxu0 0.0
        %4202 = vmatpush1.msra.mxu0 0.0
        %4203 = vmatprep.subr.mxu0 0.0
        %4204 = vmatpush1.msra.mxu0 0.0
        %4205 = vmatprep.subr.mxu0 0.0
        %4206 = vmatpush1.msra.mxu0 0.0
        %4207 = vmatprep.subr.mxu0 0.0
        %4208 = vmatpush1.msra.mxu0 0.0
        %4209 = vmatprep.subr.mxu0 0.0
        %4210 = vmatpush1.msra.mxu0 0.0
        %4211 = vmatprep.subr.mxu0 0.0
        %4212 = vmatpush1.msra.mxu0 0.0
        %4213 = vmatprep.subr.mxu0 0.0
        %4214 = vmatpush1.msra.mxu0 0.0
        %4215 = vmatprep.subr.mxu0 0.0
        %4216 = vmatpush1.msra.mxu0 0.0
        %4217 = vmatprep.subr.mxu0 0.0
        %4218 = vmatpush1.msra.mxu0 0.0
        %4219 = vmatprep.subr.mxu0 0.0
        %4220 = vmatpush1.msra.mxu0 0.0
        %4221 = vmatprep.subr.mxu0 0.0
        %4222 = vmatpush1.msra.mxu0 0.0
        %4223 = vmatprep.subr.mxu0 0.0
        %4224 = vmatpush1.msra.mxu0 0.0
        %4225 = vmatprep.subr.mxu0 0.0
        %4226 = vmatpush1.msra.mxu0 0.0
        %4227 = vmatprep.subr.mxu0 0.0
        %4228 = vmatpush1.msra.mxu0 0.0
        %4229 = vmatprep.subr.mxu0 0.0
        %4230 = vmatpush1.msra.mxu0 0.0
        %4231 = vmatprep.subr.mxu0 0.0
        %4232 = vmatpush1.msra.mxu0 0.0
        %4233 = vmatprep.subr.mxu0 0.0
        %4234 = vmatpush1.msra.mxu0 0.0
        %4235 = vmatprep.mubr.f32.mxu0 0.0
        %v4236 = vand.u32 %v3045, 4294901760
        %v4237 = vsub.f32 %v3045, %v4236
        %v4238 = vand.u32 %v4237, 4294901760
        %4239 = vmatmul.mubr.f32.gmra.mrb[0].mxu0 %v4238
        %v4240 = vpop.f32.mrb[0].mxu0
        %v4241 = vadd.f32 %v4168, %v4240
        %v4242 = vpop.f32.mrb[0].mxu0
        %4243 = vdwg.mxu0
        %4244 = vmatprep.subr.mxu0 0.0
        %v4245 = vsub.f32 %v158, %v158
        %v4246 = vand.u32 %v4245, 4294901760
        %4247 = vmatpush1.msra.mxu0 %v4246
        %4248 = vmatprep.subr.mxu0 0.0
        %v4249 = vsub.f32 %v159, %v159
        %v4250 = vand.u32 %v4249, 4294901760
        %4251 = vmatpush1.msra.mxu0 %v4250
        %4252 = vmatprep.subr.mxu0 0.0
        %4253 = vmatpush1.msra.mxu0 0.0
        %4254 = vmatprep.subr.mxu0 0.0
        %4255 = vmatpush1.msra.mxu0 0.0
        %4256 = vmatprep.subr.mxu0 0.0
        %4257 = vmatpush1.msra.mxu0 0.0
        %4258 = vmatprep.subr.mxu0 0.0
        %4259 = vmatpush1.msra.mxu0 0.0
        %4260 = vmatprep.subr.mxu0 0.0
        %4261 = vmatpush1.msra.mxu0 0.0
        %4262 = vmatprep.subr.mxu0 0.0
        %4263 = vmatpush1.msra.mxu0 0.0
        %4264 = vmatprep.subr.mxu0 0.0
        %4265 = vmatpush1.msra.mxu0 0.0
        %4266 = vmatprep.subr.mxu0 0.0
        %4267 = vmatpush1.msra.mxu0 0.0
        %4268 = vmatprep.subr.mxu0 0.0
        %4269 = vmatpush1.msra.mxu0 0.0
        %4270 = vmatprep.subr.mxu0 0.0
        %4271 = vmatpush1.msra.mxu0 0.0
        %4272 = vmatprep.subr.mxu0 0.0
        %4273 = vmatpush1.msra.mxu0 0.0
        %4274 = vmatprep.subr.mxu0 0.0
        %4275 = vmatpush1.msra.mxu0 0.0
        %4276 = vmatprep.subr.mxu0 0.0
        %4277 = vmatpush1.msra.mxu0 0.0
        %4278 = vmatprep.subr.mxu0 0.0
        %4279 = vmatpush1.msra.mxu0 0.0
        %4280 = vmatprep.subr.mxu0 0.0
        %4281 = vmatpush1.msra.mxu0 0.0
        %4282 = vmatprep.subr.mxu0 0.0
        %4283 = vmatpush1.msra.mxu0 0.0
        %4284 = vmatprep.subr.mxu0 0.0
        %4285 = vmatpush1.msra.mxu0 0.0
        %4286 = vmatprep.subr.mxu0 0.0
        %4287 = vmatpush1.msra.mxu0 0.0
        %4288 = vmatprep.subr.mxu0 0.0
        %4289 = vmatpush1.msra.mxu0 0.0
        %4290 = vmatprep.subr.mxu0 0.0
        %4291 = vmatpush1.msra.mxu0 0.0
        %4292 = vmatprep.subr.mxu0 0.0
        %4293 = vmatpush1.msra.mxu0 0.0
        %4294 = vmatprep.subr.mxu0 0.0
        %4295 = vmatpush1.msra.mxu0 0.0
        %4296 = vmatprep.subr.mxu0 0.0
        %4297 = vmatpush1.msra.mxu0 0.0
        %4298 = vmatprep.subr.mxu0 0.0
        %4299 = vmatpush1.msra.mxu0 0.0
        %4300 = vmatprep.subr.mxu0 0.0
        %4301 = vmatpush1.msra.mxu0 0.0
        %4302 = vmatprep.subr.mxu0 0.0
        %4303 = vmatpush1.msra.mxu0 0.0
        %4304 = vmatprep.subr.mxu0 0.0
        %4305 = vmatpush1.msra.mxu0 0.0
        %4306 = vmatprep.subr.mxu0 0.0
        %4307 = vmatpush1.msra.mxu0 0.0
        %4308 = vmatprep.subr.mxu0 0.0
        %4309 = vmatpush1.msra.mxu0 0.0
        %4310 = vmatprep.subr.mxu0 0.0
        %4311 = vmatpush1.msra.mxu0 0.0
        %4312 = vmatprep.mubr.f32.mxu0 0.0
        %v4313 = vand.u32 %v3045, 4294901760
        %4314 = vmatmul.mubr.f32.gmra.mrb[0].mxu0 %v4313
        %v4315 = vpop.f32.mrb[0].mxu0
        %v4316 = vadd.f32 %v4241, %v4315
        %v4317 = vpop.f32.mrb[0].mxu0
        %4318 = vdwg.mxu0
        %4319 = vmatprep.subr.mxu0 0.0
        %4320 = vmatpush1.msra.mxu0 %v158
        %4321 = vmatprep.subr.mxu0 0.0
        %4322 = vmatpush1.msra.mxu0 %v159
        %4323 = vmatprep.subr.mxu0 0.0
        %4324 = vmatpush1.msra.mxu0 0.0
        %4325 = vmatprep.subr.mxu0 0.0
        %4326 = vmatpush1.msra.mxu0 0.0
        %4327 = vmatprep.subr.mxu0 0.0
        %4328 = vmatpush1.msra.mxu0 0.0
        %4329 = vmatprep.subr.mxu0 0.0
        %4330 = vmatpush1.msra.mxu0 0.0
        %4331 = vmatprep.subr.mxu0 0.0
        %4332 = vmatpush1.msra.mxu0 0.0
        %4333 = vmatprep.subr.mxu0 0.0
        %4334 = vmatpush1.msra.mxu0 0.0
        %4335 = vmatprep.subr.mxu0 0.0
        %4336 = vmatpush1.msra.mxu0 0.0
        %4337 = vmatprep.subr.mxu0 0.0
        %4338 = vmatpush1.msra.mxu0 0.0
        %4339 = vmatprep.subr.mxu0 0.0
        %4340 = vmatpush1.msra.mxu0 0.0
        %4341 = vmatprep.subr.mxu0 0.0
        %4342 = vmatpush1.msra.mxu0 0.0
        %4343 = vmatprep.subr.mxu0 0.0
        %4344 = vmatpush1.msra.mxu0 0.0
        %4345 = vmatprep.subr.mxu0 0.0
        %4346 = vmatpush1.msra.mxu0 0.0
        %4347 = vmatprep.subr.mxu0 0.0
        %4348 = vmatpush1.msra.mxu0 0.0
        %4349 = vmatprep.subr.mxu0 0.0
        %4350 = vmatpush1.msra.mxu0 0.0
        %4351 = vmatprep.subr.mxu0 0.0
        %4352 = vmatpush1.msra.mxu0 0.0
        %4353 = vmatprep.subr.mxu0 0.0
        %4354 = vmatpush1.msra.mxu0 0.0
        %4355 = vmatprep.subr.mxu0 0.0
        %4356 = vmatpush1.msra.mxu0 0.0
        %4357 = vmatprep.subr.mxu0 0.0
        %4358 = vmatpush1.msra.mxu0 0.0
        %4359 = vmatprep.subr.mxu0 0.0
        %4360 = vmatpush1.msra.mxu0 0.0
        %4361 = vmatprep.subr.mxu0 0.0
        %4362 = vmatpush1.msra.mxu0 0.0
        %4363 = vmatprep.subr.mxu0 0.0
        %4364 = vmatpush1.msra.mxu0 0.0
        %4365 = vmatprep.subr.mxu0 0.0
        %4366 = vmatpush1.msra.mxu0 0.0
        %4367 = vmatprep.subr.mxu0 0.0
        %4368 = vmatpush1.msra.mxu0 0.0
        %4369 = vmatprep.subr.mxu0 0.0
        %4370 = vmatpush1.msra.mxu0 0.0
        %4371 = vmatprep.subr.mxu0 0.0
        %4372 = vmatpush1.msra.mxu0 0.0
        %4373 = vmatprep.subr.mxu0 0.0
        %4374 = vmatpush1.msra.mxu0 0.0
        %4375 = vmatprep.subr.mxu0 0.0
        %4376 = vmatpush1.msra.mxu0 0.0
        %4377 = vmatprep.subr.mxu0 0.0
        %4378 = vmatpush1.msra.mxu0 0.0
        %4379 = vmatprep.subr.mxu0 0.0
        %4380 = vmatpush1.msra.mxu0 0.0
        %4381 = vmatprep.subr.mxu0 0.0
        %4382 = vmatpush1.msra.mxu0 0.0
        %4383 = vmatprep.mubr.f32.mxu0 0.0
        %v4384 = vand.u32 %v3045, 4294901760
        %4385 = vmatmul.mubr.f32.gmra.mrb[0].mxu0 %v4384
        %v4386 = vpop.f32.mrb[0].mxu0
        %v4387 = vadd.f32 %v4316, %v4386
        %v4388 = vpop.f32.mrb[0].mxu0
        %4389 = vdwg.mxu0
        %v4390 = vsel %vm1550, %v4387, -3.4028235e+38
        %v4391 = vmax.f32 %v3942, %v4390
        %v4394 = vunpack.c.l.s4 1966171168
        %v4395 = vunpack.c.0.s8 %v4394
        %v4396 = vlaneseq
        %v4397 = vshrl.u32 %v4396, 7
        %v4398 = vsub.s32 %v4395, %v4397
        %v4399 = vrot.slane %v4391, %v4398
        %v4400 = vcombine.high %v4399, %v4399
        %v4402 = vunpack.c.l.s4 1966171168
        %v4403 = vunpack.c.0.s8 %v4402
        %v4404 = vlaneseq
        %v4405 = vshrl.u32 %v4404, 7
        %v4406 = vsub.s32 %v4403, %v4405
        %v4407 = vrot.slane %v4399, %v4406
        %v4409 = vunpack.c.l.s4 1966171168
        %v4410 = vunpack.c.0.s8 %v4409
        %v4411 = vlaneseq
        %v4412 = vshrl.u32 %v4411, 7
        %v4413 = vsub.s32 %v4410, %v4412
        %v4414 = vrot.slane %v4400, %v4413
        %v4415 = vcombine.high %v4407, %v4407
        %v4416 = vcombine.high %v4414, %v4414
        %4421 = vst.msk [vmem:[%s138 + $0x2] sm:$0x1] %vm1582, %v4407
        %4422 = vst.msk [vmem:[%s138 + $0xa] sm:$0x1] %vm1582, %v4414
        %4423 = vst.msk [vmem:[%s138 + $0x12] sm:$0x1] %vm1582, %v4415
        %4424 = vst.msk [vmem:[%s138 + $0x1a] sm:$0x1] %vm1582, %v4416
        %v4425 = vld [vmem:[%s114 + $0x9] sm:$0x7]
        %v4426 = vld [vmem:[%s114 + $0x19] sm:$0x7]
        %v4427 = vld [vmem:[%s114 + $0x29] sm:$0x7]
        %v4428 = vld [vmem:[%s114 + $0x39] sm:$0x7]
        %v4429 = vsel %vm164, %v4425, -inf
        %v4430 = vrot.slane %v4429, 4
        %v4431 = vmax.f32 %v4429, %v4430
        %v4432 = vrot.slane %v4431, 2
        %v4433 = vmax.f32 %v4431, %v4432
        %v4434 = vrot.slane %v4433, 1
        %v4435 = vmax.f32 %v4433, %v4434
        %v4436 = vsel %vm164, %v4426, -inf
        %v4437 = vrot.slane %v4436, 4
        %v4438 = vmax.f32 %v4436, %v4437
        %v4439 = vrot.slane %v4438, 2
        %v4440 = vmax.f32 %v4438, %v4439
        %v4441 = vrot.slane %v4440, 1
        %v4442 = vmax.f32 %v4440, %v4441
        %v4443 = vsel %vm164, %v4427, -inf
        %v4444 = vrot.slane %v4443, 4
        %v4445 = vmax.f32 %v4443, %v4444
        %v4446 = vrot.slane %v4445, 2
        %v4447 = vmax.f32 %v4445, %v4446
        %v4448 = vrot.slane %v4447, 1
        %v4449 = vmax.f32 %v4447, %v4448
        %v4450 = vsel %vm164, %v4428, -inf
        %v4451 = vrot.slane %v4450, 4
        %v4452 = vmax.f32 %v4450, %v4451
        %v4453 = vrot.slane %v4452, 2
        %v4454 = vmax.f32 %v4452, %v4453
        %v4455 = vrot.slane %v4454, 1
        %v4456 = vmax.f32 %v4454, %v4455
        %v4461 = vsel %vm197, %v4442, %v4435
        %v4462 = vsel %vm199, %v4449, %v4461
        %v4463 = vsel %vm201, %v4456, %v4462
        %v4464 = vsel %vm203, %v4463, 0
        %4466 = vmatprep.subr.mxu0 0.0
        %4467 = vmatpush1.msra.mxu0 %v148
        %4468 = vmatprep.subr.mxu0 0.0
        %4469 = vmatpush1.msra.mxu0 %v149
        %4470 = vmatprep.subr.mxu0 0.0
        %4471 = vmatpush1.msra.mxu0 0.0
        %4472 = vmatprep.subr.mxu0 0.0
        %4473 = vmatpush1.msra.mxu0 0.0
        %4474 = vmatprep.subr.mxu0 0.0
        %4475 = vmatpush1.msra.mxu0 0.0
        %4476 = vmatprep.subr.mxu0 0.0
        %4477 = vmatpush1.msra.mxu0 0.0
        %4478 = vmatprep.subr.mxu0 0.0
        %4479 = vmatpush1.msra.mxu0 0.0
        %4480 = vmatprep.subr.mxu0 0.0
        %4481 = vmatpush1.msra.mxu0 0.0
        %4482 = vmatprep.subr.mxu0 0.0
        %4483 = vmatpush1.msra.mxu0 0.0
        %4484 = vmatprep.subr.mxu0 0.0
        %4485 = vmatpush1.msra.mxu0 0.0
        %4486 = vmatprep.subr.mxu0 0.0
        %4487 = vmatpush1.msra.mxu0 0.0
        %4488 = vmatprep.subr.mxu0 0.0
        %4489 = vmatpush1.msra.mxu0 0.0
        %4490 = vmatprep.subr.mxu0 0.0
        %4491 = vmatpush1.msra.mxu0 0.0
        %4492 = vmatprep.subr.mxu0 0.0
        %4493 = vmatpush1.msra.mxu0 0.0
        %4494 = vmatprep.subr.mxu0 0.0
        %4495 = vmatpush1.msra.mxu0 0.0
        %4496 = vmatprep.subr.mxu0 0.0
        %4497 = vmatpush1.msra.mxu0 0.0
        %4498 = vmatprep.subr.mxu0 0.0
        %4499 = vmatpush1.msra.mxu0 0.0
        %4500 = vmatprep.subr.mxu0 0.0
        %4501 = vmatpush1.msra.mxu0 0.0
        %4502 = vmatprep.subr.mxu0 0.0
        %4503 = vmatpush1.msra.mxu0 0.0
        %4504 = vmatprep.subr.mxu0 0.0
        %4505 = vmatpush1.msra.mxu0 0.0
        %4506 = vmatprep.subr.mxu0 0.0
        %4507 = vmatpush1.msra.mxu0 0.0
        %4508 = vmatprep.subr.mxu0 0.0
        %4509 = vmatpush1.msra.mxu0 0.0
        %4510 = vmatprep.subr.mxu0 0.0
        %4511 = vmatpush1.msra.mxu0 0.0
        %4512 = vmatprep.subr.mxu0 0.0
        %4513 = vmatpush1.msra.mxu0 0.0
        %4514 = vmatprep.subr.mxu0 0.0
        %4515 = vmatpush1.msra.mxu0 0.0
        %4516 = vmatprep.subr.mxu0 0.0
        %4517 = vmatpush1.msra.mxu0 0.0
        %4518 = vmatprep.subr.mxu0 0.0
        %4519 = vmatpush1.msra.mxu0 0.0
        %4520 = vmatprep.subr.mxu0 0.0
        %4521 = vmatpush1.msra.mxu0 0.0
        %4522 = vmatprep.subr.mxu0 0.0
        %4523 = vmatpush1.msra.mxu0 0.0
        %4524 = vmatprep.subr.mxu0 0.0
        %4525 = vmatpush1.msra.mxu0 0.0
        %4526 = vmatprep.subr.mxu0 0.0
        %4527 = vmatpush1.msra.mxu0 0.0
        %4528 = vmatprep.subr.mxu0 0.0
        %4529 = vmatpush1.msra.mxu0 0.0
        %4530 = vmatprep.mubr.f32.mxu0 0.0
        %v4531 = vand.u32 %v4464, 4294901760
        %v4532 = vsub.f32 %v4464, %v4531
        %v4533 = vand.u32 %v4532, 4294901760
        %v4534 = vsub.f32 %v4532, %v4533
        %v4535 = vand.u32 %v4534, 4294901760
        %4536 = vmatmul.mubr.f32.gmra.mrb[0].mxu0 %v4535
        %v4537 = vpop.f32.mrb[0].mxu0
        %v4538 = vadd.f32 0.0, %v4537
        %v4539 = vpop.f32.mrb[0].mxu0
        %4540 = vdwg.mxu0
        %4541 = vmatprep.subr.mxu0 0.0
        %v4542 = vsub.f32 %v148, %v148
        %v4543 = vand.u32 %v4542, 4294901760
        %v4544 = vsub.f32 %v4542, %v4543
        %v4545 = vand.u32 %v4544, 4294901760
        %4546 = vmatpush1.msra.mxu0 %v4545
        %4547 = vmatprep.subr.mxu0 0.0
        %v4548 = vsub.f32 %v149, %v149
        %v4549 = vand.u32 %v4548, 4294901760
        %v4550 = vsub.f32 %v4548, %v4549
        %v4551 = vand.u32 %v4550, 4294901760
        %4552 = vmatpush1.msra.mxu0 %v4551
        %4553 = vmatprep.subr.mxu0 0.0
        %4554 = vmatpush1.msra.mxu0 0.0
        %4555 = vmatprep.subr.mxu0 0.0
        %4556 = vmatpush1.msra.mxu0 0.0
        %4557 = vmatprep.subr.mxu0 0.0
        %4558 = vmatpush1.msra.mxu0 0.0
        %4559 = vmatprep.subr.mxu0 0.0
        %4560 = vmatpush1.msra.mxu0 0.0
        %4561 = vmatprep.subr.mxu0 0.0
        %4562 = vmatpush1.msra.mxu0 0.0
        %4563 = vmatprep.subr.mxu0 0.0
        %4564 = vmatpush1.msra.mxu0 0.0
        %4565 = vmatprep.subr.mxu0 0.0
        %4566 = vmatpush1.msra.mxu0 0.0
        %4567 = vmatprep.subr.mxu0 0.0
        %4568 = vmatpush1.msra.mxu0 0.0
        %4569 = vmatprep.subr.mxu0 0.0
        %4570 = vmatpush1.msra.mxu0 0.0
        %4571 = vmatprep.subr.mxu0 0.0
        %4572 = vmatpush1.msra.mxu0 0.0
        %4573 = vmatprep.subr.mxu0 0.0
        %4574 = vmatpush1.msra.mxu0 0.0
        %4575 = vmatprep.subr.mxu0 0.0
        %4576 = vmatpush1.msra.mxu0 0.0
        %4577 = vmatprep.subr.mxu0 0.0
        %4578 = vmatpush1.msra.mxu0 0.0
        %4579 = vmatprep.subr.mxu0 0.0
        %4580 = vmatpush1.msra.mxu0 0.0
        %4581 = vmatprep.subr.mxu0 0.0
        %4582 = vmatpush1.msra.mxu0 0.0
        %4583 = vmatprep.subr.mxu0 0.0
        %4584 = vmatpush1.msra.mxu0 0.0
        %4585 = vmatprep.subr.mxu0 0.0
        %4586 = vmatpush1.msra.mxu0 0.0
        %4587 = vmatprep.subr.mxu0 0.0
        %4588 = vmatpush1.msra.mxu0 0.0
        %4589 = vmatprep.subr.mxu0 0.0
        %4590 = vmatpush1.msra.mxu0 0.0
        %4591 = vmatprep.subr.mxu0 0.0
        %4592 = vmatpush1.msra.mxu0 0.0
        %4593 = vmatprep.subr.mxu0 0.0
        %4594 = vmatpush1.msra.mxu0 0.0
        %4595 = vmatprep.subr.mxu0 0.0
        %4596 = vmatpush1.msra.mxu0 0.0
        %4597 = vmatprep.subr.mxu0 0.0
        %4598 = vmatpush1.msra.mxu0 0.0
        %4599 = vmatprep.subr.mxu0 0.0
        %4600 = vmatpush1.msra.mxu0 0.0
        %4601 = vmatprep.subr.mxu0 0.0
        %4602 = vmatpush1.msra.mxu0 0.0
        %4603 = vmatprep.subr.mxu0 0.0
        %4604 = vmatpush1.msra.mxu0 0.0
        %4605 = vmatprep.subr.mxu0 0.0
        %4606 = vmatpush1.msra.mxu0 0.0
        %4607 = vmatprep.subr.mxu0 0.0
        %4608 = vmatpush1.msra.mxu0 0.0
        %4609 = vmatprep.subr.mxu0 0.0
        %4610 = vmatpush1.msra.mxu0 0.0
        %4611 = vmatprep.subr.mxu0 0.0
        %4612 = vmatpush1.msra.mxu0 0.0
        %4613 = vmatprep.mubr.f32.mxu0 0.0
        %v4614 = vand.u32 %v4464, 4294901760
        %4615 = vmatmul.mubr.f32.gmra.mrb[0].mxu0 %v4614
        %v4616 = vpop.f32.mrb[0].mxu0
        %v4617 = vadd.f32 %v4538, %v4616
        %v4618 = vpop.f32.mrb[0].mxu0
        %4619 = vdwg.mxu0
        %4620 = vmatprep.subr.mxu0 0.0
        %v4621 = vsub.f32 %v148, %v148
        %4622 = vmatpush1.msra.mxu0 %v4621
        %4623 = vmatprep.subr.mxu0 0.0
        %v4624 = vsub.f32 %v149, %v149
        %4625 = vmatpush1.msra.mxu0 %v4624
        %4626 = vmatprep.subr.mxu0 0.0
        %4627 = vmatpush1.msra.mxu0 0.0
        %4628 = vmatprep.subr.mxu0 0.0
        %4629 = vmatpush1.msra.mxu0 0.0
        %4630 = vmatprep.subr.mxu0 0.0
        %4631 = vmatpush1.msra.mxu0 0.0
        %4632 = vmatprep.subr.mxu0 0.0
        %4633 = vmatpush1.msra.mxu0 0.0
        %4634 = vmatprep.subr.mxu0 0.0
        %4635 = vmatpush1.msra.mxu0 0.0
        %4636 = vmatprep.subr.mxu0 0.0
        %4637 = vmatpush1.msra.mxu0 0.0
        %4638 = vmatprep.subr.mxu0 0.0
        %4639 = vmatpush1.msra.mxu0 0.0
        %4640 = vmatprep.subr.mxu0 0.0
        %4641 = vmatpush1.msra.mxu0 0.0
        %4642 = vmatprep.subr.mxu0 0.0
        %4643 = vmatpush1.msra.mxu0 0.0
        %4644 = vmatprep.subr.mxu0 0.0
        %4645 = vmatpush1.msra.mxu0 0.0
        %4646 = vmatprep.subr.mxu0 0.0
        %4647 = vmatpush1.msra.mxu0 0.0
        %4648 = vmatprep.subr.mxu0 0.0
        %4649 = vmatpush1.msra.mxu0 0.0
        %4650 = vmatprep.subr.mxu0 0.0
        %4651 = vmatpush1.msra.mxu0 0.0
        %4652 = vmatprep.subr.mxu0 0.0
        %4653 = vmatpush1.msra.mxu0 0.0
        %4654 = vmatprep.subr.mxu0 0.0
        %4655 = vmatpush1.msra.mxu0 0.0
        %4656 = vmatprep.subr.mxu0 0.0
        %4657 = vmatpush1.msra.mxu0 0.0
        %4658 = vmatprep.subr.mxu0 0.0
        %4659 = vmatpush1.msra.mxu0 0.0
        %4660 = vmatprep.subr.mxu0 0.0
        %4661 = vmatpush1.msra.mxu0 0.0
        %4662 = vmatprep.subr.mxu0 0.0
        %4663 = vmatpush1.msra.mxu0 0.0
        %4664 = vmatprep.subr.mxu0 0.0
        %4665 = vmatpush1.msra.mxu0 0.0
        %4666 = vmatprep.subr.mxu0 0.0
        %4667 = vmatpush1.msra.mxu0 0.0
        %4668 = vmatprep.subr.mxu0 0.0
        %4669 = vmatpush1.msra.mxu0 0.0
        %4670 = vmatprep.subr.mxu0 0.0
        %4671 = vmatpush1.msra.mxu0 0.0
        %4672 = vmatprep.subr.mxu0 0.0
        %4673 = vmatpush1.msra.mxu0 0.0
        %4674 = vmatprep.subr.mxu0 0.0
        %4675 = vmatpush1.msra.mxu0 0.0
        %4676 = vmatprep.subr.mxu0 0.0
        %4677 = vmatpush1.msra.mxu0 0.0
        %4678 = vmatprep.subr.mxu0 0.0
        %4679 = vmatpush1.msra.mxu0 0.0
        %4680 = vmatprep.subr.mxu0 0.0
        %4681 = vmatpush1.msra.mxu0 0.0
        %4682 = vmatprep.subr.mxu0 0.0
        %4683 = vmatpush1.msra.mxu0 0.0
        %4684 = vmatprep.subr.mxu0 0.0
        %4685 = vmatpush1.msra.mxu0 0.0
        %4686 = vmatprep.mubr.f32.mxu0 0.0
        %v4687 = vand.u32 %v4464, 4294901760
        %v4688 = vsub.f32 %v4464, %v4687
        %4689 = vmatmul.mubr.f32.gmra.mrb[0].mxu0 %v4688
        %v4690 = vpop.f32.mrb[0].mxu0
        %v4691 = vadd.f32 %v4617, %v4690
        %v4692 = vpop.f32.mrb[0].mxu0
        %4693 = vdwg.mxu0
        %4694 = vmatprep.subr.mxu0 0.0
        %4695 = vmatpush1.msra.mxu0 %v148
        %4696 = vmatprep.subr.mxu0 0.0
        %4697 = vmatpush1.msra.mxu0 %v149
        %4698 = vmatprep.subr.mxu0 0.0
        %4699 = vmatpush1.msra.mxu0 0.0
        %4700 = vmatprep.subr.mxu0 0.0
        %4701 = vmatpush1.msra.mxu0 0.0
        %4702 = vmatprep.subr.mxu0 0.0
        %4703 = vmatpush1.msra.mxu0 0.0
        %4704 = vmatprep.subr.mxu0 0.0
        %4705 = vmatpush1.msra.mxu0 0.0
        %4706 = vmatprep.subr.mxu0 0.0
        %4707 = vmatpush1.msra.mxu0 0.0
        %4708 = vmatprep.subr.mxu0 0.0
        %4709 = vmatpush1.msra.mxu0 0.0
        %4710 = vmatprep.subr.mxu0 0.0
        %4711 = vmatpush1.msra.mxu0 0.0
        %4712 = vmatprep.subr.mxu0 0.0
        %4713 = vmatpush1.msra.mxu0 0.0
        %4714 = vmatprep.subr.mxu0 0.0
        %4715 = vmatpush1.msra.mxu0 0.0
        %4716 = vmatprep.subr.mxu0 0.0
        %4717 = vmatpush1.msra.mxu0 0.0
        %4718 = vmatprep.subr.mxu0 0.0
        %4719 = vmatpush1.msra.mxu0 0.0
        %4720 = vmatprep.subr.mxu0 0.0
        %4721 = vmatpush1.msra.mxu0 0.0
        %4722 = vmatprep.subr.mxu0 0.0
        %4723 = vmatpush1.msra.mxu0 0.0
        %4724 = vmatprep.subr.mxu0 0.0
        %4725 = vmatpush1.msra.mxu0 0.0
        %4726 = vmatprep.subr.mxu0 0.0
        %4727 = vmatpush1.msra.mxu0 0.0
        %4728 = vmatprep.subr.mxu0 0.0
        %4729 = vmatpush1.msra.mxu0 0.0
        %4730 = vmatprep.subr.mxu0 0.0
        %4731 = vmatpush1.msra.mxu0 0.0
        %4732 = vmatprep.subr.mxu0 0.0
        %4733 = vmatpush1.msra.mxu0 0.0
        %4734 = vmatprep.subr.mxu0 0.0
        %4735 = vmatpush1.msra.mxu0 0.0
        %4736 = vmatprep.subr.mxu0 0.0
        %4737 = vmatpush1.msra.mxu0 0.0
        %4738 = vmatprep.subr.mxu0 0.0
        %4739 = vmatpush1.msra.mxu0 0.0
        %4740 = vmatprep.subr.mxu0 0.0
        %4741 = vmatpush1.msra.mxu0 0.0
        %4742 = vmatprep.subr.mxu0 0.0
        %4743 = vmatpush1.msra.mxu0 0.0
        %4744 = vmatprep.subr.mxu0 0.0
        %4745 = vmatpush1.msra.mxu0 0.0
        %4746 = vmatprep.subr.mxu0 0.0
        %4747 = vmatpush1.msra.mxu0 0.0
        %4748 = vmatprep.subr.mxu0 0.0
        %4749 = vmatpush1.msra.mxu0 0.0
        %4750 = vmatprep.subr.mxu0 0.0
        %4751 = vmatpush1.msra.mxu0 0.0
        %4752 = vmatprep.subr.mxu0 0.0
        %4753 = vmatpush1.msra.mxu0 0.0
        %4754 = vmatprep.subr.mxu0 0.0
        %4755 = vmatpush1.msra.mxu0 0.0
        %4756 = vmatprep.subr.mxu0 0.0
        %4757 = vmatpush1.msra.mxu0 0.0
        %4758 = vmatprep.mubr.f32.mxu0 0.0
        %v4759 = vand.u32 %v4464, 4294901760
        %v4760 = vsub.f32 %v4464, %v4759
        %v4761 = vand.u32 %v4760, 4294901760
        %4762 = vmatmul.mubr.f32.gmra.mrb[0].mxu0 %v4761
        %v4763 = vpop.f32.mrb[0].mxu0
        %v4764 = vadd.f32 %v4691, %v4763
        %v4765 = vpop.f32.mrb[0].mxu0
        %4766 = vdwg.mxu0
        %4767 = vmatprep.subr.mxu0 0.0
        %v4768 = vsub.f32 %v148, %v148
        %v4769 = vand.u32 %v4768, 4294901760
        %4770 = vmatpush1.msra.mxu0 %v4769
        %4771 = vmatprep.subr.mxu0 0.0
        %v4772 = vsub.f32 %v149, %v149
        %v4773 = vand.u32 %v4772, 4294901760
        %4774 = vmatpush1.msra.mxu0 %v4773
        %4775 = vmatprep.subr.mxu0 0.0
        %4776 = vmatpush1.msra.mxu0 0.0
        %4777 = vmatprep.subr.mxu0 0.0
        %4778 = vmatpush1.msra.mxu0 0.0
        %4779 = vmatprep.subr.mxu0 0.0
        %4780 = vmatpush1.msra.mxu0 0.0
        %4781 = vmatprep.subr.mxu0 0.0
        %4782 = vmatpush1.msra.mxu0 0.0
        %4783 = vmatprep.subr.mxu0 0.0
        %4784 = vmatpush1.msra.mxu0 0.0
        %4785 = vmatprep.subr.mxu0 0.0
        %4786 = vmatpush1.msra.mxu0 0.0
        %4787 = vmatprep.subr.mxu0 0.0
        %4788 = vmatpush1.msra.mxu0 0.0
        %4789 = vmatprep.subr.mxu0 0.0
        %4790 = vmatpush1.msra.mxu0 0.0
        %4791 = vmatprep.subr.mxu0 0.0
        %4792 = vmatpush1.msra.mxu0 0.0
        %4793 = vmatprep.subr.mxu0 0.0
        %4794 = vmatpush1.msra.mxu0 0.0
        %4795 = vmatprep.subr.mxu0 0.0
        %4796 = vmatpush1.msra.mxu0 0.0
        %4797 = vmatprep.subr.mxu0 0.0
        %4798 = vmatpush1.msra.mxu0 0.0
        %4799 = vmatprep.subr.mxu0 0.0
        %4800 = vmatpush1.msra.mxu0 0.0
        %4801 = vmatprep.subr.mxu0 0.0
        %4802 = vmatpush1.msra.mxu0 0.0
        %4803 = vmatprep.subr.mxu0 0.0
        %4804 = vmatpush1.msra.mxu0 0.0
        %4805 = vmatprep.subr.mxu0 0.0
        %4806 = vmatpush1.msra.mxu0 0.0
        %4807 = vmatprep.subr.mxu0 0.0
        %4808 = vmatpush1.msra.mxu0 0.0
        %4809 = vmatprep.subr.mxu0 0.0
        %4810 = vmatpush1.msra.mxu0 0.0
        %4811 = vmatprep.subr.mxu0 0.0
        %4812 = vmatpush1.msra.mxu0 0.0
        %4813 = vmatprep.subr.mxu0 0.0
        %4814 = vmatpush1.msra.mxu0 0.0
        %4815 = vmatprep.subr.mxu0 0.0
        %4816 = vmatpush1.msra.mxu0 0.0
        %4817 = vmatprep.subr.mxu0 0.0
        %4818 = vmatpush1.msra.mxu0 0.0
        %4819 = vmatprep.subr.mxu0 0.0
        %4820 = vmatpush1.msra.mxu0 0.0
        %4821 = vmatprep.subr.mxu0 0.0
        %4822 = vmatpush1.msra.mxu0 0.0
        %4823 = vmatprep.subr.mxu0 0.0
        %4824 = vmatpush1.msra.mxu0 0.0
        %4825 = vmatprep.subr.mxu0 0.0
        %4826 = vmatpush1.msra.mxu0 0.0
        %4827 = vmatprep.subr.mxu0 0.0
        %4828 = vmatpush1.msra.mxu0 0.0
        %4829 = vmatprep.subr.mxu0 0.0
        %4830 = vmatpush1.msra.mxu0 0.0
        %4831 = vmatprep.subr.mxu0 0.0
        %4832 = vmatpush1.msra.mxu0 0.0
        %4833 = vmatprep.subr.mxu0 0.0
        %4834 = vmatpush1.msra.mxu0 0.0
        %4835 = vmatprep.mubr.f32.mxu0 0.0
        %v4836 = vand.u32 %v4464, 4294901760
        %4837 = vmatmul.mubr.f32.gmra.mrb[0].mxu0 %v4836
        %v4838 = vpop.f32.mrb[0].mxu0
        %v4839 = vadd.f32 %v4764, %v4838
        %v4840 = vpop.f32.mrb[0].mxu0
        %4841 = vdwg.mxu0
        %4842 = vmatprep.subr.mxu0 0.0
        %4843 = vmatpush1.msra.mxu0 %v148
        %4844 = vmatprep.subr.mxu0 0.0
        %4845 = vmatpush1.msra.mxu0 %v149
        %4846 = vmatprep.subr.mxu0 0.0
        %4847 = vmatpush1.msra.mxu0 0.0
        %4848 = vmatprep.subr.mxu0 0.0
        %4849 = vmatpush1.msra.mxu0 0.0
        %4850 = vmatprep.subr.mxu0 0.0
        %4851 = vmatpush1.msra.mxu0 0.0
        %4852 = vmatprep.subr.mxu0 0.0
        %4853 = vmatpush1.msra.mxu0 0.0
        %4854 = vmatprep.subr.mxu0 0.0
        %4855 = vmatpush1.msra.mxu0 0.0
        %4856 = vmatprep.subr.mxu0 0.0
        %4857 = vmatpush1.msra.mxu0 0.0
        %4858 = vmatprep.subr.mxu0 0.0
        %4859 = vmatpush1.msra.mxu0 0.0
        %4860 = vmatprep.subr.mxu0 0.0
        %4861 = vmatpush1.msra.mxu0 0.0
        %4862 = vmatprep.subr.mxu0 0.0
        %4863 = vmatpush1.msra.mxu0 0.0
        %4864 = vmatprep.subr.mxu0 0.0
        %4865 = vmatpush1.msra.mxu0 0.0
        %4866 = vmatprep.subr.mxu0 0.0
        %4867 = vmatpush1.msra.mxu0 0.0
        %4868 = vmatprep.subr.mxu0 0.0
        %4869 = vmatpush1.msra.mxu0 0.0
        %4870 = vmatprep.subr.mxu0 0.0
        %4871 = vmatpush1.msra.mxu0 0.0
        %4872 = vmatprep.subr.mxu0 0.0
        %4873 = vmatpush1.msra.mxu0 0.0
        %4874 = vmatprep.subr.mxu0 0.0
        %4875 = vmatpush1.msra.mxu0 0.0
        %4876 = vmatprep.subr.mxu0 0.0
        %4877 = vmatpush1.msra.mxu0 0.0
        %4878 = vmatprep.subr.mxu0 0.0
        %4879 = vmatpush1.msra.mxu0 0.0
        %4880 = vmatprep.subr.mxu0 0.0
        %4881 = vmatpush1.msra.mxu0 0.0
        %4882 = vmatprep.subr.mxu0 0.0
        %4883 = vmatpush1.msra.mxu0 0.0
        %4884 = vmatprep.subr.mxu0 0.0
        %4885 = vmatpush1.msra.mxu0 0.0
        %4886 = vmatprep.subr.mxu0 0.0
        %4887 = vmatpush1.msra.mxu0 0.0
        %4888 = vmatprep.subr.mxu0 0.0
        %4889 = vmatpush1.msra.mxu0 0.0
        %4890 = vmatprep.subr.mxu0 0.0
        %4891 = vmatpush1.msra.mxu0 0.0
        %4892 = vmatprep.subr.mxu0 0.0
        %4893 = vmatpush1.msra.mxu0 0.0
        %4894 = vmatprep.subr.mxu0 0.0
        %4895 = vmatpush1.msra.mxu0 0.0
        %4896 = vmatprep.subr.mxu0 0.0
        %4897 = vmatpush1.msra.mxu0 0.0
        %4898 = vmatprep.subr.mxu0 0.0
        %4899 = vmatpush1.msra.mxu0 0.0
        %4900 = vmatprep.subr.mxu0 0.0
        %4901 = vmatpush1.msra.mxu0 0.0
        %4902 = vmatprep.subr.mxu0 0.0
        %4903 = vmatpush1.msra.mxu0 0.0
        %4904 = vmatprep.subr.mxu0 0.0
        %4905 = vmatpush1.msra.mxu0 0.0
        %4906 = vmatprep.mubr.f32.mxu0 0.0
        %v4907 = vand.u32 %v4464, 4294901760
        %4908 = vmatmul.mubr.f32.gmra.mrb[0].mxu0 %v4907
        %v4909 = vpop.f32.mrb[0].mxu0
        %v4910 = vadd.f32 %v4839, %v4909
        %v4911 = vpop.f32.mrb[0].mxu0
        %4912 = vdwg.mxu0
        %4913 = vmatprep.subr.mxu0 0.0
        %4914 = vmatpush1.msra.mxu0 %v153
        %4915 = vmatprep.subr.mxu0 0.0
        %4916 = vmatpush1.msra.mxu0 %v154
        %4917 = vmatprep.subr.mxu0 0.0
        %4918 = vmatpush1.msra.mxu0 0.0
        %4919 = vmatprep.subr.mxu0 0.0
        %4920 = vmatpush1.msra.mxu0 0.0
        %4921 = vmatprep.subr.mxu0 0.0
        %4922 = vmatpush1.msra.mxu0 0.0
        %4923 = vmatprep.subr.mxu0 0.0
        %4924 = vmatpush1.msra.mxu0 0.0
        %4925 = vmatprep.subr.mxu0 0.0
        %4926 = vmatpush1.msra.mxu0 0.0
        %4927 = vmatprep.subr.mxu0 0.0
        %4928 = vmatpush1.msra.mxu0 0.0
        %4929 = vmatprep.subr.mxu0 0.0
        %4930 = vmatpush1.msra.mxu0 0.0
        %4931 = vmatprep.subr.mxu0 0.0
        %4932 = vmatpush1.msra.mxu0 0.0
        %4933 = vmatprep.subr.mxu0 0.0
        %4934 = vmatpush1.msra.mxu0 0.0
        %4935 = vmatprep.subr.mxu0 0.0
        %4936 = vmatpush1.msra.mxu0 0.0
        %4937 = vmatprep.subr.mxu0 0.0
        %4938 = vmatpush1.msra.mxu0 0.0
        %4939 = vmatprep.subr.mxu0 0.0
        %4940 = vmatpush1.msra.mxu0 0.0
        %4941 = vmatprep.subr.mxu0 0.0
        %4942 = vmatpush1.msra.mxu0 0.0
        %4943 = vmatprep.subr.mxu0 0.0
        %4944 = vmatpush1.msra.mxu0 0.0
        %4945 = vmatprep.subr.mxu0 0.0
        %4946 = vmatpush1.msra.mxu0 0.0
        %4947 = vmatprep.subr.mxu0 0.0
        %4948 = vmatpush1.msra.mxu0 0.0
        %4949 = vmatprep.subr.mxu0 0.0
        %4950 = vmatpush1.msra.mxu0 0.0
        %4951 = vmatprep.subr.mxu0 0.0
        %4952 = vmatpush1.msra.mxu0 0.0
        %4953 = vmatprep.subr.mxu0 0.0
        %4954 = vmatpush1.msra.mxu0 0.0
        %4955 = vmatprep.subr.mxu0 0.0
        %4956 = vmatpush1.msra.mxu0 0.0
        %4957 = vmatprep.subr.mxu0 0.0
        %4958 = vmatpush1.msra.mxu0 0.0
        %4959 = vmatprep.subr.mxu0 0.0
        %4960 = vmatpush1.msra.mxu0 0.0
        %4961 = vmatprep.subr.mxu0 0.0
        %4962 = vmatpush1.msra.mxu0 0.0
        %4963 = vmatprep.subr.mxu0 0.0
        %4964 = vmatpush1.msra.mxu0 0.0
        %4965 = vmatprep.subr.mxu0 0.0
        %4966 = vmatpush1.msra.mxu0 0.0
        %4967 = vmatprep.subr.mxu0 0.0
        %4968 = vmatpush1.msra.mxu0 0.0
        %4969 = vmatprep.subr.mxu0 0.0
        %4970 = vmatpush1.msra.mxu0 0.0
        %4971 = vmatprep.subr.mxu0 0.0
        %4972 = vmatpush1.msra.mxu0 0.0
        %4973 = vmatprep.subr.mxu0 0.0
        %4974 = vmatpush1.msra.mxu0 0.0
        %4975 = vmatprep.subr.mxu0 0.0
        %4976 = vmatpush1.msra.mxu0 0.0
        %4977 = vmatprep.mubr.f32.mxu0 0.0
        %v4978 = vand.u32 %v4464, 4294901760
        %v4979 = vsub.f32 %v4464, %v4978
        %v4980 = vand.u32 %v4979, 4294901760
        %v4981 = vsub.f32 %v4979, %v4980
        %v4982 = vand.u32 %v4981, 4294901760
        %4983 = vmatmul.mubr.f32.gmra.mrb[0].mxu0 %v4982
        %v4984 = vpop.f32.mrb[0].mxu0
        %v4985 = vadd.f32 0.0, %v4984
        %v4986 = vpop.f32.mrb[0].mxu0
        %4987 = vdwg.mxu0
        %4988 = vmatprep.subr.mxu0 0.0
        %v4989 = vsub.f32 %v153, %v153
        %v4990 = vand.u32 %v4989, 4294901760
        %v4991 = vsub.f32 %v4989, %v4990
        %v4992 = vand.u32 %v4991, 4294901760
        %4993 = vmatpush1.msra.mxu0 %v4992
        %4994 = vmatprep.subr.mxu0 0.0
        %v4995 = vsub.f32 %v154, %v154
        %v4996 = vand.u32 %v4995, 4294901760
        %v4997 = vsub.f32 %v4995, %v4996
        %v4998 = vand.u32 %v4997, 4294901760
        %4999 = vmatpush1.msra.mxu0 %v4998
        %5000 = vmatprep.subr.mxu0 0.0
        %5001 = vmatpush1.msra.mxu0 0.0
        %5002 = vmatprep.subr.mxu0 0.0
        %5003 = vmatpush1.msra.mxu0 0.0
        %5004 = vmatprep.subr.mxu0 0.0
        %5005 = vmatpush1.msra.mxu0 0.0
        %5006 = vmatprep.subr.mxu0 0.0
        %5007 = vmatpush1.msra.mxu0 0.0
        %5008 = vmatprep.subr.mxu0 0.0
        %5009 = vmatpush1.msra.mxu0 0.0
        %5010 = vmatprep.subr.mxu0 0.0
        %5011 = vmatpush1.msra.mxu0 0.0
        %5012 = vmatprep.subr.mxu0 0.0
        %5013 = vmatpush1.msra.mxu0 0.0
        %5014 = vmatprep.subr.mxu0 0.0
        %5015 = vmatpush1.msra.mxu0 0.0
        %5016 = vmatprep.subr.mxu0 0.0
        %5017 = vmatpush1.msra.mxu0 0.0
        %5018 = vmatprep.subr.mxu0 0.0
        %5019 = vmatpush1.msra.mxu0 0.0
        %5020 = vmatprep.subr.mxu0 0.0
        %5021 = vmatpush1.msra.mxu0 0.0
        %5022 = vmatprep.subr.mxu0 0.0
        %5023 = vmatpush1.msra.mxu0 0.0
        %5024 = vmatprep.subr.mxu0 0.0
        %5025 = vmatpush1.msra.mxu0 0.0
        %5026 = vmatprep.subr.mxu0 0.0
        %5027 = vmatpush1.msra.mxu0 0.0
        %5028 = vmatprep.subr.mxu0 0.0
        %5029 = vmatpush1.msra.mxu0 0.0
        %5030 = vmatprep.subr.mxu0 0.0
        %5031 = vmatpush1.msra.mxu0 0.0
        %5032 = vmatprep.subr.mxu0 0.0
        %5033 = vmatpush1.msra.mxu0 0.0
        %5034 = vmatprep.subr.mxu0 0.0
        %5035 = vmatpush1.msra.mxu0 0.0
        %5036 = vmatprep.subr.mxu0 0.0
        %5037 = vmatpush1.msra.mxu0 0.0
        %5038 = vmatprep.subr.mxu0 0.0
        %5039 = vmatpush1.msra.mxu0 0.0
        %5040 = vmatprep.subr.mxu0 0.0
        %5041 = vmatpush1.msra.mxu0 0.0
        %5042 = vmatprep.subr.mxu0 0.0
        %5043 = vmatpush1.msra.mxu0 0.0
        %5044 = vmatprep.subr.mxu0 0.0
        %5045 = vmatpush1.msra.mxu0 0.0
        %5046 = vmatprep.subr.mxu0 0.0
        %5047 = vmatpush1.msra.mxu0 0.0
        %5048 = vmatprep.subr.mxu0 0.0
        %5049 = vmatpush1.msra.mxu0 0.0
        %5050 = vmatprep.subr.mxu0 0.0
        %5051 = vmatpush1.msra.mxu0 0.0
        %5052 = vmatprep.subr.mxu0 0.0
        %5053 = vmatpush1.msra.mxu0 0.0
        %5054 = vmatprep.subr.mxu0 0.0
        %5055 = vmatpush1.msra.mxu0 0.0
        %5056 = vmatprep.subr.mxu0 0.0
        %5057 = vmatpush1.msra.mxu0 0.0
        %5058 = vmatprep.subr.mxu0 0.0
        %5059 = vmatpush1.msra.mxu0 0.0
        %5060 = vmatprep.mubr.f32.mxu0 0.0
        %v5061 = vand.u32 %v4464, 4294901760
        %5062 = vmatmul.mubr.f32.gmra.mrb[0].mxu0 %v5061
        %v5063 = vpop.f32.mrb[0].mxu0
        %v5064 = vadd.f32 %v4985, %v5063
        %v5065 = vpop.f32.mrb[0].mxu0
        %5066 = vdwg.mxu0
        %5067 = vmatprep.subr.mxu0 0.0
        %v5068 = vsub.f32 %v153, %v153
        %5069 = vmatpush1.msra.mxu0 %v5068
        %5070 = vmatprep.subr.mxu0 0.0
        %v5071 = vsub.f32 %v154, %v154
        %5072 = vmatpush1.msra.mxu0 %v5071
        %5073 = vmatprep.subr.mxu0 0.0
        %5074 = vmatpush1.msra.mxu0 0.0
        %5075 = vmatprep.subr.mxu0 0.0
        %5076 = vmatpush1.msra.mxu0 0.0
        %5077 = vmatprep.subr.mxu0 0.0
        %5078 = vmatpush1.msra.mxu0 0.0
        %5079 = vmatprep.subr.mxu0 0.0
        %5080 = vmatpush1.msra.mxu0 0.0
        %5081 = vmatprep.subr.mxu0 0.0
        %5082 = vmatpush1.msra.mxu0 0.0
        %5083 = vmatprep.subr.mxu0 0.0
        %5084 = vmatpush1.msra.mxu0 0.0
        %5085 = vmatprep.subr.mxu0 0.0
        %5086 = vmatpush1.msra.mxu0 0.0
        %5087 = vmatprep.subr.mxu0 0.0
        %5088 = vmatpush1.msra.mxu0 0.0
        %5089 = vmatprep.subr.mxu0 0.0
        %5090 = vmatpush1.msra.mxu0 0.0
        %5091 = vmatprep.subr.mxu0 0.0
        %5092 = vmatpush1.msra.mxu0 0.0
        %5093 = vmatprep.subr.mxu0 0.0
        %5094 = vmatpush1.msra.mxu0 0.0
        %5095 = vmatprep.subr.mxu0 0.0
        %5096 = vmatpush1.msra.mxu0 0.0
        %5097 = vmatprep.subr.mxu0 0.0
        %5098 = vmatpush1.msra.mxu0 0.0
        %5099 = vmatprep.subr.mxu0 0.0
        %5100 = vmatpush1.msra.mxu0 0.0
        %5101 = vmatprep.subr.mxu0 0.0
        %5102 = vmatpush1.msra.mxu0 0.0
        %5103 = vmatprep.subr.mxu0 0.0
        %5104 = vmatpush1.msra.mxu0 0.0
        %5105 = vmatprep.subr.mxu0 0.0
        %5106 = vmatpush1.msra.mxu0 0.0
        %5107 = vmatprep.subr.mxu0 0.0
        %5108 = vmatpush1.msra.mxu0 0.0
        %5109 = vmatprep.subr.mxu0 0.0
        %5110 = vmatpush1.msra.mxu0 0.0
        %5111 = vmatprep.subr.mxu0 0.0
        %5112 = vmatpush1.msra.mxu0 0.0
        %5113 = vmatprep.subr.mxu0 0.0
        %5114 = vmatpush1.msra.mxu0 0.0
        %5115 = vmatprep.subr.mxu0 0.0
        %5116 = vmatpush1.msra.mxu0 0.0
        %5117 = vmatprep.subr.mxu0 0.0
        %5118 = vmatpush1.msra.mxu0 0.0
        %5119 = vmatprep.subr.mxu0 0.0
        %5120 = vmatpush1.msra.mxu0 0.0
        %5121 = vmatprep.subr.mxu0 0.0
        %5122 = vmatpush1.msra.mxu0 0.0
        %5123 = vmatprep.subr.mxu0 0.0
        %5124 = vmatpush1.msra.mxu0 0.0
        %5125 = vmatprep.subr.mxu0 0.0
        %5126 = vmatpush1.msra.mxu0 0.0
        %5127 = vmatprep.subr.mxu0 0.0
        %5128 = vmatpush1.msra.mxu0 0.0
        %5129 = vmatprep.subr.mxu0 0.0
        %5130 = vmatpush1.msra.mxu0 0.0
        %5131 = vmatprep.subr.mxu0 0.0
        %5132 = vmatpush1.msra.mxu0 0.0
        %5133 = vmatprep.mubr.f32.mxu0 0.0
        %v5134 = vand.u32 %v4464, 4294901760
        %v5135 = vsub.f32 %v4464, %v5134
        %5136 = vmatmul.mubr.f32.gmra.mrb[0].mxu0 %v5135
        %v5137 = vpop.f32.mrb[0].mxu0
        %v5138 = vadd.f32 %v5064, %v5137
        %v5139 = vpop.f32.mrb[0].mxu0
        %5140 = vdwg.mxu0
        %5141 = vmatprep.subr.mxu0 0.0
        %5142 = vmatpush1.msra.mxu0 %v153
        %5143 = vmatprep.subr.mxu0 0.0
        %5144 = vmatpush1.msra.mxu0 %v154
        %5145 = vmatprep.subr.mxu0 0.0
        %5146 = vmatpush1.msra.mxu0 0.0
        %5147 = vmatprep.subr.mxu0 0.0
        %5148 = vmatpush1.msra.mxu0 0.0
        %5149 = vmatprep.subr.mxu0 0.0
        %5150 = vmatpush1.msra.mxu0 0.0
        %5151 = vmatprep.subr.mxu0 0.0
        %5152 = vmatpush1.msra.mxu0 0.0
        %5153 = vmatprep.subr.mxu0 0.0
        %5154 = vmatpush1.msra.mxu0 0.0
        %5155 = vmatprep.subr.mxu0 0.0
        %5156 = vmatpush1.msra.mxu0 0.0
        %5157 = vmatprep.subr.mxu0 0.0
        %5158 = vmatpush1.msra.mxu0 0.0
        %5159 = vmatprep.subr.mxu0 0.0
        %5160 = vmatpush1.msra.mxu0 0.0
        %5161 = vmatprep.subr.mxu0 0.0
        %5162 = vmatpush1.msra.mxu0 0.0
        %5163 = vmatprep.subr.mxu0 0.0
        %5164 = vmatpush1.msra.mxu0 0.0
        %5165 = vmatprep.subr.mxu0 0.0
        %5166 = vmatpush1.msra.mxu0 0.0
        %5167 = vmatprep.subr.mxu0 0.0
        %5168 = vmatpush1.msra.mxu0 0.0
        %5169 = vmatprep.subr.mxu0 0.0
        %5170 = vmatpush1.msra.mxu0 0.0
        %5171 = vmatprep.subr.mxu0 0.0
        %5172 = vmatpush1.msra.mxu0 0.0
        %5173 = vmatprep.subr.mxu0 0.0
        %5174 = vmatpush1.msra.mxu0 0.0
        %5175 = vmatprep.subr.mxu0 0.0
        %5176 = vmatpush1.msra.mxu0 0.0
        %5177 = vmatprep.subr.mxu0 0.0
        %5178 = vmatpush1.msra.mxu0 0.0
        %5179 = vmatprep.subr.mxu0 0.0
        %5180 = vmatpush1.msra.mxu0 0.0
        %5181 = vmatprep.subr.mxu0 0.0
        %5182 = vmatpush1.msra.mxu0 0.0
        %5183 = vmatprep.subr.mxu0 0.0
        %5184 = vmatpush1.msra.mxu0 0.0
        %5185 = vmatprep.subr.mxu0 0.0
        %5186 = vmatpush1.msra.mxu0 0.0
        %5187 = vmatprep.subr.mxu0 0.0
        %5188 = vmatpush1.msra.mxu0 0.0
        %5189 = vmatprep.subr.mxu0 0.0
        %5190 = vmatpush1.msra.mxu0 0.0
        %5191 = vmatprep.subr.mxu0 0.0
        %5192 = vmatpush1.msra.mxu0 0.0
        %5193 = vmatprep.subr.mxu0 0.0
        %5194 = vmatpush1.msra.mxu0 0.0
        %5195 = vmatprep.subr.mxu0 0.0
        %5196 = vmatpush1.msra.mxu0 0.0
        %5197 = vmatprep.subr.mxu0 0.0
        %5198 = vmatpush1.msra.mxu0 0.0
        %5199 = vmatprep.subr.mxu0 0.0
        %5200 = vmatpush1.msra.mxu0 0.0
        %5201 = vmatprep.subr.mxu0 0.0
        %5202 = vmatpush1.msra.mxu0 0.0
        %5203 = vmatprep.subr.mxu0 0.0
        %5204 = vmatpush1.msra.mxu0 0.0
        %5205 = vmatprep.mubr.f32.mxu0 0.0
        %v5206 = vand.u32 %v4464, 4294901760
        %v5207 = vsub.f32 %v4464, %v5206
        %v5208 = vand.u32 %v5207, 4294901760
        %5209 = vmatmul.mubr.f32.gmra.mrb[0].mxu0 %v5208
        %v5210 = vpop.f32.mrb[0].mxu0
        %v5211 = vadd.f32 %v5138, %v5210
        %v5212 = vpop.f32.mrb[0].mxu0
        %5213 = vdwg.mxu0
        %5214 = vmatprep.subr.mxu0 0.0
        %v5215 = vsub.f32 %v153, %v153
        %v5216 = vand.u32 %v5215, 4294901760
        %5217 = vmatpush1.msra.mxu0 %v5216
        %5218 = vmatprep.subr.mxu0 0.0
        %v5219 = vsub.f32 %v154, %v154
        %v5220 = vand.u32 %v5219, 4294901760
        %5221 = vmatpush1.msra.mxu0 %v5220
        %5222 = vmatprep.subr.mxu0 0.0
        %5223 = vmatpush1.msra.mxu0 0.0
        %5224 = vmatprep.subr.mxu0 0.0
        %5225 = vmatpush1.msra.mxu0 0.0
        %5226 = vmatprep.subr.mxu0 0.0
        %5227 = vmatpush1.msra.mxu0 0.0
        %5228 = vmatprep.subr.mxu0 0.0
        %5229 = vmatpush1.msra.mxu0 0.0
        %5230 = vmatprep.subr.mxu0 0.0
        %5231 = vmatpush1.msra.mxu0 0.0
        %5232 = vmatprep.subr.mxu0 0.0
        %5233 = vmatpush1.msra.mxu0 0.0
        %5234 = vmatprep.subr.mxu0 0.0
        %5235 = vmatpush1.msra.mxu0 0.0
        %5236 = vmatprep.subr.mxu0 0.0
        %5237 = vmatpush1.msra.mxu0 0.0
        %5238 = vmatprep.subr.mxu0 0.0
        %5239 = vmatpush1.msra.mxu0 0.0
        %5240 = vmatprep.subr.mxu0 0.0
        %5241 = vmatpush1.msra.mxu0 0.0
        %5242 = vmatprep.subr.mxu0 0.0
        %5243 = vmatpush1.msra.mxu0 0.0
        %5244 = vmatprep.subr.mxu0 0.0
        %5245 = vmatpush1.msra.mxu0 0.0
        %5246 = vmatprep.subr.mxu0 0.0
        %5247 = vmatpush1.msra.mxu0 0.0
        %5248 = vmatprep.subr.mxu0 0.0
        %5249 = vmatpush1.msra.mxu0 0.0
        %5250 = vmatprep.subr.mxu0 0.0
        %5251 = vmatpush1.msra.mxu0 0.0
        %5252 = vmatprep.subr.mxu0 0.0
        %5253 = vmatpush1.msra.mxu0 0.0
        %5254 = vmatprep.subr.mxu0 0.0
        %5255 = vmatpush1.msra.mxu0 0.0
        %5256 = vmatprep.subr.mxu0 0.0
        %5257 = vmatpush1.msra.mxu0 0.0
        %5258 = vmatprep.subr.mxu0 0.0
        %5259 = vmatpush1.msra.mxu0 0.0
        %5260 = vmatprep.subr.mxu0 0.0
        %5261 = vmatpush1.msra.mxu0 0.0
        %5262 = vmatprep.subr.mxu0 0.0
        %5263 = vmatpush1.msra.mxu0 0.0
        %5264 = vmatprep.subr.mxu0 0.0
        %5265 = vmatpush1.msra.mxu0 0.0
        %5266 = vmatprep.subr.mxu0 0.0
        %5267 = vmatpush1.msra.mxu0 0.0
        %5268 = vmatprep.subr.mxu0 0.0
        %5269 = vmatpush1.msra.mxu0 0.0
        %5270 = vmatprep.subr.mxu0 0.0
        %5271 = vmatpush1.msra.mxu0 0.0
        %5272 = vmatprep.subr.mxu0 0.0
        %5273 = vmatpush1.msra.mxu0 0.0
        %5274 = vmatprep.subr.mxu0 0.0
        %5275 = vmatpush1.msra.mxu0 0.0
        %5276 = vmatprep.subr.mxu0 0.0
        %5277 = vmatpush1.msra.mxu0 0.0
        %5278 = vmatprep.subr.mxu0 0.0
        %5279 = vmatpush1.msra.mxu0 0.0
        %5280 = vmatprep.subr.mxu0 0.0
        %5281 = vmatpush1.msra.mxu0 0.0
        %5282 = vmatprep.mubr.f32.mxu0 0.0
        %v5283 = vand.u32 %v4464, 4294901760
        %5284 = vmatmul.mubr.f32.gmra.mrb[0].mxu0 %v5283
        %v5285 = vpop.f32.mrb[0].mxu0
        %v5286 = vadd.f32 %v5211, %v5285
        %v5287 = vpop.f32.mrb[0].mxu0
        %5288 = vdwg.mxu0
        %5289 = vmatprep.subr.mxu0 0.0
        %5290 = vmatpush1.msra.mxu0 %v153
        %5291 = vmatprep.subr.mxu0 0.0
        %5292 = vmatpush1.msra.mxu0 %v154
        %5293 = vmatprep.subr.mxu0 0.0
        %5294 = vmatpush1.msra.mxu0 0.0
        %5295 = vmatprep.subr.mxu0 0.0
        %5296 = vmatpush1.msra.mxu0 0.0
        %5297 = vmatprep.subr.mxu0 0.0
        %5298 = vmatpush1.msra.mxu0 0.0
        %5299 = vmatprep.subr.mxu0 0.0
        %5300 = vmatpush1.msra.mxu0 0.0
        %5301 = vmatprep.subr.mxu0 0.0
        %5302 = vmatpush1.msra.mxu0 0.0
        %5303 = vmatprep.subr.mxu0 0.0
        %5304 = vmatpush1.msra.mxu0 0.0
        %5305 = vmatprep.subr.mxu0 0.0
        %5306 = vmatpush1.msra.mxu0 0.0
        %5307 = vmatprep.subr.mxu0 0.0
        %5308 = vmatpush1.msra.mxu0 0.0
        %5309 = vmatprep.subr.mxu0 0.0
        %5310 = vmatpush1.msra.mxu0 0.0
        %5311 = vmatprep.subr.mxu0 0.0
        %5312 = vmatpush1.msra.mxu0 0.0
        %5313 = vmatprep.subr.mxu0 0.0
        %5314 = vmatpush1.msra.mxu0 0.0
        %5315 = vmatprep.subr.mxu0 0.0
        %5316 = vmatpush1.msra.mxu0 0.0
        %5317 = vmatprep.subr.mxu0 0.0
        %5318 = vmatpush1.msra.mxu0 0.0
        %5319 = vmatprep.subr.mxu0 0.0
        %5320 = vmatpush1.msra.mxu0 0.0
        %5321 = vmatprep.subr.mxu0 0.0
        %5322 = vmatpush1.msra.mxu0 0.0
        %5323 = vmatprep.subr.mxu0 0.0
        %5324 = vmatpush1.msra.mxu0 0.0
        %5325 = vmatprep.subr.mxu0 0.0
        %5326 = vmatpush1.msra.mxu0 0.0
        %5327 = vmatprep.subr.mxu0 0.0
        %5328 = vmatpush1.msra.mxu0 0.0
        %5329 = vmatprep.subr.mxu0 0.0
        %5330 = vmatpush1.msra.mxu0 0.0
        %5331 = vmatprep.subr.mxu0 0.0
        %5332 = vmatpush1.msra.mxu0 0.0
        %5333 = vmatprep.subr.mxu0 0.0
        %5334 = vmatpush1.msra.mxu0 0.0
        %5335 = vmatprep.subr.mxu0 0.0
        %5336 = vmatpush1.msra.mxu0 0.0
        %5337 = vmatprep.subr.mxu0 0.0
        %5338 = vmatpush1.msra.mxu0 0.0
        %5339 = vmatprep.subr.mxu0 0.0
        %5340 = vmatpush1.msra.mxu0 0.0
        %5341 = vmatprep.subr.mxu0 0.0
        %5342 = vmatpush1.msra.mxu0 0.0
        %5343 = vmatprep.subr.mxu0 0.0
        %5344 = vmatpush1.msra.mxu0 0.0
        %5345 = vmatprep.subr.mxu0 0.0
        %5346 = vmatpush1.msra.mxu0 0.0
        %5347 = vmatprep.subr.mxu0 0.0
        %5348 = vmatpush1.msra.mxu0 0.0
        %5349 = vmatprep.subr.mxu0 0.0
        %5350 = vmatpush1.msra.mxu0 0.0
        %5351 = vmatprep.subr.mxu0 0.0
        %5352 = vmatpush1.msra.mxu0 0.0
        %5353 = vmatprep.mubr.f32.mxu0 0.0
        %v5354 = vand.u32 %v4464, 4294901760
        %5355 = vmatmul.mubr.f32.gmra.mrb[0].mxu0 %v5354
        %v5356 = vpop.f32.mrb[0].mxu0
        %v5357 = vadd.f32 %v5286, %v5356
        %v5358 = vpop.f32.mrb[0].mxu0
        %5359 = vdwg.mxu0
        %v5360 = vsel %vm1100, %v5357, -3.4028235e+38
        %v5361 = vmax.f32 %v4910, %v5360
        %5362 = vmatprep.subr.mxu0 0.0
        %5363 = vmatpush1.msra.mxu0 %v158
        %5364 = vmatprep.subr.mxu0 0.0
        %5365 = vmatpush1.msra.mxu0 %v159
        %5366 = vmatprep.subr.mxu0 0.0
        %5367 = vmatpush1.msra.mxu0 0.0
        %5368 = vmatprep.subr.mxu0 0.0
        %5369 = vmatpush1.msra.mxu0 0.0
        %5370 = vmatprep.subr.mxu0 0.0
        %5371 = vmatpush1.msra.mxu0 0.0
        %5372 = vmatprep.subr.mxu0 0.0
        %5373 = vmatpush1.msra.mxu0 0.0
        %5374 = vmatprep.subr.mxu0 0.0
        %5375 = vmatpush1.msra.mxu0 0.0
        %5376 = vmatprep.subr.mxu0 0.0
        %5377 = vmatpush1.msra.mxu0 0.0
        %5378 = vmatprep.subr.mxu0 0.0
        %5379 = vmatpush1.msra.mxu0 0.0
        %5380 = vmatprep.subr.mxu0 0.0
        %5381 = vmatpush1.msra.mxu0 0.0
        %5382 = vmatprep.subr.mxu0 0.0
        %5383 = vmatpush1.msra.mxu0 0.0
        %5384 = vmatprep.subr.mxu0 0.0
        %5385 = vmatpush1.msra.mxu0 0.0
        %5386 = vmatprep.subr.mxu0 0.0
        %5387 = vmatpush1.msra.mxu0 0.0
        %5388 = vmatprep.subr.mxu0 0.0
        %5389 = vmatpush1.msra.mxu0 0.0
        %5390 = vmatprep.subr.mxu0 0.0
        %5391 = vmatpush1.msra.mxu0 0.0
        %5392 = vmatprep.subr.mxu0 0.0
        %5393 = vmatpush1.msra.mxu0 0.0
        %5394 = vmatprep.subr.mxu0 0.0
        %5395 = vmatpush1.msra.mxu0 0.0
        %5396 = vmatprep.subr.mxu0 0.0
        %5397 = vmatpush1.msra.mxu0 0.0
        %5398 = vmatprep.subr.mxu0 0.0
        %5399 = vmatpush1.msra.mxu0 0.0
        %5400 = vmatprep.subr.mxu0 0.0
        %5401 = vmatpush1.msra.mxu0 0.0
        %5402 = vmatprep.subr.mxu0 0.0
        %5403 = vmatpush1.msra.mxu0 0.0
        %5404 = vmatprep.subr.mxu0 0.0
        %5405 = vmatpush1.msra.mxu0 0.0
        %5406 = vmatprep.subr.mxu0 0.0
        %5407 = vmatpush1.msra.mxu0 0.0
        %5408 = vmatprep.subr.mxu0 0.0
        %5409 = vmatpush1.msra.mxu0 0.0
        %5410 = vmatprep.subr.mxu0 0.0
        %5411 = vmatpush1.msra.mxu0 0.0
        %5412 = vmatprep.subr.mxu0 0.0
        %5413 = vmatpush1.msra.mxu0 0.0
        %5414 = vmatprep.subr.mxu0 0.0
        %5415 = vmatpush1.msra.mxu0 0.0
        %5416 = vmatprep.subr.mxu0 0.0
        %5417 = vmatpush1.msra.mxu0 0.0
        %5418 = vmatprep.subr.mxu0 0.0
        %5419 = vmatpush1.msra.mxu0 0.0
        %5420 = vmatprep.subr.mxu0 0.0
        %5421 = vmatpush1.msra.mxu0 0.0
        %5422 = vmatprep.subr.mxu0 0.0
        %5423 = vmatpush1.msra.mxu0 0.0
        %5424 = vmatprep.subr.mxu0 0.0
        %5425 = vmatpush1.msra.mxu0 0.0
        %5426 = vmatprep.mubr.f32.mxu0 0.0
        %v5427 = vand.u32 %v4464, 4294901760
        %v5428 = vsub.f32 %v4464, %v5427
        %v5429 = vand.u32 %v5428, 4294901760
        %v5430 = vsub.f32 %v5428, %v5429
        %v5431 = vand.u32 %v5430, 4294901760
        %5432 = vmatmul.mubr.f32.gmra.mrb[0].mxu0 %v5431
        %v5433 = vpop.f32.mrb[0].mxu0
        %v5434 = vadd.f32 0.0, %v5433
        %v5435 = vpop.f32.mrb[0].mxu0
        %5436 = vdwg.mxu0
        %5437 = vmatprep.subr.mxu0 0.0
        %v5438 = vsub.f32 %v158, %v158
        %v5439 = vand.u32 %v5438, 4294901760
        %v5440 = vsub.f32 %v5438, %v5439
        %v5441 = vand.u32 %v5440, 4294901760
        %5442 = vmatpush1.msra.mxu0 %v5441
        %5443 = vmatprep.subr.mxu0 0.0
        %v5444 = vsub.f32 %v159, %v159
        %v5445 = vand.u32 %v5444, 4294901760
        %v5446 = vsub.f32 %v5444, %v5445
        %v5447 = vand.u32 %v5446, 4294901760
        %5448 = vmatpush1.msra.mxu0 %v5447
        %5449 = vmatprep.subr.mxu0 0.0
        %5450 = vmatpush1.msra.mxu0 0.0
        %5451 = vmatprep.subr.mxu0 0.0
        %5452 = vmatpush1.msra.mxu0 0.0
        %5453 = vmatprep.subr.mxu0 0.0
        %5454 = vmatpush1.msra.mxu0 0.0
        %5455 = vmatprep.subr.mxu0 0.0
        %5456 = vmatpush1.msra.mxu0 0.0
        %5457 = vmatprep.subr.mxu0 0.0
        %5458 = vmatpush1.msra.mxu0 0.0
        %5459 = vmatprep.subr.mxu0 0.0
        %5460 = vmatpush1.msra.mxu0 0.0
        %5461 = vmatprep.subr.mxu0 0.0
        %5462 = vmatpush1.msra.mxu0 0.0
        %5463 = vmatprep.subr.mxu0 0.0
        %5464 = vmatpush1.msra.mxu0 0.0
        %5465 = vmatprep.subr.mxu0 0.0
        %5466 = vmatpush1.msra.mxu0 0.0
        %5467 = vmatprep.subr.mxu0 0.0
        %5468 = vmatpush1.msra.mxu0 0.0
        %5469 = vmatprep.subr.mxu0 0.0
        %5470 = vmatpush1.msra.mxu0 0.0
        %5471 = vmatprep.subr.mxu0 0.0
        %5472 = vmatpush1.msra.mxu0 0.0
        %5473 = vmatprep.subr.mxu0 0.0
        %5474 = vmatpush1.msra.mxu0 0.0
        %5475 = vmatprep.subr.mxu0 0.0
        %5476 = vmatpush1.msra.mxu0 0.0
        %5477 = vmatprep.subr.mxu0 0.0
        %5478 = vmatpush1.msra.mxu0 0.0
        %5479 = vmatprep.subr.mxu0 0.0
        %5480 = vmatpush1.msra.mxu0 0.0
        %5481 = vmatprep.subr.mxu0 0.0
        %5482 = vmatpush1.msra.mxu0 0.0
        %5483 = vmatprep.subr.mxu0 0.0
        %5484 = vmatpush1.msra.mxu0 0.0
        %5485 = vmatprep.subr.mxu0 0.0
        %5486 = vmatpush1.msra.mxu0 0.0
        %5487 = vmatprep.subr.mxu0 0.0
        %5488 = vmatpush1.msra.mxu0 0.0
        %5489 = vmatprep.subr.mxu0 0.0
        %5490 = vmatpush1.msra.mxu0 0.0
        %5491 = vmatprep.subr.mxu0 0.0
        %5492 = vmatpush1.msra.mxu0 0.0
        %5493 = vmatprep.subr.mxu0 0.0
        %5494 = vmatpush1.msra.mxu0 0.0
        %5495 = vmatprep.subr.mxu0 0.0
        %5496 = vmatpush1.msra.mxu0 0.0
        %5497 = vmatprep.subr.mxu0 0.0
        %5498 = vmatpush1.msra.mxu0 0.0
        %5499 = vmatprep.subr.mxu0 0.0
        %5500 = vmatpush1.msra.mxu0 0.0
        %5501 = vmatprep.subr.mxu0 0.0
        %5502 = vmatpush1.msra.mxu0 0.0
        %5503 = vmatprep.subr.mxu0 0.0
        %5504 = vmatpush1.msra.mxu0 0.0
        %5505 = vmatprep.subr.mxu0 0.0
        %5506 = vmatpush1.msra.mxu0 0.0
        %5507 = vmatprep.subr.mxu0 0.0
        %5508 = vmatpush1.msra.mxu0 0.0
        %5509 = vmatprep.mubr.f32.mxu0 0.0
        %v5510 = vand.u32 %v4464, 4294901760
        %5511 = vmatmul.mubr.f32.gmra.mrb[0].mxu0 %v5510
        %v5512 = vpop.f32.mrb[0].mxu0
        %v5513 = vadd.f32 %v5434, %v5512
        %v5514 = vpop.f32.mrb[0].mxu0
        %5515 = vdwg.mxu0
        %5516 = vmatprep.subr.mxu0 0.0
        %v5517 = vsub.f32 %v158, %v158
        %5518 = vmatpush1.msra.mxu0 %v5517
        %5519 = vmatprep.subr.mxu0 0.0
        %v5520 = vsub.f32 %v159, %v159
        %5521 = vmatpush1.msra.mxu0 %v5520
        %5522 = vmatprep.subr.mxu0 0.0
        %5523 = vmatpush1.msra.mxu0 0.0
        %5524 = vmatprep.subr.mxu0 0.0
        %5525 = vmatpush1.msra.mxu0 0.0
        %5526 = vmatprep.subr.mxu0 0.0
        %5527 = vmatpush1.msra.mxu0 0.0
        %5528 = vmatprep.subr.mxu0 0.0
        %5529 = vmatpush1.msra.mxu0 0.0
        %5530 = vmatprep.subr.mxu0 0.0
        %5531 = vmatpush1.msra.mxu0 0.0
        %5532 = vmatprep.subr.mxu0 0.0
        %5533 = vmatpush1.msra.mxu0 0.0
        %5534 = vmatprep.subr.mxu0 0.0
        %5535 = vmatpush1.msra.mxu0 0.0
        %5536 = vmatprep.subr.mxu0 0.0
        %5537 = vmatpush1.msra.mxu0 0.0
        %5538 = vmatprep.subr.mxu0 0.0
        %5539 = vmatpush1.msra.mxu0 0.0
        %5540 = vmatprep.subr.mxu0 0.0
        %5541 = vmatpush1.msra.mxu0 0.0
        %5542 = vmatprep.subr.mxu0 0.0
        %5543 = vmatpush1.msra.mxu0 0.0
        %5544 = vmatprep.subr.mxu0 0.0
        %5545 = vmatpush1.msra.mxu0 0.0
        %5546 = vmatprep.subr.mxu0 0.0
        %5547 = vmatpush1.msra.mxu0 0.0
        %5548 = vmatprep.subr.mxu0 0.0
        %5549 = vmatpush1.msra.mxu0 0.0
        %5550 = vmatprep.subr.mxu0 0.0
        %5551 = vmatpush1.msra.mxu0 0.0
        %5552 = vmatprep.subr.mxu0 0.0
        %5553 = vmatpush1.msra.mxu0 0.0
        %5554 = vmatprep.subr.mxu0 0.0
        %5555 = vmatpush1.msra.mxu0 0.0
        %5556 = vmatprep.subr.mxu0 0.0
        %5557 = vmatpush1.msra.mxu0 0.0
        %5558 = vmatprep.subr.mxu0 0.0
        %5559 = vmatpush1.msra.mxu0 0.0
        %5560 = vmatprep.subr.mxu0 0.0
        %5561 = vmatpush1.msra.mxu0 0.0
        %5562 = vmatprep.subr.mxu0 0.0
        %5563 = vmatpush1.msra.mxu0 0.0
        %5564 = vmatprep.subr.mxu0 0.0
        %5565 = vmatpush1.msra.mxu0 0.0
        %5566 = vmatprep.subr.mxu0 0.0
        %5567 = vmatpush1.msra.mxu0 0.0
        %5568 = vmatprep.subr.mxu0 0.0
        %5569 = vmatpush1.msra.mxu0 0.0
        %5570 = vmatprep.subr.mxu0 0.0
        %5571 = vmatpush1.msra.mxu0 0.0
        %5572 = vmatprep.subr.mxu0 0.0
        %5573 = vmatpush1.msra.mxu0 0.0
        %5574 = vmatprep.subr.mxu0 0.0
        %5575 = vmatpush1.msra.mxu0 0.0
        %5576 = vmatprep.subr.mxu0 0.0
        %5577 = vmatpush1.msra.mxu0 0.0
        %5578 = vmatprep.subr.mxu0 0.0
        %5579 = vmatpush1.msra.mxu0 0.0
        %5580 = vmatprep.subr.mxu0 0.0
        %5581 = vmatpush1.msra.mxu0 0.0
        %5582 = vmatprep.mubr.f32.mxu0 0.0
        %v5583 = vand.u32 %v4464, 4294901760
        %v5584 = vsub.f32 %v4464, %v5583
        %5585 = vmatmul.mubr.f32.gmra.mrb[0].mxu0 %v5584
        %v5586 = vpop.f32.mrb[0].mxu0
        %v5587 = vadd.f32 %v5513, %v5586
        %v5588 = vpop.f32.mrb[0].mxu0
        %5589 = vdwg.mxu0
        %5590 = vmatprep.subr.mxu0 0.0
        %5591 = vmatpush1.msra.mxu0 %v158
        %5592 = vmatprep.subr.mxu0 0.0
        %5593 = vmatpush1.msra.mxu0 %v159
        %5594 = vmatprep.subr.mxu0 0.0
        %5595 = vmatpush1.msra.mxu0 0.0
        %5596 = vmatprep.subr.mxu0 0.0
        %5597 = vmatpush1.msra.mxu0 0.0
        %5598 = vmatprep.subr.mxu0 0.0
        %5599 = vmatpush1.msra.mxu0 0.0
        %5600 = vmatprep.subr.mxu0 0.0
        %5601 = vmatpush1.msra.mxu0 0.0
        %5602 = vmatprep.subr.mxu0 0.0
        %5603 = vmatpush1.msra.mxu0 0.0
        %5604 = vmatprep.subr.mxu0 0.0
        %5605 = vmatpush1.msra.mxu0 0.0
        %5606 = vmatprep.subr.mxu0 0.0
        %5607 = vmatpush1.msra.mxu0 0.0
        %5608 = vmatprep.subr.mxu0 0.0
        %5609 = vmatpush1.msra.mxu0 0.0
        %5610 = vmatprep.subr.mxu0 0.0
        %5611 = vmatpush1.msra.mxu0 0.0
        %5612 = vmatprep.subr.mxu0 0.0
        %5613 = vmatpush1.msra.mxu0 0.0
        %5614 = vmatprep.subr.mxu0 0.0
        %5615 = vmatpush1.msra.mxu0 0.0
        %5616 = vmatprep.subr.mxu0 0.0
        %5617 = vmatpush1.msra.mxu0 0.0
        %5618 = vmatprep.subr.mxu0 0.0
        %5619 = vmatpush1.msra.mxu0 0.0
        %5620 = vmatprep.subr.mxu0 0.0
        %5621 = vmatpush1.msra.mxu0 0.0
        %5622 = vmatprep.subr.mxu0 0.0
        %5623 = vmatpush1.msra.mxu0 0.0
        %5624 = vmatprep.subr.mxu0 0.0
        %5625 = vmatpush1.msra.mxu0 0.0
        %5626 = vmatprep.subr.mxu0 0.0
        %5627 = vmatpush1.msra.mxu0 0.0
        %5628 = vmatprep.subr.mxu0 0.0
        %5629 = vmatpush1.msra.mxu0 0.0
        %5630 = vmatprep.subr.mxu0 0.0
        %5631 = vmatpush1.msra.mxu0 0.0
        %5632 = vmatprep.subr.mxu0 0.0
        %5633 = vmatpush1.msra.mxu0 0.0
        %5634 = vmatprep.subr.mxu0 0.0
        %5635 = vmatpush1.msra.mxu0 0.0
        %5636 = vmatprep.subr.mxu0 0.0
        %5637 = vmatpush1.msra.mxu0 0.0
        %5638 = vmatprep.subr.mxu0 0.0
        %5639 = vmatpush1.msra.mxu0 0.0
        %5640 = vmatprep.subr.mxu0 0.0
        %5641 = vmatpush1.msra.mxu0 0.0
        %5642 = vmatprep.subr.mxu0 0.0
        %5643 = vmatpush1.msra.mxu0 0.0
        %5644 = vmatprep.subr.mxu0 0.0
        %5645 = vmatpush1.msra.mxu0 0.0
        %5646 = vmatprep.subr.mxu0 0.0
        %5647 = vmatpush1.msra.mxu0 0.0
        %5648 = vmatprep.subr.mxu0 0.0
        %5649 = vmatpush1.msra.mxu0 0.0
        %5650 = vmatprep.subr.mxu0 0.0
        %5651 = vmatpush1.msra.mxu0 0.0
        %5652 = vmatprep.subr.mxu0 0.0
        %5653 = vmatpush1.msra.mxu0 0.0
        %5654 = vmatprep.mubr.f32.mxu0 0.0
        %v5655 = vand.u32 %v4464, 4294901760
        %v5656 = vsub.f32 %v4464, %v5655
        %v5657 = vand.u32 %v5656, 4294901760
        %5658 = vmatmul.mubr.f32.gmra.mrb[0].mxu0 %v5657
        %v5659 = vpop.f32.mrb[0].mxu0
        %v5660 = vadd.f32 %v5587, %v5659
        %v5661 = vpop.f32.mrb[0].mxu0
        %5662 = vdwg.mxu0
        %5663 = vmatprep.subr.mxu0 0.0
        %v5664 = vsub.f32 %v158, %v158
        %v5665 = vand.u32 %v5664, 4294901760
        %5666 = vmatpush1.msra.mxu0 %v5665
        %5667 = vmatprep.subr.mxu0 0.0
        %v5668 = vsub.f32 %v159, %v159
        %v5669 = vand.u32 %v5668, 4294901760
        %5670 = vmatpush1.msra.mxu0 %v5669
        %5671 = vmatprep.subr.mxu0 0.0
        %5672 = vmatpush1.msra.mxu0 0.0
        %5673 = vmatprep.subr.mxu0 0.0
        %5674 = vmatpush1.msra.mxu0 0.0
        %5675 = vmatprep.subr.mxu0 0.0
        %5676 = vmatpush1.msra.mxu0 0.0
        %5677 = vmatprep.subr.mxu0 0.0
        %5678 = vmatpush1.msra.mxu0 0.0
        %5679 = vmatprep.subr.mxu0 0.0
        %5680 = vmatpush1.msra.mxu0 0.0
        %5681 = vmatprep.subr.mxu0 0.0
        %5682 = vmatpush1.msra.mxu0 0.0
        %5683 = vmatprep.subr.mxu0 0.0
        %5684 = vmatpush1.msra.mxu0 0.0
        %5685 = vmatprep.subr.mxu0 0.0
        %5686 = vmatpush1.msra.mxu0 0.0
        %5687 = vmatprep.subr.mxu0 0.0
        %5688 = vmatpush1.msra.mxu0 0.0
        %5689 = vmatprep.subr.mxu0 0.0
        %5690 = vmatpush1.msra.mxu0 0.0
        %5691 = vmatprep.subr.mxu0 0.0
        %5692 = vmatpush1.msra.mxu0 0.0
        %5693 = vmatprep.subr.mxu0 0.0
        %5694 = vmatpush1.msra.mxu0 0.0
        %5695 = vmatprep.subr.mxu0 0.0
        %5696 = vmatpush1.msra.mxu0 0.0
        %5697 = vmatprep.subr.mxu0 0.0
        %5698 = vmatpush1.msra.mxu0 0.0
        %5699 = vmatprep.subr.mxu0 0.0
        %5700 = vmatpush1.msra.mxu0 0.0
        %5701 = vmatprep.subr.mxu0 0.0
        %5702 = vmatpush1.msra.mxu0 0.0
        %5703 = vmatprep.subr.mxu0 0.0
        %5704 = vmatpush1.msra.mxu0 0.0
        %5705 = vmatprep.subr.mxu0 0.0
        %5706 = vmatpush1.msra.mxu0 0.0
        %5707 = vmatprep.subr.mxu0 0.0
        %5708 = vmatpush1.msra.mxu0 0.0
        %5709 = vmatprep.subr.mxu0 0.0
        %5710 = vmatpush1.msra.mxu0 0.0
        %5711 = vmatprep.subr.mxu0 0.0
        %5712 = vmatpush1.msra.mxu0 0.0
        %5713 = vmatprep.subr.mxu0 0.0
        %5714 = vmatpush1.msra.mxu0 0.0
        %5715 = vmatprep.subr.mxu0 0.0
        %5716 = vmatpush1.msra.mxu0 0.0
        %5717 = vmatprep.subr.mxu0 0.0
        %5718 = vmatpush1.msra.mxu0 0.0
        %5719 = vmatprep.subr.mxu0 0.0
        %5720 = vmatpush1.msra.mxu0 0.0
        %5721 = vmatprep.subr.mxu0 0.0
        %5722 = vmatpush1.msra.mxu0 0.0
        %5723 = vmatprep.subr.mxu0 0.0
        %5724 = vmatpush1.msra.mxu0 0.0
        %5725 = vmatprep.subr.mxu0 0.0
        %5726 = vmatpush1.msra.mxu0 0.0
        %5727 = vmatprep.subr.mxu0 0.0
        %5728 = vmatpush1.msra.mxu0 0.0
        %5729 = vmatprep.subr.mxu0 0.0
        %5730 = vmatpush1.msra.mxu0 0.0
        %5731 = vmatprep.mubr.f32.mxu0 0.0
        %v5732 = vand.u32 %v4464, 4294901760
        %5733 = vmatmul.mubr.f32.gmra.mrb[0].mxu0 %v5732
        %v5734 = vpop.f32.mrb[0].mxu0
        %v5735 = vadd.f32 %v5660, %v5734
        %v5736 = vpop.f32.mrb[0].mxu0
        %5737 = vdwg.mxu0
        %5738 = vmatprep.subr.mxu0 0.0
        %5739 = vmatpush1.msra.mxu0 %v158
        %5740 = vmatprep.subr.mxu0 0.0
        %5741 = vmatpush1.msra.mxu0 %v159
        %5742 = vmatprep.subr.mxu0 0.0
        %5743 = vmatpush1.msra.mxu0 0.0
        %5744 = vmatprep.subr.mxu0 0.0
        %5745 = vmatpush1.msra.mxu0 0.0
        %5746 = vmatprep.subr.mxu0 0.0
        %5747 = vmatpush1.msra.mxu0 0.0
        %5748 = vmatprep.subr.mxu0 0.0
        %5749 = vmatpush1.msra.mxu0 0.0
        %5750 = vmatprep.subr.mxu0 0.0
        %5751 = vmatpush1.msra.mxu0 0.0
        %5752 = vmatprep.subr.mxu0 0.0
        %5753 = vmatpush1.msra.mxu0 0.0
        %5754 = vmatprep.subr.mxu0 0.0
        %5755 = vmatpush1.msra.mxu0 0.0
        %5756 = vmatprep.subr.mxu0 0.0
        %5757 = vmatpush1.msra.mxu0 0.0
        %5758 = vmatprep.subr.mxu0 0.0
        %5759 = vmatpush1.msra.mxu0 0.0
        %5760 = vmatprep.subr.mxu0 0.0
        %5761 = vmatpush1.msra.mxu0 0.0
        %5762 = vmatprep.subr.mxu0 0.0
        %5763 = vmatpush1.msra.mxu0 0.0
        %5764 = vmatprep.subr.mxu0 0.0
        %5765 = vmatpush1.msra.mxu0 0.0
        %5766 = vmatprep.subr.mxu0 0.0
        %5767 = vmatpush1.msra.mxu0 0.0
        %5768 = vmatprep.subr.mxu0 0.0
        %5769 = vmatpush1.msra.mxu0 0.0
        %5770 = vmatprep.subr.mxu0 0.0
        %5771 = vmatpush1.msra.mxu0 0.0
        %5772 = vmatprep.subr.mxu0 0.0
        %5773 = vmatpush1.msra.mxu0 0.0
        %5774 = vmatprep.subr.mxu0 0.0
        %5775 = vmatpush1.msra.mxu0 0.0
        %5776 = vmatprep.subr.mxu0 0.0
        %5777 = vmatpush1.msra.mxu0 0.0
        %5778 = vmatprep.subr.mxu0 0.0
        %5779 = vmatpush1.msra.mxu0 0.0
        %5780 = vmatprep.subr.mxu0 0.0
        %5781 = vmatpush1.msra.mxu0 0.0
        %5782 = vmatprep.subr.mxu0 0.0
        %5783 = vmatpush1.msra.mxu0 0.0
        %5784 = vmatprep.subr.mxu0 0.0
        %5785 = vmatpush1.msra.mxu0 0.0
        %5786 = vmatprep.subr.mxu0 0.0
        %5787 = vmatpush1.msra.mxu0 0.0
        %5788 = vmatprep.subr.mxu0 0.0
        %5789 = vmatpush1.msra.mxu0 0.0
        %5790 = vmatprep.subr.mxu0 0.0
        %5791 = vmatpush1.msra.mxu0 0.0
        %5792 = vmatprep.subr.mxu0 0.0
        %5793 = vmatpush1.msra.mxu0 0.0
        %5794 = vmatprep.subr.mxu0 0.0
        %5795 = vmatpush1.msra.mxu0 0.0
        %5796 = vmatprep.subr.mxu0 0.0
        %5797 = vmatpush1.msra.mxu0 0.0
        %5798 = vmatprep.subr.mxu0 0.0
        %5799 = vmatpush1.msra.mxu0 0.0
        %5800 = vmatprep.subr.mxu0 0.0
        %5801 = vmatpush1.msra.mxu0 0.0
        %5802 = vmatprep.mubr.f32.mxu0 0.0
        %v5803 = vand.u32 %v4464, 4294901760
        %5804 = vmatmul.mubr.f32.gmra.mrb[0].mxu0 %v5803
        %v5805 = vpop.f32.mrb[0].mxu0
        %v5806 = vadd.f32 %v5735, %v5805
        %v5807 = vpop.f32.mrb[0].mxu0
        %5808 = vdwg.mxu0
        %v5809 = vsel %vm1550, %v5806, -3.4028235e+38
        %v5810 = vmax.f32 %v5361, %v5809
        %v5813 = vunpack.c.l.s4 1966171168
        %v5814 = vunpack.c.0.s8 %v5813
        %v5815 = vlaneseq
        %v5816 = vshrl.u32 %v5815, 7
        %v5817 = vsub.s32 %v5814, %v5816
        %v5818 = vrot.slane %v5810, %v5817
        %v5819 = vcombine.high %v5818, %v5818
        %v5821 = vunpack.c.l.s4 1966171168
        %v5822 = vunpack.c.0.s8 %v5821
        %v5823 = vlaneseq
        %v5824 = vshrl.u32 %v5823, 7
        %v5825 = vsub.s32 %v5822, %v5824
        %v5826 = vrot.slane %v5818, %v5825
        %v5828 = vunpack.c.l.s4 1966171168
        %v5829 = vunpack.c.0.s8 %v5828
        %v5830 = vlaneseq
        %v5831 = vshrl.u32 %v5830, 7
        %v5832 = vsub.s32 %v5829, %v5831
        %v5833 = vrot.slane %v5819, %v5832
        %v5834 = vcombine.high %v5826, %v5826
        %v5835 = vcombine.high %v5833, %v5833
        %5840 = vst.msk [vmem:[%s138 + $0x3] sm:$0x1] %vm1582, %v5826
        %5841 = vst.msk [vmem:[%s138 + $0xb] sm:$0x1] %vm1582, %v5833
        %5842 = vst.msk [vmem:[%s138 + $0x13] sm:$0x1] %vm1582, %v5834
        %5843 = vst.msk [vmem:[%s138 + $0x1b] sm:$0x1] %vm1582, %v5835
        %v5844 = vld [vmem:[%s114 + $0xc] sm:$0x7]
        %v5845 = vld [vmem:[%s114 + $0x1c] sm:$0x7]
        %v5846 = vld [vmem:[%s114 + $0x2c] sm:$0x7]
        %v5847 = vld [vmem:[%s114 + $0x3c] sm:$0x7]
        %v5848 = vsel %vm164, %v5844, -inf
        %v5849 = vrot.slane %v5848, 4
        %v5850 = vmax.f32 %v5848, %v5849
        %v5851 = vrot.slane %v5850, 2
        %v5852 = vmax.f32 %v5850, %v5851
        %v5853 = vrot.slane %v5852, 1
        %v5854 = vmax.f32 %v5852, %v5853
        %v5855 = vsel %vm164, %v5845, -inf
        %v5856 = vrot.slane %v5855, 4
        %v5857 = vmax.f32 %v5855, %v5856
        %v5858 = vrot.slane %v5857, 2
        %v5859 = vmax.f32 %v5857, %v5858
        %v5860 = vrot.slane %v5859, 1
        %v5861 = vmax.f32 %v5859, %v5860
        %v5862 = vsel %vm164, %v5846, -inf
        %v5863 = vrot.slane %v5862, 4
        %v5864 = vmax.f32 %v5862, %v5863
        %v5865 = vrot.slane %v5864, 2
        %v5866 = vmax.f32 %v5864, %v5865
        %v5867 = vrot.slane %v5866, 1
        %v5868 = vmax.f32 %v5866, %v5867
        %v5869 = vsel %vm164, %v5847, -inf
        %v5870 = vrot.slane %v5869, 4
        %v5871 = vmax.f32 %v5869, %v5870
        %v5872 = vrot.slane %v5871, 2
        %v5873 = vmax.f32 %v5871, %v5872
        %v5874 = vrot.slane %v5873, 1
        %v5875 = vmax.f32 %v5873, %v5874
        %v5880 = vsel %vm197, %v5861, %v5854
        %v5881 = vsel %vm199, %v5868, %v5880
        %v5882 = vsel %vm201, %v5875, %v5881
        %v5883 = vsel %vm203, %v5882, 0
        %5885 = vmatprep.subr.mxu0 0.0
        %5886 = vmatpush1.msra.mxu0 %v148
        %5887 = vmatprep.subr.mxu0 0.0
        %5888 = vmatpush1.msra.mxu0 %v149
        %5889 = vmatprep.subr.mxu0 0.0
        %5890 = vmatpush1.msra.mxu0 0.0
        %5891 = vmatprep.subr.mxu0 0.0
        %5892 = vmatpush1.msra.mxu0 0.0
        %5893 = vmatprep.subr.mxu0 0.0
        %5894 = vmatpush1.msra.mxu0 0.0
        %5895 = vmatprep.subr.mxu0 0.0
        %5896 = vmatpush1.msra.mxu0 0.0
        %5897 = vmatprep.subr.mxu0 0.0
        %5898 = vmatpush1.msra.mxu0 0.0
        %5899 = vmatprep.subr.mxu0 0.0
        %5900 = vmatpush1.msra.mxu0 0.0
        %5901 = vmatprep.subr.mxu0 0.0
        %5902 = vmatpush1.msra.mxu0 0.0
        %5903 = vmatprep.subr.mxu0 0.0
        %5904 = vmatpush1.msra.mxu0 0.0
        %5905 = vmatprep.subr.mxu0 0.0
        %5906 = vmatpush1.msra.mxu0 0.0
        %5907 = vmatprep.subr.mxu0 0.0
        %5908 = vmatpush1.msra.mxu0 0.0
        %5909 = vmatprep.subr.mxu0 0.0
        %5910 = vmatpush1.msra.mxu0 0.0
        %5911 = vmatprep.subr.mxu0 0.0
        %5912 = vmatpush1.msra.mxu0 0.0
        %5913 = vmatprep.subr.mxu0 0.0
        %5914 = vmatpush1.msra.mxu0 0.0
        %5915 = vmatprep.subr.mxu0 0.0
        %5916 = vmatpush1.msra.mxu0 0.0
        %5917 = vmatprep.subr.mxu0 0.0
        %5918 = vmatpush1.msra.mxu0 0.0
        %5919 = vmatprep.subr.mxu0 0.0
        %5920 = vmatpush1.msra.mxu0 0.0
        %5921 = vmatprep.subr.mxu0 0.0
        %5922 = vmatpush1.msra.mxu0 0.0
        %5923 = vmatprep.subr.mxu0 0.0
        %5924 = vmatpush1.msra.mxu0 0.0
        %5925 = vmatprep.subr.mxu0 0.0
        %5926 = vmatpush1.msra.mxu0 0.0
        %5927 = vmatprep.subr.mxu0 0.0
        %5928 = vmatpush1.msra.mxu0 0.0
        %5929 = vmatprep.subr.mxu0 0.0
        %5930 = vmatpush1.msra.mxu0 0.0
        %5931 = vmatprep.subr.mxu0 0.0
        %5932 = vmatpush1.msra.mxu0 0.0
        %5933 = vmatprep.subr.mxu0 0.0
        %5934 = vmatpush1.msra.mxu0 0.0
        %5935 = vmatprep.subr.mxu0 0.0
        %5936 = vmatpush1.msra.mxu0 0.0
        %5937 = vmatprep.subr.mxu0 0.0
        %5938 = vmatpush1.msra.mxu0 0.0
        %5939 = vmatprep.subr.mxu0 0.0
        %5940 = vmatpush1.msra.mxu0 0.0
        %5941 = vmatprep.subr.mxu0 0.0
        %5942 = vmatpush1.msra.mxu0 0.0
        %5943 = vmatprep.subr.mxu0 0.0
        %5944 = vmatpush1.msra.mxu0 0.0
        %5945 = vmatprep.subr.mxu0 0.0
        %5946 = vmatpush1.msra.mxu0 0.0
        %5947 = vmatprep.subr.mxu0 0.0
        %5948 = vmatpush1.msra.mxu0 0.0
        %5949 = vmatprep.mubr.f32.mxu0 0.0
        %v5950 = vand.u32 %v5883, 4294901760
        %v5951 = vsub.f32 %v5883, %v5950
        %v5952 = vand.u32 %v5951, 4294901760
        %v5953 = vsub.f32 %v5951, %v5952
        %v5954 = vand.u32 %v5953, 4294901760
        %5955 = vmatmul.mubr.f32.gmra.mrb[0].mxu0 %v5954
        %v5956 = vpop.f32.mrb[0].mxu0
        %v5957 = vadd.f32 0.0, %v5956
        %v5958 = vpop.f32.mrb[0].mxu0
        %5959 = vdwg.mxu0
        %5960 = vmatprep.subr.mxu0 0.0
        %v5961 = vsub.f32 %v148, %v148
        %v5962 = vand.u32 %v5961, 4294901760
        %v5963 = vsub.f32 %v5961, %v5962
        %v5964 = vand.u32 %v5963, 4294901760
        %5965 = vmatpush1.msra.mxu0 %v5964
        %5966 = vmatprep.subr.mxu0 0.0
        %v5967 = vsub.f32 %v149, %v149
        %v5968 = vand.u32 %v5967, 4294901760
        %v5969 = vsub.f32 %v5967, %v5968
        %v5970 = vand.u32 %v5969, 4294901760
        %5971 = vmatpush1.msra.mxu0 %v5970
        %5972 = vmatprep.subr.mxu0 0.0
        %5973 = vmatpush1.msra.mxu0 0.0
        %5974 = vmatprep.subr.mxu0 0.0
        %5975 = vmatpush1.msra.mxu0 0.0
        %5976 = vmatprep.subr.mxu0 0.0
        %5977 = vmatpush1.msra.mxu0 0.0
        %5978 = vmatprep.subr.mxu0 0.0
        %5979 = vmatpush1.msra.mxu0 0.0
        %5980 = vmatprep.subr.mxu0 0.0
        %5981 = vmatpush1.msra.mxu0 0.0
        %5982 = vmatprep.subr.mxu0 0.0
        %5983 = vmatpush1.msra.mxu0 0.0
        %5984 = vmatprep.subr.mxu0 0.0
        %5985 = vmatpush1.msra.mxu0 0.0
        %5986 = vmatprep.subr.mxu0 0.0
        %5987 = vmatpush1.msra.mxu0 0.0
        %5988 = vmatprep.subr.mxu0 0.0
        %5989 = vmatpush1.msra.mxu0 0.0
        %5990 = vmatprep.subr.mxu0 0.0
        %5991 = vmatpush1.msra.mxu0 0.0
        %5992 = vmatprep.subr.mxu0 0.0
        %5993 = vmatpush1.msra.mxu0 0.0
        %5994 = vmatprep.subr.mxu0 0.0
        %5995 = vmatpush1.msra.mxu0 0.0
        %5996 = vmatprep.subr.mxu0 0.0
        %5997 = vmatpush1.msra.mxu0 0.0
        %5998 = vmatprep.subr.mxu0 0.0
        %5999 = vmatpush1.msra.mxu0 0.0
        %6000 = vmatprep.subr.mxu0 0.0
        %6001 = vmatpush1.msra.mxu0 0.0
        %6002 = vmatprep.subr.mxu0 0.0
        %6003 = vmatpush1.msra.mxu0 0.0
        %6004 = vmatprep.subr.mxu0 0.0
        %6005 = vmatpush1.msra.mxu0 0.0
        %6006 = vmatprep.subr.mxu0 0.0
        %6007 = vmatpush1.msra.mxu0 0.0
        %6008 = vmatprep.subr.mxu0 0.0
        %6009 = vmatpush1.msra.mxu0 0.0
        %6010 = vmatprep.subr.mxu0 0.0
        %6011 = vmatpush1.msra.mxu0 0.0
        %6012 = vmatprep.subr.mxu0 0.0
        %6013 = vmatpush1.msra.mxu0 0.0
        %6014 = vmatprep.subr.mxu0 0.0
        %6015 = vmatpush1.msra.mxu0 0.0
        %6016 = vmatprep.subr.mxu0 0.0
        %6017 = vmatpush1.msra.mxu0 0.0
        %6018 = vmatprep.subr.mxu0 0.0
        %6019 = vmatpush1.msra.mxu0 0.0
        %6020 = vmatprep.subr.mxu0 0.0
        %6021 = vmatpush1.msra.mxu0 0.0
        %6022 = vmatprep.subr.mxu0 0.0
        %6023 = vmatpush1.msra.mxu0 0.0
        %6024 = vmatprep.subr.mxu0 0.0
        %6025 = vmatpush1.msra.mxu0 0.0
        %6026 = vmatprep.subr.mxu0 0.0
        %6027 = vmatpush1.msra.mxu0 0.0
        %6028 = vmatprep.subr.mxu0 0.0
        %6029 = vmatpush1.msra.mxu0 0.0
        %6030 = vmatprep.subr.mxu0 0.0
        %6031 = vmatpush1.msra.mxu0 0.0
        %6032 = vmatprep.mubr.f32.mxu0 0.0
        %v6033 = vand.u32 %v5883, 4294901760
        %6034 = vmatmul.mubr.f32.gmra.mrb[0].mxu0 %v6033
        %v6035 = vpop.f32.mrb[0].mxu0
        %v6036 = vadd.f32 %v5957, %v6035
        %v6037 = vpop.f32.mrb[0].mxu0
        %6038 = vdwg.mxu0
        %6039 = vmatprep.subr.mxu0 0.0
        %v6040 = vsub.f32 %v148, %v148
        %6041 = vmatpush1.msra.mxu0 %v6040
        %6042 = vmatprep.subr.mxu0 0.0
        %v6043 = vsub.f32 %v149, %v149
        %6044 = vmatpush1.msra.mxu0 %v6043
        %6045 = vmatprep.subr.mxu0 0.0
        %6046 = vmatpush1.msra.mxu0 0.0
        %6047 = vmatprep.subr.mxu0 0.0
        %6048 = vmatpush1.msra.mxu0 0.0
        %6049 = vmatprep.subr.mxu0 0.0
        %6050 = vmatpush1.msra.mxu0 0.0
        %6051 = vmatprep.subr.mxu0 0.0
        %6052 = vmatpush1.msra.mxu0 0.0
        %6053 = vmatprep.subr.mxu0 0.0
        %6054 = vmatpush1.msra.mxu0 0.0
        %6055 = vmatprep.subr.mxu0 0.0
        %6056 = vmatpush1.msra.mxu0 0.0
        %6057 = vmatprep.subr.mxu0 0.0
        %6058 = vmatpush1.msra.mxu0 0.0
        %6059 = vmatprep.subr.mxu0 0.0
        %6060 = vmatpush1.msra.mxu0 0.0
        %6061 = vmatprep.subr.mxu0 0.0
        %6062 = vmatpush1.msra.mxu0 0.0
        %6063 = vmatprep.subr.mxu0 0.0
        %6064 = vmatpush1.msra.mxu0 0.0
        %6065 = vmatprep.subr.mxu0 0.0
        %6066 = vmatpush1.msra.mxu0 0.0
        %6067 = vmatprep.subr.mxu0 0.0
        %6068 = vmatpush1.msra.mxu0 0.0
        %6069 = vmatprep.subr.mxu0 0.0
        %6070 = vmatpush1.msra.mxu0 0.0
        %6071 = vmatprep.subr.mxu0 0.0
        %6072 = vmatpush1.msra.mxu0 0.0
        %6073 = vmatprep.subr.mxu0 0.0
        %6074 = vmatpush1.msra.mxu0 0.0
        %6075 = vmatprep.subr.mxu0 0.0
        %6076 = vmatpush1.msra.mxu0 0.0
        %6077 = vmatprep.subr.mxu0 0.0
        %6078 = vmatpush1.msra.mxu0 0.0
        %6079 = vmatprep.subr.mxu0 0.0
        %6080 = vmatpush1.msra.mxu0 0.0
        %6081 = vmatprep.subr.mxu0 0.0
        %6082 = vmatpush1.msra.mxu0 0.0
        %6083 = vmatprep.subr.mxu0 0.0
        %6084 = vmatpush1.msra.mxu0 0.0
        %6085 = vmatprep.subr.mxu0 0.0
        %6086 = vmatpush1.msra.mxu0 0.0
        %6087 = vmatprep.subr.mxu0 0.0
        %6088 = vmatpush1.msra.mxu0 0.0
        %6089 = vmatprep.subr.mxu0 0.0
        %6090 = vmatpush1.msra.mxu0 0.0
        %6091 = vmatprep.subr.mxu0 0.0
        %6092 = vmatpush1.msra.mxu0 0.0
        %6093 = vmatprep.subr.mxu0 0.0
        %6094 = vmatpush1.msra.mxu0 0.0
        %6095 = vmatprep.subr.mxu0 0.0
        %6096 = vmatpush1.msra.mxu0 0.0
        %6097 = vmatprep.subr.mxu0 0.0
        %6098 = vmatpush1.msra.mxu0 0.0
        %6099 = vmatprep.subr.mxu0 0.0
        %6100 = vmatpush1.msra.mxu0 0.0
        %6101 = vmatprep.subr.mxu0 0.0
        %6102 = vmatpush1.msra.mxu0 0.0
        %6103 = vmatprep.subr.mxu0 0.0
        %6104 = vmatpush1.msra.mxu0 0.0
        %6105 = vmatprep.mubr.f32.mxu0 0.0
        %v6106 = vand.u32 %v5883, 4294901760
        %v6107 = vsub.f32 %v5883, %v6106
        %6108 = vmatmul.mubr.f32.gmra.mrb[0].mxu0 %v6107
        %v6109 = vpop.f32.mrb[0].mxu0
        %v6110 = vadd.f32 %v6036, %v6109
        %v6111 = vpop.f32.mrb[0].mxu0
        %6112 = vdwg.mxu0
        %6113 = vmatprep.subr.mxu0 0.0
        %6114 = vmatpush1.msra.mxu0 %v148
        %6115 = vmatprep.subr.mxu0 0.0
        %6116 = vmatpush1.msra.mxu0 %v149
        %6117 = vmatprep.subr.mxu0 0.0
        %6118 = vmatpush1.msra.mxu0 0.0
        %6119 = vmatprep.subr.mxu0 0.0
        %6120 = vmatpush1.msra.mxu0 0.0
        %6121 = vmatprep.subr.mxu0 0.0
        %6122 = vmatpush1.msra.mxu0 0.0
        %6123 = vmatprep.subr.mxu0 0.0
        %6124 = vmatpush1.msra.mxu0 0.0
        %6125 = vmatprep.subr.mxu0 0.0
        %6126 = vmatpush1.msra.mxu0 0.0
        %6127 = vmatprep.subr.mxu0 0.0
        %6128 = vmatpush1.msra.mxu0 0.0
        %6129 = vmatprep.subr.mxu0 0.0
        %6130 = vmatpush1.msra.mxu0 0.0
        %6131 = vmatprep.subr.mxu0 0.0
        %6132 = vmatpush1.msra.mxu0 0.0
        %6133 = vmatprep.subr.mxu0 0.0
        %6134 = vmatpush1.msra.mxu0 0.0
        %6135 = vmatprep.subr.mxu0 0.0
        %6136 = vmatpush1.msra.mxu0 0.0
        %6137 = vmatprep.subr.mxu0 0.0
        %6138 = vmatpush1.msra.mxu0 0.0
        %6139 = vmatprep.subr.mxu0 0.0
        %6140 = vmatpush1.msra.mxu0 0.0
        %6141 = vmatprep.subr.mxu0 0.0
        %6142 = vmatpush1.msra.mxu0 0.0
        %6143 = vmatprep.subr.mxu0 0.0
        %6144 = vmatpush1.msra.mxu0 0.0
        %6145 = vmatprep.subr.mxu0 0.0
        %6146 = vmatpush1.msra.mxu0 0.0
        %6147 = vmatprep.subr.mxu0 0.0
        %6148 = vmatpush1.msra.mxu0 0.0
        %6149 = vmatprep.subr.mxu0 0.0
        %6150 = vmatpush1.msra.mxu0 0.0
        %6151 = vmatprep.subr.mxu0 0.0
        %6152 = vmatpush1.msra.mxu0 0.0
        %6153 = vmatprep.subr.mxu0 0.0
        %6154 = vmatpush1.msra.mxu0 0.0
        %6155 = vmatprep.subr.mxu0 0.0
        %6156 = vmatpush1.msra.mxu0 0.0
        %6157 = vmatprep.subr.mxu0 0.0
        %6158 = vmatpush1.msra.mxu0 0.0
        %6159 = vmatprep.subr.mxu0 0.0
        %6160 = vmatpush1.msra.mxu0 0.0
        %6161 = vmatprep.subr.mxu0 0.0
        %6162 = vmatpush1.msra.mxu0 0.0
        %6163 = vmatprep.subr.mxu0 0.0
        %6164 = vmatpush1.msra.mxu0 0.0
        %6165 = vmatprep.subr.mxu0 0.0
        %6166 = vmatpush1.msra.mxu0 0.0
        %6167 = vmatprep.subr.mxu0 0.0
        %6168 = vmatpush1.msra.mxu0 0.0
        %6169 = vmatprep.subr.mxu0 0.0
        %6170 = vmatpush1.msra.mxu0 0.0
        %6171 = vmatprep.subr.mxu0 0.0
        %6172 = vmatpush1.msra.mxu0 0.0
        %6173 = vmatprep.subr.mxu0 0.0
        %6174 = vmatpush1.msra.mxu0 0.0
        %6175 = vmatprep.subr.mxu0 0.0
        %6176 = vmatpush1.msra.mxu0 0.0
        %6177 = vmatprep.mubr.f32.mxu0 0.0
        %v6178 = vand.u32 %v5883, 4294901760
        %v6179 = vsub.f32 %v5883, %v6178
        %v6180 = vand.u32 %v6179, 4294901760
        %6181 = vmatmul.mubr.f32.gmra.mrb[0].mxu0 %v6180
        %v6182 = vpop.f32.mrb[0].mxu0
        %v6183 = vadd.f32 %v6110, %v6182
        %v6184 = vpop.f32.mrb[0].mxu0
        %6185 = vdwg.mxu0
        %6186 = vmatprep.subr.mxu0 0.0
        %v6187 = vsub.f32 %v148, %v148
        %v6188 = vand.u32 %v6187, 4294901760
        %6189 = vmatpush1.msra.mxu0 %v6188
        %6190 = vmatprep.subr.mxu0 0.0
        %v6191 = vsub.f32 %v149, %v149
        %v6192 = vand.u32 %v6191, 4294901760
        %6193 = vmatpush1.msra.mxu0 %v6192
        %6194 = vmatprep.subr.mxu0 0.0
        %6195 = vmatpush1.msra.mxu0 0.0
        %6196 = vmatprep.subr.mxu0 0.0
        %6197 = vmatpush1.msra.mxu0 0.0
        %6198 = vmatprep.subr.mxu0 0.0
        %6199 = vmatpush1.msra.mxu0 0.0
        %6200 = vmatprep.subr.mxu0 0.0
        %6201 = vmatpush1.msra.mxu0 0.0
        %6202 = vmatprep.subr.mxu0 0.0
        %6203 = vmatpush1.msra.mxu0 0.0
        %6204 = vmatprep.subr.mxu0 0.0
        %6205 = vmatpush1.msra.mxu0 0.0
        %6206 = vmatprep.subr.mxu0 0.0
        %6207 = vmatpush1.msra.mxu0 0.0
        %6208 = vmatprep.subr.mxu0 0.0
        %6209 = vmatpush1.msra.mxu0 0.0
        %6210 = vmatprep.subr.mxu0 0.0
        %6211 = vmatpush1.msra.mxu0 0.0
        %6212 = vmatprep.subr.mxu0 0.0
        %6213 = vmatpush1.msra.mxu0 0.0
        %6214 = vmatprep.subr.mxu0 0.0
        %6215 = vmatpush1.msra.mxu0 0.0
        %6216 = vmatprep.subr.mxu0 0.0
        %6217 = vmatpush1.msra.mxu0 0.0
        %6218 = vmatprep.subr.mxu0 0.0
        %6219 = vmatpush1.msra.mxu0 0.0
        %6220 = vmatprep.subr.mxu0 0.0
        %6221 = vmatpush1.msra.mxu0 0.0
        %6222 = vmatprep.subr.mxu0 0.0
        %6223 = vmatpush1.msra.mxu0 0.0
        %6224 = vmatprep.subr.mxu0 0.0
        %6225 = vmatpush1.msra.mxu0 0.0
        %6226 = vmatprep.subr.mxu0 0.0
        %6227 = vmatpush1.msra.mxu0 0.0
        %6228 = vmatprep.subr.mxu0 0.0
        %6229 = vmatpush1.msra.mxu0 0.0
        %6230 = vmatprep.subr.mxu0 0.0
        %6231 = vmatpush1.msra.mxu0 0.0
        %6232 = vmatprep.subr.mxu0 0.0
        %6233 = vmatpush1.msra.mxu0 0.0
        %6234 = vmatprep.subr.mxu0 0.0
        %6235 = vmatpush1.msra.mxu0 0.0
        %6236 = vmatprep.subr.mxu0 0.0
        %6237 = vmatpush1.msra.mxu0 0.0
        %6238 = vmatprep.subr.mxu0 0.0
        %6239 = vmatpush1.msra.mxu0 0.0
        %6240 = vmatprep.subr.mxu0 0.0
        %6241 = vmatpush1.msra.mxu0 0.0
        %6242 = vmatprep.subr.mxu0 0.0
        %6243 = vmatpush1.msra.mxu0 0.0
        %6244 = vmatprep.subr.mxu0 0.0
        %6245 = vmatpush1.msra.mxu0 0.0
        %6246 = vmatprep.subr.mxu0 0.0
        %6247 = vmatpush1.msra.mxu0 0.0
        %6248 = vmatprep.subr.mxu0 0.0
        %6249 = vmatpush1.msra.mxu0 0.0
        %6250 = vmatprep.subr.mxu0 0.0
        %6251 = vmatpush1.msra.mxu0 0.0
        %6252 = vmatprep.subr.mxu0 0.0
        %6253 = vmatpush1.msra.mxu0 0.0
        %6254 = vmatprep.mubr.f32.mxu0 0.0
        %v6255 = vand.u32 %v5883, 4294901760
        %6256 = vmatmul.mubr.f32.gmra.mrb[0].mxu0 %v6255
        %v6257 = vpop.f32.mrb[0].mxu0
        %v6258 = vadd.f32 %v6183, %v6257
        %v6259 = vpop.f32.mrb[0].mxu0
        %6260 = vdwg.mxu0
        %6261 = vmatprep.subr.mxu0 0.0
        %6262 = vmatpush1.msra.mxu0 %v148
        %6263 = vmatprep.subr.mxu0 0.0
        %6264 = vmatpush1.msra.mxu0 %v149
        %6265 = vmatprep.subr.mxu0 0.0
        %6266 = vmatpush1.msra.mxu0 0.0
        %6267 = vmatprep.subr.mxu0 0.0
        %6268 = vmatpush1.msra.mxu0 0.0
        %6269 = vmatprep.subr.mxu0 0.0
        %6270 = vmatpush1.msra.mxu0 0.0
        %6271 = vmatprep.subr.mxu0 0.0
        %6272 = vmatpush1.msra.mxu0 0.0
        %6273 = vmatprep.subr.mxu0 0.0
        %6274 = vmatpush1.msra.mxu0 0.0
        %6275 = vmatprep.subr.mxu0 0.0
        %6276 = vmatpush1.msra.mxu0 0.0
        %6277 = vmatprep.subr.mxu0 0.0
        %6278 = vmatpush1.msra.mxu0 0.0
        %6279 = vmatprep.subr.mxu0 0.0
        %6280 = vmatpush1.msra.mxu0 0.0
        %6281 = vmatprep.subr.mxu0 0.0
        %6282 = vmatpush1.msra.mxu0 0.0
        %6283 = vmatprep.subr.mxu0 0.0
        %6284 = vmatpush1.msra.mxu0 0.0
        %6285 = vmatprep.subr.mxu0 0.0
        %6286 = vmatpush1.msra.mxu0 0.0
        %6287 = vmatprep.subr.mxu0 0.0
        %6288 = vmatpush1.msra.mxu0 0.0
        %6289 = vmatprep.subr.mxu0 0.0
        %6290 = vmatpush1.msra.mxu0 0.0
        %6291 = vmatprep.subr.mxu0 0.0
        %6292 = vmatpush1.msra.mxu0 0.0
        %6293 = vmatprep.subr.mxu0 0.0
        %6294 = vmatpush1.msra.mxu0 0.0
        %6295 = vmatprep.subr.mxu0 0.0
        %6296 = vmatpush1.msra.mxu0 0.0
        %6297 = vmatprep.subr.mxu0 0.0
        %6298 = vmatpush1.msra.mxu0 0.0
        %6299 = vmatprep.subr.mxu0 0.0
        %6300 = vmatpush1.msra.mxu0 0.0
        %6301 = vmatprep.subr.mxu0 0.0
        %6302 = vmatpush1.msra.mxu0 0.0
        %6303 = vmatprep.subr.mxu0 0.0
        %6304 = vmatpush1.msra.mxu0 0.0
        %6305 = vmatprep.subr.mxu0 0.0
        %6306 = vmatpush1.msra.mxu0 0.0
        %6307 = vmatprep.subr.mxu0 0.0
        %6308 = vmatpush1.msra.mxu0 0.0
        %6309 = vmatprep.subr.mxu0 0.0
        %6310 = vmatpush1.msra.mxu0 0.0
        %6311 = vmatprep.subr.mxu0 0.0
        %6312 = vmatpush1.msra.mxu0 0.0
        %6313 = vmatprep.subr.mxu0 0.0
        %6314 = vmatpush1.msra.mxu0 0.0
        %6315 = vmatprep.subr.mxu0 0.0
        %6316 = vmatpush1.msra.mxu0 0.0
        %6317 = vmatprep.subr.mxu0 0.0
        %6318 = vmatpush1.msra.mxu0 0.0
        %6319 = vmatprep.subr.mxu0 0.0
        %6320 = vmatpush1.msra.mxu0 0.0
        %6321 = vmatprep.subr.mxu0 0.0
        %6322 = vmatpush1.msra.mxu0 0.0
        %6323 = vmatprep.subr.mxu0 0.0
        %6324 = vmatpush1.msra.mxu0 0.0
        %6325 = vmatprep.mubr.f32.mxu0 0.0
        %v6326 = vand.u32 %v5883, 4294901760
        %6327 = vmatmul.mubr.f32.gmra.mrb[0].mxu0 %v6326
        %v6328 = vpop.f32.mrb[0].mxu0
        %v6329 = vadd.f32 %v6258, %v6328
        %v6330 = vpop.f32.mrb[0].mxu0
        %6331 = vdwg.mxu0
        %6332 = vmatprep.subr.mxu0 0.0
        %6333 = vmatpush1.msra.mxu0 %v153
        %6334 = vmatprep.subr.mxu0 0.0
        %6335 = vmatpush1.msra.mxu0 %v154
        %6336 = vmatprep.subr.mxu0 0.0
        %6337 = vmatpush1.msra.mxu0 0.0
        %6338 = vmatprep.subr.mxu0 0.0
        %6339 = vmatpush1.msra.mxu0 0.0
        %6340 = vmatprep.subr.mxu0 0.0
        %6341 = vmatpush1.msra.mxu0 0.0
        %6342 = vmatprep.subr.mxu0 0.0
        %6343 = vmatpush1.msra.mxu0 0.0
        %6344 = vmatprep.subr.mxu0 0.0
        %6345 = vmatpush1.msra.mxu0 0.0
        %6346 = vmatprep.subr.mxu0 0.0
        %6347 = vmatpush1.msra.mxu0 0.0
        %6348 = vmatprep.subr.mxu0 0.0
        %6349 = vmatpush1.msra.mxu0 0.0
        %6350 = vmatprep.subr.mxu0 0.0
        %6351 = vmatpush1.msra.mxu0 0.0
        %6352 = vmatprep.subr.mxu0 0.0
        %6353 = vmatpush1.msra.mxu0 0.0
        %6354 = vmatprep.subr.mxu0 0.0
        %6355 = vmatpush1.msra.mxu0 0.0
        %6356 = vmatprep.subr.mxu0 0.0
        %6357 = vmatpush1.msra.mxu0 0.0
        %6358 = vmatprep.subr.mxu0 0.0
        %6359 = vmatpush1.msra.mxu0 0.0
        %6360 = vmatprep.subr.mxu0 0.0
        %6361 = vmatpush1.msra.mxu0 0.0
        %6362 = vmatprep.subr.mxu0 0.0
        %6363 = vmatpush1.msra.mxu0 0.0
        %6364 = vmatprep.subr.mxu0 0.0
        %6365 = vmatpush1.msra.mxu0 0.0
        %6366 = vmatprep.subr.mxu0 0.0
        %6367 = vmatpush1.msra.mxu0 0.0
        %6368 = vmatprep.subr.mxu0 0.0
        %6369 = vmatpush1.msra.mxu0 0.0
        %6370 = vmatprep.subr.mxu0 0.0
        %6371 = vmatpush1.msra.mxu0 0.0
        %6372 = vmatprep.subr.mxu0 0.0
        %6373 = vmatpush1.msra.mxu0 0.0
        %6374 = vmatprep.subr.mxu0 0.0
        %6375 = vmatpush1.msra.mxu0 0.0
        %6376 = vmatprep.subr.mxu0 0.0
        %6377 = vmatpush1.msra.mxu0 0.0
        %6378 = vmatprep.subr.mxu0 0.0
        %6379 = vmatpush1.msra.mxu0 0.0
        %6380 = vmatprep.subr.mxu0 0.0
        %6381 = vmatpush1.msra.mxu0 0.0
        %6382 = vmatprep.subr.mxu0 0.0
        %6383 = vmatpush1.msra.mxu0 0.0
        %6384 = vmatprep.subr.mxu0 0.0
        %6385 = vmatpush1.msra.mxu0 0.0
        %6386 = vmatprep.subr.mxu0 0.0
        %6387 = vmatpush1.msra.mxu0 0.0
        %6388 = vmatprep.subr.mxu0 0.0
        %6389 = vmatpush1.msra.mxu0 0.0
        %6390 = vmatprep.subr.mxu0 0.0
        %6391 = vmatpush1.msra.mxu0 0.0
        %6392 = vmatprep.subr.mxu0 0.0
        %6393 = vmatpush1.msra.mxu0 0.0
        %6394 = vmatprep.subr.mxu0 0.0
        %6395 = vmatpush1.msra.mxu0 0.0
        %6396 = vmatprep.mubr.f32.mxu0 0.0
        %v6397 = vand.u32 %v5883, 4294901760
        %v6398 = vsub.f32 %v5883, %v6397
        %v6399 = vand.u32 %v6398, 4294901760
        %v6400 = vsub.f32 %v6398, %v6399
        %v6401 = vand.u32 %v6400, 4294901760
        %6402 = vmatmul.mubr.f32.gmra.mrb[0].mxu0 %v6401
        %v6403 = vpop.f32.mrb[0].mxu0
        %v6404 = vadd.f32 0.0, %v6403
        %v6405 = vpop.f32.mrb[0].mxu0
        %6406 = vdwg.mxu0
        %6407 = vmatprep.subr.mxu0 0.0
        %v6408 = vsub.f32 %v153, %v153
        %v6409 = vand.u32 %v6408, 4294901760
        %v6410 = vsub.f32 %v6408, %v6409
        %v6411 = vand.u32 %v6410, 4294901760
        %6412 = vmatpush1.msra.mxu0 %v6411
        %6413 = vmatprep.subr.mxu0 0.0
        %v6414 = vsub.f32 %v154, %v154
        %v6415 = vand.u32 %v6414, 4294901760
        %v6416 = vsub.f32 %v6414, %v6415
        %v6417 = vand.u32 %v6416, 4294901760
        %6418 = vmatpush1.msra.mxu0 %v6417
        %6419 = vmatprep.subr.mxu0 0.0
        %6420 = vmatpush1.msra.mxu0 0.0
        %6421 = vmatprep.subr.mxu0 0.0
        %6422 = vmatpush1.msra.mxu0 0.0
        %6423 = vmatprep.subr.mxu0 0.0
        %6424 = vmatpush1.msra.mxu0 0.0
        %6425 = vmatprep.subr.mxu0 0.0
        %6426 = vmatpush1.msra.mxu0 0.0
        %6427 = vmatprep.subr.mxu0 0.0
        %6428 = vmatpush1.msra.mxu0 0.0
        %6429 = vmatprep.subr.mxu0 0.0
        %6430 = vmatpush1.msra.mxu0 0.0
        %6431 = vmatprep.subr.mxu0 0.0
        %6432 = vmatpush1.msra.mxu0 0.0
        %6433 = vmatprep.subr.mxu0 0.0
        %6434 = vmatpush1.msra.mxu0 0.0
        %6435 = vmatprep.subr.mxu0 0.0
        %6436 = vmatpush1.msra.mxu0 0.0
        %6437 = vmatprep.subr.mxu0 0.0
        %6438 = vmatpush1.msra.mxu0 0.0
        %6439 = vmatprep.subr.mxu0 0.0
        %6440 = vmatpush1.msra.mxu0 0.0
        %6441 = vmatprep.subr.mxu0 0.0
        %6442 = vmatpush1.msra.mxu0 0.0
        %6443 = vmatprep.subr.mxu0 0.0
        %6444 = vmatpush1.msra.mxu0 0.0
        %6445 = vmatprep.subr.mxu0 0.0
        %6446 = vmatpush1.msra.mxu0 0.0
        %6447 = vmatprep.subr.mxu0 0.0
        %6448 = vmatpush1.msra.mxu0 0.0
        %6449 = vmatprep.subr.mxu0 0.0
        %6450 = vmatpush1.msra.mxu0 0.0
        %6451 = vmatprep.subr.mxu0 0.0
        %6452 = vmatpush1.msra.mxu0 0.0
        %6453 = vmatprep.subr.mxu0 0.0
        %6454 = vmatpush1.msra.mxu0 0.0
        %6455 = vmatprep.subr.mxu0 0.0
        %6456 = vmatpush1.msra.mxu0 0.0
        %6457 = vmatprep.subr.mxu0 0.0
        %6458 = vmatpush1.msra.mxu0 0.0
        %6459 = vmatprep.subr.mxu0 0.0
        %6460 = vmatpush1.msra.mxu0 0.0
        %6461 = vmatprep.subr.mxu0 0.0
        %6462 = vmatpush1.msra.mxu0 0.0
        %6463 = vmatprep.subr.mxu0 0.0
        %6464 = vmatpush1.msra.mxu0 0.0
        %6465 = vmatprep.subr.mxu0 0.0
        %6466 = vmatpush1.msra.mxu0 0.0
        %6467 = vmatprep.subr.mxu0 0.0
        %6468 = vmatpush1.msra.mxu0 0.0
        %6469 = vmatprep.subr.mxu0 0.0
        %6470 = vmatpush1.msra.mxu0 0.0
        %6471 = vmatprep.subr.mxu0 0.0
        %6472 = vmatpush1.msra.mxu0 0.0
        %6473 = vmatprep.subr.mxu0 0.0
        %6474 = vmatpush1.msra.mxu0 0.0
        %6475 = vmatprep.subr.mxu0 0.0
        %6476 = vmatpush1.msra.mxu0 0.0
        %6477 = vmatprep.subr.mxu0 0.0
        %6478 = vmatpush1.msra.mxu0 0.0
        %6479 = vmatprep.mubr.f32.mxu0 0.0
        %v6480 = vand.u32 %v5883, 4294901760
        %6481 = vmatmul.mubr.f32.gmra.mrb[0].mxu0 %v6480
        %v6482 = vpop.f32.mrb[0].mxu0
        %v6483 = vadd.f32 %v6404, %v6482
        %v6484 = vpop.f32.mrb[0].mxu0
        %6485 = vdwg.mxu0
        %6486 = vmatprep.subr.mxu0 0.0
        %v6487 = vsub.f32 %v153, %v153
        %6488 = vmatpush1.msra.mxu0 %v6487
        %6489 = vmatprep.subr.mxu0 0.0
        %v6490 = vsub.f32 %v154, %v154
        %6491 = vmatpush1.msra.mxu0 %v6490
        %6492 = vmatprep.subr.mxu0 0.0
        %6493 = vmatpush1.msra.mxu0 0.0
        %6494 = vmatprep.subr.mxu0 0.0
        %6495 = vmatpush1.msra.mxu0 0.0
        %6496 = vmatprep.subr.mxu0 0.0
        %6497 = vmatpush1.msra.mxu0 0.0
        %6498 = vmatprep.subr.mxu0 0.0
        %6499 = vmatpush1.msra.mxu0 0.0
        %6500 = vmatprep.subr.mxu0 0.0
        %6501 = vmatpush1.msra.mxu0 0.0
        %6502 = vmatprep.subr.mxu0 0.0
        %6503 = vmatpush1.msra.mxu0 0.0
        %6504 = vmatprep.subr.mxu0 0.0
        %6505 = vmatpush1.msra.mxu0 0.0
        %6506 = vmatprep.subr.mxu0 0.0
        %6507 = vmatpush1.msra.mxu0 0.0
        %6508 = vmatprep.subr.mxu0 0.0
        %6509 = vmatpush1.msra.mxu0 0.0
        %6510 = vmatprep.subr.mxu0 0.0
        %6511 = vmatpush1.msra.mxu0 0.0
        %6512 = vmatprep.subr.mxu0 0.0
        %6513 = vmatpush1.msra.mxu0 0.0
        %6514 = vmatprep.subr.mxu0 0.0
        %6515 = vmatpush1.msra.mxu0 0.0
        %6516 = vmatprep.subr.mxu0 0.0
        %6517 = vmatpush1.msra.mxu0 0.0
        %6518 = vmatprep.subr.mxu0 0.0
        %6519 = vmatpush1.msra.mxu0 0.0
        %6520 = vmatprep.subr.mxu0 0.0
        %6521 = vmatpush1.msra.mxu0 0.0
        %6522 = vmatprep.subr.mxu0 0.0
        %6523 = vmatpush1.msra.mxu0 0.0
        %6524 = vmatprep.subr.mxu0 0.0
        %6525 = vmatpush1.msra.mxu0 0.0
        %6526 = vmatprep.subr.mxu0 0.0
        %6527 = vmatpush1.msra.mxu0 0.0
        %6528 = vmatprep.subr.mxu0 0.0
        %6529 = vmatpush1.msra.mxu0 0.0
        %6530 = vmatprep.subr.mxu0 0.0
        %6531 = vmatpush1.msra.mxu0 0.0
        %6532 = vmatprep.subr.mxu0 0.0
        %6533 = vmatpush1.msra.mxu0 0.0
        %6534 = vmatprep.subr.mxu0 0.0
        %6535 = vmatpush1.msra.mxu0 0.0
        %6536 = vmatprep.subr.mxu0 0.0
        %6537 = vmatpush1.msra.mxu0 0.0
        %6538 = vmatprep.subr.mxu0 0.0
        %6539 = vmatpush1.msra.mxu0 0.0
        %6540 = vmatprep.subr.mxu0 0.0
        %6541 = vmatpush1.msra.mxu0 0.0
        %6542 = vmatprep.subr.mxu0 0.0
        %6543 = vmatpush1.msra.mxu0 0.0
        %6544 = vmatprep.subr.mxu0 0.0
        %6545 = vmatpush1.msra.mxu0 0.0
        %6546 = vmatprep.subr.mxu0 0.0
        %6547 = vmatpush1.msra.mxu0 0.0
        %6548 = vmatprep.subr.mxu0 0.0
        %6549 = vmatpush1.msra.mxu0 0.0
        %6550 = vmatprep.subr.mxu0 0.0
        %6551 = vmatpush1.msra.mxu0 0.0
        %6552 = vmatprep.mubr.f32.mxu0 0.0
        %v6553 = vand.u32 %v5883, 4294901760
        %v6554 = vsub.f32 %v5883, %v6553
        %6555 = vmatmul.mubr.f32.gmra.mrb[0].mxu0 %v6554
        %v6556 = vpop.f32.mrb[0].mxu0
        %v6557 = vadd.f32 %v6483, %v6556
        %v6558 = vpop.f32.mrb[0].mxu0
        %6559 = vdwg.mxu0
        %6560 = vmatprep.subr.mxu0 0.0
        %6561 = vmatpush1.msra.mxu0 %v153
        %6562 = vmatprep.subr.mxu0 0.0
        %6563 = vmatpush1.msra.mxu0 %v154
        %6564 = vmatprep.subr.mxu0 0.0
        %6565 = vmatpush1.msra.mxu0 0.0
        %6566 = vmatprep.subr.mxu0 0.0
        %6567 = vmatpush1.msra.mxu0 0.0
        %6568 = vmatprep.subr.mxu0 0.0
        %6569 = vmatpush1.msra.mxu0 0.0
        %6570 = vmatprep.subr.mxu0 0.0
        %6571 = vmatpush1.msra.mxu0 0.0
        %6572 = vmatprep.subr.mxu0 0.0
        %6573 = vmatpush1.msra.mxu0 0.0
        %6574 = vmatprep.subr.mxu0 0.0
        %6575 = vmatpush1.msra.mxu0 0.0
        %6576 = vmatprep.subr.mxu0 0.0
        %6577 = vmatpush1.msra.mxu0 0.0
        %6578 = vmatprep.subr.mxu0 0.0
        %6579 = vmatpush1.msra.mxu0 0.0
        %6580 = vmatprep.subr.mxu0 0.0
        %6581 = vmatpush1.msra.mxu0 0.0
        %6582 = vmatprep.subr.mxu0 0.0
        %6583 = vmatpush1.msra.mxu0 0.0
        %6584 = vmatprep.subr.mxu0 0.0
        %6585 = vmatpush1.msra.mxu0 0.0
        %6586 = vmatprep.subr.mxu0 0.0
        %6587 = vmatpush1.msra.mxu0 0.0
        %6588 = vmatprep.subr.mxu0 0.0
        %6589 = vmatpush1.msra.mxu0 0.0
        %6590 = vmatprep.subr.mxu0 0.0
        %6591 = vmatpush1.msra.mxu0 0.0
        %6592 = vmatprep.subr.mxu0 0.0
        %6593 = vmatpush1.msra.mxu0 0.0
        %6594 = vmatprep.subr.mxu0 0.0
        %6595 = vmatpush1.msra.mxu0 0.0
        %6596 = vmatprep.subr.mxu0 0.0
        %6597 = vmatpush1.msra.mxu0 0.0
        %6598 = vmatprep.subr.mxu0 0.0
        %6599 = vmatpush1.msra.mxu0 0.0
        %6600 = vmatprep.subr.mxu0 0.0
        %6601 = vmatpush1.msra.mxu0 0.0
        %6602 = vmatprep.subr.mxu0 0.0
        %6603 = vmatpush1.msra.mxu0 0.0
        %6604 = vmatprep.subr.mxu0 0.0
        %6605 = vmatpush1.msra.mxu0 0.0
        %6606 = vmatprep.subr.mxu0 0.0
        %6607 = vmatpush1.msra.mxu0 0.0
        %6608 = vmatprep.subr.mxu0 0.0
        %6609 = vmatpush1.msra.mxu0 0.0
        %6610 = vmatprep.subr.mxu0 0.0
        %6611 = vmatpush1.msra.mxu0 0.0
        %6612 = vmatprep.subr.mxu0 0.0
        %6613 = vmatpush1.msra.mxu0 0.0
        %6614 = vmatprep.subr.mxu0 0.0
        %6615 = vmatpush1.msra.mxu0 0.0
        %6616 = vmatprep.subr.mxu0 0.0
        %6617 = vmatpush1.msra.mxu0 0.0
        %6618 = vmatprep.subr.mxu0 0.0
        %6619 = vmatpush1.msra.mxu0 0.0
        %6620 = vmatprep.subr.mxu0 0.0
        %6621 = vmatpush1.msra.mxu0 0.0
        %6622 = vmatprep.subr.mxu0 0.0
        %6623 = vmatpush1.msra.mxu0 0.0
        %6624 = vmatprep.mubr.f32.mxu0 0.0
        %v6625 = vand.u32 %v5883, 4294901760
        %v6626 = vsub.f32 %v5883, %v6625
        %v6627 = vand.u32 %v6626, 4294901760
        %6628 = vmatmul.mubr.f32.gmra.mrb[0].mxu0 %v6627
        %v6629 = vpop.f32.mrb[0].mxu0
        %v6630 = vadd.f32 %v6557, %v6629
        %v6631 = vpop.f32.mrb[0].mxu0
        %6632 = vdwg.mxu0
        %6633 = vmatprep.subr.mxu0 0.0
        %v6634 = vsub.f32 %v153, %v153
        %v6635 = vand.u32 %v6634, 4294901760
        %6636 = vmatpush1.msra.mxu0 %v6635
        %6637 = vmatprep.subr.mxu0 0.0
        %v6638 = vsub.f32 %v154, %v154
        %v6639 = vand.u32 %v6638, 4294901760
        %6640 = vmatpush1.msra.mxu0 %v6639
        %6641 = vmatprep.subr.mxu0 0.0
        %6642 = vmatpush1.msra.mxu0 0.0
        %6643 = vmatprep.subr.mxu0 0.0
        %6644 = vmatpush1.msra.mxu0 0.0
        %6645 = vmatprep.subr.mxu0 0.0
        %6646 = vmatpush1.msra.mxu0 0.0
        %6647 = vmatprep.subr.mxu0 0.0
        %6648 = vmatpush1.msra.mxu0 0.0
        %6649 = vmatprep.subr.mxu0 0.0
        %6650 = vmatpush1.msra.mxu0 0.0
        %6651 = vmatprep.subr.mxu0 0.0
        %6652 = vmatpush1.msra.mxu0 0.0
        %6653 = vmatprep.subr.mxu0 0.0
        %6654 = vmatpush1.msra.mxu0 0.0
        %6655 = vmatprep.subr.mxu0 0.0
        %6656 = vmatpush1.msra.mxu0 0.0
        %6657 = vmatprep.subr.mxu0 0.0
        %6658 = vmatpush1.msra.mxu0 0.0
        %6659 = vmatprep.subr.mxu0 0.0
        %6660 = vmatpush1.msra.mxu0 0.0
        %6661 = vmatprep.subr.mxu0 0.0
        %6662 = vmatpush1.msra.mxu0 0.0
        %6663 = vmatprep.subr.mxu0 0.0
        %6664 = vmatpush1.msra.mxu0 0.0
        %6665 = vmatprep.subr.mxu0 0.0
        %6666 = vmatpush1.msra.mxu0 0.0
        %6667 = vmatprep.subr.mxu0 0.0
        %6668 = vmatpush1.msra.mxu0 0.0
        %6669 = vmatprep.subr.mxu0 0.0
        %6670 = vmatpush1.msra.mxu0 0.0
        %6671 = vmatprep.subr.mxu0 0.0
        %6672 = vmatpush1.msra.mxu0 0.0
        %6673 = vmatprep.subr.mxu0 0.0
        %6674 = vmatpush1.msra.mxu0 0.0
        %6675 = vmatprep.subr.mxu0 0.0
        %6676 = vmatpush1.msra.mxu0 0.0
        %6677 = vmatprep.subr.mxu0 0.0
        %6678 = vmatpush1.msra.mxu0 0.0
        %6679 = vmatprep.subr.mxu0 0.0
        %6680 = vmatpush1.msra.mxu0 0.0
        %6681 = vmatprep.subr.mxu0 0.0
        %6682 = vmatpush1.msra.mxu0 0.0
        %6683 = vmatprep.subr.mxu0 0.0
        %6684 = vmatpush1.msra.mxu0 0.0
        %6685 = vmatprep.subr.mxu0 0.0
        %6686 = vmatpush1.msra.mxu0 0.0
        %6687 = vmatprep.subr.mxu0 0.0
        %6688 = vmatpush1.msra.mxu0 0.0
        %6689 = vmatprep.subr.mxu0 0.0
        %6690 = vmatpush1.msra.mxu0 0.0
        %6691 = vmatprep.subr.mxu0 0.0
        %6692 = vmatpush1.msra.mxu0 0.0
        %6693 = vmatprep.subr.mxu0 0.0
        %6694 = vmatpush1.msra.mxu0 0.0
        %6695 = vmatprep.subr.mxu0 0.0
        %6696 = vmatpush1.msra.mxu0 0.0
        %6697 = vmatprep.subr.mxu0 0.0
        %6698 = vmatpush1.msra.mxu0 0.0
        %6699 = vmatprep.subr.mxu0 0.0
        %6700 = vmatpush1.msra.mxu0 0.0
        %6701 = vmatprep.mubr.f32.mxu0 0.0
        %v6702 = vand.u32 %v5883, 4294901760
        %6703 = vmatmul.mubr.f32.gmra.mrb[0].mxu0 %v6702
        %v6704 = vpop.f32.mrb[0].mxu0
        %v6705 = vadd.f32 %v6630, %v6704
        %v6706 = vpop.f32.mrb[0].mxu0
        %6707 = vdwg.mxu0
        %6708 = vmatprep.subr.mxu0 0.0
        %6709 = vmatpush1.msra.mxu0 %v153
        %6710 = vmatprep.subr.mxu0 0.0
        %6711 = vmatpush1.msra.mxu0 %v154
        %6712 = vmatprep.subr.mxu0 0.0
        %6713 = vmatpush1.msra.mxu0 0.0
        %6714 = vmatprep.subr.mxu0 0.0
        %6715 = vmatpush1.msra.mxu0 0.0
        %6716 = vmatprep.subr.mxu0 0.0
        %6717 = vmatpush1.msra.mxu0 0.0
        %6718 = vmatprep.subr.mxu0 0.0
        %6719 = vmatpush1.msra.mxu0 0.0
        %6720 = vmatprep.subr.mxu0 0.0
        %6721 = vmatpush1.msra.mxu0 0.0
        %6722 = vmatprep.subr.mxu0 0.0
        %6723 = vmatpush1.msra.mxu0 0.0
        %6724 = vmatprep.subr.mxu0 0.0
        %6725 = vmatpush1.msra.mxu0 0.0
        %6726 = vmatprep.subr.mxu0 0.0
        %6727 = vmatpush1.msra.mxu0 0.0
        %6728 = vmatprep.subr.mxu0 0.0
        %6729 = vmatpush1.msra.mxu0 0.0
        %6730 = vmatprep.subr.mxu0 0.0
        %6731 = vmatpush1.msra.mxu0 0.0
        %6732 = vmatprep.subr.mxu0 0.0
        %6733 = vmatpush1.msra.mxu0 0.0
        %6734 = vmatprep.subr.mxu0 0.0
        %6735 = vmatpush1.msra.mxu0 0.0
        %6736 = vmatprep.subr.mxu0 0.0
        %6737 = vmatpush1.msra.mxu0 0.0
        %6738 = vmatprep.subr.mxu0 0.0
        %6739 = vmatpush1.msra.mxu0 0.0
        %6740 = vmatprep.subr.mxu0 0.0
        %6741 = vmatpush1.msra.mxu0 0.0
        %6742 = vmatprep.subr.mxu0 0.0
        %6743 = vmatpush1.msra.mxu0 0.0
        %6744 = vmatprep.subr.mxu0 0.0
        %6745 = vmatpush1.msra.mxu0 0.0
        %6746 = vmatprep.subr.mxu0 0.0
        %6747 = vmatpush1.msra.mxu0 0.0
        %6748 = vmatprep.subr.mxu0 0.0
        %6749 = vmatpush1.msra.mxu0 0.0
        %6750 = vmatprep.subr.mxu0 0.0
        %6751 = vmatpush1.msra.mxu0 0.0
        %6752 = vmatprep.subr.mxu0 0.0
        %6753 = vmatpush1.msra.mxu0 0.0
        %6754 = vmatprep.subr.mxu0 0.0
        %6755 = vmatpush1.msra.mxu0 0.0
        %6756 = vmatprep.subr.mxu0 0.0
        %6757 = vmatpush1.msra.mxu0 0.0
        %6758 = vmatprep.subr.mxu0 0.0
        %6759 = vmatpush1.msra.mxu0 0.0
        %6760 = vmatprep.subr.mxu0 0.0
        %6761 = vmatpush1.msra.mxu0 0.0
        %6762 = vmatprep.subr.mxu0 0.0
        %6763 = vmatpush1.msra.mxu0 0.0
        %6764 = vmatprep.subr.mxu0 0.0
        %6765 = vmatpush1.msra.mxu0 0.0
        %6766 = vmatprep.subr.mxu0 0.0
        %6767 = vmatpush1.msra.mxu0 0.0
        %6768 = vmatprep.subr.mxu0 0.0
        %6769 = vmatpush1.msra.mxu0 0.0
        %6770 = vmatprep.subr.mxu0 0.0
        %6771 = vmatpush1.msra.mxu0 0.0
        %6772 = vmatprep.mubr.f32.mxu0 0.0
        %v6773 = vand.u32 %v5883, 4294901760
        %6774 = vmatmul.mubr.f32.gmra.mrb[0].mxu0 %v6773
        %v6775 = vpop.f32.mrb[0].mxu0
        %v6776 = vadd.f32 %v6705, %v6775
        %v6777 = vpop.f32.mrb[0].mxu0
        %6778 = vdwg.mxu0
        %v6779 = vsel %vm1100, %v6776, -3.4028235e+38
        %v6780 = vmax.f32 %v6329, %v6779
        %6781 = vmatprep.subr.mxu0 0.0
        %6782 = vmatpush1.msra.mxu0 %v158
        %6783 = vmatprep.subr.mxu0 0.0
        %6784 = vmatpush1.msra.mxu0 %v159
        %6785 = vmatprep.subr.mxu0 0.0
        %6786 = vmatpush1.msra.mxu0 0.0
        %6787 = vmatprep.subr.mxu0 0.0
        %6788 = vmatpush1.msra.mxu0 0.0
        %6789 = vmatprep.subr.mxu0 0.0
        %6790 = vmatpush1.msra.mxu0 0.0
        %6791 = vmatprep.subr.mxu0 0.0
        %6792 = vmatpush1.msra.mxu0 0.0
        %6793 = vmatprep.subr.mxu0 0.0
        %6794 = vmatpush1.msra.mxu0 0.0
        %6795 = vmatprep.subr.mxu0 0.0
        %6796 = vmatpush1.msra.mxu0 0.0
        %6797 = vmatprep.subr.mxu0 0.0
        %6798 = vmatpush1.msra.mxu0 0.0
        %6799 = vmatprep.subr.mxu0 0.0
        %6800 = vmatpush1.msra.mxu0 0.0
        %6801 = vmatprep.subr.mxu0 0.0
        %6802 = vmatpush1.msra.mxu0 0.0
        %6803 = vmatprep.subr.mxu0 0.0
        %6804 = vmatpush1.msra.mxu0 0.0
        %6805 = vmatprep.subr.mxu0 0.0
        %6806 = vmatpush1.msra.mxu0 0.0
        %6807 = vmatprep.subr.mxu0 0.0
        %6808 = vmatpush1.msra.mxu0 0.0
        %6809 = vmatprep.subr.mxu0 0.0
        %6810 = vmatpush1.msra.mxu0 0.0
        %6811 = vmatprep.subr.mxu0 0.0
        %6812 = vmatpush1.msra.mxu0 0.0
        %6813 = vmatprep.subr.mxu0 0.0
        %6814 = vmatpush1.msra.mxu0 0.0
        %6815 = vmatprep.subr.mxu0 0.0
        %6816 = vmatpush1.msra.mxu0 0.0
        %6817 = vmatprep.subr.mxu0 0.0
        %6818 = vmatpush1.msra.mxu0 0.0
        %6819 = vmatprep.subr.mxu0 0.0
        %6820 = vmatpush1.msra.mxu0 0.0
        %6821 = vmatprep.subr.mxu0 0.0
        %6822 = vmatpush1.msra.mxu0 0.0
        %6823 = vmatprep.subr.mxu0 0.0
        %6824 = vmatpush1.msra.mxu0 0.0
        %6825 = vmatprep.subr.mxu0 0.0
        %6826 = vmatpush1.msra.mxu0 0.0
        %6827 = vmatprep.subr.mxu0 0.0
        %6828 = vmatpush1.msra.mxu0 0.0
        %6829 = vmatprep.subr.mxu0 0.0
        %6830 = vmatpush1.msra.mxu0 0.0
        %6831 = vmatprep.subr.mxu0 0.0
        %6832 = vmatpush1.msra.mxu0 0.0
        %6833 = vmatprep.subr.mxu0 0.0
        %6834 = vmatpush1.msra.mxu0 0.0
        %6835 = vmatprep.subr.mxu0 0.0
        %6836 = vmatpush1.msra.mxu0 0.0
        %6837 = vmatprep.subr.mxu0 0.0
        %6838 = vmatpush1.msra.mxu0 0.0
        %6839 = vmatprep.subr.mxu0 0.0
        %6840 = vmatpush1.msra.mxu0 0.0
        %6841 = vmatprep.subr.mxu0 0.0
        %6842 = vmatpush1.msra.mxu0 0.0
        %6843 = vmatprep.subr.mxu0 0.0
        %6844 = vmatpush1.msra.mxu0 0.0
        %6845 = vmatprep.mubr.f32.mxu0 0.0
        %v6846 = vand.u32 %v5883, 4294901760
        %v6847 = vsub.f32 %v5883, %v6846
        %v6848 = vand.u32 %v6847, 4294901760
        %v6849 = vsub.f32 %v6847, %v6848
        %v6850 = vand.u32 %v6849, 4294901760
        %6851 = vmatmul.mubr.f32.gmra.mrb[0].mxu0 %v6850
        %v6852 = vpop.f32.mrb[0].mxu0
        %v6853 = vadd.f32 0.0, %v6852
        %v6854 = vpop.f32.mrb[0].mxu0
        %6855 = vdwg.mxu0
        %6856 = vmatprep.subr.mxu0 0.0
        %v6857 = vsub.f32 %v158, %v158
        %v6858 = vand.u32 %v6857, 4294901760
        %v6859 = vsub.f32 %v6857, %v6858
        %v6860 = vand.u32 %v6859, 4294901760
        %6861 = vmatpush1.msra.mxu0 %v6860
        %6862 = vmatprep.subr.mxu0 0.0
        %v6863 = vsub.f32 %v159, %v159
        %v6864 = vand.u32 %v6863, 4294901760
        %v6865 = vsub.f32 %v6863, %v6864
        %v6866 = vand.u32 %v6865, 4294901760
        %6867 = vmatpush1.msra.mxu0 %v6866
        %6868 = vmatprep.subr.mxu0 0.0
        %6869 = vmatpush1.msra.mxu0 0.0
        %6870 = vmatprep.subr.mxu0 0.0
        %6871 = vmatpush1.msra.mxu0 0.0
        %6872 = vmatprep.subr.mxu0 0.0
        %6873 = vmatpush1.msra.mxu0 0.0
        %6874 = vmatprep.subr.mxu0 0.0
        %6875 = vmatpush1.msra.mxu0 0.0
        %6876 = vmatprep.subr.mxu0 0.0
        %6877 = vmatpush1.msra.mxu0 0.0
        %6878 = vmatprep.subr.mxu0 0.0
        %6879 = vmatpush1.msra.mxu0 0.0
        %6880 = vmatprep.subr.mxu0 0.0
        %6881 = vmatpush1.msra.mxu0 0.0
        %6882 = vmatprep.subr.mxu0 0.0
        %6883 = vmatpush1.msra.mxu0 0.0
        %6884 = vmatprep.subr.mxu0 0.0
        %6885 = vmatpush1.msra.mxu0 0.0
        %6886 = vmatprep.subr.mxu0 0.0
        %6887 = vmatpush1.msra.mxu0 0.0
        %6888 = vmatprep.subr.mxu0 0.0
        %6889 = vmatpush1.msra.mxu0 0.0
        %6890 = vmatprep.subr.mxu0 0.0
        %6891 = vmatpush1.msra.mxu0 0.0
        %6892 = vmatprep.subr.mxu0 0.0
        %6893 = vmatpush1.msra.mxu0 0.0
        %6894 = vmatprep.subr.mxu0 0.0
        %6895 = vmatpush1.msra.mxu0 0.0
        %6896 = vmatprep.subr.mxu0 0.0
        %6897 = vmatpush1.msra.mxu0 0.0
        %6898 = vmatprep.subr.mxu0 0.0
        %6899 = vmatpush1.msra.mxu0 0.0
        %6900 = vmatprep.subr.mxu0 0.0
        %6901 = vmatpush1.msra.mxu0 0.0
        %6902 = vmatprep.subr.mxu0 0.0
        %6903 = vmatpush1.msra.mxu0 0.0
        %6904 = vmatprep.subr.mxu0 0.0
        %6905 = vmatpush1.msra.mxu0 0.0
        %6906 = vmatprep.subr.mxu0 0.0
        %6907 = vmatpush1.msra.mxu0 0.0
        %6908 = vmatprep.subr.mxu0 0.0
        %6909 = vmatpush1.msra.mxu0 0.0
        %6910 = vmatprep.subr.mxu0 0.0
        %6911 = vmatpush1.msra.mxu0 0.0
        %6912 = vmatprep.subr.mxu0 0.0
        %6913 = vmatpush1.msra.mxu0 0.0
        %6914 = vmatprep.subr.mxu0 0.0
        %6915 = vmatpush1.msra.mxu0 0.0
        %6916 = vmatprep.subr.mxu0 0.0
        %6917 = vmatpush1.msra.mxu0 0.0
        %6918 = vmatprep.subr.mxu0 0.0
        %6919 = vmatpush1.msra.mxu0 0.0
        %6920 = vmatprep.subr.mxu0 0.0
        %6921 = vmatpush1.msra.mxu0 0.0
        %6922 = vmatprep.subr.mxu0 0.0
        %6923 = vmatpush1.msra.mxu0 0.0
        %6924 = vmatprep.subr.mxu0 0.0
        %6925 = vmatpush1.msra.mxu0 0.0
        %6926 = vmatprep.subr.mxu0 0.0
        %6927 = vmatpush1.msra.mxu0 0.0
        %6928 = vmatprep.mubr.f32.mxu0 0.0
        %v6929 = vand.u32 %v5883, 4294901760
        %6930 = vmatmul.mubr.f32.gmra.mrb[0].mxu0 %v6929
        %v6931 = vpop.f32.mrb[0].mxu0
        %v6932 = vadd.f32 %v6853, %v6931
        %v6933 = vpop.f32.mrb[0].mxu0
        %6934 = vdwg.mxu0
        %6935 = vmatprep.subr.mxu0 0.0
        %v6936 = vsub.f32 %v158, %v158
        %6937 = vmatpush1.msra.mxu0 %v6936
        %6938 = vmatprep.subr.mxu0 0.0
        %v6939 = vsub.f32 %v159, %v159
        %6940 = vmatpush1.msra.mxu0 %v6939
        %6941 = vmatprep.subr.mxu0 0.0
        %6942 = vmatpush1.msra.mxu0 0.0
        %6943 = vmatprep.subr.mxu0 0.0
        %6944 = vmatpush1.msra.mxu0 0.0
        %6945 = vmatprep.subr.mxu0 0.0
        %6946 = vmatpush1.msra.mxu0 0.0
        %6947 = vmatprep.subr.mxu0 0.0
        %6948 = vmatpush1.msra.mxu0 0.0
        %6949 = vmatprep.subr.mxu0 0.0
        %6950 = vmatpush1.msra.mxu0 0.0
        %6951 = vmatprep.subr.mxu0 0.0
        %6952 = vmatpush1.msra.mxu0 0.0
        %6953 = vmatprep.subr.mxu0 0.0
        %6954 = vmatpush1.msra.mxu0 0.0
        %6955 = vmatprep.subr.mxu0 0.0
        %6956 = vmatpush1.msra.mxu0 0.0
        %6957 = vmatprep.subr.mxu0 0.0
        %6958 = vmatpush1.msra.mxu0 0.0
        %6959 = vmatprep.subr.mxu0 0.0
        %6960 = vmatpush1.msra.mxu0 0.0
        %6961 = vmatprep.subr.mxu0 0.0
        %6962 = vmatpush1.msra.mxu0 0.0
        %6963 = vmatprep.subr.mxu0 0.0
        %6964 = vmatpush1.msra.mxu0 0.0
        %6965 = vmatprep.subr.mxu0 0.0
        %6966 = vmatpush1.msra.mxu0 0.0
        %6967 = vmatprep.subr.mxu0 0.0
        %6968 = vmatpush1.msra.mxu0 0.0
        %6969 = vmatprep.subr.mxu0 0.0
        %6970 = vmatpush1.msra.mxu0 0.0
        %6971 = vmatprep.subr.mxu0 0.0
        %6972 = vmatpush1.msra.mxu0 0.0
        %6973 = vmatprep.subr.mxu0 0.0
        %6974 = vmatpush1.msra.mxu0 0.0
        %6975 = vmatprep.subr.mxu0 0.0
        %6976 = vmatpush1.msra.mxu0 0.0
        %6977 = vmatprep.subr.mxu0 0.0
        %6978 = vmatpush1.msra.mxu0 0.0
        %6979 = vmatprep.subr.mxu0 0.0
        %6980 = vmatpush1.msra.mxu0 0.0
        %6981 = vmatprep.subr.mxu0 0.0
        %6982 = vmatpush1.msra.mxu0 0.0
        %6983 = vmatprep.subr.mxu0 0.0
        %6984 = vmatpush1.msra.mxu0 0.0
        %6985 = vmatprep.subr.mxu0 0.0
        %6986 = vmatpush1.msra.mxu0 0.0
        %6987 = vmatprep.subr.mxu0 0.0
        %6988 = vmatpush1.msra.mxu0 0.0
        %6989 = vmatprep.subr.mxu0 0.0
        %6990 = vmatpush1.msra.mxu0 0.0
        %6991 = vmatprep.subr.mxu0 0.0
        %6992 = vmatpush1.msra.mxu0 0.0
        %6993 = vmatprep.subr.mxu0 0.0
        %6994 = vmatpush1.msra.mxu0 0.0
        %6995 = vmatprep.subr.mxu0 0.0
        %6996 = vmatpush1.msra.mxu0 0.0
        %6997 = vmatprep.subr.mxu0 0.0
        %6998 = vmatpush1.msra.mxu0 0.0
        %6999 = vmatprep.subr.mxu0 0.0
        %7000 = vmatpush1.msra.mxu0 0.0
        %7001 = vmatprep.mubr.f32.mxu0 0.0
        %v7002 = vand.u32 %v5883, 4294901760
        %v7003 = vsub.f32 %v5883, %v7002
        %7004 = vmatmul.mubr.f32.gmra.mrb[0].mxu0 %v7003
        %v7005 = vpop.f32.mrb[0].mxu0
        %v7006 = vadd.f32 %v6932, %v7005
        %v7007 = vpop.f32.mrb[0].mxu0
        %7008 = vdwg.mxu0
        %7009 = vmatprep.subr.mxu0 0.0
        %7010 = vmatpush1.msra.mxu0 %v158
        %7011 = vmatprep.subr.mxu0 0.0
        %7012 = vmatpush1.msra.mxu0 %v159
        %7013 = vmatprep.subr.mxu0 0.0
        %7014 = vmatpush1.msra.mxu0 0.0
        %7015 = vmatprep.subr.mxu0 0.0
        %7016 = vmatpush1.msra.mxu0 0.0
        %7017 = vmatprep.subr.mxu0 0.0
        %7018 = vmatpush1.msra.mxu0 0.0
        %7019 = vmatprep.subr.mxu0 0.0
        %7020 = vmatpush1.msra.mxu0 0.0
        %7021 = vmatprep.subr.mxu0 0.0
        %7022 = vmatpush1.msra.mxu0 0.0
        %7023 = vmatprep.subr.mxu0 0.0
        %7024 = vmatpush1.msra.mxu0 0.0
        %7025 = vmatprep.subr.mxu0 0.0
        %7026 = vmatpush1.msra.mxu0 0.0
        %7027 = vmatprep.subr.mxu0 0.0
        %7028 = vmatpush1.msra.mxu0 0.0
        %7029 = vmatprep.subr.mxu0 0.0
        %7030 = vmatpush1.msra.mxu0 0.0
        %7031 = vmatprep.subr.mxu0 0.0
        %7032 = vmatpush1.msra.mxu0 0.0
        %7033 = vmatprep.subr.mxu0 0.0
        %7034 = vmatpush1.msra.mxu0 0.0
        %7035 = vmatprep.subr.mxu0 0.0
        %7036 = vmatpush1.msra.mxu0 0.0
        %7037 = vmatprep.subr.mxu0 0.0
        %7038 = vmatpush1.msra.mxu0 0.0
        %7039 = vmatprep.subr.mxu0 0.0
        %7040 = vmatpush1.msra.mxu0 0.0
        %7041 = vmatprep.subr.mxu0 0.0
        %7042 = vmatpush1.msra.mxu0 0.0
        %7043 = vmatprep.subr.mxu0 0.0
        %7044 = vmatpush1.msra.mxu0 0.0
        %7045 = vmatprep.subr.mxu0 0.0
        %7046 = vmatpush1.msra.mxu0 0.0
        %7047 = vmatprep.subr.mxu0 0.0
        %7048 = vmatpush1.msra.mxu0 0.0
        %7049 = vmatprep.subr.mxu0 0.0
        %7050 = vmatpush1.msra.mxu0 0.0
        %7051 = vmatprep.subr.mxu0 0.0
        %7052 = vmatpush1.msra.mxu0 0.0
        %7053 = vmatprep.subr.mxu0 0.0
        %7054 = vmatpush1.msra.mxu0 0.0
        %7055 = vmatprep.subr.mxu0 0.0
        %7056 = vmatpush1.msra.mxu0 0.0
        %7057 = vmatprep.subr.mxu0 0.0
        %7058 = vmatpush1.msra.mxu0 0.0
        %7059 = vmatprep.subr.mxu0 0.0
        %7060 = vmatpush1.msra.mxu0 0.0
        %7061 = vmatprep.subr.mxu0 0.0
        %7062 = vmatpush1.msra.mxu0 0.0
        %7063 = vmatprep.subr.mxu0 0.0
        %7064 = vmatpush1.msra.mxu0 0.0
        %7065 = vmatprep.subr.mxu0 0.0
        %7066 = vmatpush1.msra.mxu0 0.0
        %7067 = vmatprep.subr.mxu0 0.0
        %7068 = vmatpush1.msra.mxu0 0.0
        %7069 = vmatprep.subr.mxu0 0.0
        %7070 = vmatpush1.msra.mxu0 0.0
        %7071 = vmatprep.subr.mxu0 0.0
        %7072 = vmatpush1.msra.mxu0 0.0
        %7073 = vmatprep.mubr.f32.mxu0 0.0
        %v7074 = vand.u32 %v5883, 4294901760
        %v7075 = vsub.f32 %v5883, %v7074
        %v7076 = vand.u32 %v7075, 4294901760
        %7077 = vmatmul.mubr.f32.gmra.mrb[0].mxu0 %v7076
        %v7078 = vpop.f32.mrb[0].mxu0
        %v7079 = vadd.f32 %v7006, %v7078
        %v7080 = vpop.f32.mrb[0].mxu0
        %7081 = vdwg.mxu0
        %7082 = vmatprep.subr.mxu0 0.0
        %v7083 = vsub.f32 %v158, %v158
        %v7084 = vand.u32 %v7083, 4294901760
        %7085 = vmatpush1.msra.mxu0 %v7084
        %7086 = vmatprep.subr.mxu0 0.0
        %v7087 = vsub.f32 %v159, %v159
        %v7088 = vand.u32 %v7087, 4294901760
        %7089 = vmatpush1.msra.mxu0 %v7088
        %7090 = vmatprep.subr.mxu0 0.0
        %7091 = vmatpush1.msra.mxu0 0.0
        %7092 = vmatprep.subr.mxu0 0.0
        %7093 = vmatpush1.msra.mxu0 0.0
        %7094 = vmatprep.subr.mxu0 0.0
        %7095 = vmatpush1.msra.mxu0 0.0
        %7096 = vmatprep.subr.mxu0 0.0
        %7097 = vmatpush1.msra.mxu0 0.0
        %7098 = vmatprep.subr.mxu0 0.0
        %7099 = vmatpush1.msra.mxu0 0.0
        %7100 = vmatprep.subr.mxu0 0.0
        %7101 = vmatpush1.msra.mxu0 0.0
        %7102 = vmatprep.subr.mxu0 0.0
        %7103 = vmatpush1.msra.mxu0 0.0
        %7104 = vmatprep.subr.mxu0 0.0
        %7105 = vmatpush1.msra.mxu0 0.0
        %7106 = vmatprep.subr.mxu0 0.0
        %7107 = vmatpush1.msra.mxu0 0.0
        %7108 = vmatprep.subr.mxu0 0.0
        %7109 = vmatpush1.msra.mxu0 0.0
        %7110 = vmatprep.subr.mxu0 0.0
        %7111 = vmatpush1.msra.mxu0 0.0
        %7112 = vmatprep.subr.mxu0 0.0
        %7113 = vmatpush1.msra.mxu0 0.0
        %7114 = vmatprep.subr.mxu0 0.0
        %7115 = vmatpush1.msra.mxu0 0.0
        %7116 = vmatprep.subr.mxu0 0.0
        %7117 = vmatpush1.msra.mxu0 0.0
        %7118 = vmatprep.subr.mxu0 0.0
        %7119 = vmatpush1.msra.mxu0 0.0
        %7120 = vmatprep.subr.mxu0 0.0
        %7121 = vmatpush1.msra.mxu0 0.0
        %7122 = vmatprep.subr.mxu0 0.0
        %7123 = vmatpush1.msra.mxu0 0.0
        %7124 = vmatprep.subr.mxu0 0.0
        %7125 = vmatpush1.msra.mxu0 0.0
        %7126 = vmatprep.subr.mxu0 0.0
        %7127 = vmatpush1.msra.mxu0 0.0
        %7128 = vmatprep.subr.mxu0 0.0
        %7129 = vmatpush1.msra.mxu0 0.0
        %7130 = vmatprep.subr.mxu0 0.0
        %7131 = vmatpush1.msra.mxu0 0.0
        %7132 = vmatprep.subr.mxu0 0.0
        %7133 = vmatpush1.msra.mxu0 0.0
        %7134 = vmatprep.subr.mxu0 0.0
        %7135 = vmatpush1.msra.mxu0 0.0
        %7136 = vmatprep.subr.mxu0 0.0
        %7137 = vmatpush1.msra.mxu0 0.0
        %7138 = vmatprep.subr.mxu0 0.0
        %7139 = vmatpush1.msra.mxu0 0.0
        %7140 = vmatprep.subr.mxu0 0.0
        %7141 = vmatpush1.msra.mxu0 0.0
        %7142 = vmatprep.subr.mxu0 0.0
        %7143 = vmatpush1.msra.mxu0 0.0
        %7144 = vmatprep.subr.mxu0 0.0
        %7145 = vmatpush1.msra.mxu0 0.0
        %7146 = vmatprep.subr.mxu0 0.0
        %7147 = vmatpush1.msra.mxu0 0.0
        %7148 = vmatprep.subr.mxu0 0.0
        %7149 = vmatpush1.msra.mxu0 0.0
        %7150 = vmatprep.mubr.f32.mxu0 0.0
        %v7151 = vand.u32 %v5883, 4294901760
        %7152 = vmatmul.mubr.f32.gmra.mrb[0].mxu0 %v7151
        %v7153 = vpop.f32.mrb[0].mxu0
        %v7154 = vadd.f32 %v7079, %v7153
        %v7155 = vpop.f32.mrb[0].mxu0
        %7156 = vdwg.mxu0
        %7157 = vmatprep.subr.mxu0 0.0
        %7158 = vmatpush1.msra.mxu0 %v158
        %7159 = vmatprep.subr.mxu0 0.0
        %7160 = vmatpush1.msra.mxu0 %v159
        %7161 = vmatprep.subr.mxu0 0.0
        %7162 = vmatpush1.msra.mxu0 0.0
        %7163 = vmatprep.subr.mxu0 0.0
        %7164 = vmatpush1.msra.mxu0 0.0
        %7165 = vmatprep.subr.mxu0 0.0
        %7166 = vmatpush1.msra.mxu0 0.0
        %7167 = vmatprep.subr.mxu0 0.0
        %7168 = vmatpush1.msra.mxu0 0.0
        %7169 = vmatprep.subr.mxu0 0.0
        %7170 = vmatpush1.msra.mxu0 0.0
        %7171 = vmatprep.subr.mxu0 0.0
        %7172 = vmatpush1.msra.mxu0 0.0
        %7173 = vmatprep.subr.mxu0 0.0
        %7174 = vmatpush1.msra.mxu0 0.0
        %7175 = vmatprep.subr.mxu0 0.0
        %7176 = vmatpush1.msra.mxu0 0.0
        %7177 = vmatprep.subr.mxu0 0.0
        %7178 = vmatpush1.msra.mxu0 0.0
        %7179 = vmatprep.subr.mxu0 0.0
        %7180 = vmatpush1.msra.mxu0 0.0
        %7181 = vmatprep.subr.mxu0 0.0
        %7182 = vmatpush1.msra.mxu0 0.0
        %7183 = vmatprep.subr.mxu0 0.0
        %7184 = vmatpush1.msra.mxu0 0.0
        %7185 = vmatprep.subr.mxu0 0.0
        %7186 = vmatpush1.msra.mxu0 0.0
        %7187 = vmatprep.subr.mxu0 0.0
        %7188 = vmatpush1.msra.mxu0 0.0
        %7189 = vmatprep.subr.mxu0 0.0
        %7190 = vmatpush1.msra.mxu0 0.0
        %7191 = vmatprep.subr.mxu0 0.0
        %7192 = vmatpush1.msra.mxu0 0.0
        %7193 = vmatprep.subr.mxu0 0.0
        %7194 = vmatpush1.msra.mxu0 0.0
        %7195 = vmatprep.subr.mxu0 0.0
        %7196 = vmatpush1.msra.mxu0 0.0
        %7197 = vmatprep.subr.mxu0 0.0
        %7198 = vmatpush1.msra.mxu0 0.0
        %7199 = vmatprep.subr.mxu0 0.0
        %7200 = vmatpush1.msra.mxu0 0.0
        %7201 = vmatprep.subr.mxu0 0.0
        %7202 = vmatpush1.msra.mxu0 0.0
        %7203 = vmatprep.subr.mxu0 0.0
        %7204 = vmatpush1.msra.mxu0 0.0
        %7205 = vmatprep.subr.mxu0 0.0
        %7206 = vmatpush1.msra.mxu0 0.0
        %7207 = vmatprep.subr.mxu0 0.0
        %7208 = vmatpush1.msra.mxu0 0.0
        %7209 = vmatprep.subr.mxu0 0.0
        %7210 = vmatpush1.msra.mxu0 0.0
        %7211 = vmatprep.subr.mxu0 0.0
        %7212 = vmatpush1.msra.mxu0 0.0
        %7213 = vmatprep.subr.mxu0 0.0
        %7214 = vmatpush1.msra.mxu0 0.0
        %7215 = vmatprep.subr.mxu0 0.0
        %7216 = vmatpush1.msra.mxu0 0.0
        %7217 = vmatprep.subr.mxu0 0.0
        %7218 = vmatpush1.msra.mxu0 0.0
        %7219 = vmatprep.subr.mxu0 0.0
        %7220 = vmatpush1.msra.mxu0 0.0
        %7221 = vmatprep.mubr.f32.mxu0 0.0
        %v7222 = vand.u32 %v5883, 4294901760
        %7223 = vmatmul.mubr.f32.gmra.mrb[0].mxu0 %v7222
        %v7224 = vpop.f32.mrb[0].mxu0
        %v7225 = vadd.f32 %v7154, %v7224
        %v7226 = vpop.f32.mrb[0].mxu0
        %7227 = vdwg.mxu0
        %v7228 = vsel %vm1550, %v7225, -3.4028235e+38
        %v7229 = vmax.f32 %v6780, %v7228
        %v7232 = vunpack.c.l.s4 1966171168
        %v7233 = vunpack.c.0.s8 %v7232
        %v7234 = vlaneseq
        %v7235 = vshrl.u32 %v7234, 7
        %v7236 = vsub.s32 %v7233, %v7235
        %v7237 = vrot.slane %v7229, %v7236
        %v7238 = vcombine.high %v7237, %v7237
        %v7240 = vunpack.c.l.s4 1966171168
        %v7241 = vunpack.c.0.s8 %v7240
        %v7242 = vlaneseq
        %v7243 = vshrl.u32 %v7242, 7
        %v7244 = vsub.s32 %v7241, %v7243
        %v7245 = vrot.slane %v7237, %v7244
        %v7247 = vunpack.c.l.s4 1966171168
        %v7248 = vunpack.c.0.s8 %v7247
        %v7249 = vlaneseq
        %v7250 = vshrl.u32 %v7249, 7
        %v7251 = vsub.s32 %v7248, %v7250
        %v7252 = vrot.slane %v7238, %v7251
        %v7253 = vcombine.high %v7245, %v7245
        %v7254 = vcombine.high %v7252, %v7252
        %7259 = vst.msk [vmem:[%s138 + $0x4] sm:$0x1] %vm1582, %v7245
        %7260 = vst.msk [vmem:[%s138 + $0xc] sm:$0x1] %vm1582, %v7252
        %7261 = vst.msk [vmem:[%s138 + $0x14] sm:$0x1] %vm1582, %v7253
        %7262 = vst.msk [vmem:[%s138 + $0x1c] sm:$0x1] %vm1582, %v7254
        %v7263 = vld [vmem:[%s114 + $0xf] sm:$0x1]
        %v7264 = vld [vmem:[%s114 + $0x1f] sm:$0x1]
        %v7265 = vld [vmem:[%s114 + $0x2f] sm:$0x1]
        %v7266 = vld [vmem:[%s114 + $0x3f] sm:$0x1]
        %v7271 = vrot.slane %v7264, 7
        %v7272 = vsel %vm197, %v7271, %v7263
        %v7273 = vrot.slane %v7265, 6
        %v7274 = vsel %vm199, %v7273, %v7272
        %v7275 = vrot.slane %v7266, 5
        %v7276 = vsel %vm201, %v7275, %v7274
        %v7277 = vsel %vm203, %v7276, 0
        %7279 = vmatprep.subr.mxu0 0.0
        %7280 = vmatpush1.msra.mxu0 %v148
        %7281 = vmatprep.subr.mxu0 0.0
        %7282 = vmatpush1.msra.mxu0 %v149
        %7283 = vmatprep.subr.mxu0 0.0
        %7284 = vmatpush1.msra.mxu0 0.0
        %7285 = vmatprep.subr.mxu0 0.0
        %7286 = vmatpush1.msra.mxu0 0.0
        %7287 = vmatprep.subr.mxu0 0.0
        %7288 = vmatpush1.msra.mxu0 0.0
        %7289 = vmatprep.subr.mxu0 0.0
        %7290 = vmatpush1.msra.mxu0 0.0
        %7291 = vmatprep.subr.mxu0 0.0
        %7292 = vmatpush1.msra.mxu0 0.0
        %7293 = vmatprep.subr.mxu0 0.0
        %7294 = vmatpush1.msra.mxu0 0.0
        %7295 = vmatprep.subr.mxu0 0.0
        %7296 = vmatpush1.msra.mxu0 0.0
        %7297 = vmatprep.subr.mxu0 0.0
        %7298 = vmatpush1.msra.mxu0 0.0
        %7299 = vmatprep.subr.mxu0 0.0
        %7300 = vmatpush1.msra.mxu0 0.0
        %7301 = vmatprep.subr.mxu0 0.0
        %7302 = vmatpush1.msra.mxu0 0.0
        %7303 = vmatprep.subr.mxu0 0.0
        %7304 = vmatpush1.msra.mxu0 0.0
        %7305 = vmatprep.subr.mxu0 0.0
        %7306 = vmatpush1.msra.mxu0 0.0
        %7307 = vmatprep.subr.mxu0 0.0
        %7308 = vmatpush1.msra.mxu0 0.0
        %7309 = vmatprep.subr.mxu0 0.0
        %7310 = vmatpush1.msra.mxu0 0.0
        %7311 = vmatprep.subr.mxu0 0.0
        %7312 = vmatpush1.msra.mxu0 0.0
        %7313 = vmatprep.subr.mxu0 0.0
        %7314 = vmatpush1.msra.mxu0 0.0
        %7315 = vmatprep.subr.mxu0 0.0
        %7316 = vmatpush1.msra.mxu0 0.0
        %7317 = vmatprep.subr.mxu0 0.0
        %7318 = vmatpush1.msra.mxu0 0.0
        %7319 = vmatprep.subr.mxu0 0.0
        %7320 = vmatpush1.msra.mxu0 0.0
        %7321 = vmatprep.subr.mxu0 0.0
        %7322 = vmatpush1.msra.mxu0 0.0
        %7323 = vmatprep.subr.mxu0 0.0
        %7324 = vmatpush1.msra.mxu0 0.0
        %7325 = vmatprep.subr.mxu0 0.0
        %7326 = vmatpush1.msra.mxu0 0.0
        %7327 = vmatprep.subr.mxu0 0.0
        %7328 = vmatpush1.msra.mxu0 0.0
        %7329 = vmatprep.subr.mxu0 0.0
        %7330 = vmatpush1.msra.mxu0 0.0
        %7331 = vmatprep.subr.mxu0 0.0
        %7332 = vmatpush1.msra.mxu0 0.0
        %7333 = vmatprep.subr.mxu0 0.0
        %7334 = vmatpush1.msra.mxu0 0.0
        %7335 = vmatprep.subr.mxu0 0.0
        %7336 = vmatpush1.msra.mxu0 0.0
        %7337 = vmatprep.subr.mxu0 0.0
        %7338 = vmatpush1.msra.mxu0 0.0
        %7339 = vmatprep.subr.mxu0 0.0
        %7340 = vmatpush1.msra.mxu0 0.0
        %7341 = vmatprep.subr.mxu0 0.0
        %7342 = vmatpush1.msra.mxu0 0.0
        %7343 = vmatprep.mubr.f32.mxu0 0.0
        %v7344 = vand.u32 %v7277, 4294901760
        %v7345 = vsub.f32 %v7277, %v7344
        %v7346 = vand.u32 %v7345, 4294901760
        %v7347 = vsub.f32 %v7345, %v7346
        %v7348 = vand.u32 %v7347, 4294901760
        %7349 = vmatmul.mubr.f32.gmra.mrb[0].mxu0 %v7348
        %v7350 = vpop.f32.mrb[0].mxu0
        %v7351 = vadd.f32 0.0, %v7350
        %v7352 = vpop.f32.mrb[0].mxu0
        %7353 = vdwg.mxu0
        %7354 = vmatprep.subr.mxu0 0.0
        %v7355 = vsub.f32 %v148, %v148
        %v7356 = vand.u32 %v7355, 4294901760
        %v7357 = vsub.f32 %v7355, %v7356
        %v7358 = vand.u32 %v7357, 4294901760
        %7359 = vmatpush1.msra.mxu0 %v7358
        %7360 = vmatprep.subr.mxu0 0.0
        %v7361 = vsub.f32 %v149, %v149
        %v7362 = vand.u32 %v7361, 4294901760
        %v7363 = vsub.f32 %v7361, %v7362
        %v7364 = vand.u32 %v7363, 4294901760
        %7365 = vmatpush1.msra.mxu0 %v7364
        %7366 = vmatprep.subr.mxu0 0.0
        %7367 = vmatpush1.msra.mxu0 0.0
        %7368 = vmatprep.subr.mxu0 0.0
        %7369 = vmatpush1.msra.mxu0 0.0
        %7370 = vmatprep.subr.mxu0 0.0
        %7371 = vmatpush1.msra.mxu0 0.0
        %7372 = vmatprep.subr.mxu0 0.0
        %7373 = vmatpush1.msra.mxu0 0.0
        %7374 = vmatprep.subr.mxu0 0.0
        %7375 = vmatpush1.msra.mxu0 0.0
        %7376 = vmatprep.subr.mxu0 0.0
        %7377 = vmatpush1.msra.mxu0 0.0
        %7378 = vmatprep.subr.mxu0 0.0
        %7379 = vmatpush1.msra.mxu0 0.0
        %7380 = vmatprep.subr.mxu0 0.0
        %7381 = vmatpush1.msra.mxu0 0.0
        %7382 = vmatprep.subr.mxu0 0.0
        %7383 = vmatpush1.msra.mxu0 0.0
        %7384 = vmatprep.subr.mxu0 0.0
        %7385 = vmatpush1.msra.mxu0 0.0
        %7386 = vmatprep.subr.mxu0 0.0
        %7387 = vmatpush1.msra.mxu0 0.0
        %7388 = vmatprep.subr.mxu0 0.0
        %7389 = vmatpush1.msra.mxu0 0.0
        %7390 = vmatprep.subr.mxu0 0.0
        %7391 = vmatpush1.msra.mxu0 0.0
        %7392 = vmatprep.subr.mxu0 0.0
        %7393 = vmatpush1.msra.mxu0 0.0
        %7394 = vmatprep.subr.mxu0 0.0
        %7395 = vmatpush1.msra.mxu0 0.0
        %7396 = vmatprep.subr.mxu0 0.0
        %7397 = vmatpush1.msra.mxu0 0.0
        %7398 = vmatprep.subr.mxu0 0.0
        %7399 = vmatpush1.msra.mxu0 0.0
        %7400 = vmatprep.subr.mxu0 0.0
        %7401 = vmatpush1.msra.mxu0 0.0
        %7402 = vmatprep.subr.mxu0 0.0
        %7403 = vmatpush1.msra.mxu0 0.0
        %7404 = vmatprep.subr.mxu0 0.0
        %7405 = vmatpush1.msra.mxu0 0.0
        %7406 = vmatprep.subr.mxu0 0.0
        %7407 = vmatpush1.msra.mxu0 0.0
        %7408 = vmatprep.subr.mxu0 0.0
        %7409 = vmatpush1.msra.mxu0 0.0
        %7410 = vmatprep.subr.mxu0 0.0
        %7411 = vmatpush1.msra.mxu0 0.0
        %7412 = vmatprep.subr.mxu0 0.0
        %7413 = vmatpush1.msra.mxu0 0.0
        %7414 = vmatprep.subr.mxu0 0.0
        %7415 = vmatpush1.msra.mxu0 0.0
        %7416 = vmatprep.subr.mxu0 0.0
        %7417 = vmatpush1.msra.mxu0 0.0
        %7418 = vmatprep.subr.mxu0 0.0
        %7419 = vmatpush1.msra.mxu0 0.0
        %7420 = vmatprep.subr.mxu0 0.0
        %7421 = vmatpush1.msra.mxu0 0.0
        %7422 = vmatprep.subr.mxu0 0.0
        %7423 = vmatpush1.msra.mxu0 0.0
        %7424 = vmatprep.subr.mxu0 0.0
        %7425 = vmatpush1.msra.mxu0 0.0
        %7426 = vmatprep.mubr.f32.mxu0 0.0
        %v7427 = vand.u32 %v7277, 4294901760
        %7428 = vmatmul.mubr.f32.gmra.mrb[0].mxu0 %v7427
        %v7429 = vpop.f32.mrb[0].mxu0
        %v7430 = vadd.f32 %v7351, %v7429
        %v7431 = vpop.f32.mrb[0].mxu0
        %7432 = vdwg.mxu0
        %7433 = vmatprep.subr.mxu0 0.0
        %v7434 = vsub.f32 %v148, %v148
        %7435 = vmatpush1.msra.mxu0 %v7434
        %7436 = vmatprep.subr.mxu0 0.0
        %v7437 = vsub.f32 %v149, %v149
        %7438 = vmatpush1.msra.mxu0 %v7437
        %7439 = vmatprep.subr.mxu0 0.0
        %7440 = vmatpush1.msra.mxu0 0.0
        %7441 = vmatprep.subr.mxu0 0.0
        %7442 = vmatpush1.msra.mxu0 0.0
        %7443 = vmatprep.subr.mxu0 0.0
        %7444 = vmatpush1.msra.mxu0 0.0
        %7445 = vmatprep.subr.mxu0 0.0
        %7446 = vmatpush1.msra.mxu0 0.0
        %7447 = vmatprep.subr.mxu0 0.0
        %7448 = vmatpush1.msra.mxu0 0.0
        %7449 = vmatprep.subr.mxu0 0.0
        %7450 = vmatpush1.msra.mxu0 0.0
        %7451 = vmatprep.subr.mxu0 0.0
        %7452 = vmatpush1.msra.mxu0 0.0
        %7453 = vmatprep.subr.mxu0 0.0
        %7454 = vmatpush1.msra.mxu0 0.0
        %7455 = vmatprep.subr.mxu0 0.0
        %7456 = vmatpush1.msra.mxu0 0.0
        %7457 = vmatprep.subr.mxu0 0.0
        %7458 = vmatpush1.msra.mxu0 0.0
        %7459 = vmatprep.subr.mxu0 0.0
        %7460 = vmatpush1.msra.mxu0 0.0
        %7461 = vmatprep.subr.mxu0 0.0
        %7462 = vmatpush1.msra.mxu0 0.0
        %7463 = vmatprep.subr.mxu0 0.0
        %7464 = vmatpush1.msra.mxu0 0.0
        %7465 = vmatprep.subr.mxu0 0.0
        %7466 = vmatpush1.msra.mxu0 0.0
        %7467 = vmatprep.subr.mxu0 0.0
        %7468 = vmatpush1.msra.mxu0 0.0
        %7469 = vmatprep.subr.mxu0 0.0
        %7470 = vmatpush1.msra.mxu0 0.0
        %7471 = vmatprep.subr.mxu0 0.0
        %7472 = vmatpush1.msra.mxu0 0.0
        %7473 = vmatprep.subr.mxu0 0.0
        %7474 = vmatpush1.msra.mxu0 0.0
        %7475 = vmatprep.subr.mxu0 0.0
        %7476 = vmatpush1.msra.mxu0 0.0
        %7477 = vmatprep.subr.mxu0 0.0
        %7478 = vmatpush1.msra.mxu0 0.0
        %7479 = vmatprep.subr.mxu0 0.0
        %7480 = vmatpush1.msra.mxu0 0.0
        %7481 = vmatprep.subr.mxu0 0.0
        %7482 = vmatpush1.msra.mxu0 0.0
        %7483 = vmatprep.subr.mxu0 0.0
        %7484 = vmatpush1.msra.mxu0 0.0
        %7485 = vmatprep.subr.mxu0 0.0
        %7486 = vmatpush1.msra.mxu0 0.0
        %7487 = vmatprep.subr.mxu0 0.0
        %7488 = vmatpush1.msra.mxu0 0.0
        %7489 = vmatprep.subr.mxu0 0.0
        %7490 = vmatpush1.msra.mxu0 0.0
        %7491 = vmatprep.subr.mxu0 0.0
        %7492 = vmatpush1.msra.mxu0 0.0
        %7493 = vmatprep.subr.mxu0 0.0
        %7494 = vmatpush1.msra.mxu0 0.0
        %7495 = vmatprep.subr.mxu0 0.0
        %7496 = vmatpush1.msra.mxu0 0.0
        %7497 = vmatprep.subr.mxu0 0.0
        %7498 = vmatpush1.msra.mxu0 0.0
        %7499 = vmatprep.mubr.f32.mxu0 0.0
        %v7500 = vand.u32 %v7277, 4294901760
        %v7501 = vsub.f32 %v7277, %v7500
        %7502 = vmatmul.mubr.f32.gmra.mrb[0].mxu0 %v7501
        %v7503 = vpop.f32.mrb[0].mxu0
        %v7504 = vadd.f32 %v7430, %v7503
        %v7505 = vpop.f32.mrb[0].mxu0
        %7506 = vdwg.mxu0
        %7507 = vmatprep.subr.mxu0 0.0
        %7508 = vmatpush1.msra.mxu0 %v148
        %7509 = vmatprep.subr.mxu0 0.0
        %7510 = vmatpush1.msra.mxu0 %v149
        %7511 = vmatprep.subr.mxu0 0.0
        %7512 = vmatpush1.msra.mxu0 0.0
        %7513 = vmatprep.subr.mxu0 0.0
        %7514 = vmatpush1.msra.mxu0 0.0
        %7515 = vmatprep.subr.mxu0 0.0
        %7516 = vmatpush1.msra.mxu0 0.0
        %7517 = vmatprep.subr.mxu0 0.0
        %7518 = vmatpush1.msra.mxu0 0.0
        %7519 = vmatprep.subr.mxu0 0.0
        %7520 = vmatpush1.msra.mxu0 0.0
        %7521 = vmatprep.subr.mxu0 0.0
        %7522 = vmatpush1.msra.mxu0 0.0
        %7523 = vmatprep.subr.mxu0 0.0
        %7524 = vmatpush1.msra.mxu0 0.0
        %7525 = vmatprep.subr.mxu0 0.0
        %7526 = vmatpush1.msra.mxu0 0.0
        %7527 = vmatprep.subr.mxu0 0.0
        %7528 = vmatpush1.msra.mxu0 0.0
        %7529 = vmatprep.subr.mxu0 0.0
        %7530 = vmatpush1.msra.mxu0 0.0
        %7531 = vmatprep.subr.mxu0 0.0
        %7532 = vmatpush1.msra.mxu0 0.0
        %7533 = vmatprep.subr.mxu0 0.0
        %7534 = vmatpush1.msra.mxu0 0.0
        %7535 = vmatprep.subr.mxu0 0.0
        %7536 = vmatpush1.msra.mxu0 0.0
        %7537 = vmatprep.subr.mxu0 0.0
        %7538 = vmatpush1.msra.mxu0 0.0
        %7539 = vmatprep.subr.mxu0 0.0
        %7540 = vmatpush1.msra.mxu0 0.0
        %7541 = vmatprep.subr.mxu0 0.0
        %7542 = vmatpush1.msra.mxu0 0.0
        %7543 = vmatprep.subr.mxu0 0.0
        %7544 = vmatpush1.msra.mxu0 0.0
        %7545 = vmatprep.subr.mxu0 0.0
        %7546 = vmatpush1.msra.mxu0 0.0
        %7547 = vmatprep.subr.mxu0 0.0
        %7548 = vmatpush1.msra.mxu0 0.0
        %7549 = vmatprep.subr.mxu0 0.0
        %7550 = vmatpush1.msra.mxu0 0.0
        %7551 = vmatprep.subr.mxu0 0.0
        %7552 = vmatpush1.msra.mxu0 0.0
        %7553 = vmatprep.subr.mxu0 0.0
        %7554 = vmatpush1.msra.mxu0 0.0
        %7555 = vmatprep.subr.mxu0 0.0
        %7556 = vmatpush1.msra.mxu0 0.0
        %7557 = vmatprep.subr.mxu0 0.0
        %7558 = vmatpush1.msra.mxu0 0.0
        %7559 = vmatprep.subr.mxu0 0.0
        %7560 = vmatpush1.msra.mxu0 0.0
        %7561 = vmatprep.subr.mxu0 0.0
        %7562 = vmatpush1.msra.mxu0 0.0
        %7563 = vmatprep.subr.mxu0 0.0
        %7564 = vmatpush1.msra.mxu0 0.0
        %7565 = vmatprep.subr.mxu0 0.0
        %7566 = vmatpush1.msra.mxu0 0.0
        %7567 = vmatprep.subr.mxu0 0.0
        %7568 = vmatpush1.msra.mxu0 0.0
        %7569 = vmatprep.subr.mxu0 0.0
        %7570 = vmatpush1.msra.mxu0 0.0
        %7571 = vmatprep.mubr.f32.mxu0 0.0
        %v7572 = vand.u32 %v7277, 4294901760
        %v7573 = vsub.f32 %v7277, %v7572
        %v7574 = vand.u32 %v7573, 4294901760
        %7575 = vmatmul.mubr.f32.gmra.mrb[0].mxu0 %v7574
        %v7576 = vpop.f32.mrb[0].mxu0
        %v7577 = vadd.f32 %v7504, %v7576
        %v7578 = vpop.f32.mrb[0].mxu0
        %7579 = vdwg.mxu0
        %7580 = vmatprep.subr.mxu0 0.0
        %v7581 = vsub.f32 %v148, %v148
        %v7582 = vand.u32 %v7581, 4294901760
        %7583 = vmatpush1.msra.mxu0 %v7582
        %7584 = vmatprep.subr.mxu0 0.0
        %v7585 = vsub.f32 %v149, %v149
        %v7586 = vand.u32 %v7585, 4294901760
        %7587 = vmatpush1.msra.mxu0 %v7586
        %7588 = vmatprep.subr.mxu0 0.0
        %7589 = vmatpush1.msra.mxu0 0.0
        %7590 = vmatprep.subr.mxu0 0.0
        %7591 = vmatpush1.msra.mxu0 0.0
        %7592 = vmatprep.subr.mxu0 0.0
        %7593 = vmatpush1.msra.mxu0 0.0
        %7594 = vmatprep.subr.mxu0 0.0
        %7595 = vmatpush1.msra.mxu0 0.0
        %7596 = vmatprep.subr.mxu0 0.0
        %7597 = vmatpush1.msra.mxu0 0.0
        %7598 = vmatprep.subr.mxu0 0.0
        %7599 = vmatpush1.msra.mxu0 0.0
        %7600 = vmatprep.subr.mxu0 0.0
        %7601 = vmatpush1.msra.mxu0 0.0
        %7602 = vmatprep.subr.mxu0 0.0
        %7603 = vmatpush1.msra.mxu0 0.0
        %7604 = vmatprep.subr.mxu0 0.0
        %7605 = vmatpush1.msra.mxu0 0.0
        %7606 = vmatprep.subr.mxu0 0.0
        %7607 = vmatpush1.msra.mxu0 0.0
        %7608 = vmatprep.subr.mxu0 0.0
        %7609 = vmatpush1.msra.mxu0 0.0
        %7610 = vmatprep.subr.mxu0 0.0
        %7611 = vmatpush1.msra.mxu0 0.0
        %7612 = vmatprep.subr.mxu0 0.0
        %7613 = vmatpush1.msra.mxu0 0.0
        %7614 = vmatprep.subr.mxu0 0.0
        %7615 = vmatpush1.msra.mxu0 0.0
        %7616 = vmatprep.subr.mxu0 0.0
        %7617 = vmatpush1.msra.mxu0 0.0
        %7618 = vmatprep.subr.mxu0 0.0
        %7619 = vmatpush1.msra.mxu0 0.0
        %7620 = vmatprep.subr.mxu0 0.0
        %7621 = vmatpush1.msra.mxu0 0.0
        %7622 = vmatprep.subr.mxu0 0.0
        %7623 = vmatpush1.msra.mxu0 0.0
        %7624 = vmatprep.subr.mxu0 0.0
        %7625 = vmatpush1.msra.mxu0 0.0
        %7626 = vmatprep.subr.mxu0 0.0
        %7627 = vmatpush1.msra.mxu0 0.0
        %7628 = vmatprep.subr.mxu0 0.0
        %7629 = vmatpush1.msra.mxu0 0.0
        %7630 = vmatprep.subr.mxu0 0.0
        %7631 = vmatpush1.msra.mxu0 0.0
        %7632 = vmatprep.subr.mxu0 0.0
        %7633 = vmatpush1.msra.mxu0 0.0
        %7634 = vmatprep.subr.mxu0 0.0
        %7635 = vmatpush1.msra.mxu0 0.0
        %7636 = vmatprep.subr.mxu0 0.0
        %7637 = vmatpush1.msra.mxu0 0.0
        %7638 = vmatprep.subr.mxu0 0.0
        %7639 = vmatpush1.msra.mxu0 0.0
        %7640 = vmatprep.subr.mxu0 0.0
        %7641 = vmatpush1.msra.mxu0 0.0
        %7642 = vmatprep.subr.mxu0 0.0
        %7643 = vmatpush1.msra.mxu0 0.0
        %7644 = vmatprep.subr.mxu0 0.0
        %7645 = vmatpush1.msra.mxu0 0.0
        %7646 = vmatprep.subr.mxu0 0.0
        %7647 = vmatpush1.msra.mxu0 0.0
        %7648 = vmatprep.mubr.f32.mxu0 0.0
        %v7649 = vand.u32 %v7277, 4294901760
        %7650 = vmatmul.mubr.f32.gmra.mrb[0].mxu0 %v7649
        %v7651 = vpop.f32.mrb[0].mxu0
        %v7652 = vadd.f32 %v7577, %v7651
        %v7653 = vpop.f32.mrb[0].mxu0
        %7654 = vdwg.mxu0
        %7655 = vmatprep.subr.mxu0 0.0
        %7656 = vmatpush1.msra.mxu0 %v148
        %7657 = vmatprep.subr.mxu0 0.0
        %7658 = vmatpush1.msra.mxu0 %v149
        %7659 = vmatprep.subr.mxu0 0.0
        %7660 = vmatpush1.msra.mxu0 0.0
        %7661 = vmatprep.subr.mxu0 0.0
        %7662 = vmatpush1.msra.mxu0 0.0
        %7663 = vmatprep.subr.mxu0 0.0
        %7664 = vmatpush1.msra.mxu0 0.0
        %7665 = vmatprep.subr.mxu0 0.0
        %7666 = vmatpush1.msra.mxu0 0.0
        %7667 = vmatprep.subr.mxu0 0.0
        %7668 = vmatpush1.msra.mxu0 0.0
        %7669 = vmatprep.subr.mxu0 0.0
        %7670 = vmatpush1.msra.mxu0 0.0
        %7671 = vmatprep.subr.mxu0 0.0
        %7672 = vmatpush1.msra.mxu0 0.0
        %7673 = vmatprep.subr.mxu0 0.0
        %7674 = vmatpush1.msra.mxu0 0.0
        %7675 = vmatprep.subr.mxu0 0.0
        %7676 = vmatpush1.msra.mxu0 0.0
        %7677 = vmatprep.subr.mxu0 0.0
        %7678 = vmatpush1.msra.mxu0 0.0
        %7679 = vmatprep.subr.mxu0 0.0
        %7680 = vmatpush1.msra.mxu0 0.0
        %7681 = vmatprep.subr.mxu0 0.0
        %7682 = vmatpush1.msra.mxu0 0.0
        %7683 = vmatprep.subr.mxu0 0.0
        %7684 = vmatpush1.msra.mxu0 0.0
        %7685 = vmatprep.subr.mxu0 0.0
        %7686 = vmatpush1.msra.mxu0 0.0
        %7687 = vmatprep.subr.mxu0 0.0
        %7688 = vmatpush1.msra.mxu0 0.0
        %7689 = vmatprep.subr.mxu0 0.0
        %7690 = vmatpush1.msra.mxu0 0.0
        %7691 = vmatprep.subr.mxu0 0.0
        %7692 = vmatpush1.msra.mxu0 0.0
        %7693 = vmatprep.subr.mxu0 0.0
        %7694 = vmatpush1.msra.mxu0 0.0
        %7695 = vmatprep.subr.mxu0 0.0
        %7696 = vmatpush1.msra.mxu0 0.0
        %7697 = vmatprep.subr.mxu0 0.0
        %7698 = vmatpush1.msra.mxu0 0.0
        %7699 = vmatprep.subr.mxu0 0.0
        %7700 = vmatpush1.msra.mxu0 0.0
        %7701 = vmatprep.subr.mxu0 0.0
        %7702 = vmatpush1.msra.mxu0 0.0
        %7703 = vmatprep.subr.mxu0 0.0
        %7704 = vmatpush1.msra.mxu0 0.0
        %7705 = vmatprep.subr.mxu0 0.0
        %7706 = vmatpush1.msra.mxu0 0.0
        %7707 = vmatprep.subr.mxu0 0.0
        %7708 = vmatpush1.msra.mxu0 0.0
        %7709 = vmatprep.subr.mxu0 0.0
        %7710 = vmatpush1.msra.mxu0 0.0
        %7711 = vmatprep.subr.mxu0 0.0
        %7712 = vmatpush1.msra.mxu0 0.0
        %7713 = vmatprep.subr.mxu0 0.0
        %7714 = vmatpush1.msra.mxu0 0.0
        %7715 = vmatprep.subr.mxu0 0.0
        %7716 = vmatpush1.msra.mxu0 0.0
        %7717 = vmatprep.subr.mxu0 0.0
        %7718 = vmatpush1.msra.mxu0 0.0
        %7719 = vmatprep.mubr.f32.mxu0 0.0
        %v7720 = vand.u32 %v7277, 4294901760
        %7721 = vmatmul.mubr.f32.gmra.mrb[0].mxu0 %v7720
        %v7722 = vpop.f32.mrb[0].mxu0
        %v7723 = vadd.f32 %v7652, %v7722
        %v7724 = vpop.f32.mrb[0].mxu0
        %7725 = vdwg.mxu0
        %7726 = vmatprep.subr.mxu0 0.0
        %7727 = vmatpush1.msra.mxu0 %v153
        %7728 = vmatprep.subr.mxu0 0.0
        %7729 = vmatpush1.msra.mxu0 %v154
        %7730 = vmatprep.subr.mxu0 0.0
        %7731 = vmatpush1.msra.mxu0 0.0
        %7732 = vmatprep.subr.mxu0 0.0
        %7733 = vmatpush1.msra.mxu0 0.0
        %7734 = vmatprep.subr.mxu0 0.0
        %7735 = vmatpush1.msra.mxu0 0.0
        %7736 = vmatprep.subr.mxu0 0.0
        %7737 = vmatpush1.msra.mxu0 0.0
        %7738 = vmatprep.subr.mxu0 0.0
        %7739 = vmatpush1.msra.mxu0 0.0
        %7740 = vmatprep.subr.mxu0 0.0
        %7741 = vmatpush1.msra.mxu0 0.0
        %7742 = vmatprep.subr.mxu0 0.0
        %7743 = vmatpush1.msra.mxu0 0.0
        %7744 = vmatprep.subr.mxu0 0.0
        %7745 = vmatpush1.msra.mxu0 0.0
        %7746 = vmatprep.subr.mxu0 0.0
        %7747 = vmatpush1.msra.mxu0 0.0
        %7748 = vmatprep.subr.mxu0 0.0
        %7749 = vmatpush1.msra.mxu0 0.0
        %7750 = vmatprep.subr.mxu0 0.0
        %7751 = vmatpush1.msra.mxu0 0.0
        %7752 = vmatprep.subr.mxu0 0.0
        %7753 = vmatpush1.msra.mxu0 0.0
        %7754 = vmatprep.subr.mxu0 0.0
        %7755 = vmatpush1.msra.mxu0 0.0
        %7756 = vmatprep.subr.mxu0 0.0
        %7757 = vmatpush1.msra.mxu0 0.0
        %7758 = vmatprep.subr.mxu0 0.0
        %7759 = vmatpush1.msra.mxu0 0.0
        %7760 = vmatprep.subr.mxu0 0.0
        %7761 = vmatpush1.msra.mxu0 0.0
        %7762 = vmatprep.subr.mxu0 0.0
        %7763 = vmatpush1.msra.mxu0 0.0
        %7764 = vmatprep.subr.mxu0 0.0
        %7765 = vmatpush1.msra.mxu0 0.0
        %7766 = vmatprep.subr.mxu0 0.0
        %7767 = vmatpush1.msra.mxu0 0.0
        %7768 = vmatprep.subr.mxu0 0.0
        %7769 = vmatpush1.msra.mxu0 0.0
        %7770 = vmatprep.subr.mxu0 0.0
        %7771 = vmatpush1.msra.mxu0 0.0
        %7772 = vmatprep.subr.mxu0 0.0
        %7773 = vmatpush1.msra.mxu0 0.0
        %7774 = vmatprep.subr.mxu0 0.0
        %7775 = vmatpush1.msra.mxu0 0.0
        %7776 = vmatprep.subr.mxu0 0.0
        %7777 = vmatpush1.msra.mxu0 0.0
        %7778 = vmatprep.subr.mxu0 0.0
        %7779 = vmatpush1.msra.mxu0 0.0
        %7780 = vmatprep.subr.mxu0 0.0
        %7781 = vmatpush1.msra.mxu0 0.0
        %7782 = vmatprep.subr.mxu0 0.0
        %7783 = vmatpush1.msra.mxu0 0.0
        %7784 = vmatprep.subr.mxu0 0.0
        %7785 = vmatpush1.msra.mxu0 0.0
        %7786 = vmatprep.subr.mxu0 0.0
        %7787 = vmatpush1.msra.mxu0 0.0
        %7788 = vmatprep.subr.mxu0 0.0
        %7789 = vmatpush1.msra.mxu0 0.0
        %7790 = vmatprep.mubr.f32.mxu0 0.0
        %v7791 = vand.u32 %v7277, 4294901760
        %v7792 = vsub.f32 %v7277, %v7791
        %v7793 = vand.u32 %v7792, 4294901760
        %v7794 = vsub.f32 %v7792, %v7793
        %v7795 = vand.u32 %v7794, 4294901760
        %7796 = vmatmul.mubr.f32.gmra.mrb[0].mxu0 %v7795
        %v7797 = vpop.f32.mrb[0].mxu0
        %v7798 = vadd.f32 0.0, %v7797
        %v7799 = vpop.f32.mrb[0].mxu0
        %7800 = vdwg.mxu0
        %7801 = vmatprep.subr.mxu0 0.0
        %v7802 = vsub.f32 %v153, %v153
        %v7803 = vand.u32 %v7802, 4294901760
        %v7804 = vsub.f32 %v7802, %v7803
        %v7805 = vand.u32 %v7804, 4294901760
        %7806 = vmatpush1.msra.mxu0 %v7805
        %7807 = vmatprep.subr.mxu0 0.0
        %v7808 = vsub.f32 %v154, %v154
        %v7809 = vand.u32 %v7808, 4294901760
        %v7810 = vsub.f32 %v7808, %v7809
        %v7811 = vand.u32 %v7810, 4294901760
        %7812 = vmatpush1.msra.mxu0 %v7811
        %7813 = vmatprep.subr.mxu0 0.0
        %7814 = vmatpush1.msra.mxu0 0.0
        %7815 = vmatprep.subr.mxu0 0.0
        %7816 = vmatpush1.msra.mxu0 0.0
        %7817 = vmatprep.subr.mxu0 0.0
        %7818 = vmatpush1.msra.mxu0 0.0
        %7819 = vmatprep.subr.mxu0 0.0
        %7820 = vmatpush1.msra.mxu0 0.0
        %7821 = vmatprep.subr.mxu0 0.0
        %7822 = vmatpush1.msra.mxu0 0.0
        %7823 = vmatprep.subr.mxu0 0.0
        %7824 = vmatpush1.msra.mxu0 0.0
        %7825 = vmatprep.subr.mxu0 0.0
        %7826 = vmatpush1.msra.mxu0 0.0
        %7827 = vmatprep.subr.mxu0 0.0
        %7828 = vmatpush1.msra.mxu0 0.0
        %7829 = vmatprep.subr.mxu0 0.0
        %7830 = vmatpush1.msra.mxu0 0.0
        %7831 = vmatprep.subr.mxu0 0.0
        %7832 = vmatpush1.msra.mxu0 0.0
        %7833 = vmatprep.subr.mxu0 0.0
        %7834 = vmatpush1.msra.mxu0 0.0
        %7835 = vmatprep.subr.mxu0 0.0
        %7836 = vmatpush1.msra.mxu0 0.0
        %7837 = vmatprep.subr.mxu0 0.0
        %7838 = vmatpush1.msra.mxu0 0.0
        %7839 = vmatprep.subr.mxu0 0.0
        %7840 = vmatpush1.msra.mxu0 0.0
        %7841 = vmatprep.subr.mxu0 0.0
        %7842 = vmatpush1.msra.mxu0 0.0
        %7843 = vmatprep.subr.mxu0 0.0
        %7844 = vmatpush1.msra.mxu0 0.0
        %7845 = vmatprep.subr.mxu0 0.0
        %7846 = vmatpush1.msra.mxu0 0.0
        %7847 = vmatprep.subr.mxu0 0.0
        %7848 = vmatpush1.msra.mxu0 0.0
        %7849 = vmatprep.subr.mxu0 0.0
        %7850 = vmatpush1.msra.mxu0 0.0
        %7851 = vmatprep.subr.mxu0 0.0
        %7852 = vmatpush1.msra.mxu0 0.0
        %7853 = vmatprep.subr.mxu0 0.0
        %7854 = vmatpush1.msra.mxu0 0.0
        %7855 = vmatprep.subr.mxu0 0.0
        %7856 = vmatpush1.msra.mxu0 0.0
        %7857 = vmatprep.subr.mxu0 0.0
        %7858 = vmatpush1.msra.mxu0 0.0
        %7859 = vmatprep.subr.mxu0 0.0
        %7860 = vmatpush1.msra.mxu0 0.0
        %7861 = vmatprep.subr.mxu0 0.0
        %7862 = vmatpush1.msra.mxu0 0.0
        %7863 = vmatprep.subr.mxu0 0.0
        %7864 = vmatpush1.msra.mxu0 0.0
        %7865 = vmatprep.subr.mxu0 0.0
        %7866 = vmatpush1.msra.mxu0 0.0
        %7867 = vmatprep.subr.mxu0 0.0
        %7868 = vmatpush1.msra.mxu0 0.0
        %7869 = vmatprep.subr.mxu0 0.0
        %7870 = vmatpush1.msra.mxu0 0.0
        %7871 = vmatprep.subr.mxu0 0.0
        %7872 = vmatpush1.msra.mxu0 0.0
        %7873 = vmatprep.mubr.f32.mxu0 0.0
        %v7874 = vand.u32 %v7277, 4294901760
        %7875 = vmatmul.mubr.f32.gmra.mrb[0].mxu0 %v7874
        %v7876 = vpop.f32.mrb[0].mxu0
        %v7877 = vadd.f32 %v7798, %v7876
        %v7878 = vpop.f32.mrb[0].mxu0
        %7879 = vdwg.mxu0
        %7880 = vmatprep.subr.mxu0 0.0
        %v7881 = vsub.f32 %v153, %v153
        %7882 = vmatpush1.msra.mxu0 %v7881
        %7883 = vmatprep.subr.mxu0 0.0
        %v7884 = vsub.f32 %v154, %v154
        %7885 = vmatpush1.msra.mxu0 %v7884
        %7886 = vmatprep.subr.mxu0 0.0
        %7887 = vmatpush1.msra.mxu0 0.0
        %7888 = vmatprep.subr.mxu0 0.0
        %7889 = vmatpush1.msra.mxu0 0.0
        %7890 = vmatprep.subr.mxu0 0.0
        %7891 = vmatpush1.msra.mxu0 0.0
        %7892 = vmatprep.subr.mxu0 0.0
        %7893 = vmatpush1.msra.mxu0 0.0
        %7894 = vmatprep.subr.mxu0 0.0
        %7895 = vmatpush1.msra.mxu0 0.0
        %7896 = vmatprep.subr.mxu0 0.0
        %7897 = vmatpush1.msra.mxu0 0.0
        %7898 = vmatprep.subr.mxu0 0.0
        %7899 = vmatpush1.msra.mxu0 0.0
        %7900 = vmatprep.subr.mxu0 0.0
        %7901 = vmatpush1.msra.mxu0 0.0
        %7902 = vmatprep.subr.mxu0 0.0
        %7903 = vmatpush1.msra.mxu0 0.0
        %7904 = vmatprep.subr.mxu0 0.0
        %7905 = vmatpush1.msra.mxu0 0.0
        %7906 = vmatprep.subr.mxu0 0.0
        %7907 = vmatpush1.msra.mxu0 0.0
        %7908 = vmatprep.subr.mxu0 0.0
        %7909 = vmatpush1.msra.mxu0 0.0
        %7910 = vmatprep.subr.mxu0 0.0
        %7911 = vmatpush1.msra.mxu0 0.0
        %7912 = vmatprep.subr.mxu0 0.0
        %7913 = vmatpush1.msra.mxu0 0.0
        %7914 = vmatprep.subr.mxu0 0.0
        %7915 = vmatpush1.msra.mxu0 0.0
        %7916 = vmatprep.subr.mxu0 0.0
        %7917 = vmatpush1.msra.mxu0 0.0
        %7918 = vmatprep.subr.mxu0 0.0
        %7919 = vmatpush1.msra.mxu0 0.0
        %7920 = vmatprep.subr.mxu0 0.0
        %7921 = vmatpush1.msra.mxu0 0.0
        %7922 = vmatprep.subr.mxu0 0.0
        %7923 = vmatpush1.msra.mxu0 0.0
        %7924 = vmatprep.subr.mxu0 0.0
        %7925 = vmatpush1.msra.mxu0 0.0
        %7926 = vmatprep.subr.mxu0 0.0
        %7927 = vmatpush1.msra.mxu0 0.0
        %7928 = vmatprep.subr.mxu0 0.0
        %7929 = vmatpush1.msra.mxu0 0.0
        %7930 = vmatprep.subr.mxu0 0.0
        %7931 = vmatpush1.msra.mxu0 0.0
        %7932 = vmatprep.subr.mxu0 0.0
        %7933 = vmatpush1.msra.mxu0 0.0
        %7934 = vmatprep.subr.mxu0 0.0
        %7935 = vmatpush1.msra.mxu0 0.0
        %7936 = vmatprep.subr.mxu0 0.0
        %7937 = vmatpush1.msra.mxu0 0.0
        %7938 = vmatprep.subr.mxu0 0.0
        %7939 = vmatpush1.msra.mxu0 0.0
        %7940 = vmatprep.subr.mxu0 0.0
        %7941 = vmatpush1.msra.mxu0 0.0
        %7942 = vmatprep.subr.mxu0 0.0
        %7943 = vmatpush1.msra.mxu0 0.0
        %7944 = vmatprep.subr.mxu0 0.0
        %7945 = vmatpush1.msra.mxu0 0.0
        %7946 = vmatprep.mubr.f32.mxu0 0.0
        %v7947 = vand.u32 %v7277, 4294901760
        %v7948 = vsub.f32 %v7277, %v7947
        %7949 = vmatmul.mubr.f32.gmra.mrb[0].mxu0 %v7948
        %v7950 = vpop.f32.mrb[0].mxu0
        %v7951 = vadd.f32 %v7877, %v7950
        %v7952 = vpop.f32.mrb[0].mxu0
        %7953 = vdwg.mxu0
        %7954 = vmatprep.subr.mxu0 0.0
        %7955 = vmatpush1.msra.mxu0 %v153
        %7956 = vmatprep.subr.mxu0 0.0
        %7957 = vmatpush1.msra.mxu0 %v154
        %7958 = vmatprep.subr.mxu0 0.0
        %7959 = vmatpush1.msra.mxu0 0.0
        %7960 = vmatprep.subr.mxu0 0.0
        %7961 = vmatpush1.msra.mxu0 0.0
        %7962 = vmatprep.subr.mxu0 0.0
        %7963 = vmatpush1.msra.mxu0 0.0
        %7964 = vmatprep.subr.mxu0 0.0
        %7965 = vmatpush1.msra.mxu0 0.0
        %7966 = vmatprep.subr.mxu0 0.0
        %7967 = vmatpush1.msra.mxu0 0.0
        %7968 = vmatprep.subr.mxu0 0.0
        %7969 = vmatpush1.msra.mxu0 0.0
        %7970 = vmatprep.subr.mxu0 0.0
        %7971 = vmatpush1.msra.mxu0 0.0
        %7972 = vmatprep.subr.mxu0 0.0
        %7973 = vmatpush1.msra.mxu0 0.0
        %7974 = vmatprep.subr.mxu0 0.0
        %7975 = vmatpush1.msra.mxu0 0.0
        %7976 = vmatprep.subr.mxu0 0.0
        %7977 = vmatpush1.msra.mxu0 0.0
        %7978 = vmatprep.subr.mxu0 0.0
        %7979 = vmatpush1.msra.mxu0 0.0
        %7980 = vmatprep.subr.mxu0 0.0
        %7981 = vmatpush1.msra.mxu0 0.0
        %7982 = vmatprep.subr.mxu0 0.0
        %7983 = vmatpush1.msra.mxu0 0.0
        %7984 = vmatprep.subr.mxu0 0.0
        %7985 = vmatpush1.msra.mxu0 0.0
        %7986 = vmatprep.subr.mxu0 0.0
        %7987 = vmatpush1.msra.mxu0 0.0
        %7988 = vmatprep.subr.mxu0 0.0
        %7989 = vmatpush1.msra.mxu0 0.0
        %7990 = vmatprep.subr.mxu0 0.0
        %7991 = vmatpush1.msra.mxu0 0.0
        %7992 = vmatprep.subr.mxu0 0.0
        %7993 = vmatpush1.msra.mxu0 0.0
        %7994 = vmatprep.subr.mxu0 0.0
        %7995 = vmatpush1.msra.mxu0 0.0
        %7996 = vmatprep.subr.mxu0 0.0
        %7997 = vmatpush1.msra.mxu0 0.0
        %7998 = vmatprep.subr.mxu0 0.0
        %7999 = vmatpush1.msra.mxu0 0.0
        %8000 = vmatprep.subr.mxu0 0.0
        %8001 = vmatpush1.msra.mxu0 0.0
        %8002 = vmatprep.subr.mxu0 0.0
        %8003 = vmatpush1.msra.mxu0 0.0
        %8004 = vmatprep.subr.mxu0 0.0
        %8005 = vmatpush1.msra.mxu0 0.0
        %8006 = vmatprep.subr.mxu0 0.0
        %8007 = vmatpush1.msra.mxu0 0.0
        %8008 = vmatprep.subr.mxu0 0.0
        %8009 = vmatpush1.msra.mxu0 0.0
        %8010 = vmatprep.subr.mxu0 0.0
        %8011 = vmatpush1.msra.mxu0 0.0
        %8012 = vmatprep.subr.mxu0 0.0
        %8013 = vmatpush1.msra.mxu0 0.0
        %8014 = vmatprep.subr.mxu0 0.0
        %8015 = vmatpush1.msra.mxu0 0.0
        %8016 = vmatprep.subr.mxu0 0.0
        %8017 = vmatpush1.msra.mxu0 0.0
        %8018 = vmatprep.mubr.f32.mxu0 0.0
        %v8019 = vand.u32 %v7277, 4294901760
        %v8020 = vsub.f32 %v7277, %v8019
        %v8021 = vand.u32 %v8020, 4294901760
        %8022 = vmatmul.mubr.f32.gmra.mrb[0].mxu0 %v8021
        %v8023 = vpop.f32.mrb[0].mxu0
        %v8024 = vadd.f32 %v7951, %v8023
        %v8025 = vpop.f32.mrb[0].mxu0
        %8026 = vdwg.mxu0
        %8027 = vmatprep.subr.mxu0 0.0
        %v8028 = vsub.f32 %v153, %v153
        %v8029 = vand.u32 %v8028, 4294901760
        %8030 = vmatpush1.msra.mxu0 %v8029
        %8031 = vmatprep.subr.mxu0 0.0
        %v8032 = vsub.f32 %v154, %v154
        %v8033 = vand.u32 %v8032, 4294901760
        %8034 = vmatpush1.msra.mxu0 %v8033
        %8035 = vmatprep.subr.mxu0 0.0
        %8036 = vmatpush1.msra.mxu0 0.0
        %8037 = vmatprep.subr.mxu0 0.0
        %8038 = vmatpush1.msra.mxu0 0.0
        %8039 = vmatprep.subr.mxu0 0.0
        %8040 = vmatpush1.msra.mxu0 0.0
        %8041 = vmatprep.subr.mxu0 0.0
        %8042 = vmatpush1.msra.mxu0 0.0
        %8043 = vmatprep.subr.mxu0 0.0
        %8044 = vmatpush1.msra.mxu0 0.0
        %8045 = vmatprep.subr.mxu0 0.0
        %8046 = vmatpush1.msra.mxu0 0.0
        %8047 = vmatprep.subr.mxu0 0.0
        %8048 = vmatpush1.msra.mxu0 0.0
        %8049 = vmatprep.subr.mxu0 0.0
        %8050 = vmatpush1.msra.mxu0 0.0
        %8051 = vmatprep.subr.mxu0 0.0
        %8052 = vmatpush1.msra.mxu0 0.0
        %8053 = vmatprep.subr.mxu0 0.0
        %8054 = vmatpush1.msra.mxu0 0.0
        %8055 = vmatprep.subr.mxu0 0.0
        %8056 = vmatpush1.msra.mxu0 0.0
        %8057 = vmatprep.subr.mxu0 0.0
        %8058 = vmatpush1.msra.mxu0 0.0
        %8059 = vmatprep.subr.mxu0 0.0
        %8060 = vmatpush1.msra.mxu0 0.0
        %8061 = vmatprep.subr.mxu0 0.0
        %8062 = vmatpush1.msra.mxu0 0.0
        %8063 = vmatprep.subr.mxu0 0.0
        %8064 = vmatpush1.msra.mxu0 0.0
        %8065 = vmatprep.subr.mxu0 0.0
        %8066 = vmatpush1.msra.mxu0 0.0
        %8067 = vmatprep.subr.mxu0 0.0
        %8068 = vmatpush1.msra.mxu0 0.0
        %8069 = vmatprep.subr.mxu0 0.0
        %8070 = vmatpush1.msra.mxu0 0.0
        %8071 = vmatprep.subr.mxu0 0.0
        %8072 = vmatpush1.msra.mxu0 0.0
        %8073 = vmatprep.subr.mxu0 0.0
        %8074 = vmatpush1.msra.mxu0 0.0
        %8075 = vmatprep.subr.mxu0 0.0
        %8076 = vmatpush1.msra.mxu0 0.0
        %8077 = vmatprep.subr.mxu0 0.0
        %8078 = vmatpush1.msra.mxu0 0.0
        %8079 = vmatprep.subr.mxu0 0.0
        %8080 = vmatpush1.msra.mxu0 0.0
        %8081 = vmatprep.subr.mxu0 0.0
        %8082 = vmatpush1.msra.mxu0 0.0
        %8083 = vmatprep.subr.mxu0 0.0
        %8084 = vmatpush1.msra.mxu0 0.0
        %8085 = vmatprep.subr.mxu0 0.0
        %8086 = vmatpush1.msra.mxu0 0.0
        %8087 = vmatprep.subr.mxu0 0.0
        %8088 = vmatpush1.msra.mxu0 0.0
        %8089 = vmatprep.subr.mxu0 0.0
        %8090 = vmatpush1.msra.mxu0 0.0
        %8091 = vmatprep.subr.mxu0 0.0
        %8092 = vmatpush1.msra.mxu0 0.0
        %8093 = vmatprep.subr.mxu0 0.0
        %8094 = vmatpush1.msra.mxu0 0.0
        %8095 = vmatprep.mubr.f32.mxu0 0.0
        %v8096 = vand.u32 %v7277, 4294901760
        %8097 = vmatmul.mubr.f32.gmra.mrb[0].mxu0 %v8096
        %v8098 = vpop.f32.mrb[0].mxu0
        %v8099 = vadd.f32 %v8024, %v8098
        %v8100 = vpop.f32.mrb[0].mxu0
        %8101 = vdwg.mxu0
        %8102 = vmatprep.subr.mxu0 0.0
        %8103 = vmatpush1.msra.mxu0 %v153
        %8104 = vmatprep.subr.mxu0 0.0
        %8105 = vmatpush1.msra.mxu0 %v154
        %8106 = vmatprep.subr.mxu0 0.0
        %8107 = vmatpush1.msra.mxu0 0.0
        %8108 = vmatprep.subr.mxu0 0.0
        %8109 = vmatpush1.msra.mxu0 0.0
        %8110 = vmatprep.subr.mxu0 0.0
        %8111 = vmatpush1.msra.mxu0 0.0
        %8112 = vmatprep.subr.mxu0 0.0
        %8113 = vmatpush1.msra.mxu0 0.0
        %8114 = vmatprep.subr.mxu0 0.0
        %8115 = vmatpush1.msra.mxu0 0.0
        %8116 = vmatprep.subr.mxu0 0.0
        %8117 = vmatpush1.msra.mxu0 0.0
        %8118 = vmatprep.subr.mxu0 0.0
        %8119 = vmatpush1.msra.mxu0 0.0
        %8120 = vmatprep.subr.mxu0 0.0
        %8121 = vmatpush1.msra.mxu0 0.0
        %8122 = vmatprep.subr.mxu0 0.0
        %8123 = vmatpush1.msra.mxu0 0.0
        %8124 = vmatprep.subr.mxu0 0.0
        %8125 = vmatpush1.msra.mxu0 0.0
        %8126 = vmatprep.subr.mxu0 0.0
        %8127 = vmatpush1.msra.mxu0 0.0
        %8128 = vmatprep.subr.mxu0 0.0
        %8129 = vmatpush1.msra.mxu0 0.0
        %8130 = vmatprep.subr.mxu0 0.0
        %8131 = vmatpush1.msra.mxu0 0.0
        %8132 = vmatprep.subr.mxu0 0.0
        %8133 = vmatpush1.msra.mxu0 0.0
        %8134 = vmatprep.subr.mxu0 0.0
        %8135 = vmatpush1.msra.mxu0 0.0
        %8136 = vmatprep.subr.mxu0 0.0
        %8137 = vmatpush1.msra.mxu0 0.0
        %8138 = vmatprep.subr.mxu0 0.0
        %8139 = vmatpush1.msra.mxu0 0.0
        %8140 = vmatprep.subr.mxu0 0.0
        %8141 = vmatpush1.msra.mxu0 0.0
        %8142 = vmatprep.subr.mxu0 0.0
        %8143 = vmatpush1.msra.mxu0 0.0
        %8144 = vmatprep.subr.mxu0 0.0
        %8145 = vmatpush1.msra.mxu0 0.0
        %8146 = vmatprep.subr.mxu0 0.0
        %8147 = vmatpush1.msra.mxu0 0.0
        %8148 = vmatprep.subr.mxu0 0.0
        %8149 = vmatpush1.msra.mxu0 0.0
        %8150 = vmatprep.subr.mxu0 0.0
        %8151 = vmatpush1.msra.mxu0 0.0
        %8152 = vmatprep.subr.mxu0 0.0
        %8153 = vmatpush1.msra.mxu0 0.0
        %8154 = vmatprep.subr.mxu0 0.0
        %8155 = vmatpush1.msra.mxu0 0.0
        %8156 = vmatprep.subr.mxu0 0.0
        %8157 = vmatpush1.msra.mxu0 0.0
        %8158 = vmatprep.subr.mxu0 0.0
        %8159 = vmatpush1.msra.mxu0 0.0
        %8160 = vmatprep.subr.mxu0 0.0
        %8161 = vmatpush1.msra.mxu0 0.0
        %8162 = vmatprep.subr.mxu0 0.0
        %8163 = vmatpush1.msra.mxu0 0.0
        %8164 = vmatprep.subr.mxu0 0.0
        %8165 = vmatpush1.msra.mxu0 0.0
        %8166 = vmatprep.mubr.f32.mxu0 0.0
        %v8167 = vand.u32 %v7277, 4294901760
        %8168 = vmatmul.mubr.f32.gmra.mrb[0].mxu0 %v8167
        %v8169 = vpop.f32.mrb[0].mxu0
        %v8170 = vadd.f32 %v8099, %v8169
        %v8171 = vpop.f32.mrb[0].mxu0
        %8172 = vdwg.mxu0
        %v8173 = vsel %vm1100, %v8170, -3.4028235e+38
        %v8174 = vmax.f32 %v7723, %v8173
        %8175 = vmatprep.subr.mxu0 0.0
        %8176 = vmatpush1.msra.mxu0 %v158
        %8177 = vmatprep.subr.mxu0 0.0
        %8178 = vmatpush1.msra.mxu0 %v159
        %8179 = vmatprep.subr.mxu0 0.0
        %8180 = vmatpush1.msra.mxu0 0.0
        %8181 = vmatprep.subr.mxu0 0.0
        %8182 = vmatpush1.msra.mxu0 0.0
        %8183 = vmatprep.subr.mxu0 0.0
        %8184 = vmatpush1.msra.mxu0 0.0
        %8185 = vmatprep.subr.mxu0 0.0
        %8186 = vmatpush1.msra.mxu0 0.0
        %8187 = vmatprep.subr.mxu0 0.0
        %8188 = vmatpush1.msra.mxu0 0.0
        %8189 = vmatprep.subr.mxu0 0.0
        %8190 = vmatpush1.msra.mxu0 0.0
        %8191 = vmatprep.subr.mxu0 0.0
        %8192 = vmatpush1.msra.mxu0 0.0
        %8193 = vmatprep.subr.mxu0 0.0
        %8194 = vmatpush1.msra.mxu0 0.0
        %8195 = vmatprep.subr.mxu0 0.0
        %8196 = vmatpush1.msra.mxu0 0.0
        %8197 = vmatprep.subr.mxu0 0.0
        %8198 = vmatpush1.msra.mxu0 0.0
        %8199 = vmatprep.subr.mxu0 0.0
        %8200 = vmatpush1.msra.mxu0 0.0
        %8201 = vmatprep.subr.mxu0 0.0
        %8202 = vmatpush1.msra.mxu0 0.0
        %8203 = vmatprep.subr.mxu0 0.0
        %8204 = vmatpush1.msra.mxu0 0.0
        %8205 = vmatprep.subr.mxu0 0.0
        %8206 = vmatpush1.msra.mxu0 0.0
        %8207 = vmatprep.subr.mxu0 0.0
        %8208 = vmatpush1.msra.mxu0 0.0
        %8209 = vmatprep.subr.mxu0 0.0
        %8210 = vmatpush1.msra.mxu0 0.0
        %8211 = vmatprep.subr.mxu0 0.0
        %8212 = vmatpush1.msra.mxu0 0.0
        %8213 = vmatprep.subr.mxu0 0.0
        %8214 = vmatpush1.msra.mxu0 0.0
        %8215 = vmatprep.subr.mxu0 0.0
        %8216 = vmatpush1.msra.mxu0 0.0
        %8217 = vmatprep.subr.mxu0 0.0
        %8218 = vmatpush1.msra.mxu0 0.0
        %8219 = vmatprep.subr.mxu0 0.0
        %8220 = vmatpush1.msra.mxu0 0.0
        %8221 = vmatprep.subr.mxu0 0.0
        %8222 = vmatpush1.msra.mxu0 0.0
        %8223 = vmatprep.subr.mxu0 0.0
        %8224 = vmatpush1.msra.mxu0 0.0
        %8225 = vmatprep.subr.mxu0 0.0
        %8226 = vmatpush1.msra.mxu0 0.0
        %8227 = vmatprep.subr.mxu0 0.0
        %8228 = vmatpush1.msra.mxu0 0.0
        %8229 = vmatprep.subr.mxu0 0.0
        %8230 = vmatpush1.msra.mxu0 0.0
        %8231 = vmatprep.subr.mxu0 0.0
        %8232 = vmatpush1.msra.mxu0 0.0
        %8233 = vmatprep.subr.mxu0 0.0
        %8234 = vmatpush1.msra.mxu0 0.0
        %8235 = vmatprep.subr.mxu0 0.0
        %8236 = vmatpush1.msra.mxu0 0.0
        %8237 = vmatprep.subr.mxu0 0.0
        %8238 = vmatpush1.msra.mxu0 0.0
        %8239 = vmatprep.mubr.f32.mxu0 0.0
        %v8240 = vand.u32 %v7277, 4294901760
        %v8241 = vsub.f32 %v7277, %v8240
        %v8242 = vand.u32 %v8241, 4294901760
        %v8243 = vsub.f32 %v8241, %v8242
        %v8244 = vand.u32 %v8243, 4294901760
        %8245 = vmatmul.mubr.f32.gmra.mrb[0].mxu0 %v8244
        %v8246 = vpop.f32.mrb[0].mxu0
        %v8247 = vadd.f32 0.0, %v8246
        %v8248 = vpop.f32.mrb[0].mxu0
        %8249 = vdwg.mxu0
        %8250 = vmatprep.subr.mxu0 0.0
        %v8251 = vsub.f32 %v158, %v158
        %v8252 = vand.u32 %v8251, 4294901760
        %v8253 = vsub.f32 %v8251, %v8252
        %v8254 = vand.u32 %v8253, 4294901760
        %8255 = vmatpush1.msra.mxu0 %v8254
        %8256 = vmatprep.subr.mxu0 0.0
        %v8257 = vsub.f32 %v159, %v159
        %v8258 = vand.u32 %v8257, 4294901760
        %v8259 = vsub.f32 %v8257, %v8258
        %v8260 = vand.u32 %v8259, 4294901760
        %8261 = vmatpush1.msra.mxu0 %v8260
        %8262 = vmatprep.subr.mxu0 0.0
        %8263 = vmatpush1.msra.mxu0 0.0
        %8264 = vmatprep.subr.mxu0 0.0
        %8265 = vmatpush1.msra.mxu0 0.0
        %8266 = vmatprep.subr.mxu0 0.0
        %8267 = vmatpush1.msra.mxu0 0.0
        %8268 = vmatprep.subr.mxu0 0.0
        %8269 = vmatpush1.msra.mxu0 0.0
        %8270 = vmatprep.subr.mxu0 0.0
        %8271 = vmatpush1.msra.mxu0 0.0
        %8272 = vmatprep.subr.mxu0 0.0
        %8273 = vmatpush1.msra.mxu0 0.0
        %8274 = vmatprep.subr.mxu0 0.0
        %8275 = vmatpush1.msra.mxu0 0.0
        %8276 = vmatprep.subr.mxu0 0.0
        %8277 = vmatpush1.msra.mxu0 0.0
        %8278 = vmatprep.subr.mxu0 0.0
        %8279 = vmatpush1.msra.mxu0 0.0
        %8280 = vmatprep.subr.mxu0 0.0
        %8281 = vmatpush1.msra.mxu0 0.0
        %8282 = vmatprep.subr.mxu0 0.0
        %8283 = vmatpush1.msra.mxu0 0.0
        %8284 = vmatprep.subr.mxu0 0.0
        %8285 = vmatpush1.msra.mxu0 0.0
        %8286 = vmatprep.subr.mxu0 0.0
        %8287 = vmatpush1.msra.mxu0 0.0
        %8288 = vmatprep.subr.mxu0 0.0
        %8289 = vmatpush1.msra.mxu0 0.0
        %8290 = vmatprep.subr.mxu0 0.0
        %8291 = vmatpush1.msra.mxu0 0.0
        %8292 = vmatprep.subr.mxu0 0.0
        %8293 = vmatpush1.msra.mxu0 0.0
        %8294 = vmatprep.subr.mxu0 0.0
        %8295 = vmatpush1.msra.mxu0 0.0
        %8296 = vmatprep.subr.mxu0 0.0
        %8297 = vmatpush1.msra.mxu0 0.0
        %8298 = vmatprep.subr.mxu0 0.0
        %8299 = vmatpush1.msra.mxu0 0.0
        %8300 = vmatprep.subr.mxu0 0.0
        %8301 = vmatpush1.msra.mxu0 0.0
        %8302 = vmatprep.subr.mxu0 0.0
        %8303 = vmatpush1.msra.mxu0 0.0
        %8304 = vmatprep.subr.mxu0 0.0
        %8305 = vmatpush1.msra.mxu0 0.0
        %8306 = vmatprep.subr.mxu0 0.0
        %8307 = vmatpush1.msra.mxu0 0.0
        %8308 = vmatprep.subr.mxu0 0.0
        %8309 = vmatpush1.msra.mxu0 0.0
        %8310 = vmatprep.subr.mxu0 0.0
        %8311 = vmatpush1.msra.mxu0 0.0
        %8312 = vmatprep.subr.mxu0 0.0
        %8313 = vmatpush1.msra.mxu0 0.0
        %8314 = vmatprep.subr.mxu0 0.0
        %8315 = vmatpush1.msra.mxu0 0.0
        %8316 = vmatprep.subr.mxu0 0.0
        %8317 = vmatpush1.msra.mxu0 0.0
        %8318 = vmatprep.subr.mxu0 0.0
        %8319 = vmatpush1.msra.mxu0 0.0
        %8320 = vmatprep.subr.mxu0 0.0
        %8321 = vmatpush1.msra.mxu0 0.0
        %8322 = vmatprep.mubr.f32.mxu0 0.0
        %v8323 = vand.u32 %v7277, 4294901760
        %8324 = vmatmul.mubr.f32.gmra.mrb[0].mxu0 %v8323
        %v8325 = vpop.f32.mrb[0].mxu0
        %v8326 = vadd.f32 %v8247, %v8325
        %v8327 = vpop.f32.mrb[0].mxu0
        %8328 = vdwg.mxu0
        %8329 = vmatprep.subr.mxu0 0.0
        %v8330 = vsub.f32 %v158, %v158
        %8331 = vmatpush1.msra.mxu0 %v8330
        %8332 = vmatprep.subr.mxu0 0.0
        %v8333 = vsub.f32 %v159, %v159
        %8334 = vmatpush1.msra.mxu0 %v8333
        %8335 = vmatprep.subr.mxu0 0.0
        %8336 = vmatpush1.msra.mxu0 0.0
        %8337 = vmatprep.subr.mxu0 0.0
        %8338 = vmatpush1.msra.mxu0 0.0
        %8339 = vmatprep.subr.mxu0 0.0
        %8340 = vmatpush1.msra.mxu0 0.0
        %8341 = vmatprep.subr.mxu0 0.0
        %8342 = vmatpush1.msra.mxu0 0.0
        %8343 = vmatprep.subr.mxu0 0.0
        %8344 = vmatpush1.msra.mxu0 0.0
        %8345 = vmatprep.subr.mxu0 0.0
        %8346 = vmatpush1.msra.mxu0 0.0
        %8347 = vmatprep.subr.mxu0 0.0
        %8348 = vmatpush1.msra.mxu0 0.0
        %8349 = vmatprep.subr.mxu0 0.0
        %8350 = vmatpush1.msra.mxu0 0.0
        %8351 = vmatprep.subr.mxu0 0.0
        %8352 = vmatpush1.msra.mxu0 0.0
        %8353 = vmatprep.subr.mxu0 0.0
        %8354 = vmatpush1.msra.mxu0 0.0
        %8355 = vmatprep.subr.mxu0 0.0
        %8356 = vmatpush1.msra.mxu0 0.0
        %8357 = vmatprep.subr.mxu0 0.0
        %8358 = vmatpush1.msra.mxu0 0.0
        %8359 = vmatprep.subr.mxu0 0.0
        %8360 = vmatpush1.msra.mxu0 0.0
        %8361 = vmatprep.subr.mxu0 0.0
        %8362 = vmatpush1.msra.mxu0 0.0
        %8363 = vmatprep.subr.mxu0 0.0
        %8364 = vmatpush1.msra.mxu0 0.0
        %8365 = vmatprep.subr.mxu0 0.0
        %8366 = vmatpush1.msra.mxu0 0.0
        %8367 = vmatprep.subr.mxu0 0.0
        %8368 = vmatpush1.msra.mxu0 0.0
        %8369 = vmatprep.subr.mxu0 0.0
        %8370 = vmatpush1.msra.mxu0 0.0
        %8371 = vmatprep.subr.mxu0 0.0
        %8372 = vmatpush1.msra.mxu0 0.0
        %8373 = vmatprep.subr.mxu0 0.0
        %8374 = vmatpush1.msra.mxu0 0.0
        %8375 = vmatprep.subr.mxu0 0.0
        %8376 = vmatpush1.msra.mxu0 0.0
        %8377 = vmatprep.subr.mxu0 0.0
        %8378 = vmatpush1.msra.mxu0 0.0
        %8379 = vmatprep.subr.mxu0 0.0
        %8380 = vmatpush1.msra.mxu0 0.0
        %8381 = vmatprep.subr.mxu0 0.0
        %8382 = vmatpush1.msra.mxu0 0.0
        %8383 = vmatprep.subr.mxu0 0.0
        %8384 = vmatpush1.msra.mxu0 0.0
        %8385 = vmatprep.subr.mxu0 0.0
        %8386 = vmatpush1.msra.mxu0 0.0
        %8387 = vmatprep.subr.mxu0 0.0
        %8388 = vmatpush1.msra.mxu0 0.0
        %8389 = vmatprep.subr.mxu0 0.0
        %8390 = vmatpush1.msra.mxu0 0.0
        %8391 = vmatprep.subr.mxu0 0.0
        %8392 = vmatpush1.msra.mxu0 0.0
        %8393 = vmatprep.subr.mxu0 0.0
        %8394 = vmatpush1.msra.mxu0 0.0
        %8395 = vmatprep.mubr.f32.mxu0 0.0
        %v8396 = vand.u32 %v7277, 4294901760
        %v8397 = vsub.f32 %v7277, %v8396
        %8398 = vmatmul.mubr.f32.gmra.mrb[0].mxu0 %v8397
        %v8399 = vpop.f32.mrb[0].mxu0
        %v8400 = vadd.f32 %v8326, %v8399
        %v8401 = vpop.f32.mrb[0].mxu0
        %8402 = vdwg.mxu0
        %8403 = vmatprep.subr.mxu0 0.0
        %8404 = vmatpush1.msra.mxu0 %v158
        %8405 = vmatprep.subr.mxu0 0.0
        %8406 = vmatpush1.msra.mxu0 %v159
        %8407 = vmatprep.subr.mxu0 0.0
        %8408 = vmatpush1.msra.mxu0 0.0
        %8409 = vmatprep.subr.mxu0 0.0
        %8410 = vmatpush1.msra.mxu0 0.0
        %8411 = vmatprep.subr.mxu0 0.0
        %8412 = vmatpush1.msra.mxu0 0.0
        %8413 = vmatprep.subr.mxu0 0.0
        %8414 = vmatpush1.msra.mxu0 0.0
        %8415 = vmatprep.subr.mxu0 0.0
        %8416 = vmatpush1.msra.mxu0 0.0
        %8417 = vmatprep.subr.mxu0 0.0
        %8418 = vmatpush1.msra.mxu0 0.0
        %8419 = vmatprep.subr.mxu0 0.0
        %8420 = vmatpush1.msra.mxu0 0.0
        %8421 = vmatprep.subr.mxu0 0.0
        %8422 = vmatpush1.msra.mxu0 0.0
        %8423 = vmatprep.subr.mxu0 0.0
        %8424 = vmatpush1.msra.mxu0 0.0
        %8425 = vmatprep.subr.mxu0 0.0
        %8426 = vmatpush1.msra.mxu0 0.0
        %8427 = vmatprep.subr.mxu0 0.0
        %8428 = vmatpush1.msra.mxu0 0.0
        %8429 = vmatprep.subr.mxu0 0.0
        %8430 = vmatpush1.msra.mxu0 0.0
        %8431 = vmatprep.subr.mxu0 0.0
        %8432 = vmatpush1.msra.mxu0 0.0
        %8433 = vmatprep.subr.mxu0 0.0
        %8434 = vmatpush1.msra.mxu0 0.0
        %8435 = vmatprep.subr.mxu0 0.0
        %8436 = vmatpush1.msra.mxu0 0.0
        %8437 = vmatprep.subr.mxu0 0.0
        %8438 = vmatpush1.msra.mxu0 0.0
        %8439 = vmatprep.subr.mxu0 0.0
        %8440 = vmatpush1.msra.mxu0 0.0
        %8441 = vmatprep.subr.mxu0 0.0
        %8442 = vmatpush1.msra.mxu0 0.0
        %8443 = vmatprep.subr.mxu0 0.0
        %8444 = vmatpush1.msra.mxu0 0.0
        %8445 = vmatprep.subr.mxu0 0.0
        %8446 = vmatpush1.msra.mxu0 0.0
        %8447 = vmatprep.subr.mxu0 0.0
        %8448 = vmatpush1.msra.mxu0 0.0
        %8449 = vmatprep.subr.mxu0 0.0
        %8450 = vmatpush1.msra.mxu0 0.0
        %8451 = vmatprep.subr.mxu0 0.0
        %8452 = vmatpush1.msra.mxu0 0.0
        %8453 = vmatprep.subr.mxu0 0.0
        %8454 = vmatpush1.msra.mxu0 0.0
        %8455 = vmatprep.subr.mxu0 0.0
        %8456 = vmatpush1.msra.mxu0 0.0
        %8457 = vmatprep.subr.mxu0 0.0
        %8458 = vmatpush1.msra.mxu0 0.0
        %8459 = vmatprep.subr.mxu0 0.0
        %8460 = vmatpush1.msra.mxu0 0.0
        %8461 = vmatprep.subr.mxu0 0.0
        %8462 = vmatpush1.msra.mxu0 0.0
        %8463 = vmatprep.subr.mxu0 0.0
        %8464 = vmatpush1.msra.mxu0 0.0
        %8465 = vmatprep.subr.mxu0 0.0
        %8466 = vmatpush1.msra.mxu0 0.0
        %8467 = vmatprep.mubr.f32.mxu0 0.0
        %v8468 = vand.u32 %v7277, 4294901760
        %v8469 = vsub.f32 %v7277, %v8468
        %v8470 = vand.u32 %v8469, 4294901760
        %8471 = vmatmul.mubr.f32.gmra.mrb[0].mxu0 %v8470
        %v8472 = vpop.f32.mrb[0].mxu0
        %v8473 = vadd.f32 %v8400, %v8472
        %v8474 = vpop.f32.mrb[0].mxu0
        %8475 = vdwg.mxu0
        %8476 = vmatprep.subr.mxu0 0.0
        %v8477 = vsub.f32 %v158, %v158
        %v8478 = vand.u32 %v8477, 4294901760
        %8479 = vmatpush1.msra.mxu0 %v8478
        %8480 = vmatprep.subr.mxu0 0.0
        %v8481 = vsub.f32 %v159, %v159
        %v8482 = vand.u32 %v8481, 4294901760
        %8483 = vmatpush1.msra.mxu0 %v8482
        %8484 = vmatprep.subr.mxu0 0.0
        %8485 = vmatpush1.msra.mxu0 0.0
        %8486 = vmatprep.subr.mxu0 0.0
        %8487 = vmatpush1.msra.mxu0 0.0
        %8488 = vmatprep.subr.mxu0 0.0
        %8489 = vmatpush1.msra.mxu0 0.0
        %8490 = vmatprep.subr.mxu0 0.0
        %8491 = vmatpush1.msra.mxu0 0.0
        %8492 = vmatprep.subr.mxu0 0.0
        %8493 = vmatpush1.msra.mxu0 0.0
        %8494 = vmatprep.subr.mxu0 0.0
        %8495 = vmatpush1.msra.mxu0 0.0
        %8496 = vmatprep.subr.mxu0 0.0
        %8497 = vmatpush1.msra.mxu0 0.0
        %8498 = vmatprep.subr.mxu0 0.0
        %8499 = vmatpush1.msra.mxu0 0.0
        %8500 = vmatprep.subr.mxu0 0.0
        %8501 = vmatpush1.msra.mxu0 0.0
        %8502 = vmatprep.subr.mxu0 0.0
        %8503 = vmatpush1.msra.mxu0 0.0
        %8504 = vmatprep.subr.mxu0 0.0
        %8505 = vmatpush1.msra.mxu0 0.0
        %8506 = vmatprep.subr.mxu0 0.0
        %8507 = vmatpush1.msra.mxu0 0.0
        %8508 = vmatprep.subr.mxu0 0.0
        %8509 = vmatpush1.msra.mxu0 0.0
        %8510 = vmatprep.subr.mxu0 0.0
        %8511 = vmatpush1.msra.mxu0 0.0
        %8512 = vmatprep.subr.mxu0 0.0
        %8513 = vmatpush1.msra.mxu0 0.0
        %8514 = vmatprep.subr.mxu0 0.0
        %8515 = vmatpush1.msra.mxu0 0.0
        %8516 = vmatprep.subr.mxu0 0.0
        %8517 = vmatpush1.msra.mxu0 0.0
        %8518 = vmatprep.subr.mxu0 0.0
        %8519 = vmatpush1.msra.mxu0 0.0
        %8520 = vmatprep.subr.mxu0 0.0
        %8521 = vmatpush1.msra.mxu0 0.0
        %8522 = vmatprep.subr.mxu0 0.0
        %8523 = vmatpush1.msra.mxu0 0.0
        %8524 = vmatprep.subr.mxu0 0.0
        %8525 = vmatpush1.msra.mxu0 0.0
        %8526 = vmatprep.subr.mxu0 0.0
        %8527 = vmatpush1.msra.mxu0 0.0
        %8528 = vmatprep.subr.mxu0 0.0
        %8529 = vmatpush1.msra.mxu0 0.0
        %8530 = vmatprep.subr.mxu0 0.0
        %8531 = vmatpush1.msra.mxu0 0.0
        %8532 = vmatprep.subr.mxu0 0.0
        %8533 = vmatpush1.msra.mxu0 0.0
        %8534 = vmatprep.subr.mxu0 0.0
        %8535 = vmatpush1.msra.mxu0 0.0
        %8536 = vmatprep.subr.mxu0 0.0
        %8537 = vmatpush1.msra.mxu0 0.0
        %8538 = vmatprep.subr.mxu0 0.0
        %8539 = vmatpush1.msra.mxu0 0.0
        %8540 = vmatprep.subr.mxu0 0.0
        %8541 = vmatpush1.msra.mxu0 0.0
        %8542 = vmatprep.subr.mxu0 0.0
        %8543 = vmatpush1.msra.mxu0 0.0
        %8544 = vmatprep.mubr.f32.mxu0 0.0
        %v8545 = vand.u32 %v7277, 4294901760
        %8546 = vmatmul.mubr.f32.gmra.mrb[0].mxu0 %v8545
        %v8547 = vpop.f32.mrb[0].mxu0
        %v8548 = vadd.f32 %v8473, %v8547
        %v8549 = vpop.f32.mrb[0].mxu0
        %8550 = vdwg.mxu0
        %8551 = vmatprep.subr.mxu0 0.0
        %8552 = vmatpush1.msra.mxu0 %v158
        %8553 = vmatprep.subr.mxu0 0.0
        %8554 = vmatpush1.msra.mxu0 %v159
        %8555 = vmatprep.subr.mxu0 0.0
        %8556 = vmatpush1.msra.mxu0 0.0
        %8557 = vmatprep.subr.mxu0 0.0
        %8558 = vmatpush1.msra.mxu0 0.0
        %8559 = vmatprep.subr.mxu0 0.0
        %8560 = vmatpush1.msra.mxu0 0.0
        %8561 = vmatprep.subr.mxu0 0.0
        %8562 = vmatpush1.msra.mxu0 0.0
        %8563 = vmatprep.subr.mxu0 0.0
        %8564 = vmatpush1.msra.mxu0 0.0
        %8565 = vmatprep.subr.mxu0 0.0
        %8566 = vmatpush1.msra.mxu0 0.0
        %8567 = vmatprep.subr.mxu0 0.0
        %8568 = vmatpush1.msra.mxu0 0.0
        %8569 = vmatprep.subr.mxu0 0.0
        %8570 = vmatpush1.msra.mxu0 0.0
        %8571 = vmatprep.subr.mxu0 0.0
        %8572 = vmatpush1.msra.mxu0 0.0
        %8573 = vmatprep.subr.mxu0 0.0
        %8574 = vmatpush1.msra.mxu0 0.0
        %8575 = vmatprep.subr.mxu0 0.0
        %8576 = vmatpush1.msra.mxu0 0.0
        %8577 = vmatprep.subr.mxu0 0.0
        %8578 = vmatpush1.msra.mxu0 0.0
        %8579 = vmatprep.subr.mxu0 0.0
        %8580 = vmatpush1.msra.mxu0 0.0
        %8581 = vmatprep.subr.mxu0 0.0
        %8582 = vmatpush1.msra.mxu0 0.0
        %8583 = vmatprep.subr.mxu0 0.0
        %8584 = vmatpush1.msra.mxu0 0.0
        %8585 = vmatprep.subr.mxu0 0.0
        %8586 = vmatpush1.msra.mxu0 0.0
        %8587 = vmatprep.subr.mxu0 0.0
        %8588 = vmatpush1.msra.mxu0 0.0
        %8589 = vmatprep.subr.mxu0 0.0
        %8590 = vmatpush1.msra.mxu0 0.0
        %8591 = vmatprep.subr.mxu0 0.0
        %8592 = vmatpush1.msra.mxu0 0.0
        %8593 = vmatprep.subr.mxu0 0.0
        %8594 = vmatpush1.msra.mxu0 0.0
        %8595 = vmatprep.subr.mxu0 0.0
        %8596 = vmatpush1.msra.mxu0 0.0
        %8597 = vmatprep.subr.mxu0 0.0
        %8598 = vmatpush1.msra.mxu0 0.0
        %8599 = vmatprep.subr.mxu0 0.0
        %8600 = vmatpush1.msra.mxu0 0.0
        %8601 = vmatprep.subr.mxu0 0.0
        %8602 = vmatpush1.msra.mxu0 0.0
        %8603 = vmatprep.subr.mxu0 0.0
        %8604 = vmatpush1.msra.mxu0 0.0
        %8605 = vmatprep.subr.mxu0 0.0
        %8606 = vmatpush1.msra.mxu0 0.0
        %8607 = vmatprep.subr.mxu0 0.0
        %8608 = vmatpush1.msra.mxu0 0.0
        %8609 = vmatprep.subr.mxu0 0.0
        %8610 = vmatpush1.msra.mxu0 0.0
        %8611 = vmatprep.subr.mxu0 0.0
        %8612 = vmatpush1.msra.mxu0 0.0
        %8613 = vmatprep.subr.mxu0 0.0
        %8614 = vmatpush1.msra.mxu0 0.0
        %8615 = vmatprep.mubr.f32.mxu0 0.0
        %v8616 = vand.u32 %v7277, 4294901760
        %8617 = vmatmul.mubr.f32.gmra.mrb[0].mxu0 %v8616
        %v8618 = vpop.f32.mrb[0].mxu0
        %v8619 = vadd.f32 %v8548, %v8618
        %v8620 = vpop.f32.mrb[0].mxu0
        %8621 = vdwg.mxu0
        %v8622 = vsel %vm1550, %v8619, -3.4028235e+38
        %v8623 = vmax.f32 %v8174, %v8622
        %v8626 = vunpack.c.l.s4 1966171168
        %v8627 = vunpack.c.0.s8 %v8626
        %v8628 = vlaneseq
        %v8629 = vshrl.u32 %v8628, 7
        %v8630 = vsub.s32 %v8627, %v8629
        %v8631 = vrot.slane %v8623, %v8630
        %v8632 = vcombine.high %v8631, %v8631
        %v8634 = vunpack.c.l.s4 1966171168
        %v8635 = vunpack.c.0.s8 %v8634
        %v8636 = vlaneseq
        %v8637 = vshrl.u32 %v8636, 7
        %v8638 = vsub.s32 %v8635, %v8637
        %v8639 = vrot.slane %v8631, %v8638
        %v8641 = vunpack.c.l.s4 1966171168
        %v8642 = vunpack.c.0.s8 %v8641
        %v8643 = vlaneseq
        %v8644 = vshrl.u32 %v8643, 7
        %v8645 = vsub.s32 %v8642, %v8644
        %v8646 = vrot.slane %v8632, %v8645
        %v8647 = vcombine.high %v8639, %v8639
        %v8648 = vcombine.high %v8646, %v8646
        %8653 = vst.msk [vmem:[%s138 + $0x5] sm:$0x1] %vm1582, %v8639
        %8654 = vst.msk [vmem:[%s138 + $0xd] sm:$0x1] %vm1582, %v8646
        %8655 = vst.msk [vmem:[%s138 + $0x15] sm:$0x1] %vm1582, %v8647
        %8656 = vst.msk [vmem:[%s138 + $0x1d] sm:$0x1] %vm1582, %v8648
        %s8657 = smul.u32 4, %s15
        %p8658 = scmp.lt.s32.totalorder %s8657, 7
        %s8659 = scalar_select %p8658, %s8657, 7
        %s8660 = smul.addr %s8659, 8
        %s8661 = scalar_lea.vmem %s1, %s8660
        // Predicated region
        $region29: #{tpu_custom_call.1} parent=23 // pred_check
          %p8662 = pneg %p59
        $region30: #{tpu_custom_call.1} parent=23 // pred_check_branch
          %8664 = sbr.rel (%p8662) target = $region32
        $region31: #{tpu_custom_call.1} parent=23 // pred_region
          %s8665 = smul.u32 4, %s15
        $region32: #{tpu_custom_call.1} parent=23 // pred_fallthru
          _
      $region24: #{tpu_custom_call.1} parent=5 // pred_fallthru
        _
      %p8666 = scmp.le.s32.totalorder 2, %s10
      // Predicated region
      $region33: #{tpu_custom_call.1} parent=5 // pred_check
        %p8667 = pneg %p8666
      $region34: #{tpu_custom_call.1} parent=5 // pred_check_branch
        %8669 = sbr.rel (%p8667) target = $region36
      $region35: #{tpu_custom_call.1} parent=5 // pred_region
        %s8670 = ssub.s32 %s10, 2
        // Predicated region
        $region37: #{tpu_custom_call.1} parent=35 // pred_check
          %p8671 = pneg %p65
        $region38: #{tpu_custom_call.1} parent=35 // pred_check_branch
          %8673 = sbr.rel (%p8671) target = $region40
        $region39: #{tpu_custom_call.1} parent=35 // pred_region
          %s8674 = smul.u32 4, %s16
          %p8675 = scmp.lt.s32.totalorder %s8674, 7
          %s8676 = scalar_select %p8675, %s8674, 7
          %s8677 = smul.addr %s8676, 8
          %s8678 = scalar_lea.vmem %s1, %s8677
        $region40: #{tpu_custom_call.1} parent=35 // pred_fallthru
          _
      $region36: #{tpu_custom_call.1} parent=5 // pred_fallthru
        _
    $region6: #{tpu_custom_call.1} parent=1 // loop_footer
      %s14 = sadd.s32 1, %s10
    $region7: #{tpu_custom_call.1} parent=1 // loop_footer_branch
      %9 = sbr.rel target = $region3
    $region8: #{tpu_custom_call.1} parent=1 // loop_exit
      _
    %8679 = vsyncpa [#allocation3], 1
    %s8680 = scalar_lea.sflag [#allocation3], 1
    %8681 = vsyncpa %s8680, 1

</llo_original>
